<compile_context>
chip_gen: v7x
topology: tpu7x:2x2x1
jax: 0.10.0
libtpu: 0.0.40
codegen_flags: <defaults>
</compile_context>

<pallas_src>
import math

import numpy as np
import jax
import jax.numpy as jnp
from jax.experimental import pallas as pl
from jax.experimental.pallas import tpu as pltpu


# ----------------------------- sizes -----------------------------------------
C1, C1P = 6, 8          # conv1 out channels (real, lane stride per pixel)
C2, C2P = 16, 16        # conv2 out channels
W1P = 14                # pooled width after stage 1
W2P = 5                 # pooled width after stage 2
L1 = W1P * C1P          # 112 lanes: stage-1 activation row (w*8 + c)
L2 = W2P * C2P          # 80  lanes: stage-2 activation row (w*16 + c)
NF = 128                # lane-padded fc width


# ----------------------------- fused kernel ----------------------------------
def _lenet_kernel(x_ref, a1_ref, b1_ref, a2_ref, b2_ref,
                  w3_ref, b3_ref, w4_ref, b4_ref, w5_ref, b5_ref, out_ref):
    f32 = jnp.float32

    # ---- stage 1: conv1(5x5) + bias + ReLU + 2x2 max pool --------------------
    # x_ref[0, s, u, :] holds image row 4*u + s.  Produce the pooled feature
    # map split by pooled-row parity so stage 2 needs only contiguous slices.
    def stage1(row_off):                       # 0 -> pooled rows 0,2,..,12 ; 2 -> 1,3,..,13
        cands = []
        for q in range(2):                     # pool-window row offset
            for p in range(2):                 # pool-window col offset (baked into a1)
                acc = None
                for i in range(5):             # conv kernel row
                    m = row_off + q + i        # image row = 4*t + m
                    lhs = x_ref[0, m % 4, m // 4:m // 4 + 7, :]          # [7, 32]
                    t = jnp.dot(lhs, a1_ref[p, i], preferred_element_type=f32)
                    acc = t if acc is None else acc + t
                cands.append(acc)
        m_ = cands[0]
        for c in cands[1:]:
            m_ = jnp.maximum(m_, c)
        return jnp.maximum(m_ + b1_ref[...], 0.0)                        # [7, L1]

    p1e = stage1(0)
    p1o = stage1(2)
    p1 = (p1e, p1o)

    # ---- stage 2: conv2(5x5, 6ch) + bias + ReLU + 2x2 max pool ----------------
    cands = []
    for q in range(2):
        for p in range(2):
            acc = None
            for i in range(5):
                m = q + i                      # pooled-1 row = 2*h + m
                lhs = p1[m % 2][m // 2:m // 2 + 5, :]                    # [5, L1]
                t = jnp.dot(lhs, a2_ref[p, i], preferred_element_type=f32)
                acc = t if acc is None else acc + t
            cands.append(acc)
    m2 = cands[0]
    for c in cands[1:]:
        m2 = jnp.maximum(m2, c)
    p2 = jnp.maximum(m2 + b2_ref[...], 0.0)                              # [5, L2]

    # ---- stage 3: fc1 -> fc2 -> fc3 (all lane-padded to 128) ------------------
    acc = None
    for h in range(5):
        t = jnp.dot(p2[h:h + 1, :], w3_ref[h], preferred_element_type=f32)
        acc = t if acc is None else acc + t
    a3 = jnp.maximum(acc + b3_ref[...], 0.0)                             # [1, 128]
    a4 = jnp.maximum(jnp.dot(a3, w4_ref[...], preferred_element_type=f32)
                     + b4_ref[...], 0.0)                                 # [1, 128]
    logits = jnp.dot(a4, w5_ref[...], preferred_element_type=f32) + b5_ref[...]
    out_ref[0] = logits                                                  # lane-dense store


# ----------------------------- wrapper ----------------------------------------
def lenet_forward(x_nchw, packed):
    B = x_nchw.shape[0]
    # de-interleave image rows mod 4 (one tiny XLA copy) so the kernel only
    # ever takes contiguous row slices: x_d4[b, s, u, :] = x[b, 0, 4*u + s, :]
    x_d4 = x_nchw.reshape(B, 8, 4, 32).transpose(0, 2, 1, 3)             # [B,4,8,32]
    a1, b1, a2, b2, w3r, b3, w4p, b4, w5p, b5 = packed

    out = pl.pallas_call(
        _lenet_kernel,
        out_shape=jax.ShapeDtypeStruct((B, 1, NF), jnp.float32),
        grid=(B,),
        in_specs=[
            pl.BlockSpec((1, 4, 8, 32), lambda b: (b, 0, 0, 0)),
            pl.BlockSpec((2, 5, 32, L1), lambda b: (0, 0, 0, 0)),
            pl.BlockSpec((1, L1), lambda b: (0, 0)),
            pl.BlockSpec((2, 5, L1, L2), lambda b: (0, 0, 0, 0)),
            pl.BlockSpec((1, L2), lambda b: (0, 0)),
            pl.BlockSpec((5, L2, NF), lambda b: (0, 0, 0)),
            pl.BlockSpec((1, NF), lambda b: (0, 0)),
            pl.BlockSpec((NF, NF), lambda b: (0, 0)),
            pl.BlockSpec((1, NF), lambda b: (0, 0)),
            pl.BlockSpec((NF, NF), lambda b: (0, 0)),
            pl.BlockSpec((1, NF), lambda b: (0, 0)),
        ],
        out_specs=pl.BlockSpec((1, 1, NF), lambda b: (b, 0, 0)),
        compiler_params=pltpu.CompilerParams(dimension_semantics=("parallel",)),
    )(x_d4, a1, b1, a2, b2, w3r, b3, w4p, b4, w5p, b5)
    return out[:, 0, :10]


net_forward = jax.jit(lenet_forward)


# -------------------- one-time parameter repacking (host side) ----------------
def prepare_params(p):
    w1 = np.asarray(p["w1"]); b1 = np.asarray(p["b1"])
    w2 = np.asarray(p["w2"]); b2 = np.asarray(p["b2"])
    w3 = np.asarray(p["w3"]); b3 = np.asarray(p["b3"])
    w4 = np.asarray(p["w4"]); b4 = np.asarray(p["b4"])
    w5 = np.asarray(p["w5"]); b5 = np.asarray(p["b5"])

    # conv1 banded matrices: a1[par, i, col, w*8 + o] = w1[o,0,i, col-2w-par]
    a1 = np.zeros((2, 5, 32, L1), np.float32)
    for par in range(2):
        for i in range(5):
            for w in range(W1P):
                for j in range(5):
                    col = 2 * w + par + j
                    a1[par, i, col, w * C1P:w * C1P + C1] = w1[:, 0, i, j]
    b1row = np.zeros((1, L1), np.float32)
    for w in range(W1P):
        b1row[0, w * C1P:w * C1P + C1] = b1

    # conv2 banded matrices: a2[par, i, w*8 + c, v*16 + o] = w2[o,c,i, w-2v-par]
    a2 = np.zeros((2, 5, L1, L2), np.float32)
    for par in range(2):
        for i in range(5):
            for v in range(W2P):
                for j in range(5):
                    w = 2 * v + par + j
                    a2[par, i, w * C1P:w * C1P + C1,
                       v * C2P:v * C2P + C2] = w2[:, :, i, j].T
    b2row = np.zeros((1, L2), np.float32)
    for v in range(W2P):
        b2row[0, v * C2P:v * C2P + C2] = b2

    # fc1 rows permuted to the kernel's (h, w*16+o) feature order
    w3r = np.zeros((5, L2, NF), np.float32)
    for h in range(5):
        for w in range(5):
            for o in range(C2):
                w3r[h, w * C2P + o, :120] = w3[:, o * 25 + h * 5 + w]
    b3row = np.zeros((1, NF), np.float32); b3row[0, :120] = b3

    w4p = np.zeros((NF, NF), np.float32); w4p[:120, :84] = w4.T
    b4row = np.zeros((1, NF), np.float32); b4row[0, :84] = b4
    w5p = np.zeros((NF, NF), np.float32); w5p[:84, :10] = w5.T
    b5row = np.zeros((1, NF), np.float32); b5row[0, :10] = b5

    return tuple(jnp.asarray(t) for t in
                 (a1, b1row, a2, b2row, w3r, b3row, w4p, b4row, w5p, b5row))


# -------------------- deterministic parameter init (as in the PyTorch Net) ----
def xavier_uniform(key, shape, fan_in, fan_out, gain):
    bound = gain * math.sqrt(6.0 / (fan_in + fan_out))
    return jax.random.uniform(key, shape, jnp.float32, -bound, bound)


def bias_init(key, shape, fan_in):
    bound = 1.0 / math.sqrt(fan_in)
    return jax.random.uniform(key, shape, jnp.float32, -bound, bound)


def make_params(key):
    gain = math.sqrt(2.0)  # nn.init.calculate_gain('relu')
    ks = jax.random.split(key, 10)
    return {
        "w1": xavier_uniform(ks[0], (6, 1, 5, 5), 1 * 25, 6 * 25, gain),
        "b1": bias_init(ks[1], (6,), 1 * 25),
        "w2": xavier_uniform(ks[2], (16, 6, 5, 5), 6 * 25, 16 * 25, gain),
        "b2": bias_init(ks[3], (16,), 6 * 25),
        "w3": xavier_uniform(ks[4], (120, 400), 400, 120, gain),
        "b3": bias_init(ks[5], (120,), 400),
        "w4": xavier_uniform(ks[6], (84, 120), 120, 84, gain),
        "b4": bias_init(ks[7], (84,), 120),
        "w5": xavier_uniform(ks[8], (10, 84), 84, 10, gain),
        "b5": bias_init(ks[9], (10,), 84),
    }


# ----------------------------- pure-JAX reference ------------------------------
def reference(x, p):
    def conv(x, w, b):
        y = jax.lax.conv_general_dilated(
            x, w, (1, 1), "VALID", dimension_numbers=("NCHW", "OIHW", "NCHW"))
        return jax.nn.relu(y + b[None, :, None, None])

    def pool(x):
        B, C, H, W = x.shape
        return x.reshape(B, C, H // 2, 2, W // 2, 2).max(axis=(3, 5))

    y = pool(conv(x, p["w1"], p["b1"]))
    y = pool(conv(y, p["w2"], p["b2"]))
    y = y.reshape(y.shape[0], -1)
    y = jax.nn.relu(y @ p["w3"].T + p["b3"])
    y = jax.nn.relu(y @ p["w4"].T + p["b4"])
    return y @ p["w5"].T + p["b5"]


# ----------------------------- main --------------------------------------------
if __name__ == "__main__":
    key = jax.random.PRNGKey(0)
    kx, kp = jax.random.split(key)
    x = jax.random.normal(kx, (2, 1, 32, 32), jnp.float32)   # NCHW, like PyTorch
    params = make_params(kp)
    packed = prepare_params(params)                          # one-time repack

    out = net_forward(x, packed)
    out = jax.block_until_ready(out)
    assert out.shape == (2, 10)

    ref = jax.block_until_ready(reference(x, params))
    assert jnp.allclose(out, ref, rtol=1e-4, atol=1e-4), "mismatch vs pure-JAX reference"

    print("KERNEL_OK")
</pallas_src>

<mosaic_0001>
module attributes {stable_mosaic.version = 11 : i64} {
  func.func @_lenet_kernel(%arg0: i32, %arg1: memref<1x4x8x32xf32, #tpu.memory_space<vmem>>, %arg2: memref<2x5x32x112xf32, #tpu.memory_space<vmem>>, %arg3: memref<1x112xf32, #tpu.memory_space<vmem>>, %arg4: memref<2x5x112x80xf32, #tpu.memory_space<vmem>>, %arg5: memref<1x80xf32, #tpu.memory_space<vmem>>, %arg6: memref<5x80x128xf32, #tpu.memory_space<vmem>>, %arg7: memref<1x128xf32, #tpu.memory_space<vmem>>, %arg8: memref<128x128xf32, #tpu.memory_space<vmem>>, %arg9: memref<1x128xf32, #tpu.memory_space<vmem>>, %arg10: memref<128x128xf32, #tpu.memory_space<vmem>>, %arg11: memref<1x128xf32, #tpu.memory_space<vmem>>, %arg12: memref<1x1x128xf32, #tpu.memory_space<vmem>>) attributes {dimension_semantics = [#tpu.dimension_semantics<parallel>], iteration_bounds = array<i64: 2>, scalar_prefetch = 0 : i64, scratch_operands = 0 : i64, tpu.core_type = #tpu.core_type<tc>, window_params = [{transform_indices = @transform_0, window_bounds = array<i64: 1, 4, 8, 32>}, {pipeline_mode = #tpu.pipeline_mode<synchronous>, transform_indices = @transform_1, window_bounds = array<i64: 2, 5, 32, 112>}, {pipeline_mode = #tpu.pipeline_mode<synchronous>, transform_indices = @transform_2, window_bounds = array<i64: 1, 112>}, {pipeline_mode = #tpu.pipeline_mode<synchronous>, transform_indices = @transform_3, window_bounds = array<i64: 2, 5, 112, 80>}, {pipeline_mode = #tpu.pipeline_mode<synchronous>, transform_indices = @transform_4, window_bounds = array<i64: 1, 80>}, {pipeline_mode = #tpu.pipeline_mode<synchronous>, transform_indices = @transform_5, window_bounds = array<i64: 5, 80, 128>}, {pipeline_mode = #tpu.pipeline_mode<synchronous>, transform_indices = @transform_6, window_bounds = array<i64: 1, 128>}, {pipeline_mode = #tpu.pipeline_mode<synchronous>, transform_indices = @transform_7, window_bounds = array<i64: 128, 128>}, {pipeline_mode = #tpu.pipeline_mode<synchronous>, transform_indices = @transform_8, window_bounds = array<i64: 1, 128>}, {pipeline_mode = #tpu.pipeline_mode<synchronous>, transform_indices = @transform_9, window_bounds = array<i64: 128, 128>}, {pipeline_mode = #tpu.pipeline_mode<synchronous>, transform_indices = @transform_10, window_bounds = array<i64: 1, 128>}, {transform_indices = @transform_11, window_bounds = array<i64: 1, 1, 128>}]} {
    %c0 = arith.constant 0 : index
    %c0_0 = arith.constant 0 : index
    %c0_1 = arith.constant 0 : index
    %c0_2 = arith.constant 0 : index
    %0 = vector.load %arg1[%c0, %c0_0, %c0_1, %c0_2] : memref<1x4x8x32xf32, #tpu.memory_space<vmem>>, vector<1x1x7x32xf32>
    %1 = vector.shape_cast %0 : vector<1x1x7x32xf32> to vector<7x32xf32>
    %c0_3 = arith.constant 0 : index
    %c0_4 = arith.constant 0 : index
    %c0_5 = arith.constant 0 : index
    %c0_6 = arith.constant 0 : index
    %2 = vector.load %arg2[%c0_3, %c0_4, %c0_5, %c0_6] : memref<2x5x32x112xf32, #tpu.memory_space<vmem>>, vector<1x1x32x112xf32>
    %3 = vector.shape_cast %2 : vector<1x1x32x112xf32> to vector<32x112xf32>
    %cst = arith.constant dense<0.000000e+00> : vector<7x112xf32>
    %4 = tpu.matmul %1, %3, %cst {dimension_numbers = #tpu.dot_dimension_numbers<[1], [0], [0], [1], [0, 0, 1, 1], [], []>} : vector<7x32xf32>, vector<32x112xf32>, vector<7x112xf32> -> vector<7x112xf32>
    %c0_7 = arith.constant 0 : index
    %c1 = arith.constant 1 : index
    %c0_8 = arith.constant 0 : index
    %c0_9 = arith.constant 0 : index
    %5 = vector.load %arg1[%c0_7, %c1, %c0_8, %c0_9] : memref<1x4x8x32xf32, #tpu.memory_space<vmem>>, vector<1x1x7x32xf32>
    %6 = vector.shape_cast %5 : vector<1x1x7x32xf32> to vector<7x32xf32>
    %c0_10 = arith.constant 0 : index
    %c1_11 = arith.constant 1 : index
    %c0_12 = arith.constant 0 : index
    %c0_13 = arith.constant 0 : index
    %7 = vector.load %arg2[%c0_10, %c1_11, %c0_12, %c0_13] : memref<2x5x32x112xf32, #tpu.memory_space<vmem>>, vector<1x1x32x112xf32>
    %8 = vector.shape_cast %7 : vector<1x1x32x112xf32> to vector<32x112xf32>
    %cst_14 = arith.constant dense<0.000000e+00> : vector<7x112xf32>
    %9 = tpu.matmul %6, %8, %cst_14 {dimension_numbers = #tpu.dot_dimension_numbers<[1], [0], [0], [1], [0, 0, 1, 1], [], []>} : vector<7x32xf32>, vector<32x112xf32>, vector<7x112xf32> -> vector<7x112xf32>
    %10 = arith.addf %4, %9 : vector<7x112xf32>
    %c0_15 = arith.constant 0 : index
    %c2 = arith.constant 2 : index
    %c0_16 = arith.constant 0 : index
    %c0_17 = arith.constant 0 : index
    %11 = vector.load %arg1[%c0_15, %c2, %c0_16, %c0_17] : memref<1x4x8x32xf32, #tpu.memory_space<vmem>>, vector<1x1x7x32xf32>
    %12 = vector.shape_cast %11 : vector<1x1x7x32xf32> to vector<7x32xf32>
    %c0_18 = arith.constant 0 : index
    %c2_19 = arith.constant 2 : index
    %c0_20 = arith.constant 0 : index
    %c0_21 = arith.constant 0 : index
    %13 = vector.load %arg2[%c0_18, %c2_19, %c0_20, %c0_21] : memref<2x5x32x112xf32, #tpu.memory_space<vmem>>, vector<1x1x32x112xf32>
    %14 = vector.shape_cast %13 : vector<1x1x32x112xf32> to vector<32x112xf32>
    %cst_22 = arith.constant dense<0.000000e+00> : vector<7x112xf32>
    %15 = tpu.matmul %12, %14, %cst_22 {dimension_numbers = #tpu.dot_dimension_numbers<[1], [0], [0], [1], [0, 0, 1, 1], [], []>} : vector<7x32xf32>, vector<32x112xf32>, vector<7x112xf32> -> vector<7x112xf32>
    %16 = arith.addf %10, %15 : vector<7x112xf32>
    %c0_23 = arith.constant 0 : index
    %c3 = arith.constant 3 : index
    %c0_24 = arith.constant 0 : index
    %c0_25 = arith.constant 0 : index
    %17 = vector.load %arg1[%c0_23, %c3, %c0_24, %c0_25] : memref<1x4x8x32xf32, #tpu.memory_space<vmem>>, vector<1x1x7x32xf32>
    %18 = vector.shape_cast %17 : vector<1x1x7x32xf32> to vector<7x32xf32>
    %c0_26 = arith.constant 0 : index
    %c3_27 = arith.constant 3 : index
    %c0_28 = arith.constant 0 : index
    %c0_29 = arith.constant 0 : index
    %19 = vector.load %arg2[%c0_26, %c3_27, %c0_28, %c0_29] : memref<2x5x32x112xf32, #tpu.memory_space<vmem>>, vector<1x1x32x112xf32>
    %20 = vector.shape_cast %19 : vector<1x1x32x112xf32> to vector<32x112xf32>
    %cst_30 = arith.constant dense<0.000000e+00> : vector<7x112xf32>
    %21 = tpu.matmul %18, %20, %cst_30 {dimension_numbers = #tpu.dot_dimension_numbers<[1], [0], [0], [1], [0, 0, 1, 1], [], []>} : vector<7x32xf32>, vector<32x112xf32>, vector<7x112xf32> -> vector<7x112xf32>
    %22 = arith.addf %16, %21 : vector<7x112xf32>
    %c0_31 = arith.constant 0 : index
    %c0_32 = arith.constant 0 : index
    %c1_33 = arith.constant 1 : index
    %c0_34 = arith.constant 0 : index
    %23 = vector.load %arg1[%c0_31, %c0_32, %c1_33, %c0_34] : memref<1x4x8x32xf32, #tpu.memory_space<vmem>>, vector<1x1x7x32xf32>
    %24 = vector.shape_cast %23 : vector<1x1x7x32xf32> to vector<7x32xf32>
    %c0_35 = arith.constant 0 : index
    %c4 = arith.constant 4 : index
    %c0_36 = arith.constant 0 : index
    %c0_37 = arith.constant 0 : index
    %25 = vector.load %arg2[%c0_35, %c4, %c0_36, %c0_37] : memref<2x5x32x112xf32, #tpu.memory_space<vmem>>, vector<1x1x32x112xf32>
    %26 = vector.shape_cast %25 : vector<1x1x32x112xf32> to vector<32x112xf32>
    %cst_38 = arith.constant dense<0.000000e+00> : vector<7x112xf32>
    %27 = tpu.matmul %24, %26, %cst_38 {dimension_numbers = #tpu.dot_dimension_numbers<[1], [0], [0], [1], [0, 0, 1, 1], [], []>} : vector<7x32xf32>, vector<32x112xf32>, vector<7x112xf32> -> vector<7x112xf32>
    %28 = arith.addf %22, %27 : vector<7x112xf32>
    %c0_39 = arith.constant 0 : index
    %c0_40 = arith.constant 0 : index
    %c0_41 = arith.constant 0 : index
    %c0_42 = arith.constant 0 : index
    %29 = vector.load %arg1[%c0_39, %c0_40, %c0_41, %c0_42] : memref<1x4x8x32xf32, #tpu.memory_space<vmem>>, vector<1x1x7x32xf32>
    %30 = vector.shape_cast %29 : vector<1x1x7x32xf32> to vector<7x32xf32>
    %c1_43 = arith.constant 1 : index
    %c0_44 = arith.constant 0 : index
    %c0_45 = arith.constant 0 : index
    %c0_46 = arith.constant 0 : index
    %31 = vector.load %arg2[%c1_43, %c0_44, %c0_45, %c0_46] : memref<2x5x32x112xf32, #tpu.memory_space<vmem>>, vector<1x1x32x112xf32>
    %32 = vector.shape_cast %31 : vector<1x1x32x112xf32> to vector<32x112xf32>
    %cst_47 = arith.constant dense<0.000000e+00> : vector<7x112xf32>
    %33 = tpu.matmul %30, %32, %cst_47 {dimension_numbers = #tpu.dot_dimension_numbers<[1], [0], [0], [1], [0, 0, 1, 1], [], []>} : vector<7x32xf32>, vector<32x112xf32>, vector<7x112xf32> -> vector<7x112xf32>
    %c0_48 = arith.constant 0 : index
    %c1_49 = arith.constant 1 : index
    %c0_50 = arith.constant 0 : index
    %c0_51 = arith.constant 0 : index
    %34 = vector.load %arg1[%c0_48, %c1_49, %c0_50, %c0_51] : memref<1x4x8x32xf32, #tpu.memory_space<vmem>>, vector<1x1x7x32xf32>
    %35 = vector.shape_cast %34 : vector<1x1x7x32xf32> to vector<7x32xf32>
    %c1_52 = arith.constant 1 : index
    %c1_53 = arith.constant 1 : index
    %c0_54 = arith.constant 0 : index
    %c0_55 = arith.constant 0 : index
    %36 = vector.load %arg2[%c1_52, %c1_53, %c0_54, %c0_55] : memref<2x5x32x112xf32, #tpu.memory_space<vmem>>, vector<1x1x32x112xf32>
    %37 = vector.shape_cast %36 : vector<1x1x32x112xf32> to vector<32x112xf32>
    %cst_56 = arith.constant dense<0.000000e+00> : vector<7x112xf32>
    %38 = tpu.matmul %35, %37, %cst_56 {dimension_numbers = #tpu.dot_dimension_numbers<[1], [0], [0], [1], [0, 0, 1, 1], [], []>} : vector<7x32xf32>, vector<32x112xf32>, vector<7x112xf32> -> vector<7x112xf32>
    %39 = arith.addf %33, %38 : vector<7x112xf32>
    %c0_57 = arith.constant 0 : index
    %c2_58 = arith.constant 2 : index
    %c0_59 = arith.constant 0 : index
    %c0_60 = arith.constant 0 : index
    %40 = vector.load %arg1[%c0_57, %c2_58, %c0_59, %c0_60] : memref<1x4x8x32xf32, #tpu.memory_space<vmem>>, vector<1x1x7x32xf32>
    %41 = vector.shape_cast %40 : vector<1x1x7x32xf32> to vector<7x32xf32>
    %c1_61 = arith.constant 1 : index
    %c2_62 = arith.constant 2 : index
    %c0_63 = arith.constant 0 : index
    %c0_64 = arith.constant 0 : index
    %42 = vector.load %arg2[%c1_61, %c2_62, %c0_63, %c0_64] : memref<2x5x32x112xf32, #tpu.memory_space<vmem>>, vector<1x1x32x112xf32>
    %43 = vector.shape_cast %42 : vector<1x1x32x112xf32> to vector<32x112xf32>
    %cst_65 = arith.constant dense<0.000000e+00> : vector<7x112xf32>
    %44 = tpu.matmul %41, %43, %cst_65 {dimension_numbers = #tpu.dot_dimension_numbers<[1], [0], [0], [1], [0, 0, 1, 1], [], []>} : vector<7x32xf32>, vector<32x112xf32>, vector<7x112xf32> -> vector<7x112xf32>
    %45 = arith.addf %39, %44 : vector<7x112xf32>
    %c0_66 = arith.constant 0 : index
    %c3_67 = arith.constant 3 : index
    %c0_68 = arith.constant 0 : index
    %c0_69 = arith.constant 0 : index
    %46 = vector.load %arg1[%c0_66, %c3_67, %c0_68, %c0_69] : memref<1x4x8x32xf32, #tpu.memory_space<vmem>>, vector<1x1x7x32xf32>
    %47 = vector.shape_cast %46 : vector<1x1x7x32xf32> to vector<7x32xf32>
    %c1_70 = arith.constant 1 : index
    %c3_71 = arith.constant 3 : index
    %c0_72 = arith.constant 0 : index
    %c0_73 = arith.constant 0 : index
    %48 = vector.load %arg2[%c1_70, %c3_71, %c0_72, %c0_73] : memref<2x5x32x112xf32, #tpu.memory_space<vmem>>, vector<1x1x32x112xf32>
    %49 = vector.shape_cast %48 : vector<1x1x32x112xf32> to vector<32x112xf32>
    %cst_74 = arith.constant dense<0.000000e+00> : vector<7x112xf32>
    %50 = tpu.matmul %47, %49, %cst_74 {dimension_numbers = #tpu.dot_dimension_numbers<[1], [0], [0], [1], [0, 0, 1, 1], [], []>} : vector<7x32xf32>, vector<32x112xf32>, vector<7x112xf32> -> vector<7x112xf32>
    %51 = arith.addf %45, %50 : vector<7x112xf32>
    %c0_75 = arith.constant 0 : index
    %c0_76 = arith.constant 0 : index
    %c1_77 = arith.constant 1 : index
    %c0_78 = arith.constant 0 : index
    %52 = vector.load %arg1[%c0_75, %c0_76, %c1_77, %c0_78] : memref<1x4x8x32xf32, #tpu.memory_space<vmem>>, vector<1x1x7x32xf32>
    %53 = vector.shape_cast %52 : vector<1x1x7x32xf32> to vector<7x32xf32>
    %c1_79 = arith.constant 1 : index
    %c4_80 = arith.constant 4 : index
    %c0_81 = arith.constant 0 : index
    %c0_82 = arith.constant 0 : index
    %54 = vector.load %arg2[%c1_79, %c4_80, %c0_81, %c0_82] : memref<2x5x32x112xf32, #tpu.memory_space<vmem>>, vector<1x1x32x112xf32>
    %55 = vector.shape_cast %54 : vector<1x1x32x112xf32> to vector<32x112xf32>
    %cst_83 = arith.constant dense<0.000000e+00> : vector<7x112xf32>
    %56 = tpu.matmul %53, %55, %cst_83 {dimension_numbers = #tpu.dot_dimension_numbers<[1], [0], [0], [1], [0, 0, 1, 1], [], []>} : vector<7x32xf32>, vector<32x112xf32>, vector<7x112xf32> -> vector<7x112xf32>
    %57 = arith.addf %51, %56 : vector<7x112xf32>
    %c0_84 = arith.constant 0 : index
    %c1_85 = arith.constant 1 : index
    %c0_86 = arith.constant 0 : index
    %c0_87 = arith.constant 0 : index
    %58 = vector.load %arg1[%c0_84, %c1_85, %c0_86, %c0_87] : memref<1x4x8x32xf32, #tpu.memory_space<vmem>>, vector<1x1x7x32xf32>
    %59 = vector.shape_cast %58 : vector<1x1x7x32xf32> to vector<7x32xf32>
    %c0_88 = arith.constant 0 : index
    %c0_89 = arith.constant 0 : index
    %c0_90 = arith.constant 0 : index
    %c0_91 = arith.constant 0 : index
    %60 = vector.load %arg2[%c0_88, %c0_89, %c0_90, %c0_91] : memref<2x5x32x112xf32, #tpu.memory_space<vmem>>, vector<1x1x32x112xf32>
    %61 = vector.shape_cast %60 : vector<1x1x32x112xf32> to vector<32x112xf32>
    %cst_92 = arith.constant dense<0.000000e+00> : vector<7x112xf32>
    %62 = tpu.matmul %59, %61, %cst_92 {dimension_numbers = #tpu.dot_dimension_numbers<[1], [0], [0], [1], [0, 0, 1, 1], [], []>} : vector<7x32xf32>, vector<32x112xf32>, vector<7x112xf32> -> vector<7x112xf32>
    %c0_93 = arith.constant 0 : index
    %c2_94 = arith.constant 2 : index
    %c0_95 = arith.constant 0 : index
    %c0_96 = arith.constant 0 : index
    %63 = vector.load %arg1[%c0_93, %c2_94, %c0_95, %c0_96] : memref<1x4x8x32xf32, #tpu.memory_space<vmem>>, vector<1x1x7x32xf32>
    %64 = vector.shape_cast %63 : vector<1x1x7x32xf32> to vector<7x32xf32>
    %c0_97 = arith.constant 0 : index
    %c1_98 = arith.constant 1 : index
    %c0_99 = arith.constant 0 : index
    %c0_100 = arith.constant 0 : index
    %65 = vector.load %arg2[%c0_97, %c1_98, %c0_99, %c0_100] : memref<2x5x32x112xf32, #tpu.memory_space<vmem>>, vector<1x1x32x112xf32>
    %66 = vector.shape_cast %65 : vector<1x1x32x112xf32> to vector<32x112xf32>
    %cst_101 = arith.constant dense<0.000000e+00> : vector<7x112xf32>
    %67 = tpu.matmul %64, %66, %cst_101 {dimension_numbers = #tpu.dot_dimension_numbers<[1], [0], [0], [1], [0, 0, 1, 1], [], []>} : vector<7x32xf32>, vector<32x112xf32>, vector<7x112xf32> -> vector<7x112xf32>
    %68 = arith.addf %62, %67 : vector<7x112xf32>
    %c0_102 = arith.constant 0 : index
    %c3_103 = arith.constant 3 : index
    %c0_104 = arith.constant 0 : index
    %c0_105 = arith.constant 0 : index
    %69 = vector.load %arg1[%c0_102, %c3_103, %c0_104, %c0_105] : memref<1x4x8x32xf32, #tpu.memory_space<vmem>>, vector<1x1x7x32xf32>
    %70 = vector.shape_cast %69 : vector<1x1x7x32xf32> to vector<7x32xf32>
    %c0_106 = arith.constant 0 : index
    %c2_107 = arith.constant 2 : index
    %c0_108 = arith.constant 0 : index
    %c0_109 = arith.constant 0 : index
    %71 = vector.load %arg2[%c0_106, %c2_107, %c0_108, %c0_109] : memref<2x5x32x112xf32, #tpu.memory_space<vmem>>, vector<1x1x32x112xf32>
    %72 = vector.shape_cast %71 : vector<1x1x32x112xf32> to vector<32x112xf32>
    %cst_110 = arith.constant dense<0.000000e+00> : vector<7x112xf32>
    %73 = tpu.matmul %70, %72, %cst_110 {dimension_numbers = #tpu.dot_dimension_numbers<[1], [0], [0], [1], [0, 0, 1, 1], [], []>} : vector<7x32xf32>, vector<32x112xf32>, vector<7x112xf32> -> vector<7x112xf32>
    %74 = arith.addf %68, %73 : vector<7x112xf32>
    %c0_111 = arith.constant 0 : index
    %c0_112 = arith.constant 0 : index
    %c1_113 = arith.constant 1 : index
    %c0_114 = arith.constant 0 : index
    %75 = vector.load %arg1[%c0_111, %c0_112, %c1_113, %c0_114] : memref<1x4x8x32xf32, #tpu.memory_space<vmem>>, vector<1x1x7x32xf32>
    %76 = vector.shape_cast %75 : vector<1x1x7x32xf32> to vector<7x32xf32>
    %c0_115 = arith.constant 0 : index
    %c3_116 = arith.constant 3 : index
    %c0_117 = arith.constant 0 : index
    %c0_118 = arith.constant 0 : index
    %77 = vector.load %arg2[%c0_115, %c3_116, %c0_117, %c0_118] : memref<2x5x32x112xf32, #tpu.memory_space<vmem>>, vector<1x1x32x112xf32>
    %78 = vector.shape_cast %77 : vector<1x1x32x112xf32> to vector<32x112xf32>
    %cst_119 = arith.constant dense<0.000000e+00> : vector<7x112xf32>
    %79 = tpu.matmul %76, %78, %cst_119 {dimension_numbers = #tpu.dot_dimension_numbers<[1], [0], [0], [1], [0, 0, 1, 1], [], []>} : vector<7x32xf32>, vector<32x112xf32>, vector<7x112xf32> -> vector<7x112xf32>
    %80 = arith.addf %74, %79 : vector<7x112xf32>
    %c0_120 = arith.constant 0 : index
    %c1_121 = arith.constant 1 : index
    %c1_122 = arith.constant 1 : index
    %c0_123 = arith.constant 0 : index
    %81 = vector.load %arg1[%c0_120, %c1_121, %c1_122, %c0_123] : memref<1x4x8x32xf32, #tpu.memory_space<vmem>>, vector<1x1x7x32xf32>
    %82 = vector.shape_cast %81 : vector<1x1x7x32xf32> to vector<7x32xf32>
    %c0_124 = arith.constant 0 : index
    %c4_125 = arith.constant 4 : index
    %c0_126 = arith.constant 0 : index
    %c0_127 = arith.constant 0 : index
    %83 = vector.load %arg2[%c0_124, %c4_125, %c0_126, %c0_127] : memref<2x5x32x112xf32, #tpu.memory_space<vmem>>, vector<1x1x32x112xf32>
    %84 = vector.shape_cast %83 : vector<1x1x32x112xf32> to vector<32x112xf32>
    %cst_128 = arith.constant dense<0.000000e+00> : vector<7x112xf32>
    %85 = tpu.matmul %82, %84, %cst_128 {dimension_numbers = #tpu.dot_dimension_numbers<[1], [0], [0], [1], [0, 0, 1, 1], [], []>} : vector<7x32xf32>, vector<32x112xf32>, vector<7x112xf32> -> vector<7x112xf32>
    %86 = arith.addf %80, %85 : vector<7x112xf32>
    %c0_129 = arith.constant 0 : index
    %c1_130 = arith.constant 1 : index
    %c0_131 = arith.constant 0 : index
    %c0_132 = arith.constant 0 : index
    %87 = vector.load %arg1[%c0_129, %c1_130, %c0_131, %c0_132] : memref<1x4x8x32xf32, #tpu.memory_space<vmem>>, vector<1x1x7x32xf32>
    %88 = vector.shape_cast %87 : vector<1x1x7x32xf32> to vector<7x32xf32>
    %c1_133 = arith.constant 1 : index
    %c0_134 = arith.constant 0 : index
    %c0_135 = arith.constant 0 : index
    %c0_136 = arith.constant 0 : index
    %89 = vector.load %arg2[%c1_133, %c0_134, %c0_135, %c0_136] : memref<2x5x32x112xf32, #tpu.memory_space<vmem>>, vector<1x1x32x112xf32>
    %90 = vector.shape_cast %89 : vector<1x1x32x112xf32> to vector<32x112xf32>
    %cst_137 = arith.constant dense<0.000000e+00> : vector<7x112xf32>
    %91 = tpu.matmul %88, %90, %cst_137 {dimension_numbers = #tpu.dot_dimension_numbers<[1], [0], [0], [1], [0, 0, 1, 1], [], []>} : vector<7x32xf32>, vector<32x112xf32>, vector<7x112xf32> -> vector<7x112xf32>
    %c0_138 = arith.constant 0 : index
    %c2_139 = arith.constant 2 : index
    %c0_140 = arith.constant 0 : index
    %c0_141 = arith.constant 0 : index
    %92 = vector.load %arg1[%c0_138, %c2_139, %c0_140, %c0_141] : memref<1x4x8x32xf32, #tpu.memory_space<vmem>>, vector<1x1x7x32xf32>
    %93 = vector.shape_cast %92 : vector<1x1x7x32xf32> to vector<7x32xf32>
    %c1_142 = arith.constant 1 : index
    %c1_143 = arith.constant 1 : index
    %c0_144 = arith.constant 0 : index
    %c0_145 = arith.constant 0 : index
    %94 = vector.load %arg2[%c1_142, %c1_143, %c0_144, %c0_145] : memref<2x5x32x112xf32, #tpu.memory_space<vmem>>, vector<1x1x32x112xf32>
    %95 = vector.shape_cast %94 : vector<1x1x32x112xf32> to vector<32x112xf32>
    %cst_146 = arith.constant dense<0.000000e+00> : vector<7x112xf32>
    %96 = tpu.matmul %93, %95, %cst_146 {dimension_numbers = #tpu.dot_dimension_numbers<[1], [0], [0], [1], [0, 0, 1, 1], [], []>} : vector<7x32xf32>, vector<32x112xf32>, vector<7x112xf32> -> vector<7x112xf32>
    %97 = arith.addf %91, %96 : vector<7x112xf32>
    %c0_147 = arith.constant 0 : index
    %c3_148 = arith.constant 3 : index
    %c0_149 = arith.constant 0 : index
    %c0_150 = arith.constant 0 : index
    %98 = vector.load %arg1[%c0_147, %c3_148, %c0_149, %c0_150] : memref<1x4x8x32xf32, #tpu.memory_space<vmem>>, vector<1x1x7x32xf32>
    %99 = vector.shape_cast %98 : vector<1x1x7x32xf32> to vector<7x32xf32>
    %c1_151 = arith.constant 1 : index
    %c2_152 = arith.constant 2 : index
    %c0_153 = arith.constant 0 : index
    %c0_154 = arith.constant 0 : index
    %100 = vector.load %arg2[%c1_151, %c2_152, %c0_153, %c0_154] : memref<2x5x32x112xf32, #tpu.memory_space<vmem>>, vector<1x1x32x112xf32>
    %101 = vector.shape_cast %100 : vector<1x1x32x112xf32> to vector<32x112xf32>
    %cst_155 = arith.constant dense<0.000000e+00> : vector<7x112xf32>
    %102 = tpu.matmul %99, %101, %cst_155 {dimension_numbers = #tpu.dot_dimension_numbers<[1], [0], [0], [1], [0, 0, 1, 1], [], []>} : vector<7x32xf32>, vector<32x112xf32>, vector<7x112xf32> -> vector<7x112xf32>
    %103 = arith.addf %97, %102 : vector<7x112xf32>
    %c0_156 = arith.constant 0 : index
    %c0_157 = arith.constant 0 : index
    %c1_158 = arith.constant 1 : index
    %c0_159 = arith.constant 0 : index
    %104 = vector.load %arg1[%c0_156, %c0_157, %c1_158, %c0_159] : memref<1x4x8x32xf32, #tpu.memory_space<vmem>>, vector<1x1x7x32xf32>
    %105 = vector.shape_cast %104 : vector<1x1x7x32xf32> to vector<7x32xf32>
    %c1_160 = arith.constant 1 : index
    %c3_161 = arith.constant 3 : index
    %c0_162 = arith.constant 0 : index
    %c0_163 = arith.constant 0 : index
    %106 = vector.load %arg2[%c1_160, %c3_161, %c0_162, %c0_163] : memref<2x5x32x112xf32, #tpu.memory_space<vmem>>, vector<1x1x32x112xf32>
    %107 = vector.shape_cast %106 : vector<1x1x32x112xf32> to vector<32x112xf32>
    %cst_164 = arith.constant dense<0.000000e+00> : vector<7x112xf32>
    %108 = tpu.matmul %105, %107, %cst_164 {dimension_numbers = #tpu.dot_dimension_numbers<[1], [0], [0], [1], [0, 0, 1, 1], [], []>} : vector<7x32xf32>, vector<32x112xf32>, vector<7x112xf32> -> vector<7x112xf32>
    %109 = arith.addf %103, %108 : vector<7x112xf32>
    %c0_165 = arith.constant 0 : index
    %c1_166 = arith.constant 1 : index
    %c1_167 = arith.constant 1 : index
    %c0_168 = arith.constant 0 : index
    %110 = vector.load %arg1[%c0_165, %c1_166, %c1_167, %c0_168] : memref<1x4x8x32xf32, #tpu.memory_space<vmem>>, vector<1x1x7x32xf32>
    %111 = vector.shape_cast %110 : vector<1x1x7x32xf32> to vector<7x32xf32>
    %c1_169 = arith.constant 1 : index
    %c4_170 = arith.constant 4 : index
    %c0_171 = arith.constant 0 : index
    %c0_172 = arith.constant 0 : index
    %112 = vector.load %arg2[%c1_169, %c4_170, %c0_171, %c0_172] : memref<2x5x32x112xf32, #tpu.memory_space<vmem>>, vector<1x1x32x112xf32>
    %113 = vector.shape_cast %112 : vector<1x1x32x112xf32> to vector<32x112xf32>
    %cst_173 = arith.constant dense<0.000000e+00> : vector<7x112xf32>
    %114 = tpu.matmul %111, %113, %cst_173 {dimension_numbers = #tpu.dot_dimension_numbers<[1], [0], [0], [1], [0, 0, 1, 1], [], []>} : vector<7x32xf32>, vector<32x112xf32>, vector<7x112xf32> -> vector<7x112xf32>
    %115 = arith.addf %109, %114 : vector<7x112xf32>
    %116 = arith.maximumf %28, %57 : vector<7x112xf32>
    %117 = arith.maximumf %116, %86 : vector<7x112xf32>
    %118 = arith.maximumf %117, %115 : vector<7x112xf32>
    %c0_174 = arith.constant 0 : index
    %c0_175 = arith.constant 0 : index
    %119 = vector.load %arg3[%c0_174, %c0_175] : memref<1x112xf32, #tpu.memory_space<vmem>>, vector<1x112xf32>
    %120 = vector.broadcast %119 : vector<1x112xf32> to vector<7x112xf32>
    %121 = arith.addf %118, %120 : vector<7x112xf32>
    %cst_176 = arith.constant 0.000000e+00 : f32
    %122 = vector.broadcast %cst_176 : f32 to vector<7x112xf32>
    %123 = arith.maximumf %121, %122 : vector<7x112xf32>
    %c0_177 = arith.constant 0 : index
    %c2_178 = arith.constant 2 : index
    %c0_179 = arith.constant 0 : index
    %c0_180 = arith.constant 0 : index
    %124 = vector.load %arg1[%c0_177, %c2_178, %c0_179, %c0_180] : memref<1x4x8x32xf32, #tpu.memory_space<vmem>>, vector<1x1x7x32xf32>
    %125 = vector.shape_cast %124 : vector<1x1x7x32xf32> to vector<7x32xf32>
    %c0_181 = arith.constant 0 : index
    %c0_182 = arith.constant 0 : index
    %c0_183 = arith.constant 0 : index
    %c0_184 = arith.constant 0 : index
    %126 = vector.load %arg2[%c0_181, %c0_182, %c0_183, %c0_184] : memref<2x5x32x112xf32, #tpu.memory_space<vmem>>, vector<1x1x32x112xf32>
    %127 = vector.shape_cast %126 : vector<1x1x32x112xf32> to vector<32x112xf32>
    %cst_185 = arith.constant dense<0.000000e+00> : vector<7x112xf32>
    %128 = tpu.matmul %125, %127, %cst_185 {dimension_numbers = #tpu.dot_dimension_numbers<[1], [0], [0], [1], [0, 0, 1, 1], [], []>} : vector<7x32xf32>, vector<32x112xf32>, vector<7x112xf32> -> vector<7x112xf32>
    %c0_186 = arith.constant 0 : index
    %c3_187 = arith.constant 3 : index
    %c0_188 = arith.constant 0 : index
    %c0_189 = arith.constant 0 : index
    %129 = vector.load %arg1[%c0_186, %c3_187, %c0_188, %c0_189] : memref<1x4x8x32xf32, #tpu.memory_space<vmem>>, vector<1x1x7x32xf32>
    %130 = vector.shape_cast %129 : vector<1x1x7x32xf32> to vector<7x32xf32>
    %c0_190 = arith.constant 0 : index
    %c1_191 = arith.constant 1 : index
    %c0_192 = arith.constant 0 : index
    %c0_193 = arith.constant 0 : index
    %131 = vector.load %arg2[%c0_190, %c1_191, %c0_192, %c0_193] : memref<2x5x32x112xf32, #tpu.memory_space<vmem>>, vector<1x1x32x112xf32>
    %132 = vector.shape_cast %131 : vector<1x1x32x112xf32> to vector<32x112xf32>
    %cst_194 = arith.constant dense<0.000000e+00> : vector<7x112xf32>
    %133 = tpu.matmul %130, %132, %cst_194 {dimension_numbers = #tpu.dot_dimension_numbers<[1], [0], [0], [1], [0, 0, 1, 1], [], []>} : vector<7x32xf32>, vector<32x112xf32>, vector<7x112xf32> -> vector<7x112xf32>
    %134 = arith.addf %128, %133 : vector<7x112xf32>
    %c0_195 = arith.constant 0 : index
    %c0_196 = arith.constant 0 : index
    %c1_197 = arith.constant 1 : index
    %c0_198 = arith.constant 0 : index
    %135 = vector.load %arg1[%c0_195, %c0_196, %c1_197, %c0_198] : memref<1x4x8x32xf32, #tpu.memory_space<vmem>>, vector<1x1x7x32xf32>
    %136 = vector.shape_cast %135 : vector<1x1x7x32xf32> to vector<7x32xf32>
    %c0_199 = arith.constant 0 : index
    %c2_200 = arith.constant 2 : index
    %c0_201 = arith.constant 0 : index
    %c0_202 = arith.constant 0 : index
    %137 = vector.load %arg2[%c0_199, %c2_200, %c0_201, %c0_202] : memref<2x5x32x112xf32, #tpu.memory_space<vmem>>, vector<1x1x32x112xf32>
    %138 = vector.shape_cast %137 : vector<1x1x32x112xf32> to vector<32x112xf32>
    %cst_203 = arith.constant dense<0.000000e+00> : vector<7x112xf32>
    %139 = tpu.matmul %136, %138, %cst_203 {dimension_numbers = #tpu.dot_dimension_numbers<[1], [0], [0], [1], [0, 0, 1, 1], [], []>} : vector<7x32xf32>, vector<32x112xf32>, vector<7x112xf32> -> vector<7x112xf32>
    %140 = arith.addf %134, %139 : vector<7x112xf32>
    %c0_204 = arith.constant 0 : index
    %c1_205 = arith.constant 1 : index
    %c1_206 = arith.constant 1 : index
    %c0_207 = arith.constant 0 : index
    %141 = vector.load %arg1[%c0_204, %c1_205, %c1_206, %c0_207] : memref<1x4x8x32xf32, #tpu.memory_space<vmem>>, vector<1x1x7x32xf32>
    %142 = vector.shape_cast %141 : vector<1x1x7x32xf32> to vector<7x32xf32>
    %c0_208 = arith.constant 0 : index
    %c3_209 = arith.constant 3 : index
    %c0_210 = arith.constant 0 : index
    %c0_211 = arith.constant 0 : index
    %143 = vector.load %arg2[%c0_208, %c3_209, %c0_210, %c0_211] : memref<2x5x32x112xf32, #tpu.memory_space<vmem>>, vector<1x1x32x112xf32>
    %144 = vector.shape_cast %143 : vector<1x1x32x112xf32> to vector<32x112xf32>
    %cst_212 = arith.constant dense<0.000000e+00> : vector<7x112xf32>
    %145 = tpu.matmul %142, %144, %cst_212 {dimension_numbers = #tpu.dot_dimension_numbers<[1], [0], [0], [1], [0, 0, 1, 1], [], []>} : vector<7x32xf32>, vector<32x112xf32>, vector<7x112xf32> -> vector<7x112xf32>
    %146 = arith.addf %140, %145 : vector<7x112xf32>
    %c0_213 = arith.constant 0 : index
    %c2_214 = arith.constant 2 : index
    %c1_215 = arith.constant 1 : index
    %c0_216 = arith.constant 0 : index
    %147 = vector.load %arg1[%c0_213, %c2_214, %c1_215, %c0_216] : memref<1x4x8x32xf32, #tpu.memory_space<vmem>>, vector<1x1x7x32xf32>
    %148 = vector.shape_cast %147 : vector<1x1x7x32xf32> to vector<7x32xf32>
    %c0_217 = arith.constant 0 : index
    %c4_218 = arith.constant 4 : index
    %c0_219 = arith.constant 0 : index
    %c0_220 = arith.constant 0 : index
    %149 = vector.load %arg2[%c0_217, %c4_218, %c0_219, %c0_220] : memref<2x5x32x112xf32, #tpu.memory_space<vmem>>, vector<1x1x32x112xf32>
    %150 = vector.shape_cast %149 : vector<1x1x32x112xf32> to vector<32x112xf32>
    %cst_221 = arith.constant dense<0.000000e+00> : vector<7x112xf32>
    %151 = tpu.matmul %148, %150, %cst_221 {dimension_numbers = #tpu.dot_dimension_numbers<[1], [0], [0], [1], [0, 0, 1, 1], [], []>} : vector<7x32xf32>, vector<32x112xf32>, vector<7x112xf32> -> vector<7x112xf32>
    %152 = arith.addf %146, %151 : vector<7x112xf32>
    %c0_222 = arith.constant 0 : index
    %c2_223 = arith.constant 2 : index
    %c0_224 = arith.constant 0 : index
    %c0_225 = arith.constant 0 : index
    %153 = vector.load %arg1[%c0_222, %c2_223, %c0_224, %c0_225] : memref<1x4x8x32xf32, #tpu.memory_space<vmem>>, vector<1x1x7x32xf32>
    %154 = vector.shape_cast %153 : vector<1x1x7x32xf32> to vector<7x32xf32>
    %c1_226 = arith.constant 1 : index
    %c0_227 = arith.constant 0 : index
    %c0_228 = arith.constant 0 : index
    %c0_229 = arith.constant 0 : index
    %155 = vector.load %arg2[%c1_226, %c0_227, %c0_228, %c0_229] : memref<2x5x32x112xf32, #tpu.memory_space<vmem>>, vector<1x1x32x112xf32>
    %156 = vector.shape_cast %155 : vector<1x1x32x112xf32> to vector<32x112xf32>
    %cst_230 = arith.constant dense<0.000000e+00> : vector<7x112xf32>
    %157 = tpu.matmul %154, %156, %cst_230 {dimension_numbers = #tpu.dot_dimension_numbers<[1], [0], [0], [1], [0, 0, 1, 1], [], []>} : vector<7x32xf32>, vector<32x112xf32>, vector<7x112xf32> -> vector<7x112xf32>
    %c0_231 = arith.constant 0 : index
    %c3_232 = arith.constant 3 : index
    %c0_233 = arith.constant 0 : index
    %c0_234 = arith.constant 0 : index
    %158 = vector.load %arg1[%c0_231, %c3_232, %c0_233, %c0_234] : memref<1x4x8x32xf32, #tpu.memory_space<vmem>>, vector<1x1x7x32xf32>
    %159 = vector.shape_cast %158 : vector<1x1x7x32xf32> to vector<7x32xf32>
    %c1_235 = arith.constant 1 : index
    %c1_236 = arith.constant 1 : index
    %c0_237 = arith.constant 0 : index
    %c0_238 = arith.constant 0 : index
    %160 = vector.load %arg2[%c1_235, %c1_236, %c0_237, %c0_238] : memref<2x5x32x112xf32, #tpu.memory_space<vmem>>, vector<1x1x32x112xf32>
    %161 = vector.shape_cast %160 : vector<1x1x32x112xf32> to vector<32x112xf32>
    %cst_239 = arith.constant dense<0.000000e+00> : vector<7x112xf32>
    %162 = tpu.matmul %159, %161, %cst_239 {dimension_numbers = #tpu.dot_dimension_numbers<[1], [0], [0], [1], [0, 0, 1, 1], [], []>} : vector<7x32xf32>, vector<32x112xf32>, vector<7x112xf32> -> vector<7x112xf32>
    %163 = arith.addf %157, %162 : vector<7x112xf32>
    %c0_240 = arith.constant 0 : index
    %c0_241 = arith.constant 0 : index
    %c1_242 = arith.constant 1 : index
    %c0_243 = arith.constant 0 : index
    %164 = vector.load %arg1[%c0_240, %c0_241, %c1_242, %c0_243] : memref<1x4x8x32xf32, #tpu.memory_space<vmem>>, vector<1x1x7x32xf32>
    %165 = vector.shape_cast %164 : vector<1x1x7x32xf32> to vector<7x32xf32>
    %c1_244 = arith.constant 1 : index
    %c2_245 = arith.constant 2 : index
    %c0_246 = arith.constant 0 : index
    %c0_247 = arith.constant 0 : index
    %166 = vector.load %arg2[%c1_244, %c2_245, %c0_246, %c0_247] : memref<2x5x32x112xf32, #tpu.memory_space<vmem>>, vector<1x1x32x112xf32>
    %167 = vector.shape_cast %166 : vector<1x1x32x112xf32> to vector<32x112xf32>
    %cst_248 = arith.constant dense<0.000000e+00> : vector<7x112xf32>
    %168 = tpu.matmul %165, %167, %cst_248 {dimension_numbers = #tpu.dot_dimension_numbers<[1], [0], [0], [1], [0, 0, 1, 1], [], []>} : vector<7x32xf32>, vector<32x112xf32>, vector<7x112xf32> -> vector<7x112xf32>
    %169 = arith.addf %163, %168 : vector<7x112xf32>
    %c0_249 = arith.constant 0 : index
    %c1_250 = arith.constant 1 : index
    %c1_251 = arith.constant 1 : index
    %c0_252 = arith.constant 0 : index
    %170 = vector.load %arg1[%c0_249, %c1_250, %c1_251, %c0_252] : memref<1x4x8x32xf32, #tpu.memory_space<vmem>>, vector<1x1x7x32xf32>
    %171 = vector.shape_cast %170 : vector<1x1x7x32xf32> to vector<7x32xf32>
    %c1_253 = arith.constant 1 : index
    %c3_254 = arith.constant 3 : index
    %c0_255 = arith.constant 0 : index
    %c0_256 = arith.constant 0 : index
    %172 = vector.load %arg2[%c1_253, %c3_254, %c0_255, %c0_256] : memref<2x5x32x112xf32, #tpu.memory_space<vmem>>, vector<1x1x32x112xf32>
    %173 = vector.shape_cast %172 : vector<1x1x32x112xf32> to vector<32x112xf32>
    %cst_257 = arith.constant dense<0.000000e+00> : vector<7x112xf32>
    %174 = tpu.matmul %171, %173, %cst_257 {dimension_numbers = #tpu.dot_dimension_numbers<[1], [0], [0], [1], [0, 0, 1, 1], [], []>} : vector<7x32xf32>, vector<32x112xf32>, vector<7x112xf32> -> vector<7x112xf32>
    %175 = arith.addf %169, %174 : vector<7x112xf32>
    %c0_258 = arith.constant 0 : index
    %c2_259 = arith.constant 2 : index
    %c1_260 = arith.constant 1 : index
    %c0_261 = arith.constant 0 : index
    %176 = vector.load %arg1[%c0_258, %c2_259, %c1_260, %c0_261] : memref<1x4x8x32xf32, #tpu.memory_space<vmem>>, vector<1x1x7x32xf32>
    %177 = vector.shape_cast %176 : vector<1x1x7x32xf32> to vector<7x32xf32>
    %c1_262 = arith.constant 1 : index
    %c4_263 = arith.constant 4 : index
    %c0_264 = arith.constant 0 : index
    %c0_265 = arith.constant 0 : index
    %178 = vector.load %arg2[%c1_262, %c4_263, %c0_264, %c0_265] : memref<2x5x32x112xf32, #tpu.memory_space<vmem>>, vector<1x1x32x112xf32>
    %179 = vector.shape_cast %178 : vector<1x1x32x112xf32> to vector<32x112xf32>
    %cst_266 = arith.constant dense<0.000000e+00> : vector<7x112xf32>
    %180 = tpu.matmul %177, %179, %cst_266 {dimension_numbers = #tpu.dot_dimension_numbers<[1], [0], [0], [1], [0, 0, 1, 1], [], []>} : vector<7x32xf32>, vector<32x112xf32>, vector<7x112xf32> -> vector<7x112xf32>
    %181 = arith.addf %175, %180 : vector<7x112xf32>
    %c0_267 = arith.constant 0 : index
    %c3_268 = arith.constant 3 : index
    %c0_269 = arith.constant 0 : index
    %c0_270 = arith.constant 0 : index
    %182 = vector.load %arg1[%c0_267, %c3_268, %c0_269, %c0_270] : memref<1x4x8x32xf32, #tpu.memory_space<vmem>>, vector<1x1x7x32xf32>
    %183 = vector.shape_cast %182 : vector<1x1x7x32xf32> to vector<7x32xf32>
    %c0_271 = arith.constant 0 : index
    %c0_272 = arith.constant 0 : index
    %c0_273 = arith.constant 0 : index
    %c0_274 = arith.constant 0 : index
    %184 = vector.load %arg2[%c0_271, %c0_272, %c0_273, %c0_274] : memref<2x5x32x112xf32, #tpu.memory_space<vmem>>, vector<1x1x32x112xf32>
    %185 = vector.shape_cast %184 : vector<1x1x32x112xf32> to vector<32x112xf32>
    %cst_275 = arith.constant dense<0.000000e+00> : vector<7x112xf32>
    %186 = tpu.matmul %183, %185, %cst_275 {dimension_numbers = #tpu.dot_dimension_numbers<[1], [0], [0], [1], [0, 0, 1, 1], [], []>} : vector<7x32xf32>, vector<32x112xf32>, vector<7x112xf32> -> vector<7x112xf32>
    %c0_276 = arith.constant 0 : index
    %c0_277 = arith.constant 0 : index
    %c1_278 = arith.constant 1 : index
    %c0_279 = arith.constant 0 : index
    %187 = vector.load %arg1[%c0_276, %c0_277, %c1_278, %c0_279] : memref<1x4x8x32xf32, #tpu.memory_space<vmem>>, vector<1x1x7x32xf32>
    %188 = vector.shape_cast %187 : vector<1x1x7x32xf32> to vector<7x32xf32>
    %c0_280 = arith.constant 0 : index
    %c1_281 = arith.constant 1 : index
    %c0_282 = arith.constant 0 : index
    %c0_283 = arith.constant 0 : index
    %189 = vector.load %arg2[%c0_280, %c1_281, %c0_282, %c0_283] : memref<2x5x32x112xf32, #tpu.memory_space<vmem>>, vector<1x1x32x112xf32>
    %190 = vector.shape_cast %189 : vector<1x1x32x112xf32> to vector<32x112xf32>
    %cst_284 = arith.constant dense<0.000000e+00> : vector<7x112xf32>
    %191 = tpu.matmul %188, %190, %cst_284 {dimension_numbers = #tpu.dot_dimension_numbers<[1], [0], [0], [1], [0, 0, 1, 1], [], []>} : vector<7x32xf32>, vector<32x112xf32>, vector<7x112xf32> -> vector<7x112xf32>
    %192 = arith.addf %186, %191 : vector<7x112xf32>
    %c0_285 = arith.constant 0 : index
    %c1_286 = arith.constant 1 : index
    %c1_287 = arith.constant 1 : index
    %c0_288 = arith.constant 0 : index
    %193 = vector.load %arg1[%c0_285, %c1_286, %c1_287, %c0_288] : memref<1x4x8x32xf32, #tpu.memory_space<vmem>>, vector<1x1x7x32xf32>
    %194 = vector.shape_cast %193 : vector<1x1x7x32xf32> to vector<7x32xf32>
    %c0_289 = arith.constant 0 : index
    %c2_290 = arith.constant 2 : index
    %c0_291 = arith.constant 0 : index
    %c0_292 = arith.constant 0 : index
    %195 = vector.load %arg2[%c0_289, %c2_290, %c0_291, %c0_292] : memref<2x5x32x112xf32, #tpu.memory_space<vmem>>, vector<1x1x32x112xf32>
    %196 = vector.shape_cast %195 : vector<1x1x32x112xf32> to vector<32x112xf32>
    %cst_293 = arith.constant dense<0.000000e+00> : vector<7x112xf32>
    %197 = tpu.matmul %194, %196, %cst_293 {dimension_numbers = #tpu.dot_dimension_numbers<[1], [0], [0], [1], [0, 0, 1, 1], [], []>} : vector<7x32xf32>, vector<32x112xf32>, vector<7x112xf32> -> vector<7x112xf32>
    %198 = arith.addf %192, %197 : vector<7x112xf32>
    %c0_294 = arith.constant 0 : index
    %c2_295 = arith.constant 2 : index
    %c1_296 = arith.constant 1 : index
    %c0_297 = arith.constant 0 : index
    %199 = vector.load %arg1[%c0_294, %c2_295, %c1_296, %c0_297] : memref<1x4x8x32xf32, #tpu.memory_space<vmem>>, vector<1x1x7x32xf32>
    %200 = vector.shape_cast %199 : vector<1x1x7x32xf32> to vector<7x32xf32>
    %c0_298 = arith.constant 0 : index
    %c3_299 = arith.constant 3 : index
    %c0_300 = arith.constant 0 : index
    %c0_301 = arith.constant 0 : index
    %201 = vector.load %arg2[%c0_298, %c3_299, %c0_300, %c0_301] : memref<2x5x32x112xf32, #tpu.memory_space<vmem>>, vector<1x1x32x112xf32>
    %202 = vector.shape_cast %201 : vector<1x1x32x112xf32> to vector<32x112xf32>
    %cst_302 = arith.constant dense<0.000000e+00> : vector<7x112xf32>
    %203 = tpu.matmul %200, %202, %cst_302 {dimension_numbers = #tpu.dot_dimension_numbers<[1], [0], [0], [1], [0, 0, 1, 1], [], []>} : vector<7x32xf32>, vector<32x112xf32>, vector<7x112xf32> -> vector<7x112xf32>
    %204 = arith.addf %198, %203 : vector<7x112xf32>
    %c0_303 = arith.constant 0 : index
    %c3_304 = arith.constant 3 : index
    %c1_305 = arith.constant 1 : index
    %c0_306 = arith.constant 0 : index
    %205 = vector.load %arg1[%c0_303, %c3_304, %c1_305, %c0_306] : memref<1x4x8x32xf32, #tpu.memory_space<vmem>>, vector<1x1x7x32xf32>
    %206 = vector.shape_cast %205 : vector<1x1x7x32xf32> to vector<7x32xf32>
    %c0_307 = arith.constant 0 : index
    %c4_308 = arith.constant 4 : index
    %c0_309 = arith.constant 0 : index
    %c0_310 = arith.constant 0 : index
    %207 = vector.load %arg2[%c0_307, %c4_308, %c0_309, %c0_310] : memref<2x5x32x112xf32, #tpu.memory_space<vmem>>, vector<1x1x32x112xf32>
    %208 = vector.shape_cast %207 : vector<1x1x32x112xf32> to vector<32x112xf32>
    %cst_311 = arith.constant dense<0.000000e+00> : vector<7x112xf32>
    %209 = tpu.matmul %206, %208, %cst_311 {dimension_numbers = #tpu.dot_dimension_numbers<[1], [0], [0], [1], [0, 0, 1, 1], [], []>} : vector<7x32xf32>, vector<32x112xf32>, vector<7x112xf32> -> vector<7x112xf32>
    %210 = arith.addf %204, %209 : vector<7x112xf32>
    %c0_312 = arith.constant 0 : index
    %c3_313 = arith.constant 3 : index
    %c0_314 = arith.constant 0 : index
    %c0_315 = arith.constant 0 : index
    %211 = vector.load %arg1[%c0_312, %c3_313, %c0_314, %c0_315] : memref<1x4x8x32xf32, #tpu.memory_space<vmem>>, vector<1x1x7x32xf32>
    %212 = vector.shape_cast %211 : vector<1x1x7x32xf32> to vector<7x32xf32>
    %c1_316 = arith.constant 1 : index
    %c0_317 = arith.constant 0 : index
    %c0_318 = arith.constant 0 : index
    %c0_319 = arith.constant 0 : index
    %213 = vector.load %arg2[%c1_316, %c0_317, %c0_318, %c0_319] : memref<2x5x32x112xf32, #tpu.memory_space<vmem>>, vector<1x1x32x112xf32>
    %214 = vector.shape_cast %213 : vector<1x1x32x112xf32> to vector<32x112xf32>
    %cst_320 = arith.constant dense<0.000000e+00> : vector<7x112xf32>
    %215 = tpu.matmul %212, %214, %cst_320 {dimension_numbers = #tpu.dot_dimension_numbers<[1], [0], [0], [1], [0, 0, 1, 1], [], []>} : vector<7x32xf32>, vector<32x112xf32>, vector<7x112xf32> -> vector<7x112xf32>
    %c0_321 = arith.constant 0 : index
    %c0_322 = arith.constant 0 : index
    %c1_323 = arith.constant 1 : index
    %c0_324 = arith.constant 0 : index
    %216 = vector.load %arg1[%c0_321, %c0_322, %c1_323, %c0_324] : memref<1x4x8x32xf32, #tpu.memory_space<vmem>>, vector<1x1x7x32xf32>
    %217 = vector.shape_cast %216 : vector<1x1x7x32xf32> to vector<7x32xf32>
    %c1_325 = arith.constant 1 : index
    %c1_326 = arith.constant 1 : index
    %c0_327 = arith.constant 0 : index
    %c0_328 = arith.constant 0 : index
    %218 = vector.load %arg2[%c1_325, %c1_326, %c0_327, %c0_328] : memref<2x5x32x112xf32, #tpu.memory_space<vmem>>, vector<1x1x32x112xf32>
    %219 = vector.shape_cast %218 : vector<1x1x32x112xf32> to vector<32x112xf32>
    %cst_329 = arith.constant dense<0.000000e+00> : vector<7x112xf32>
    %220 = tpu.matmul %217, %219, %cst_329 {dimension_numbers = #tpu.dot_dimension_numbers<[1], [0], [0], [1], [0, 0, 1, 1], [], []>} : vector<7x32xf32>, vector<32x112xf32>, vector<7x112xf32> -> vector<7x112xf32>
    %221 = arith.addf %215, %220 : vector<7x112xf32>
    %c0_330 = arith.constant 0 : index
    %c1_331 = arith.constant 1 : index
    %c1_332 = arith.constant 1 : index
    %c0_333 = arith.constant 0 : index
    %222 = vector.load %arg1[%c0_330, %c1_331, %c1_332, %c0_333] : memref<1x4x8x32xf32, #tpu.memory_space<vmem>>, vector<1x1x7x32xf32>
    %223 = vector.shape_cast %222 : vector<1x1x7x32xf32> to vector<7x32xf32>
    %c1_334 = arith.constant 1 : index
    %c2_335 = arith.constant 2 : index
    %c0_336 = arith.constant 0 : index
    %c0_337 = arith.constant 0 : index
    %224 = vector.load %arg2[%c1_334, %c2_335, %c0_336, %c0_337] : memref<2x5x32x112xf32, #tpu.memory_space<vmem>>, vector<1x1x32x112xf32>
    %225 = vector.shape_cast %224 : vector<1x1x32x112xf32> to vector<32x112xf32>
    %cst_338 = arith.constant dense<0.000000e+00> : vector<7x112xf32>
    %226 = tpu.matmul %223, %225, %cst_338 {dimension_numbers = #tpu.dot_dimension_numbers<[1], [0], [0], [1], [0, 0, 1, 1], [], []>} : vector<7x32xf32>, vector<32x112xf32>, vector<7x112xf32> -> vector<7x112xf32>
    %227 = arith.addf %221, %226 : vector<7x112xf32>
    %c0_339 = arith.constant 0 : index
    %c2_340 = arith.constant 2 : index
    %c1_341 = arith.constant 1 : index
    %c0_342 = arith.constant 0 : index
    %228 = vector.load %arg1[%c0_339, %c2_340, %c1_341, %c0_342] : memref<1x4x8x32xf32, #tpu.memory_space<vmem>>, vector<1x1x7x32xf32>
    %229 = vector.shape_cast %228 : vector<1x1x7x32xf32> to vector<7x32xf32>
    %c1_343 = arith.constant 1 : index
    %c3_344 = arith.constant 3 : index
    %c0_345 = arith.constant 0 : index
    %c0_346 = arith.constant 0 : index
    %230 = vector.load %arg2[%c1_343, %c3_344, %c0_345, %c0_346] : memref<2x5x32x112xf32, #tpu.memory_space<vmem>>, vector<1x1x32x112xf32>
    %231 = vector.shape_cast %230 : vector<1x1x32x112xf32> to vector<32x112xf32>
    %cst_347 = arith.constant dense<0.000000e+00> : vector<7x112xf32>
    %232 = tpu.matmul %229, %231, %cst_347 {dimension_numbers = #tpu.dot_dimension_numbers<[1], [0], [0], [1], [0, 0, 1, 1], [], []>} : vector<7x32xf32>, vector<32x112xf32>, vector<7x112xf32> -> vector<7x112xf32>
    %233 = arith.addf %227, %232 : vector<7x112xf32>
    %c0_348 = arith.constant 0 : index
    %c3_349 = arith.constant 3 : index
    %c1_350 = arith.constant 1 : index
    %c0_351 = arith.constant 0 : index
    %234 = vector.load %arg1[%c0_348, %c3_349, %c1_350, %c0_351] : memref<1x4x8x32xf32, #tpu.memory_space<vmem>>, vector<1x1x7x32xf32>
    %235 = vector.shape_cast %234 : vector<1x1x7x32xf32> to vector<7x32xf32>
    %c1_352 = arith.constant 1 : index
    %c4_353 = arith.constant 4 : index
    %c0_354 = arith.constant 0 : index
    %c0_355 = arith.constant 0 : index
    %236 = vector.load %arg2[%c1_352, %c4_353, %c0_354, %c0_355] : memref<2x5x32x112xf32, #tpu.memory_space<vmem>>, vector<1x1x32x112xf32>
    %237 = vector.shape_cast %236 : vector<1x1x32x112xf32> to vector<32x112xf32>
    %cst_356 = arith.constant dense<0.000000e+00> : vector<7x112xf32>
    %238 = tpu.matmul %235, %237, %cst_356 {dimension_numbers = #tpu.dot_dimension_numbers<[1], [0], [0], [1], [0, 0, 1, 1], [], []>} : vector<7x32xf32>, vector<32x112xf32>, vector<7x112xf32> -> vector<7x112xf32>
    %239 = arith.addf %233, %238 : vector<7x112xf32>
    %240 = arith.maximumf %152, %181 : vector<7x112xf32>
    %241 = arith.maximumf %240, %210 : vector<7x112xf32>
    %242 = arith.maximumf %241, %239 : vector<7x112xf32>
    %c0_357 = arith.constant 0 : index
    %c0_358 = arith.constant 0 : index
    %243 = vector.load %arg3[%c0_357, %c0_358] : memref<1x112xf32, #tpu.memory_space<vmem>>, vector<1x112xf32>
    %244 = vector.broadcast %243 : vector<1x112xf32> to vector<7x112xf32>
    %245 = arith.addf %242, %244 : vector<7x112xf32>
    %cst_359 = arith.constant 0.000000e+00 : f32
    %246 = vector.broadcast %cst_359 : f32 to vector<7x112xf32>
    %247 = arith.maximumf %245, %246 : vector<7x112xf32>
    %248 = vector.extract_strided_slice %123 {offsets = [0, 0], sizes = [5, 112], strides = [1, 1]} : vector<7x112xf32> to vector<5x112xf32>
    %c0_360 = arith.constant 0 : index
    %c0_361 = arith.constant 0 : index
    %c0_362 = arith.constant 0 : index
    %c0_363 = arith.constant 0 : index
    %249 = vector.load %arg4[%c0_360, %c0_361, %c0_362, %c0_363] : memref<2x5x112x80xf32, #tpu.memory_space<vmem>>, vector<1x1x112x80xf32>
    %250 = vector.shape_cast %249 : vector<1x1x112x80xf32> to vector<112x80xf32>
    %cst_364 = arith.constant dense<0.000000e+00> : vector<5x80xf32>
    %251 = tpu.matmul %248, %250, %cst_364 {dimension_numbers = #tpu.dot_dimension_numbers<[1], [0], [0], [1], [0, 0, 1, 1], [], []>} : vector<5x112xf32>, vector<112x80xf32>, vector<5x80xf32> -> vector<5x80xf32>
    %252 = vector.extract_strided_slice %247 {offsets = [0, 0], sizes = [5, 112], strides = [1, 1]} : vector<7x112xf32> to vector<5x112xf32>
    %c0_365 = arith.constant 0 : index
    %c1_366 = arith.constant 1 : index
    %c0_367 = arith.constant 0 : index
    %c0_368 = arith.constant 0 : index
    %253 = vector.load %arg4[%c0_365, %c1_366, %c0_367, %c0_368] : memref<2x5x112x80xf32, #tpu.memory_space<vmem>>, vector<1x1x112x80xf32>
    %254 = vector.shape_cast %253 : vector<1x1x112x80xf32> to vector<112x80xf32>
    %cst_369 = arith.constant dense<0.000000e+00> : vector<5x80xf32>
    %255 = tpu.matmul %252, %254, %cst_369 {dimension_numbers = #tpu.dot_dimension_numbers<[1], [0], [0], [1], [0, 0, 1, 1], [], []>} : vector<5x112xf32>, vector<112x80xf32>, vector<5x80xf32> -> vector<5x80xf32>
    %256 = arith.addf %251, %255 : vector<5x80xf32>
    %257 = vector.extract_strided_slice %123 {offsets = [1, 0], sizes = [5, 112], strides = [1, 1]} : vector<7x112xf32> to vector<5x112xf32>
    %c0_370 = arith.constant 0 : index
    %c2_371 = arith.constant 2 : index
    %c0_372 = arith.constant 0 : index
    %c0_373 = arith.constant 0 : index
    %258 = vector.load %arg4[%c0_370, %c2_371, %c0_372, %c0_373] : memref<2x5x112x80xf32, #tpu.memory_space<vmem>>, vector<1x1x112x80xf32>
    %259 = vector.shape_cast %258 : vector<1x1x112x80xf32> to vector<112x80xf32>
    %cst_374 = arith.constant dense<0.000000e+00> : vector<5x80xf32>
    %260 = tpu.matmul %257, %259, %cst_374 {dimension_numbers = #tpu.dot_dimension_numbers<[1], [0], [0], [1], [0, 0, 1, 1], [], []>} : vector<5x112xf32>, vector<112x80xf32>, vector<5x80xf32> -> vector<5x80xf32>
    %261 = arith.addf %256, %260 : vector<5x80xf32>
    %262 = vector.extract_strided_slice %247 {offsets = [1, 0], sizes = [5, 112], strides = [1, 1]} : vector<7x112xf32> to vector<5x112xf32>
    %c0_375 = arith.constant 0 : index
    %c3_376 = arith.constant 3 : index
    %c0_377 = arith.constant 0 : index
    %c0_378 = arith.constant 0 : index
    %263 = vector.load %arg4[%c0_375, %c3_376, %c0_377, %c0_378] : memref<2x5x112x80xf32, #tpu.memory_space<vmem>>, vector<1x1x112x80xf32>
    %264 = vector.shape_cast %263 : vector<1x1x112x80xf32> to vector<112x80xf32>
    %cst_379 = arith.constant dense<0.000000e+00> : vector<5x80xf32>
    %265 = tpu.matmul %262, %264, %cst_379 {dimension_numbers = #tpu.dot_dimension_numbers<[1], [0], [0], [1], [0, 0, 1, 1], [], []>} : vector<5x112xf32>, vector<112x80xf32>, vector<5x80xf32> -> vector<5x80xf32>
    %266 = arith.addf %261, %265 : vector<5x80xf32>
    %267 = vector.extract_strided_slice %123 {offsets = [2, 0], sizes = [5, 112], strides = [1, 1]} : vector<7x112xf32> to vector<5x112xf32>
    %c0_380 = arith.constant 0 : index
    %c4_381 = arith.constant 4 : index
    %c0_382 = arith.constant 0 : index
    %c0_383 = arith.constant 0 : index
    %268 = vector.load %arg4[%c0_380, %c4_381, %c0_382, %c0_383] : memref<2x5x112x80xf32, #tpu.memory_space<vmem>>, vector<1x1x112x80xf32>
    %269 = vector.shape_cast %268 : vector<1x1x112x80xf32> to vector<112x80xf32>
    %cst_384 = arith.constant dense<0.000000e+00> : vector<5x80xf32>
    %270 = tpu.matmul %267, %269, %cst_384 {dimension_numbers = #tpu.dot_dimension_numbers<[1], [0], [0], [1], [0, 0, 1, 1], [], []>} : vector<5x112xf32>, vector<112x80xf32>, vector<5x80xf32> -> vector<5x80xf32>
    %271 = arith.addf %266, %270 : vector<5x80xf32>
    %272 = vector.extract_strided_slice %123 {offsets = [0, 0], sizes = [5, 112], strides = [1, 1]} : vector<7x112xf32> to vector<5x112xf32>
    %c1_385 = arith.constant 1 : index
    %c0_386 = arith.constant 0 : index
    %c0_387 = arith.constant 0 : index
    %c0_388 = arith.constant 0 : index
    %273 = vector.load %arg4[%c1_385, %c0_386, %c0_387, %c0_388] : memref<2x5x112x80xf32, #tpu.memory_space<vmem>>, vector<1x1x112x80xf32>
    %274 = vector.shape_cast %273 : vector<1x1x112x80xf32> to vector<112x80xf32>
    %cst_389 = arith.constant dense<0.000000e+00> : vector<5x80xf32>
    %275 = tpu.matmul %272, %274, %cst_389 {dimension_numbers = #tpu.dot_dimension_numbers<[1], [0], [0], [1], [0, 0, 1, 1], [], []>} : vector<5x112xf32>, vector<112x80xf32>, vector<5x80xf32> -> vector<5x80xf32>
    %276 = vector.extract_strided_slice %247 {offsets = [0, 0], sizes = [5, 112], strides = [1, 1]} : vector<7x112xf32> to vector<5x112xf32>
    %c1_390 = arith.constant 1 : index
    %c1_391 = arith.constant 1 : index
    %c0_392 = arith.constant 0 : index
    %c0_393 = arith.constant 0 : index
    %277 = vector.load %arg4[%c1_390, %c1_391, %c0_392, %c0_393] : memref<2x5x112x80xf32, #tpu.memory_space<vmem>>, vector<1x1x112x80xf32>
    %278 = vector.shape_cast %277 : vector<1x1x112x80xf32> to vector<112x80xf32>
    %cst_394 = arith.constant dense<0.000000e+00> : vector<5x80xf32>
    %279 = tpu.matmul %276, %278, %cst_394 {dimension_numbers = #tpu.dot_dimension_numbers<[1], [0], [0], [1], [0, 0, 1, 1], [], []>} : vector<5x112xf32>, vector<112x80xf32>, vector<5x80xf32> -> vector<5x80xf32>
    %280 = arith.addf %275, %279 : vector<5x80xf32>
    %281 = vector.extract_strided_slice %123 {offsets = [1, 0], sizes = [5, 112], strides = [1, 1]} : vector<7x112xf32> to vector<5x112xf32>
    %c1_395 = arith.constant 1 : index
    %c2_396 = arith.constant 2 : index
    %c0_397 = arith.constant 0 : index
    %c0_398 = arith.constant 0 : index
    %282 = vector.load %arg4[%c1_395, %c2_396, %c0_397, %c0_398] : memref<2x5x112x80xf32, #tpu.memory_space<vmem>>, vector<1x1x112x80xf32>
    %283 = vector.shape_cast %282 : vector<1x1x112x80xf32> to vector<112x80xf32>
    %cst_399 = arith.constant dense<0.000000e+00> : vector<5x80xf32>
    %284 = tpu.matmul %281, %283, %cst_399 {dimension_numbers = #tpu.dot_dimension_numbers<[1], [0], [0], [1], [0, 0, 1, 1], [], []>} : vector<5x112xf32>, vector<112x80xf32>, vector<5x80xf32> -> vector<5x80xf32>
    %285 = arith.addf %280, %284 : vector<5x80xf32>
    %286 = vector.extract_strided_slice %247 {offsets = [1, 0], sizes = [5, 112], strides = [1, 1]} : vector<7x112xf32> to vector<5x112xf32>
    %c1_400 = arith.constant 1 : index
    %c3_401 = arith.constant 3 : index
    %c0_402 = arith.constant 0 : index
    %c0_403 = arith.constant 0 : index
    %287 = vector.load %arg4[%c1_400, %c3_401, %c0_402, %c0_403] : memref<2x5x112x80xf32, #tpu.memory_space<vmem>>, vector<1x1x112x80xf32>
    %288 = vector.shape_cast %287 : vector<1x1x112x80xf32> to vector<112x80xf32>
    %cst_404 = arith.constant dense<0.000000e+00> : vector<5x80xf32>
    %289 = tpu.matmul %286, %288, %cst_404 {dimension_numbers = #tpu.dot_dimension_numbers<[1], [0], [0], [1], [0, 0, 1, 1], [], []>} : vector<5x112xf32>, vector<112x80xf32>, vector<5x80xf32> -> vector<5x80xf32>
    %290 = arith.addf %285, %289 : vector<5x80xf32>
    %291 = vector.extract_strided_slice %123 {offsets = [2, 0], sizes = [5, 112], strides = [1, 1]} : vector<7x112xf32> to vector<5x112xf32>
    %c1_405 = arith.constant 1 : index
    %c4_406 = arith.constant 4 : index
    %c0_407 = arith.constant 0 : index
    %c0_408 = arith.constant 0 : index
    %292 = vector.load %arg4[%c1_405, %c4_406, %c0_407, %c0_408] : memref<2x5x112x80xf32, #tpu.memory_space<vmem>>, vector<1x1x112x80xf32>
    %293 = vector.shape_cast %292 : vector<1x1x112x80xf32> to vector<112x80xf32>
    %cst_409 = arith.constant dense<0.000000e+00> : vector<5x80xf32>
    %294 = tpu.matmul %291, %293, %cst_409 {dimension_numbers = #tpu.dot_dimension_numbers<[1], [0], [0], [1], [0, 0, 1, 1], [], []>} : vector<5x112xf32>, vector<112x80xf32>, vector<5x80xf32> -> vector<5x80xf32>
    %295 = arith.addf %290, %294 : vector<5x80xf32>
    %296 = vector.extract_strided_slice %247 {offsets = [0, 0], sizes = [5, 112], strides = [1, 1]} : vector<7x112xf32> to vector<5x112xf32>
    %c0_410 = arith.constant 0 : index
    %c0_411 = arith.constant 0 : index
    %c0_412 = arith.constant 0 : index
    %c0_413 = arith.constant 0 : index
    %297 = vector.load %arg4[%c0_410, %c0_411, %c0_412, %c0_413] : memref<2x5x112x80xf32, #tpu.memory_space<vmem>>, vector<1x1x112x80xf32>
    %298 = vector.shape_cast %297 : vector<1x1x112x80xf32> to vector<112x80xf32>
    %cst_414 = arith.constant dense<0.000000e+00> : vector<5x80xf32>
    %299 = tpu.matmul %296, %298, %cst_414 {dimension_numbers = #tpu.dot_dimension_numbers<[1], [0], [0], [1], [0, 0, 1, 1], [], []>} : vector<5x112xf32>, vector<112x80xf32>, vector<5x80xf32> -> vector<5x80xf32>
    %300 = vector.extract_strided_slice %123 {offsets = [1, 0], sizes = [5, 112], strides = [1, 1]} : vector<7x112xf32> to vector<5x112xf32>
    %c0_415 = arith.constant 0 : index
    %c1_416 = arith.constant 1 : index
    %c0_417 = arith.constant 0 : index
    %c0_418 = arith.constant 0 : index
    %301 = vector.load %arg4[%c0_415, %c1_416, %c0_417, %c0_418] : memref<2x5x112x80xf32, #tpu.memory_space<vmem>>, vector<1x1x112x80xf32>
    %302 = vector.shape_cast %301 : vector<1x1x112x80xf32> to vector<112x80xf32>
    %cst_419 = arith.constant dense<0.000000e+00> : vector<5x80xf32>
    %303 = tpu.matmul %300, %302, %cst_419 {dimension_numbers = #tpu.dot_dimension_numbers<[1], [0], [0], [1], [0, 0, 1, 1], [], []>} : vector<5x112xf32>, vector<112x80xf32>, vector<5x80xf32> -> vector<5x80xf32>
    %304 = arith.addf %299, %303 : vector<5x80xf32>
    %305 = vector.extract_strided_slice %247 {offsets = [1, 0], sizes = [5, 112], strides = [1, 1]} : vector<7x112xf32> to vector<5x112xf32>
    %c0_420 = arith.constant 0 : index
    %c2_421 = arith.constant 2 : index
    %c0_422 = arith.constant 0 : index
    %c0_423 = arith.constant 0 : index
    %306 = vector.load %arg4[%c0_420, %c2_421, %c0_422, %c0_423] : memref<2x5x112x80xf32, #tpu.memory_space<vmem>>, vector<1x1x112x80xf32>
    %307 = vector.shape_cast %306 : vector<1x1x112x80xf32> to vector<112x80xf32>
    %cst_424 = arith.constant dense<0.000000e+00> : vector<5x80xf32>
    %308 = tpu.matmul %305, %307, %cst_424 {dimension_numbers = #tpu.dot_dimension_numbers<[1], [0], [0], [1], [0, 0, 1, 1], [], []>} : vector<5x112xf32>, vector<112x80xf32>, vector<5x80xf32> -> vector<5x80xf32>
    %309 = arith.addf %304, %308 : vector<5x80xf32>
    %310 = vector.extract_strided_slice %123 {offsets = [2, 0], sizes = [5, 112], strides = [1, 1]} : vector<7x112xf32> to vector<5x112xf32>
    %c0_425 = arith.constant 0 : index
    %c3_426 = arith.constant 3 : index
    %c0_427 = arith.constant 0 : index
    %c0_428 = arith.constant 0 : index
    %311 = vector.load %arg4[%c0_425, %c3_426, %c0_427, %c0_428] : memref<2x5x112x80xf32, #tpu.memory_space<vmem>>, vector<1x1x112x80xf32>
    %312 = vector.shape_cast %311 : vector<1x1x112x80xf32> to vector<112x80xf32>
    %cst_429 = arith.constant dense<0.000000e+00> : vector<5x80xf32>
    %313 = tpu.matmul %310, %312, %cst_429 {dimension_numbers = #tpu.dot_dimension_numbers<[1], [0], [0], [1], [0, 0, 1, 1], [], []>} : vector<5x112xf32>, vector<112x80xf32>, vector<5x80xf32> -> vector<5x80xf32>
    %314 = arith.addf %309, %313 : vector<5x80xf32>
    %315 = vector.extract_strided_slice %247 {offsets = [2, 0], sizes = [5, 112], strides = [1, 1]} : vector<7x112xf32> to vector<5x112xf32>
    %c0_430 = arith.constant 0 : index
    %c4_431 = arith.constant 4 : index
    %c0_432 = arith.constant 0 : index
    %c0_433 = arith.constant 0 : index
    %316 = vector.load %arg4[%c0_430, %c4_431, %c0_432, %c0_433] : memref<2x5x112x80xf32, #tpu.memory_space<vmem>>, vector<1x1x112x80xf32>
    %317 = vector.shape_cast %316 : vector<1x1x112x80xf32> to vector<112x80xf32>
    %cst_434 = arith.constant dense<0.000000e+00> : vector<5x80xf32>
    %318 = tpu.matmul %315, %317, %cst_434 {dimension_numbers = #tpu.dot_dimension_numbers<[1], [0], [0], [1], [0, 0, 1, 1], [], []>} : vector<5x112xf32>, vector<112x80xf32>, vector<5x80xf32> -> vector<5x80xf32>
    %319 = arith.addf %314, %318 : vector<5x80xf32>
    %320 = vector.extract_strided_slice %247 {offsets = [0, 0], sizes = [5, 112], strides = [1, 1]} : vector<7x112xf32> to vector<5x112xf32>
    %c1_435 = arith.constant 1 : index
    %c0_436 = arith.constant 0 : index
    %c0_437 = arith.constant 0 : index
    %c0_438 = arith.constant 0 : index
    %321 = vector.load %arg4[%c1_435, %c0_436, %c0_437, %c0_438] : memref<2x5x112x80xf32, #tpu.memory_space<vmem>>, vector<1x1x112x80xf32>
    %322 = vector.shape_cast %321 : vector<1x1x112x80xf32> to vector<112x80xf32>
    %cst_439 = arith.constant dense<0.000000e+00> : vector<5x80xf32>
    %323 = tpu.matmul %320, %322, %cst_439 {dimension_numbers = #tpu.dot_dimension_numbers<[1], [0], [0], [1], [0, 0, 1, 1], [], []>} : vector<5x112xf32>, vector<112x80xf32>, vector<5x80xf32> -> vector<5x80xf32>
    %324 = vector.extract_strided_slice %123 {offsets = [1, 0], sizes = [5, 112], strides = [1, 1]} : vector<7x112xf32> to vector<5x112xf32>
    %c1_440 = arith.constant 1 : index
    %c1_441 = arith.constant 1 : index
    %c0_442 = arith.constant 0 : index
    %c0_443 = arith.constant 0 : index
    %325 = vector.load %arg4[%c1_440, %c1_441, %c0_442, %c0_443] : memref<2x5x112x80xf32, #tpu.memory_space<vmem>>, vector<1x1x112x80xf32>
    %326 = vector.shape_cast %325 : vector<1x1x112x80xf32> to vector<112x80xf32>
    %cst_444 = arith.constant dense<0.000000e+00> : vector<5x80xf32>
    %327 = tpu.matmul %324, %326, %cst_444 {dimension_numbers = #tpu.dot_dimension_numbers<[1], [0], [0], [1], [0, 0, 1, 1], [], []>} : vector<5x112xf32>, vector<112x80xf32>, vector<5x80xf32> -> vector<5x80xf32>
    %328 = arith.addf %323, %327 : vector<5x80xf32>
    %329 = vector.extract_strided_slice %247 {offsets = [1, 0], sizes = [5, 112], strides = [1, 1]} : vector<7x112xf32> to vector<5x112xf32>
    %c1_445 = arith.constant 1 : index
    %c2_446 = arith.constant 2 : index
    %c0_447 = arith.constant 0 : index
    %c0_448 = arith.constant 0 : index
    %330 = vector.load %arg4[%c1_445, %c2_446, %c0_447, %c0_448] : memref<2x5x112x80xf32, #tpu.memory_space<vmem>>, vector<1x1x112x80xf32>
    %331 = vector.shape_cast %330 : vector<1x1x112x80xf32> to vector<112x80xf32>
    %cst_449 = arith.constant dense<0.000000e+00> : vector<5x80xf32>
    %332 = tpu.matmul %329, %331, %cst_449 {dimension_numbers = #tpu.dot_dimension_numbers<[1], [0], [0], [1], [0, 0, 1, 1], [], []>} : vector<5x112xf32>, vector<112x80xf32>, vector<5x80xf32> -> vector<5x80xf32>
    %333 = arith.addf %328, %332 : vector<5x80xf32>
    %334 = vector.extract_strided_slice %123 {offsets = [2, 0], sizes = [5, 112], strides = [1, 1]} : vector<7x112xf32> to vector<5x112xf32>
    %c1_450 = arith.constant 1 : index
    %c3_451 = arith.constant 3 : index
    %c0_452 = arith.constant 0 : index
    %c0_453 = arith.constant 0 : index
    %335 = vector.load %arg4[%c1_450, %c3_451, %c0_452, %c0_453] : memref<2x5x112x80xf32, #tpu.memory_space<vmem>>, vector<1x1x112x80xf32>
    %336 = vector.shape_cast %335 : vector<1x1x112x80xf32> to vector<112x80xf32>
    %cst_454 = arith.constant dense<0.000000e+00> : vector<5x80xf32>
    %337 = tpu.matmul %334, %336, %cst_454 {dimension_numbers = #tpu.dot_dimension_numbers<[1], [0], [0], [1], [0, 0, 1, 1], [], []>} : vector<5x112xf32>, vector<112x80xf32>, vector<5x80xf32> -> vector<5x80xf32>
    %338 = arith.addf %333, %337 : vector<5x80xf32>
    %339 = vector.extract_strided_slice %247 {offsets = [2, 0], sizes = [5, 112], strides = [1, 1]} : vector<7x112xf32> to vector<5x112xf32>
    %c1_455 = arith.constant 1 : index
    %c4_456 = arith.constant 4 : index
    %c0_457 = arith.constant 0 : index
    %c0_458 = arith.constant 0 : index
    %340 = vector.load %arg4[%c1_455, %c4_456, %c0_457, %c0_458] : memref<2x5x112x80xf32, #tpu.memory_space<vmem>>, vector<1x1x112x80xf32>
    %341 = vector.shape_cast %340 : vector<1x1x112x80xf32> to vector<112x80xf32>
    %cst_459 = arith.constant dense<0.000000e+00> : vector<5x80xf32>
    %342 = tpu.matmul %339, %341, %cst_459 {dimension_numbers = #tpu.dot_dimension_numbers<[1], [0], [0], [1], [0, 0, 1, 1], [], []>} : vector<5x112xf32>, vector<112x80xf32>, vector<5x80xf32> -> vector<5x80xf32>
    %343 = arith.addf %338, %342 : vector<5x80xf32>
    %344 = arith.maximumf %271, %295 : vector<5x80xf32>
    %345 = arith.maximumf %344, %319 : vector<5x80xf32>
    %346 = arith.maximumf %345, %343 : vector<5x80xf32>
    %c0_460 = arith.constant 0 : index
    %c0_461 = arith.constant 0 : index
    %347 = vector.load %arg5[%c0_460, %c0_461] : memref<1x80xf32, #tpu.memory_space<vmem>>, vector<1x80xf32>
    %348 = vector.broadcast %347 : vector<1x80xf32> to vector<5x80xf32>
    %349 = arith.addf %346, %348 : vector<5x80xf32>
    %cst_462 = arith.constant 0.000000e+00 : f32
    %350 = vector.broadcast %cst_462 : f32 to vector<5x80xf32>
    %351 = arith.maximumf %349, %350 : vector<5x80xf32>
    %352 = vector.extract_strided_slice %351 {offsets = [0, 0], sizes = [1, 80], strides = [1, 1]} : vector<5x80xf32> to vector<1x80xf32>
    %c0_463 = arith.constant 0 : index
    %c0_464 = arith.constant 0 : index
    %c0_465 = arith.constant 0 : index
    %353 = vector.load %arg6[%c0_463, %c0_464, %c0_465] : memref<5x80x128xf32, #tpu.memory_space<vmem>>, vector<1x80x128xf32>
    %354 = vector.shape_cast %353 : vector<1x80x128xf32> to vector<80x128xf32>
    %cst_466 = arith.constant dense<0.000000e+00> : vector<1x128xf32>
    %355 = tpu.matmul %352, %354, %cst_466 {dimension_numbers = #tpu.dot_dimension_numbers<[1], [0], [0], [1], [0, 0, 1, 1], [], []>} : vector<1x80xf32>, vector<80x128xf32>, vector<1x128xf32> -> vector<1x128xf32>
    %356 = vector.extract_strided_slice %351 {offsets = [1, 0], sizes = [1, 80], strides = [1, 1]} : vector<5x80xf32> to vector<1x80xf32>
    %c1_467 = arith.constant 1 : index
    %c0_468 = arith.constant 0 : index
    %c0_469 = arith.constant 0 : index
    %357 = vector.load %arg6[%c1_467, %c0_468, %c0_469] : memref<5x80x128xf32, #tpu.memory_space<vmem>>, vector<1x80x128xf32>
    %358 = vector.shape_cast %357 : vector<1x80x128xf32> to vector<80x128xf32>
    %cst_470 = arith.constant dense<0.000000e+00> : vector<1x128xf32>
    %359 = tpu.matmul %356, %358, %cst_470 {dimension_numbers = #tpu.dot_dimension_numbers<[1], [0], [0], [1], [0, 0, 1, 1], [], []>} : vector<1x80xf32>, vector<80x128xf32>, vector<1x128xf32> -> vector<1x128xf32>
    %360 = arith.addf %355, %359 : vector<1x128xf32>
    %361 = vector.extract_strided_slice %351 {offsets = [2, 0], sizes = [1, 80], strides = [1, 1]} : vector<5x80xf32> to vector<1x80xf32>
    %c2_471 = arith.constant 2 : index
    %c0_472 = arith.constant 0 : index
    %c0_473 = arith.constant 0 : index
    %362 = vector.load %arg6[%c2_471, %c0_472, %c0_473] : memref<5x80x128xf32, #tpu.memory_space<vmem>>, vector<1x80x128xf32>
    %363 = vector.shape_cast %362 : vector<1x80x128xf32> to vector<80x128xf32>
    %cst_474 = arith.constant dense<0.000000e+00> : vector<1x128xf32>
    %364 = tpu.matmul %361, %363, %cst_474 {dimension_numbers = #tpu.dot_dimension_numbers<[1], [0], [0], [1], [0, 0, 1, 1], [], []>} : vector<1x80xf32>, vector<80x128xf32>, vector<1x128xf32> -> vector<1x128xf32>
    %365 = arith.addf %360, %364 : vector<1x128xf32>
    %366 = vector.extract_strided_slice %351 {offsets = [3, 0], sizes = [1, 80], strides = [1, 1]} : vector<5x80xf32> to vector<1x80xf32>
    %c3_475 = arith.constant 3 : index
    %c0_476 = arith.constant 0 : index
    %c0_477 = arith.constant 0 : index
    %367 = vector.load %arg6[%c3_475, %c0_476, %c0_477] : memref<5x80x128xf32, #tpu.memory_space<vmem>>, vector<1x80x128xf32>
    %368 = vector.shape_cast %367 : vector<1x80x128xf32> to vector<80x128xf32>
    %cst_478 = arith.constant dense<0.000000e+00> : vector<1x128xf32>
    %369 = tpu.matmul %366, %368, %cst_478 {dimension_numbers = #tpu.dot_dimension_numbers<[1], [0], [0], [1], [0, 0, 1, 1], [], []>} : vector<1x80xf32>, vector<80x128xf32>, vector<1x128xf32> -> vector<1x128xf32>
    %370 = arith.addf %365, %369 : vector<1x128xf32>
    %371 = vector.extract_strided_slice %351 {offsets = [4, 0], sizes = [1, 80], strides = [1, 1]} : vector<5x80xf32> to vector<1x80xf32>
    %c4_479 = arith.constant 4 : index
    %c0_480 = arith.constant 0 : index
    %c0_481 = arith.constant 0 : index
    %372 = vector.load %arg6[%c4_479, %c0_480, %c0_481] : memref<5x80x128xf32, #tpu.memory_space<vmem>>, vector<1x80x128xf32>
    %373 = vector.shape_cast %372 : vector<1x80x128xf32> to vector<80x128xf32>
    %cst_482 = arith.constant dense<0.000000e+00> : vector<1x128xf32>
    %374 = tpu.matmul %371, %373, %cst_482 {dimension_numbers = #tpu.dot_dimension_numbers<[1], [0], [0], [1], [0, 0, 1, 1], [], []>} : vector<1x80xf32>, vector<80x128xf32>, vector<1x128xf32> -> vector<1x128xf32>
    %375 = arith.addf %370, %374 : vector<1x128xf32>
    %c0_483 = arith.constant 0 : index
    %c0_484 = arith.constant 0 : index
    %376 = vector.load %arg7[%c0_483, %c0_484] : memref<1x128xf32, #tpu.memory_space<vmem>>, vector<1x128xf32>
    %377 = arith.addf %375, %376 : vector<1x128xf32>
    %cst_485 = arith.constant 0.000000e+00 : f32
    %378 = vector.broadcast %cst_485 : f32 to vector<1x128xf32>
    %379 = arith.maximumf %377, %378 : vector<1x128xf32>
    %c0_486 = arith.constant 0 : index
    %c0_487 = arith.constant 0 : index
    %380 = vector.load %arg8[%c0_486, %c0_487] : memref<128x128xf32, #tpu.memory_space<vmem>>, vector<128x128xf32>
    %cst_488 = arith.constant dense<0.000000e+00> : vector<1x128xf32>
    %381 = tpu.matmul %379, %380, %cst_488 {dimension_numbers = #tpu.dot_dimension_numbers<[1], [0], [0], [1], [0, 0, 1, 1], [], []>} : vector<1x128xf32>, vector<128x128xf32>, vector<1x128xf32> -> vector<1x128xf32>
    %c0_489 = arith.constant 0 : index
    %c0_490 = arith.constant 0 : index
    %382 = vector.load %arg9[%c0_489, %c0_490] : memref<1x128xf32, #tpu.memory_space<vmem>>, vector<1x128xf32>
    %383 = arith.addf %381, %382 : vector<1x128xf32>
    %cst_491 = arith.constant 0.000000e+00 : f32
    %384 = vector.broadcast %cst_491 : f32 to vector<1x128xf32>
    %385 = arith.maximumf %383, %384 : vector<1x128xf32>
    %c0_492 = arith.constant 0 : index
    %c0_493 = arith.constant 0 : index
    %386 = vector.load %arg10[%c0_492, %c0_493] : memref<128x128xf32, #tpu.memory_space<vmem>>, vector<128x128xf32>
    %cst_494 = arith.constant dense<0.000000e+00> : vector<1x128xf32>
    %387 = tpu.matmul %385, %386, %cst_494 {dimension_numbers = #tpu.dot_dimension_numbers<[1], [0], [0], [1], [0, 0, 1, 1], [], []>} : vector<1x128xf32>, vector<128x128xf32>, vector<1x128xf32> -> vector<1x128xf32>
    %c0_495 = arith.constant 0 : index
    %c0_496 = arith.constant 0 : index
    %388 = vector.load %arg11[%c0_495, %c0_496] : memref<1x128xf32, #tpu.memory_space<vmem>>, vector<1x128xf32>
    %389 = arith.addf %387, %388 : vector<1x128xf32>
    %c0_497 = arith.constant 0 : index
    %c0_498 = arith.constant 0 : index
    %c0_499 = arith.constant 0 : index
    %390 = vector.load %arg12[%c0_497, %c0_498, %c0_499] : memref<1x1x128xf32, #tpu.memory_space<vmem>>, vector<1x1x128xf32>
    %391 = vector.shape_cast %390 : vector<1x1x128xf32> to vector<1x128xf32>
    %392 = vector.shape_cast %389 : vector<1x128xf32> to vector<1x1x128xf32>
    tpu.vector_store %arg12[%c0_497, %c0_498, %c0_499], %392 {strides = array<i32>} : memref<1x1x128xf32, #tpu.memory_space<vmem>>, vector<1x1x128xf32>,
    return
  }
  func.func @transform_0(%arg0: i32) -> (i32, i32, i32, i32) {
    %c0_i32 = arith.constant 0 : i32
    %c0_i32_0 = arith.constant 0 : i32
    %c0_i32_1 = arith.constant 0 : i32
    %c0_i32_2 = arith.constant 0 : i32
    return %arg0, %c0_i32, %c0_i32_0, %c0_i32_1 : i32, i32, i32, i32
  }
  func.func @transform_1(%arg0: i32) -> (i32, i32, i32, i32) {
    %c0_i32 = arith.constant 0 : i32
    %c0_i32_0 = arith.constant 0 : i32
    %c0_i32_1 = arith.constant 0 : i32
    %c0_i32_2 = arith.constant 0 : i32
    %c0_i32_3 = arith.constant 0 : i32
    return %c0_i32, %c0_i32_0, %c0_i32_1, %c0_i32_2 : i32, i32, i32, i32
  }
  func.func @transform_2(%arg0: i32) -> (i32, i32) {
    %c0_i32 = arith.constant 0 : i32
    %c0_i32_0 = arith.constant 0 : i32
    %c0_i32_1 = arith.constant 0 : i32
    return %c0_i32, %c0_i32_0 : i32, i32
  }
  func.func @transform_3(%arg0: i32) -> (i32, i32, i32, i32) {
    %c0_i32 = arith.constant 0 : i32
    %c0_i32_0 = arith.constant 0 : i32
    %c0_i32_1 = arith.constant 0 : i32
    %c0_i32_2 = arith.constant 0 : i32
    %c0_i32_3 = arith.constant 0 : i32
    return %c0_i32, %c0_i32_0, %c0_i32_1, %c0_i32_2 : i32, i32, i32, i32
  }
  func.func @transform_4(%arg0: i32) -> (i32, i32) {
    %c0_i32 = arith.constant 0 : i32
    %c0_i32_0 = arith.constant 0 : i32
    %c0_i32_1 = arith.constant 0 : i32
    return %c0_i32, %c0_i32_0 : i32, i32
  }
  func.func @transform_5(%arg0: i32) -> (i32, i32, i32) {
    %c0_i32 = arith.constant 0 : i32
    %c0_i32_0 = arith.constant 0 : i32
    %c0_i32_1 = arith.constant 0 : i32
    %c0_i32_2 = arith.constant 0 : i32
    return %c0_i32, %c0_i32_0, %c0_i32_1 : i32, i32, i32
  }
  func.func @transform_6(%arg0: i32) -> (i32, i32) {
    %c0_i32 = arith.constant 0 : i32
    %c0_i32_0 = arith.constant 0 : i32
    %c0_i32_1 = arith.constant 0 : i32
    return %c0_i32, %c0_i32_0 : i32, i32
  }
  func.func @transform_7(%arg0: i32) -> (i32, i32) {
    %c0_i32 = arith.constant 0 : i32
    %c0_i32_0 = arith.constant 0 : i32
    %c0_i32_1 = arith.constant 0 : i32
    return %c0_i32, %c0_i32_0 : i32, i32
  }
  func.func @transform_8(%arg0: i32) -> (i32, i32) {
    %c0_i32 = arith.constant 0 : i32
    %c0_i32_0 = arith.constant 0 : i32
    %c0_i32_1 = arith.constant 0 : i32
    return %c0_i32, %c0_i32_0 : i32, i32
  }
  func.func @transform_9(%arg0: i32) -> (i32, i32) {
    %c0_i32 = arith.constant 0 : i32
    %c0_i32_0 = arith.constant 0 : i32
    %c0_i32_1 = arith.constant 0 : i32
    return %c0_i32, %c0_i32_0 : i32, i32
  }
  func.func @transform_10(%arg0: i32) -> (i32, i32) {
    %c0_i32 = arith.constant 0 : i32
    %c0_i32_0 = arith.constant 0 : i32
    %c0_i32_1 = arith.constant 0 : i32
    return %c0_i32, %c0_i32_0 : i32, i32
  }
  func.func @transform_11(%arg0: i32) -> (i32, i32, i32) {
    %c0_i32 = arith.constant 0 : i32
    %c0_i32_0 = arith.constant 0 : i32
    %c0_i32_1 = arith.constant 0 : i32
    return %arg0, %c0_i32, %c0_i32_0 : i32, i32, i32
  }
}

</mosaic_0001>

<llo_original>
// kernel: lenet_forward.1
$region0: #{lenet_forward.1}
  #allocation0 [shape = 'u32[]', space=smem, size = 0x4, offset = 0x4, fixed_abs, tag = 'smem constant byte address 0x4 - core index']
  #allocation1 [shape = 'u32[144,128]{1,0:T(1,128)}', space=vmem, size = 0x12000, scoped, tag = 'internal scratch']
  %s0 = inlined_call_operand.vmem [shape: f32[2,4,8,32], index: 0, kind: input, shape index: {}]
  %s1 = inlined_call_operand.vmem [shape: f32[2,5,32,112], index: 1, kind: input, shape index: {}]
  %s2 = inlined_call_operand.vmem [shape: f32[1,112], index: 2, kind: input, shape index: {}]
  %s3 = inlined_call_operand.vmem [shape: f32[2,5,112,80], index: 3, kind: input, shape index: {}]
  %s4 = inlined_call_operand.vmem [shape: f32[1,80], index: 4, kind: input, shape index: {}]
  %s5 = inlined_call_operand.vmem [shape: f32[5,80,128], index: 5, kind: input, shape index: {}]
  %s6 = inlined_call_operand.vmem [shape: f32[1,128], index: 6, kind: input, shape index: {}]
  %s7 = inlined_call_operand.vmem [shape: f32[128,128], index: 7, kind: input, shape index: {}]
  %s8 = inlined_call_operand.vmem [shape: f32[1,128], index: 8, kind: input, shape index: {}]
  %s9 = inlined_call_operand.vmem [shape: f32[128,128], index: 9, kind: input, shape index: {}]
  %s10 = inlined_call_operand.vmem [shape: f32[1,128], index: 10, kind: input, shape index: {}]
  %s11 = inlined_call_operand.hbm [shape: f32[2,1,128], index: 11, kind: output, shape index: {}]
  %s12 = sld [smem:[#allocation0]]
  $region77: #{lenet_forward.1} parent=0
    _
  %s14 = ssub.s32 1, %s12
  %s15 = scalar_select 0, %s14, %s12
  $region1: #{lenet_forward.1} parent=0
    #allocation2 [shape = 'u8[1024]{0}', space=vmem, size = 0x400, scoped, tag = 'output window, operand 0']
    #allocation3 [shape = 's32[2]{0}', space=sflag, size = 0x8, scoped, tag = 'scoped memory for lenet_forward.1']
    %16 = vsyncpa [#allocation3], 0
    %s17 = scalar_lea.sflag [#allocation3], 1
    %18 = vsyncpa %s17, 0
    loop: start=0, step=1, limit=4
    $region2: #{lenet_forward.1} parent=1 // loop_pre_header
      _
    $region3: #{lenet_forward.1} parent=1 // loop_header
      %s20 = sphi 0, %s24
      %p21 = scmp.ge.s32.totalorder %s20, 4
      %s30 = sphi 0, %s32
      %s33 = sphi 0, %s30
      %s34 = sphi 0, %s33
      %s50 = sphi 0, %s34
      %s54 = sphi 0, %s54
      %s56 = sphi 0, %s54
      %s57 = sphi 0, %s56
      %s71 = sphi 0, %s57
      %s75 = sphi 0, %s75
      %s77 = sphi 0, %s75
      %s78 = sphi 0, %s77
      %s92 = sphi 0, %s78
      %s96 = sphi 0, %s96
      %s98 = sphi 0, %s96
      %s99 = sphi 0, %s98
      %s113 = sphi 0, %s99
      %s117 = sphi 0, %s117
      %s119 = sphi 0, %s117
      %s120 = sphi 0, %s119
      %s134 = sphi 0, %s120
      %s138 = sphi 0, %s138
      %s140 = sphi 0, %s138
      %s141 = sphi 0, %s140
      %s155 = sphi 0, %s141
      %s159 = sphi 0, %s159
      %s161 = sphi 0, %s159
      %s162 = sphi 0, %s161
      %s176 = sphi 0, %s162
      %s180 = sphi 0, %s180
      %s182 = sphi 0, %s180
      %s183 = sphi 0, %s182
      %s197 = sphi 0, %s183
      %s201 = sphi 0, %s201
      %s203 = sphi 0, %s201
      %s204 = sphi 0, %s203
      %s218 = sphi 0, %s204
      %s222 = sphi 0, %s222
      %s224 = sphi 0, %s222
      %s225 = sphi 0, %s224
      %s239 = sphi 0, %s225
      %s243 = sphi 0, %s243
      %s245 = sphi 0, %s243
      %s246 = sphi 0, %s245
      %s260 = sphi 0, %s246
      %s266 = sphi 0, %s268
      %s269 = sphi 0, %s266
      %s270 = sphi 0, %s269
      %s286 = sphi 0, %s270
    $region4: #{lenet_forward.1} parent=1 // loop_header_branch
      %23 = sbr.rel (%p21) target = $region8
    $region5: #{lenet_forward.1} parent=1 // loop_body
      %s25 = ssub.s32 %s20, 1
      %s26 = ssub.s32 %s20, 2
      %s27 = sadd.s32 %s20, 1
      %s28 = ssub.s32 %s20, %s27
      %p29 = scmp.eq.s32.totalorder %s28, 0
      %s31 = sadd.s32 %s30, 1
      %s32 = scalar_select %p29, %s30, %s31
      %p35 = pneg %p29
      %p36 = scmp.eq.s32.totalorder %s20, 1
      %p37 = por %p35, %p36
      %p38 = scmp.ne.s32.totalorder %s30, %s33
      %p39 = scmp.eq.s32.totalorder %s20, 0
      %p40 = por %p38, %p39
      %p41 = scmp.ne.s32.totalorder %s30, %s33
      %p42 = scmp.eq.s32.totalorder %s25, 1
      %p43 = por %p41, %p42
      %p44 = scmp.ne.s32.totalorder %s33, %s34
      %p45 = scmp.eq.s32.totalorder %s25, 0
      %p46 = por %p44, %p45
      %p47 = scmp.ne.s32.totalorder %s33, %s34
      %p48 = scmp.eq.s32.totalorder %s26, 1
      %p49 = por %p47, %p48
      %p51 = scmp.ne.s32.totalorder %s34, %s50
      %p52 = scmp.eq.s32.totalorder %s26, 0
      %p53 = por %p51, %p52
      %s55 = sadd.s32 %s54, 1
      %p58 = scmp.eq.s32.totalorder %s20, 1
      %p59 = scmp.ne.s32.totalorder %s54, %s56
      %p60 = scmp.eq.s32.totalorder %s20, 0
      %p61 = por %p59, %p60
      %p62 = scmp.ne.s32.totalorder %s54, %s56
      %p63 = scmp.eq.s32.totalorder %s25, 1
      %p64 = por %p62, %p63
      %p65 = scmp.ne.s32.totalorder %s56, %s57
      %p66 = scmp.eq.s32.totalorder %s25, 0
      %p67 = por %p65, %p66
      %p68 = scmp.ne.s32.totalorder %s56, %s57
      %p69 = scmp.eq.s32.totalorder %s26, 1
      %p70 = por %p68, %p69
      %p72 = scmp.ne.s32.totalorder %s57, %s71
      %p73 = scmp.eq.s32.totalorder %s26, 0
      %p74 = por %p72, %p73
      %s76 = sadd.s32 %s75, 1
      %p79 = scmp.eq.s32.totalorder %s20, 1
      %p80 = scmp.ne.s32.totalorder %s75, %s77
      %p81 = scmp.eq.s32.totalorder %s20, 0
      %p82 = por %p80, %p81
      %p83 = scmp.ne.s32.totalorder %s75, %s77
      %p84 = scmp.eq.s32.totalorder %s25, 1
      %p85 = por %p83, %p84
      %p86 = scmp.ne.s32.totalorder %s77, %s78
      %p87 = scmp.eq.s32.totalorder %s25, 0
      %p88 = por %p86, %p87
      %p89 = scmp.ne.s32.totalorder %s77, %s78
      %p90 = scmp.eq.s32.totalorder %s26, 1
      %p91 = por %p89, %p90
      %p93 = scmp.ne.s32.totalorder %s78, %s92
      %p94 = scmp.eq.s32.totalorder %s26, 0
      %p95 = por %p93, %p94
      %s97 = sadd.s32 %s96, 1
      %p100 = scmp.eq.s32.totalorder %s20, 1
      %p101 = scmp.ne.s32.totalorder %s96, %s98
      %p102 = scmp.eq.s32.totalorder %s20, 0
      %p103 = por %p101, %p102
      %p104 = scmp.ne.s32.totalorder %s96, %s98
      %p105 = scmp.eq.s32.totalorder %s25, 1
      %p106 = por %p104, %p105
      %p107 = scmp.ne.s32.totalorder %s98, %s99
      %p108 = scmp.eq.s32.totalorder %s25, 0
      %p109 = por %p107, %p108
      %p110 = scmp.ne.s32.totalorder %s98, %s99
      %p111 = scmp.eq.s32.totalorder %s26, 1
      %p112 = por %p110, %p111
      %p114 = scmp.ne.s32.totalorder %s99, %s113
      %p115 = scmp.eq.s32.totalorder %s26, 0
      %p116 = por %p114, %p115
      %s118 = sadd.s32 %s117, 1
      %p121 = scmp.eq.s32.totalorder %s20, 1
      %p122 = scmp.ne.s32.totalorder %s117, %s119
      %p123 = scmp.eq.s32.totalorder %s20, 0
      %p124 = por %p122, %p123
      %p125 = scmp.ne.s32.totalorder %s117, %s119
      %p126 = scmp.eq.s32.totalorder %s25, 1
      %p127 = por %p125, %p126
      %p128 = scmp.ne.s32.totalorder %s119, %s120
      %p129 = scmp.eq.s32.totalorder %s25, 0
      %p130 = por %p128, %p129
      %p131 = scmp.ne.s32.totalorder %s119, %s120
      %p132 = scmp.eq.s32.totalorder %s26, 1
      %p133 = por %p131, %p132
      %p135 = scmp.ne.s32.totalorder %s120, %s134
      %p136 = scmp.eq.s32.totalorder %s26, 0
      %p137 = por %p135, %p136
      %s139 = sadd.s32 %s138, 1
      %p142 = scmp.eq.s32.totalorder %s20, 1
      %p143 = scmp.ne.s32.totalorder %s138, %s140
      %p144 = scmp.eq.s32.totalorder %s20, 0
      %p145 = por %p143, %p144
      %p146 = scmp.ne.s32.totalorder %s138, %s140
      %p147 = scmp.eq.s32.totalorder %s25, 1
      %p148 = por %p146, %p147
      %p149 = scmp.ne.s32.totalorder %s140, %s141
      %p150 = scmp.eq.s32.totalorder %s25, 0
      %p151 = por %p149, %p150
      %p152 = scmp.ne.s32.totalorder %s140, %s141
      %p153 = scmp.eq.s32.totalorder %s26, 1
      %p154 = por %p152, %p153
      %p156 = scmp.ne.s32.totalorder %s141, %s155
      %p157 = scmp.eq.s32.totalorder %s26, 0
      %p158 = por %p156, %p157
      %s160 = sadd.s32 %s159, 1
      %p163 = scmp.eq.s32.totalorder %s20, 1
      %p164 = scmp.ne.s32.totalorder %s159, %s161
      %p165 = scmp.eq.s32.totalorder %s20, 0
      %p166 = por %p164, %p165
      %p167 = scmp.ne.s32.totalorder %s159, %s161
      %p168 = scmp.eq.s32.totalorder %s25, 1
      %p169 = por %p167, %p168
      %p170 = scmp.ne.s32.totalorder %s161, %s162
      %p171 = scmp.eq.s32.totalorder %s25, 0
      %p172 = por %p170, %p171
      %p173 = scmp.ne.s32.totalorder %s161, %s162
      %p174 = scmp.eq.s32.totalorder %s26, 1
      %p175 = por %p173, %p174
      %p177 = scmp.ne.s32.totalorder %s162, %s176
      %p178 = scmp.eq.s32.totalorder %s26, 0
      %p179 = por %p177, %p178
      %s181 = sadd.s32 %s180, 1
      %p184 = scmp.eq.s32.totalorder %s20, 1
      %p185 = scmp.ne.s32.totalorder %s180, %s182
      %p186 = scmp.eq.s32.totalorder %s20, 0
      %p187 = por %p185, %p186
      %p188 = scmp.ne.s32.totalorder %s180, %s182
      %p189 = scmp.eq.s32.totalorder %s25, 1
      %p190 = por %p188, %p189
      %p191 = scmp.ne.s32.totalorder %s182, %s183
      %p192 = scmp.eq.s32.totalorder %s25, 0
      %p193 = por %p191, %p192
      %p194 = scmp.ne.s32.totalorder %s182, %s183
      %p195 = scmp.eq.s32.totalorder %s26, 1
      %p196 = por %p194, %p195
      %p198 = scmp.ne.s32.totalorder %s183, %s197
      %p199 = scmp.eq.s32.totalorder %s26, 0
      %p200 = por %p198, %p199
      %s202 = sadd.s32 %s201, 1
      %p205 = scmp.eq.s32.totalorder %s20, 1
      %p206 = scmp.ne.s32.totalorder %s201, %s203
      %p207 = scmp.eq.s32.totalorder %s20, 0
      %p208 = por %p206, %p207
      %p209 = scmp.ne.s32.totalorder %s201, %s203
      %p210 = scmp.eq.s32.totalorder %s25, 1
      %p211 = por %p209, %p210
      %p212 = scmp.ne.s32.totalorder %s203, %s204
      %p213 = scmp.eq.s32.totalorder %s25, 0
      %p214 = por %p212, %p213
      %p215 = scmp.ne.s32.totalorder %s203, %s204
      %p216 = scmp.eq.s32.totalorder %s26, 1
      %p217 = por %p215, %p216
      %p219 = scmp.ne.s32.totalorder %s204, %s218
      %p220 = scmp.eq.s32.totalorder %s26, 0
      %p221 = por %p219, %p220
      %s223 = sadd.s32 %s222, 1
      %p226 = scmp.eq.s32.totalorder %s20, 1
      %p227 = scmp.ne.s32.totalorder %s222, %s224
      %p228 = scmp.eq.s32.totalorder %s20, 0
      %p229 = por %p227, %p228
      %p230 = scmp.ne.s32.totalorder %s222, %s224
      %p231 = scmp.eq.s32.totalorder %s25, 1
      %p232 = por %p230, %p231
      %p233 = scmp.ne.s32.totalorder %s224, %s225
      %p234 = scmp.eq.s32.totalorder %s25, 0
      %p235 = por %p233, %p234
      %p236 = scmp.ne.s32.totalorder %s224, %s225
      %p237 = scmp.eq.s32.totalorder %s26, 1
      %p238 = por %p236, %p237
      %p240 = scmp.ne.s32.totalorder %s225, %s239
      %p241 = scmp.eq.s32.totalorder %s26, 0
      %p242 = por %p240, %p241
      %s244 = sadd.s32 %s243, 1
      %p247 = scmp.eq.s32.totalorder %s20, 1
      %p248 = scmp.ne.s32.totalorder %s243, %s245
      %p249 = scmp.eq.s32.totalorder %s20, 0
      %p250 = por %p248, %p249
      %p251 = scmp.ne.s32.totalorder %s243, %s245
      %p252 = scmp.eq.s32.totalorder %s25, 1
      %p253 = por %p251, %p252
      %p254 = scmp.ne.s32.totalorder %s245, %s246
      %p255 = scmp.eq.s32.totalorder %s25, 0
      %p256 = por %p254, %p255
      %p257 = scmp.ne.s32.totalorder %s245, %s246
      %p258 = scmp.eq.s32.totalorder %s26, 1
      %p259 = por %p257, %p258
      %p261 = scmp.ne.s32.totalorder %s246, %s260
      %p262 = scmp.eq.s32.totalorder %s26, 0
      %p263 = por %p261, %p262
      %s264 = ssub.s32 %s20, %s27
      %p265 = scmp.eq.s32.totalorder %s264, 0
      %s267 = sadd.s32 %s266, 1
      %s268 = scalar_select %p265, %s266, %s267
      %p271 = pneg %p265
      %p272 = scmp.eq.s32.totalorder %s20, 1
      %p273 = por %p271, %p272
      %p274 = scmp.ne.s32.totalorder %s266, %s269
      %p275 = scmp.eq.s32.totalorder %s20, 0
      %p276 = por %p274, %p275
      %p277 = scmp.ne.s32.totalorder %s266, %s269
      %p278 = scmp.eq.s32.totalorder %s25, 1
      %p279 = por %p277, %p278
      %p280 = scmp.ne.s32.totalorder %s269, %s270
      %p281 = scmp.eq.s32.totalorder %s25, 0
      %p282 = por %p280, %p281
      %p283 = scmp.ne.s32.totalorder %s269, %s270
      %p284 = scmp.eq.s32.totalorder %s26, 1
      %p285 = por %p283, %p284
      %p287 = scmp.ne.s32.totalorder %s270, %s286
      %p288 = scmp.eq.s32.totalorder %s26, 0
      %p289 = por %p287, %p288
      %p290 = scmp.le.s32.totalorder 1, %s20
      %p291 = scmp.lt.s32.totalorder %s20, 3
      %p292 = pnand %p290, %p291
      %p293 = pneg %p292
      // Predicated region
      $region9: #{lenet_forward.1} parent=5 // pred_check
        _
      $region10: #{lenet_forward.1} parent=5 // pred_check_branch
        %295 = sbr.rel (%p292) target = $region12
      $region11: #{lenet_forward.1} parent=5 // pred_region
        %s296 = ssub.s32 %s20, 1
        // Predicated region
        $region13: #{lenet_forward.1} parent=11 // pred_check
          %p297 = pneg %p67
        $region14: #{lenet_forward.1} parent=11 // pred_check_branch
          %299 = sbr.rel (%p297) target = $region16
        $region15: #{lenet_forward.1} parent=11 // pred_region
          _
        $region16: #{lenet_forward.1} parent=11 // pred_fallthru
          _
        // Predicated region
        $region17: #{lenet_forward.1} parent=11 // pred_check
          %p300 = pneg %p88
        $region18: #{lenet_forward.1} parent=11 // pred_check_branch
          %302 = sbr.rel (%p300) target = $region20
        $region19: #{lenet_forward.1} parent=11 // pred_region
          _
        $region20: #{lenet_forward.1} parent=11 // pred_fallthru
          _
        // Predicated region
        $region21: #{lenet_forward.1} parent=11 // pred_check
          %p303 = pneg %p109
        $region22: #{lenet_forward.1} parent=11 // pred_check_branch
          %305 = sbr.rel (%p303) target = $region24
        $region23: #{lenet_forward.1} parent=11 // pred_region
          _
        $region24: #{lenet_forward.1} parent=11 // pred_fallthru
          _
        // Predicated region
        $region25: #{lenet_forward.1} parent=11 // pred_check
          %p306 = pneg %p130
        $region26: #{lenet_forward.1} parent=11 // pred_check_branch
          %308 = sbr.rel (%p306) target = $region28
        $region27: #{lenet_forward.1} parent=11 // pred_region
          _
        $region28: #{lenet_forward.1} parent=11 // pred_fallthru
          _
        // Predicated region
        $region29: #{lenet_forward.1} parent=11 // pred_check
          %p309 = pneg %p151
        $region30: #{lenet_forward.1} parent=11 // pred_check_branch
          %311 = sbr.rel (%p309) target = $region32
        $region31: #{lenet_forward.1} parent=11 // pred_region
          _
        $region32: #{lenet_forward.1} parent=11 // pred_fallthru
          _
        // Predicated region
        $region33: #{lenet_forward.1} parent=11 // pred_check
          %p312 = pneg %p172
        $region34: #{lenet_forward.1} parent=11 // pred_check_branch
          %314 = sbr.rel (%p312) target = $region36
        $region35: #{lenet_forward.1} parent=11 // pred_region
          _
        $region36: #{lenet_forward.1} parent=11 // pred_fallthru
          _
        // Predicated region
        $region37: #{lenet_forward.1} parent=11 // pred_check
          %p315 = pneg %p193
        $region38: #{lenet_forward.1} parent=11 // pred_check_branch
          %317 = sbr.rel (%p315) target = $region40
        $region39: #{lenet_forward.1} parent=11 // pred_region
          _
        $region40: #{lenet_forward.1} parent=11 // pred_fallthru
          _
        // Predicated region
        $region41: #{lenet_forward.1} parent=11 // pred_check
          %p318 = pneg %p214
        $region42: #{lenet_forward.1} parent=11 // pred_check_branch
          %320 = sbr.rel (%p318) target = $region44
        $region43: #{lenet_forward.1} parent=11 // pred_region
          _
        $region44: #{lenet_forward.1} parent=11 // pred_fallthru
          _
        // Predicated region
        $region45: #{lenet_forward.1} parent=11 // pred_check
          %p321 = pneg %p235
        $region46: #{lenet_forward.1} parent=11 // pred_check_branch
          %323 = sbr.rel (%p321) target = $region48
        $region47: #{lenet_forward.1} parent=11 // pred_region
          _
        $region48: #{lenet_forward.1} parent=11 // pred_fallthru
          _
        // Predicated region
        $region49: #{lenet_forward.1} parent=11 // pred_check
          %p324 = pneg %p256
        $region50: #{lenet_forward.1} parent=11 // pred_check_branch
          %326 = sbr.rel (%p324) target = $region52
        $region51: #{lenet_forward.1} parent=11 // pred_region
          _
        $region52: #{lenet_forward.1} parent=11 // pred_fallthru
          _
      $region12: #{lenet_forward.1} parent=5 // pred_fallthru
        _
      %p327 = scmp.lt.s32.totalorder %s20, 2
      // Predicated region
      $region53: #{lenet_forward.1} parent=5 // pred_check
        %p328 = pneg %p327
      $region54: #{lenet_forward.1} parent=5 // pred_check_branch
        %330 = sbr.rel (%p328) target = $region56
      $region55: #{lenet_forward.1} parent=5 // pred_region
        // Predicated region
        $region57: #{lenet_forward.1} parent=55 // pred_check
          %p331 = pneg %p40
        $region58: #{lenet_forward.1} parent=55 // pred_check_branch
          %333 = sbr.rel (%p331) target = $region60
        $region59: #{lenet_forward.1} parent=55 // pred_region
          %p334 = scmp.lt.s32.totalorder %s20, 1
          %s335 = scalar_select %p334, %s20, 1
          %s336 = smul.addr %s335, 4
          %s337 = smul.addr %s336, 8
          %s338 = scalar_lea.vmem %s0, %s337
        $region60: #{lenet_forward.1} parent=55 // pred_fallthru
          _
      $region56: #{lenet_forward.1} parent=5 // pred_fallthru
        _
      %p339 = scmp.le.s32.totalorder 1, %s20
      %p340 = scmp.lt.s32.totalorder %s20, 3
      %p341 = pnand %p339, %p340
      %p342 = pneg %p341
      // Predicated region
      $region61: #{lenet_forward.1} parent=5 // pred_check
        _
      $region62: #{lenet_forward.1} parent=5 // pred_check_branch
        %344 = sbr.rel (%p341) target = $region64
      $region63: #{lenet_forward.1} parent=5 // pred_region
        %s345 = ssub.s32 %s20, 1
        %p346 = scmp.lt.s32.totalorder %s25, 1
        %s347 = scalar_select %p346, %s25, 1
        %s348 = smul.addr %s347, 4
        %s349 = smul.addr %s348, 8
        %s350 = scalar_lea.vmem %s0, %s349
        %p351 = pneg %p46
        %p352 = pneg %p43
        %p353 = pneg %p67
        %p354 = pneg %p64
        %p355 = pneg %p88
        %p356 = pneg %p85
        %p357 = pneg %p109
        %p358 = pneg %p106
        %p359 = pneg %p130
        %p360 = pneg %p127
        %p361 = pneg %p151
        %p362 = pneg %p148
        %p363 = pneg %p172
        %p364 = pneg %p169
        %p365 = pneg %p193
        %p366 = pneg %p190
        %p367 = pneg %p214
        %p368 = pneg %p211
        %p369 = pneg %p235
        %p370 = pneg %p232
        %p371 = pneg %p256
        %p372 = pneg %p253
        %p373 = pneg %p282
        %p374 = pneg %p279
        %s375 = sand.u32 %s269, 1
        %s376 = scalar_lea.sflag [#allocation3], %s375
        %s377 = sand.u32 %s269, 1
        %s378 = scalar_lea.vmem [#allocation2], %s377
        %p379 = scmp.lt.s32.totalorder %s25, 1
        %s380 = scalar_select %p379, %s25, 1
        %s381 = smul.addr %s380, 4
        %s382 = smul.addr %s381, 8
        %s383 = scalar_lea.vmem %s0, %s382
        %v384 = vld [vmem:[%s383] sm:$0x7f]
        %v385 = vld [vmem:[%s1] sm:$0xff]
        %v386 = vld [vmem:[%s1 + $0x8] sm:$0xff]
        %v387 = vld [vmem:[%s1 + $0x10] sm:$0xff]
        %v388 = vld [vmem:[%s1 + $0x18] sm:$0xff]
        %s389 = scalar_lea.vmem %s383, 8
        %v390 = vld [vmem:[%s389] sm:$0x7f]
        %s391 = scalar_lea.vmem %s1, 32
        %v392 = vld [vmem:[%s391] sm:$0xff]
        %v393 = vld [vmem:[%s391 + $0x8] sm:$0xff]
        %v394 = vld [vmem:[%s391 + $0x10] sm:$0xff]
        %v395 = vld [vmem:[%s391 + $0x18] sm:$0xff]
        %vm396 = vcmask 261120
        %v398 = vsel %vm396, %v390, 0
        %400 = vmatprep.subr.mxu0 0.0
        %401 = vmatpush1.msra.mxu0 %v392
        %402 = vmatprep.subr.mxu0 0.0
        %403 = vmatpush1.msra.mxu0 %v393
        %404 = vmatprep.subr.mxu0 0.0
        %405 = vmatpush1.msra.mxu0 %v394
        %406 = vmatprep.subr.mxu0 0.0
        %407 = vmatpush1.msra.mxu0 %v395
        %408 = vmatprep.subr.mxu0 0.0
        %409 = vmatpush1.msra.mxu0 0.0
        %410 = vmatprep.subr.mxu0 0.0
        %411 = vmatpush1.msra.mxu0 0.0
        %412 = vmatprep.subr.mxu0 0.0
        %413 = vmatpush1.msra.mxu0 0.0
        %414 = vmatprep.subr.mxu0 0.0
        %415 = vmatpush1.msra.mxu0 0.0
        %416 = vmatprep.subr.mxu0 0.0
        %417 = vmatpush1.msra.mxu0 0.0
        %418 = vmatprep.subr.mxu0 0.0
        %419 = vmatpush1.msra.mxu0 0.0
        %420 = vmatprep.subr.mxu0 0.0
        %421 = vmatpush1.msra.mxu0 0.0
        %422 = vmatprep.subr.mxu0 0.0
        %423 = vmatpush1.msra.mxu0 0.0
        %424 = vmatprep.subr.mxu0 0.0
        %425 = vmatpush1.msra.mxu0 0.0
        %426 = vmatprep.subr.mxu0 0.0
        %427 = vmatpush1.msra.mxu0 0.0
        %428 = vmatprep.subr.mxu0 0.0
        %429 = vmatpush1.msra.mxu0 0.0
        %430 = vmatprep.subr.mxu0 0.0
        %431 = vmatpush1.msra.mxu0 0.0
        %432 = vmatprep.subr.mxu0 0.0
        %433 = vmatpush1.msra.mxu0 0.0
        %434 = vmatprep.subr.mxu0 0.0
        %435 = vmatpush1.msra.mxu0 0.0
        %436 = vmatprep.subr.mxu0 0.0
        %437 = vmatpush1.msra.mxu0 0.0
        %438 = vmatprep.subr.mxu0 0.0
        %439 = vmatpush1.msra.mxu0 0.0
        %440 = vmatprep.subr.mxu0 0.0
        %441 = vmatpush1.msra.mxu0 0.0
        %442 = vmatprep.subr.mxu0 0.0
        %443 = vmatpush1.msra.mxu0 0.0
        %444 = vmatprep.subr.mxu0 0.0
        %445 = vmatpush1.msra.mxu0 0.0
        %446 = vmatprep.subr.mxu0 0.0
        %447 = vmatpush1.msra.mxu0 0.0
        %448 = vmatprep.subr.mxu0 0.0
        %449 = vmatpush1.msra.mxu0 0.0
        %450 = vmatprep.subr.mxu0 0.0
        %451 = vmatpush1.msra.mxu0 0.0
        %452 = vmatprep.subr.mxu0 0.0
        %453 = vmatpush1.msra.mxu0 0.0
        %454 = vmatprep.subr.mxu0 0.0
        %455 = vmatpush1.msra.mxu0 0.0
        %456 = vmatprep.subr.mxu0 0.0
        %457 = vmatpush1.msra.mxu0 0.0
        %458 = vmatprep.subr.mxu0 0.0
        %459 = vmatpush1.msra.mxu0 0.0
        %460 = vmatprep.subr.mxu0 0.0
        %461 = vmatpush1.msra.mxu0 0.0
        %462 = vmatprep.subr.mxu0 0.0
        %463 = vmatpush1.msra.mxu0 0.0
        %464 = vmatprep.mubr.f32.mxu0 0.0
        %465 = vmatmul.mubr.f32.gmra.mrb[0].mxu0 %v398
        %v466 = vpop.f32.mrb[0].mxu0
        %v467 = vadd.f32 0.0, %v466
        %v468 = vpop.f32.mrb[0].mxu0
        %469 = vdwg.mxu0
        %v471 = vsel %vm396, %v384, 0
        %473 = vmatprep.subr.mxu0 0.0
        %474 = vmatpush1.msra.mxu0 %v385
        %475 = vmatprep.subr.mxu0 0.0
        %476 = vmatpush1.msra.mxu0 %v386
        %477 = vmatprep.subr.mxu0 0.0
        %478 = vmatpush1.msra.mxu0 %v387
        %479 = vmatprep.subr.mxu0 0.0
        %480 = vmatpush1.msra.mxu0 %v388
        %481 = vmatprep.subr.mxu0 0.0
        %482 = vmatpush1.msra.mxu0 0.0
        %483 = vmatprep.subr.mxu0 0.0
        %484 = vmatpush1.msra.mxu0 0.0
        %485 = vmatprep.subr.mxu0 0.0
        %486 = vmatpush1.msra.mxu0 0.0
        %487 = vmatprep.subr.mxu0 0.0
        %488 = vmatpush1.msra.mxu0 0.0
        %489 = vmatprep.subr.mxu0 0.0
        %490 = vmatpush1.msra.mxu0 0.0
        %491 = vmatprep.subr.mxu0 0.0
        %492 = vmatpush1.msra.mxu0 0.0
        %493 = vmatprep.subr.mxu0 0.0
        %494 = vmatpush1.msra.mxu0 0.0
        %495 = vmatprep.subr.mxu0 0.0
        %496 = vmatpush1.msra.mxu0 0.0
        %497 = vmatprep.subr.mxu0 0.0
        %498 = vmatpush1.msra.mxu0 0.0
        %499 = vmatprep.subr.mxu0 0.0
        %500 = vmatpush1.msra.mxu0 0.0
        %501 = vmatprep.subr.mxu0 0.0
        %502 = vmatpush1.msra.mxu0 0.0
        %503 = vmatprep.subr.mxu0 0.0
        %504 = vmatpush1.msra.mxu0 0.0
        %505 = vmatprep.subr.mxu0 0.0
        %506 = vmatpush1.msra.mxu0 0.0
        %507 = vmatprep.subr.mxu0 0.0
        %508 = vmatpush1.msra.mxu0 0.0
        %509 = vmatprep.subr.mxu0 0.0
        %510 = vmatpush1.msra.mxu0 0.0
        %511 = vmatprep.subr.mxu0 0.0
        %512 = vmatpush1.msra.mxu0 0.0
        %513 = vmatprep.subr.mxu0 0.0
        %514 = vmatpush1.msra.mxu0 0.0
        %515 = vmatprep.subr.mxu0 0.0
        %516 = vmatpush1.msra.mxu0 0.0
        %517 = vmatprep.subr.mxu0 0.0
        %518 = vmatpush1.msra.mxu0 0.0
        %519 = vmatprep.subr.mxu0 0.0
        %520 = vmatpush1.msra.mxu0 0.0
        %521 = vmatprep.subr.mxu0 0.0
        %522 = vmatpush1.msra.mxu0 0.0
        %523 = vmatprep.subr.mxu0 0.0
        %524 = vmatpush1.msra.mxu0 0.0
        %525 = vmatprep.subr.mxu0 0.0
        %526 = vmatpush1.msra.mxu0 0.0
        %527 = vmatprep.subr.mxu0 0.0
        %528 = vmatpush1.msra.mxu0 0.0
        %529 = vmatprep.subr.mxu0 0.0
        %530 = vmatpush1.msra.mxu0 0.0
        %531 = vmatprep.subr.mxu0 0.0
        %532 = vmatpush1.msra.mxu0 0.0
        %533 = vmatprep.subr.mxu0 0.0
        %534 = vmatpush1.msra.mxu0 0.0
        %535 = vmatprep.subr.mxu0 0.0
        %536 = vmatpush1.msra.mxu0 0.0
        %537 = vmatprep.mubr.f32.mxu0 0.0
        %538 = vmatmul.mubr.f32.gmra.mrb[0].mxu0 %v471
        %v539 = vpop.f32.mrb[0].mxu0
        %v540 = vadd.f32 %v467, %v539
        %v541 = vpop.f32.mrb[0].mxu0
        %542 = vdwg.mxu0
        %s543 = scalar_lea.vmem %s383, 16
        %v544 = vld [vmem:[%s543] sm:$0x7f]
        %s545 = scalar_lea.vmem %s1, 64
        %v546 = vld [vmem:[%s545] sm:$0xff]
        %v547 = vld [vmem:[%s545 + $0x8] sm:$0xff]
        %v548 = vld [vmem:[%s545 + $0x10] sm:$0xff]
        %v549 = vld [vmem:[%s545 + $0x18] sm:$0xff]
        %v551 = vsel %vm396, %v544, 0
        %553 = vmatprep.subr.mxu0 0.0
        %554 = vmatpush1.msra.mxu0 %v546
        %555 = vmatprep.subr.mxu0 0.0
        %556 = vmatpush1.msra.mxu0 %v547
        %557 = vmatprep.subr.mxu0 0.0
        %558 = vmatpush1.msra.mxu0 %v548
        %559 = vmatprep.subr.mxu0 0.0
        %560 = vmatpush1.msra.mxu0 %v549
        %561 = vmatprep.subr.mxu0 0.0
        %562 = vmatpush1.msra.mxu0 0.0
        %563 = vmatprep.subr.mxu0 0.0
        %564 = vmatpush1.msra.mxu0 0.0
        %565 = vmatprep.subr.mxu0 0.0
        %566 = vmatpush1.msra.mxu0 0.0
        %567 = vmatprep.subr.mxu0 0.0
        %568 = vmatpush1.msra.mxu0 0.0
        %569 = vmatprep.subr.mxu0 0.0
        %570 = vmatpush1.msra.mxu0 0.0
        %571 = vmatprep.subr.mxu0 0.0
        %572 = vmatpush1.msra.mxu0 0.0
        %573 = vmatprep.subr.mxu0 0.0
        %574 = vmatpush1.msra.mxu0 0.0
        %575 = vmatprep.subr.mxu0 0.0
        %576 = vmatpush1.msra.mxu0 0.0
        %577 = vmatprep.subr.mxu0 0.0
        %578 = vmatpush1.msra.mxu0 0.0
        %579 = vmatprep.subr.mxu0 0.0
        %580 = vmatpush1.msra.mxu0 0.0
        %581 = vmatprep.subr.mxu0 0.0
        %582 = vmatpush1.msra.mxu0 0.0
        %583 = vmatprep.subr.mxu0 0.0
        %584 = vmatpush1.msra.mxu0 0.0
        %585 = vmatprep.subr.mxu0 0.0
        %586 = vmatpush1.msra.mxu0 0.0
        %587 = vmatprep.subr.mxu0 0.0
        %588 = vmatpush1.msra.mxu0 0.0
        %589 = vmatprep.subr.mxu0 0.0
        %590 = vmatpush1.msra.mxu0 0.0
        %591 = vmatprep.subr.mxu0 0.0
        %592 = vmatpush1.msra.mxu0 0.0
        %593 = vmatprep.subr.mxu0 0.0
        %594 = vmatpush1.msra.mxu0 0.0
        %595 = vmatprep.subr.mxu0 0.0
        %596 = vmatpush1.msra.mxu0 0.0
        %597 = vmatprep.subr.mxu0 0.0
        %598 = vmatpush1.msra.mxu0 0.0
        %599 = vmatprep.subr.mxu0 0.0
        %600 = vmatpush1.msra.mxu0 0.0
        %601 = vmatprep.subr.mxu0 0.0
        %602 = vmatpush1.msra.mxu0 0.0
        %603 = vmatprep.subr.mxu0 0.0
        %604 = vmatpush1.msra.mxu0 0.0
        %605 = vmatprep.subr.mxu0 0.0
        %606 = vmatpush1.msra.mxu0 0.0
        %607 = vmatprep.subr.mxu0 0.0
        %608 = vmatpush1.msra.mxu0 0.0
        %609 = vmatprep.subr.mxu0 0.0
        %610 = vmatpush1.msra.mxu0 0.0
        %611 = vmatprep.subr.mxu0 0.0
        %612 = vmatpush1.msra.mxu0 0.0
        %613 = vmatprep.subr.mxu0 0.0
        %614 = vmatpush1.msra.mxu0 0.0
        %615 = vmatprep.subr.mxu0 0.0
        %616 = vmatpush1.msra.mxu0 0.0
        %617 = vmatprep.mubr.f32.mxu0 0.0
        %618 = vmatmul.mubr.f32.gmra.mrb[0].mxu0 %v551
        %v619 = vpop.f32.mrb[0].mxu0
        %v620 = vadd.f32 0.0, %v619
        %v621 = vpop.f32.mrb[0].mxu0
        %622 = vdwg.mxu0
        %v623 = vadd.f32 %v540, %v620
        %s624 = scalar_lea.vmem %s383, 24
        %v625 = vld [vmem:[%s624] sm:$0x7f]
        %s626 = scalar_lea.vmem %s1, 96
        %v627 = vld [vmem:[%s626] sm:$0xff]
        %v628 = vld [vmem:[%s626 + $0x8] sm:$0xff]
        %v629 = vld [vmem:[%s626 + $0x10] sm:$0xff]
        %v630 = vld [vmem:[%s626 + $0x18] sm:$0xff]
        %v632 = vsel %vm396, %v625, 0
        %634 = vmatprep.subr.mxu0 0.0
        %635 = vmatpush1.msra.mxu0 %v627
        %636 = vmatprep.subr.mxu0 0.0
        %637 = vmatpush1.msra.mxu0 %v628
        %638 = vmatprep.subr.mxu0 0.0
        %639 = vmatpush1.msra.mxu0 %v629
        %640 = vmatprep.subr.mxu0 0.0
        %641 = vmatpush1.msra.mxu0 %v630
        %642 = vmatprep.subr.mxu0 0.0
        %643 = vmatpush1.msra.mxu0 0.0
        %644 = vmatprep.subr.mxu0 0.0
        %645 = vmatpush1.msra.mxu0 0.0
        %646 = vmatprep.subr.mxu0 0.0
        %647 = vmatpush1.msra.mxu0 0.0
        %648 = vmatprep.subr.mxu0 0.0
        %649 = vmatpush1.msra.mxu0 0.0
        %650 = vmatprep.subr.mxu0 0.0
        %651 = vmatpush1.msra.mxu0 0.0
        %652 = vmatprep.subr.mxu0 0.0
        %653 = vmatpush1.msra.mxu0 0.0
        %654 = vmatprep.subr.mxu0 0.0
        %655 = vmatpush1.msra.mxu0 0.0
        %656 = vmatprep.subr.mxu0 0.0
        %657 = vmatpush1.msra.mxu0 0.0
        %658 = vmatprep.subr.mxu0 0.0
        %659 = vmatpush1.msra.mxu0 0.0
        %660 = vmatprep.subr.mxu0 0.0
        %661 = vmatpush1.msra.mxu0 0.0
        %662 = vmatprep.subr.mxu0 0.0
        %663 = vmatpush1.msra.mxu0 0.0
        %664 = vmatprep.subr.mxu0 0.0
        %665 = vmatpush1.msra.mxu0 0.0
        %666 = vmatprep.subr.mxu0 0.0
        %667 = vmatpush1.msra.mxu0 0.0
        %668 = vmatprep.subr.mxu0 0.0
        %669 = vmatpush1.msra.mxu0 0.0
        %670 = vmatprep.subr.mxu0 0.0
        %671 = vmatpush1.msra.mxu0 0.0
        %672 = vmatprep.subr.mxu0 0.0
        %673 = vmatpush1.msra.mxu0 0.0
        %674 = vmatprep.subr.mxu0 0.0
        %675 = vmatpush1.msra.mxu0 0.0
        %676 = vmatprep.subr.mxu0 0.0
        %677 = vmatpush1.msra.mxu0 0.0
        %678 = vmatprep.subr.mxu0 0.0
        %679 = vmatpush1.msra.mxu0 0.0
        %680 = vmatprep.subr.mxu0 0.0
        %681 = vmatpush1.msra.mxu0 0.0
        %682 = vmatprep.subr.mxu0 0.0
        %683 = vmatpush1.msra.mxu0 0.0
        %684 = vmatprep.subr.mxu0 0.0
        %685 = vmatpush1.msra.mxu0 0.0
        %686 = vmatprep.subr.mxu0 0.0
        %687 = vmatpush1.msra.mxu0 0.0
        %688 = vmatprep.subr.mxu0 0.0
        %689 = vmatpush1.msra.mxu0 0.0
        %690 = vmatprep.subr.mxu0 0.0
        %691 = vmatpush1.msra.mxu0 0.0
        %692 = vmatprep.subr.mxu0 0.0
        %693 = vmatpush1.msra.mxu0 0.0
        %694 = vmatprep.subr.mxu0 0.0
        %695 = vmatpush1.msra.mxu0 0.0
        %696 = vmatprep.subr.mxu0 0.0
        %697 = vmatpush1.msra.mxu0 0.0
        %698 = vmatprep.mubr.f32.mxu0 0.0
        %699 = vmatmul.mubr.f32.gmra.mrb[0].mxu0 %v632
        %v700 = vpop.f32.mrb[0].mxu0
        %v701 = vadd.f32 0.0, %v700
        %v702 = vpop.f32.mrb[0].mxu0
        %703 = vdwg.mxu0
        %v704 = vadd.f32 %v623, %v701
        %v705 = vld [vmem:[%s383 + $0x1] sm:$0x7f]
        %s706 = scalar_lea.vmem %s1, 128
        %v707 = vld [vmem:[%s706] sm:$0xff]
        %v708 = vld [vmem:[%s706 + $0x8] sm:$0xff]
        %v709 = vld [vmem:[%s706 + $0x10] sm:$0xff]
        %v710 = vld [vmem:[%s706 + $0x18] sm:$0xff]
        %v712 = vsel %vm396, %v705, 0
        %714 = vmatprep.subr.mxu0 0.0
        %715 = vmatpush1.msra.mxu0 %v707
        %716 = vmatprep.subr.mxu0 0.0
        %717 = vmatpush1.msra.mxu0 %v708
        %718 = vmatprep.subr.mxu0 0.0
        %719 = vmatpush1.msra.mxu0 %v709
        %720 = vmatprep.subr.mxu0 0.0
        %721 = vmatpush1.msra.mxu0 %v710
        %722 = vmatprep.subr.mxu0 0.0
        %723 = vmatpush1.msra.mxu0 0.0
        %724 = vmatprep.subr.mxu0 0.0
        %725 = vmatpush1.msra.mxu0 0.0
        %726 = vmatprep.subr.mxu0 0.0
        %727 = vmatpush1.msra.mxu0 0.0
        %728 = vmatprep.subr.mxu0 0.0
        %729 = vmatpush1.msra.mxu0 0.0
        %730 = vmatprep.subr.mxu0 0.0
        %731 = vmatpush1.msra.mxu0 0.0
        %732 = vmatprep.subr.mxu0 0.0
        %733 = vmatpush1.msra.mxu0 0.0
        %734 = vmatprep.subr.mxu0 0.0
        %735 = vmatpush1.msra.mxu0 0.0
        %736 = vmatprep.subr.mxu0 0.0
        %737 = vmatpush1.msra.mxu0 0.0
        %738 = vmatprep.subr.mxu0 0.0
        %739 = vmatpush1.msra.mxu0 0.0
        %740 = vmatprep.subr.mxu0 0.0
        %741 = vmatpush1.msra.mxu0 0.0
        %742 = vmatprep.subr.mxu0 0.0
        %743 = vmatpush1.msra.mxu0 0.0
        %744 = vmatprep.subr.mxu0 0.0
        %745 = vmatpush1.msra.mxu0 0.0
        %746 = vmatprep.subr.mxu0 0.0
        %747 = vmatpush1.msra.mxu0 0.0
        %748 = vmatprep.subr.mxu0 0.0
        %749 = vmatpush1.msra.mxu0 0.0
        %750 = vmatprep.subr.mxu0 0.0
        %751 = vmatpush1.msra.mxu0 0.0
        %752 = vmatprep.subr.mxu0 0.0
        %753 = vmatpush1.msra.mxu0 0.0
        %754 = vmatprep.subr.mxu0 0.0
        %755 = vmatpush1.msra.mxu0 0.0
        %756 = vmatprep.subr.mxu0 0.0
        %757 = vmatpush1.msra.mxu0 0.0
        %758 = vmatprep.subr.mxu0 0.0
        %759 = vmatpush1.msra.mxu0 0.0
        %760 = vmatprep.subr.mxu0 0.0
        %761 = vmatpush1.msra.mxu0 0.0
        %762 = vmatprep.subr.mxu0 0.0
        %763 = vmatpush1.msra.mxu0 0.0
        %764 = vmatprep.subr.mxu0 0.0
        %765 = vmatpush1.msra.mxu0 0.0
        %766 = vmatprep.subr.mxu0 0.0
        %767 = vmatpush1.msra.mxu0 0.0
        %768 = vmatprep.subr.mxu0 0.0
        %769 = vmatpush1.msra.mxu0 0.0
        %770 = vmatprep.subr.mxu0 0.0
        %771 = vmatpush1.msra.mxu0 0.0
        %772 = vmatprep.subr.mxu0 0.0
        %773 = vmatpush1.msra.mxu0 0.0
        %774 = vmatprep.subr.mxu0 0.0
        %775 = vmatpush1.msra.mxu0 0.0
        %776 = vmatprep.subr.mxu0 0.0
        %777 = vmatpush1.msra.mxu0 0.0
        %778 = vmatprep.mubr.f32.mxu0 0.0
        %779 = vmatmul.mubr.f32.gmra.mrb[0].mxu0 %v712
        %v780 = vpop.f32.mrb[0].mxu0
        %v781 = vadd.f32 0.0, %v780
        %v782 = vpop.f32.mrb[0].mxu0
        %783 = vdwg.mxu0
        %v784 = vadd.f32 %v704, %v781
        %s785 = scalar_lea.vmem %s1, 160
        %v786 = vld [vmem:[%s785] sm:$0xff]
        %v787 = vld [vmem:[%s785 + $0x8] sm:$0xff]
        %v788 = vld [vmem:[%s785 + $0x10] sm:$0xff]
        %v789 = vld [vmem:[%s785 + $0x18] sm:$0xff]
        %s790 = scalar_lea.vmem %s1, 192
        %v791 = vld [vmem:[%s790] sm:$0xff]
        %v792 = vld [vmem:[%s790 + $0x8] sm:$0xff]
        %v793 = vld [vmem:[%s790 + $0x10] sm:$0xff]
        %v794 = vld [vmem:[%s790 + $0x18] sm:$0xff]
        %795 = vmatprep.subr.mxu0 0.0
        %796 = vmatpush1.msra.mxu0 %v791
        %797 = vmatprep.subr.mxu0 0.0
        %798 = vmatpush1.msra.mxu0 %v792
        %799 = vmatprep.subr.mxu0 0.0
        %800 = vmatpush1.msra.mxu0 %v793
        %801 = vmatprep.subr.mxu0 0.0
        %802 = vmatpush1.msra.mxu0 %v794
        %803 = vmatprep.subr.mxu0 0.0
        %804 = vmatpush1.msra.mxu0 0.0
        %805 = vmatprep.subr.mxu0 0.0
        %806 = vmatpush1.msra.mxu0 0.0
        %807 = vmatprep.subr.mxu0 0.0
        %808 = vmatpush1.msra.mxu0 0.0
        %809 = vmatprep.subr.mxu0 0.0
        %810 = vmatpush1.msra.mxu0 0.0
        %811 = vmatprep.subr.mxu0 0.0
        %812 = vmatpush1.msra.mxu0 0.0
        %813 = vmatprep.subr.mxu0 0.0
        %814 = vmatpush1.msra.mxu0 0.0
        %815 = vmatprep.subr.mxu0 0.0
        %816 = vmatpush1.msra.mxu0 0.0
        %817 = vmatprep.subr.mxu0 0.0
        %818 = vmatpush1.msra.mxu0 0.0
        %819 = vmatprep.subr.mxu0 0.0
        %820 = vmatpush1.msra.mxu0 0.0
        %821 = vmatprep.subr.mxu0 0.0
        %822 = vmatpush1.msra.mxu0 0.0
        %823 = vmatprep.subr.mxu0 0.0
        %824 = vmatpush1.msra.mxu0 0.0
        %825 = vmatprep.subr.mxu0 0.0
        %826 = vmatpush1.msra.mxu0 0.0
        %827 = vmatprep.subr.mxu0 0.0
        %828 = vmatpush1.msra.mxu0 0.0
        %829 = vmatprep.subr.mxu0 0.0
        %830 = vmatpush1.msra.mxu0 0.0
        %831 = vmatprep.subr.mxu0 0.0
        %832 = vmatpush1.msra.mxu0 0.0
        %833 = vmatprep.subr.mxu0 0.0
        %834 = vmatpush1.msra.mxu0 0.0
        %835 = vmatprep.subr.mxu0 0.0
        %836 = vmatpush1.msra.mxu0 0.0
        %837 = vmatprep.subr.mxu0 0.0
        %838 = vmatpush1.msra.mxu0 0.0
        %839 = vmatprep.subr.mxu0 0.0
        %840 = vmatpush1.msra.mxu0 0.0
        %841 = vmatprep.subr.mxu0 0.0
        %842 = vmatpush1.msra.mxu0 0.0
        %843 = vmatprep.subr.mxu0 0.0
        %844 = vmatpush1.msra.mxu0 0.0
        %845 = vmatprep.subr.mxu0 0.0
        %846 = vmatpush1.msra.mxu0 0.0
        %847 = vmatprep.subr.mxu0 0.0
        %848 = vmatpush1.msra.mxu0 0.0
        %849 = vmatprep.subr.mxu0 0.0
        %850 = vmatpush1.msra.mxu0 0.0
        %851 = vmatprep.subr.mxu0 0.0
        %852 = vmatpush1.msra.mxu0 0.0
        %853 = vmatprep.subr.mxu0 0.0
        %854 = vmatpush1.msra.mxu0 0.0
        %855 = vmatprep.subr.mxu0 0.0
        %856 = vmatpush1.msra.mxu0 0.0
        %857 = vmatprep.subr.mxu0 0.0
        %858 = vmatpush1.msra.mxu0 0.0
        %859 = vmatprep.mubr.f32.mxu0 0.0
        %860 = vmatmul.mubr.f32.gmra.mrb[0].mxu0 %v398
        %v861 = vpop.f32.mrb[0].mxu0
        %v862 = vadd.f32 0.0, %v861
        %v863 = vpop.f32.mrb[0].mxu0
        %864 = vdwg.mxu0
        %865 = vmatprep.subr.mxu0 0.0
        %866 = vmatpush1.msra.mxu0 %v786
        %867 = vmatprep.subr.mxu0 0.0
        %868 = vmatpush1.msra.mxu0 %v787
        %869 = vmatprep.subr.mxu0 0.0
        %870 = vmatpush1.msra.mxu0 %v788
        %871 = vmatprep.subr.mxu0 0.0
        %872 = vmatpush1.msra.mxu0 %v789
        %873 = vmatprep.subr.mxu0 0.0
        %874 = vmatpush1.msra.mxu0 0.0
        %875 = vmatprep.subr.mxu0 0.0
        %876 = vmatpush1.msra.mxu0 0.0
        %877 = vmatprep.subr.mxu0 0.0
        %878 = vmatpush1.msra.mxu0 0.0
        %879 = vmatprep.subr.mxu0 0.0
        %880 = vmatpush1.msra.mxu0 0.0
        %881 = vmatprep.subr.mxu0 0.0
        %882 = vmatpush1.msra.mxu0 0.0
        %883 = vmatprep.subr.mxu0 0.0
        %884 = vmatpush1.msra.mxu0 0.0
        %885 = vmatprep.subr.mxu0 0.0
        %886 = vmatpush1.msra.mxu0 0.0
        %887 = vmatprep.subr.mxu0 0.0
        %888 = vmatpush1.msra.mxu0 0.0
        %889 = vmatprep.subr.mxu0 0.0
        %890 = vmatpush1.msra.mxu0 0.0
        %891 = vmatprep.subr.mxu0 0.0
        %892 = vmatpush1.msra.mxu0 0.0
        %893 = vmatprep.subr.mxu0 0.0
        %894 = vmatpush1.msra.mxu0 0.0
        %895 = vmatprep.subr.mxu0 0.0
        %896 = vmatpush1.msra.mxu0 0.0
        %897 = vmatprep.subr.mxu0 0.0
        %898 = vmatpush1.msra.mxu0 0.0
        %899 = vmatprep.subr.mxu0 0.0
        %900 = vmatpush1.msra.mxu0 0.0
        %901 = vmatprep.subr.mxu0 0.0
        %902 = vmatpush1.msra.mxu0 0.0
        %903 = vmatprep.subr.mxu0 0.0
        %904 = vmatpush1.msra.mxu0 0.0
        %905 = vmatprep.subr.mxu0 0.0
        %906 = vmatpush1.msra.mxu0 0.0
        %907 = vmatprep.subr.mxu0 0.0
        %908 = vmatpush1.msra.mxu0 0.0
        %909 = vmatprep.subr.mxu0 0.0
        %910 = vmatpush1.msra.mxu0 0.0
        %911 = vmatprep.subr.mxu0 0.0
        %912 = vmatpush1.msra.mxu0 0.0
        %913 = vmatprep.subr.mxu0 0.0
        %914 = vmatpush1.msra.mxu0 0.0
        %915 = vmatprep.subr.mxu0 0.0
        %916 = vmatpush1.msra.mxu0 0.0
        %917 = vmatprep.subr.mxu0 0.0
        %918 = vmatpush1.msra.mxu0 0.0
        %919 = vmatprep.subr.mxu0 0.0
        %920 = vmatpush1.msra.mxu0 0.0
        %921 = vmatprep.subr.mxu0 0.0
        %922 = vmatpush1.msra.mxu0 0.0
        %923 = vmatprep.subr.mxu0 0.0
        %924 = vmatpush1.msra.mxu0 0.0
        %925 = vmatprep.subr.mxu0 0.0
        %926 = vmatpush1.msra.mxu0 0.0
        %927 = vmatprep.subr.mxu0 0.0
        %928 = vmatpush1.msra.mxu0 0.0
        %929 = vmatprep.mubr.f32.mxu0 0.0
        %930 = vmatmul.mubr.f32.gmra.mrb[0].mxu0 %v471
        %v931 = vpop.f32.mrb[0].mxu0
        %v932 = vadd.f32 %v862, %v931
        %v933 = vpop.f32.mrb[0].mxu0
        %934 = vdwg.mxu0
        %s935 = scalar_lea.vmem %s1, 224
        %v936 = vld [vmem:[%s935] sm:$0xff]
        %v937 = vld [vmem:[%s935 + $0x8] sm:$0xff]
        %v938 = vld [vmem:[%s935 + $0x10] sm:$0xff]
        %v939 = vld [vmem:[%s935 + $0x18] sm:$0xff]
        %940 = vmatprep.subr.mxu0 0.0
        %941 = vmatpush1.msra.mxu0 %v936
        %942 = vmatprep.subr.mxu0 0.0
        %943 = vmatpush1.msra.mxu0 %v937
        %944 = vmatprep.subr.mxu0 0.0
        %945 = vmatpush1.msra.mxu0 %v938
        %946 = vmatprep.subr.mxu0 0.0
        %947 = vmatpush1.msra.mxu0 %v939
        %948 = vmatprep.subr.mxu0 0.0
        %949 = vmatpush1.msra.mxu0 0.0
        %950 = vmatprep.subr.mxu0 0.0
        %951 = vmatpush1.msra.mxu0 0.0
        %952 = vmatprep.subr.mxu0 0.0
        %953 = vmatpush1.msra.mxu0 0.0
        %954 = vmatprep.subr.mxu0 0.0
        %955 = vmatpush1.msra.mxu0 0.0
        %956 = vmatprep.subr.mxu0 0.0
        %957 = vmatpush1.msra.mxu0 0.0
        %958 = vmatprep.subr.mxu0 0.0
        %959 = vmatpush1.msra.mxu0 0.0
        %960 = vmatprep.subr.mxu0 0.0
        %961 = vmatpush1.msra.mxu0 0.0
        %962 = vmatprep.subr.mxu0 0.0
        %963 = vmatpush1.msra.mxu0 0.0
        %964 = vmatprep.subr.mxu0 0.0
        %965 = vmatpush1.msra.mxu0 0.0
        %966 = vmatprep.subr.mxu0 0.0
        %967 = vmatpush1.msra.mxu0 0.0
        %968 = vmatprep.subr.mxu0 0.0
        %969 = vmatpush1.msra.mxu0 0.0
        %970 = vmatprep.subr.mxu0 0.0
        %971 = vmatpush1.msra.mxu0 0.0
        %972 = vmatprep.subr.mxu0 0.0
        %973 = vmatpush1.msra.mxu0 0.0
        %974 = vmatprep.subr.mxu0 0.0
        %975 = vmatpush1.msra.mxu0 0.0
        %976 = vmatprep.subr.mxu0 0.0
        %977 = vmatpush1.msra.mxu0 0.0
        %978 = vmatprep.subr.mxu0 0.0
        %979 = vmatpush1.msra.mxu0 0.0
        %980 = vmatprep.subr.mxu0 0.0
        %981 = vmatpush1.msra.mxu0 0.0
        %982 = vmatprep.subr.mxu0 0.0
        %983 = vmatpush1.msra.mxu0 0.0
        %984 = vmatprep.subr.mxu0 0.0
        %985 = vmatpush1.msra.mxu0 0.0
        %986 = vmatprep.subr.mxu0 0.0
        %987 = vmatpush1.msra.mxu0 0.0
        %988 = vmatprep.subr.mxu0 0.0
        %989 = vmatpush1.msra.mxu0 0.0
        %990 = vmatprep.subr.mxu0 0.0
        %991 = vmatpush1.msra.mxu0 0.0
        %992 = vmatprep.subr.mxu0 0.0
        %993 = vmatpush1.msra.mxu0 0.0
        %994 = vmatprep.subr.mxu0 0.0
        %995 = vmatpush1.msra.mxu0 0.0
        %996 = vmatprep.subr.mxu0 0.0
        %997 = vmatpush1.msra.mxu0 0.0
        %998 = vmatprep.subr.mxu0 0.0
        %999 = vmatpush1.msra.mxu0 0.0
        %1000 = vmatprep.subr.mxu0 0.0
        %1001 = vmatpush1.msra.mxu0 0.0
        %1002 = vmatprep.subr.mxu0 0.0
        %1003 = vmatpush1.msra.mxu0 0.0
        %1004 = vmatprep.mubr.f32.mxu0 0.0
        %1005 = vmatmul.mubr.f32.gmra.mrb[0].mxu0 %v551
        %v1006 = vpop.f32.mrb[0].mxu0
        %v1007 = vadd.f32 0.0, %v1006
        %v1008 = vpop.f32.mrb[0].mxu0
        %1009 = vdwg.mxu0
        %v1010 = vadd.f32 %v932, %v1007
        %s1011 = scalar_lea.vmem %s1, 256
        %v1012 = vld [vmem:[%s1011] sm:$0xff]
        %v1013 = vld [vmem:[%s1011 + $0x8] sm:$0xff]
        %v1014 = vld [vmem:[%s1011 + $0x10] sm:$0xff]
        %v1015 = vld [vmem:[%s1011 + $0x18] sm:$0xff]
        %1016 = vmatprep.subr.mxu0 0.0
        %1017 = vmatpush1.msra.mxu0 %v1012
        %1018 = vmatprep.subr.mxu0 0.0
        %1019 = vmatpush1.msra.mxu0 %v1013
        %1020 = vmatprep.subr.mxu0 0.0
        %1021 = vmatpush1.msra.mxu0 %v1014
        %1022 = vmatprep.subr.mxu0 0.0
        %1023 = vmatpush1.msra.mxu0 %v1015
        %1024 = vmatprep.subr.mxu0 0.0
        %1025 = vmatpush1.msra.mxu0 0.0
        %1026 = vmatprep.subr.mxu0 0.0
        %1027 = vmatpush1.msra.mxu0 0.0
        %1028 = vmatprep.subr.mxu0 0.0
        %1029 = vmatpush1.msra.mxu0 0.0
        %1030 = vmatprep.subr.mxu0 0.0
        %1031 = vmatpush1.msra.mxu0 0.0
        %1032 = vmatprep.subr.mxu0 0.0
        %1033 = vmatpush1.msra.mxu0 0.0
        %1034 = vmatprep.subr.mxu0 0.0
        %1035 = vmatpush1.msra.mxu0 0.0
        %1036 = vmatprep.subr.mxu0 0.0
        %1037 = vmatpush1.msra.mxu0 0.0
        %1038 = vmatprep.subr.mxu0 0.0
        %1039 = vmatpush1.msra.mxu0 0.0
        %1040 = vmatprep.subr.mxu0 0.0
        %1041 = vmatpush1.msra.mxu0 0.0
        %1042 = vmatprep.subr.mxu0 0.0
        %1043 = vmatpush1.msra.mxu0 0.0
        %1044 = vmatprep.subr.mxu0 0.0
        %1045 = vmatpush1.msra.mxu0 0.0
        %1046 = vmatprep.subr.mxu0 0.0
        %1047 = vmatpush1.msra.mxu0 0.0
        %1048 = vmatprep.subr.mxu0 0.0
        %1049 = vmatpush1.msra.mxu0 0.0
        %1050 = vmatprep.subr.mxu0 0.0
        %1051 = vmatpush1.msra.mxu0 0.0
        %1052 = vmatprep.subr.mxu0 0.0
        %1053 = vmatpush1.msra.mxu0 0.0
        %1054 = vmatprep.subr.mxu0 0.0
        %1055 = vmatpush1.msra.mxu0 0.0
        %1056 = vmatprep.subr.mxu0 0.0
        %1057 = vmatpush1.msra.mxu0 0.0
        %1058 = vmatprep.subr.mxu0 0.0
        %1059 = vmatpush1.msra.mxu0 0.0
        %1060 = vmatprep.subr.mxu0 0.0
        %1061 = vmatpush1.msra.mxu0 0.0
        %1062 = vmatprep.subr.mxu0 0.0
        %1063 = vmatpush1.msra.mxu0 0.0
        %1064 = vmatprep.subr.mxu0 0.0
        %1065 = vmatpush1.msra.mxu0 0.0
        %1066 = vmatprep.subr.mxu0 0.0
        %1067 = vmatpush1.msra.mxu0 0.0
        %1068 = vmatprep.subr.mxu0 0.0
        %1069 = vmatpush1.msra.mxu0 0.0
        %1070 = vmatprep.subr.mxu0 0.0
        %1071 = vmatpush1.msra.mxu0 0.0
        %1072 = vmatprep.subr.mxu0 0.0
        %1073 = vmatpush1.msra.mxu0 0.0
        %1074 = vmatprep.subr.mxu0 0.0
        %1075 = vmatpush1.msra.mxu0 0.0
        %1076 = vmatprep.subr.mxu0 0.0
        %1077 = vmatpush1.msra.mxu0 0.0
        %1078 = vmatprep.subr.mxu0 0.0
        %1079 = vmatpush1.msra.mxu0 0.0
        %1080 = vmatprep.mubr.f32.mxu0 0.0
        %1081 = vmatmul.mubr.f32.gmra.mrb[0].mxu0 %v632
        %v1082 = vpop.f32.mrb[0].mxu0
        %v1083 = vadd.f32 0.0, %v1082
        %v1084 = vpop.f32.mrb[0].mxu0
        %1085 = vdwg.mxu0
        %v1086 = vadd.f32 %v1010, %v1083
        %s1087 = scalar_lea.vmem %s1, 288
        %v1088 = vld [vmem:[%s1087] sm:$0xff]
        %v1089 = vld [vmem:[%s1087 + $0x8] sm:$0xff]
        %v1090 = vld [vmem:[%s1087 + $0x10] sm:$0xff]
        %v1091 = vld [vmem:[%s1087 + $0x18] sm:$0xff]
        %1092 = vmatprep.subr.mxu0 0.0
        %1093 = vmatpush1.msra.mxu0 %v1088
        %1094 = vmatprep.subr.mxu0 0.0
        %1095 = vmatpush1.msra.mxu0 %v1089
        %1096 = vmatprep.subr.mxu0 0.0
        %1097 = vmatpush1.msra.mxu0 %v1090
        %1098 = vmatprep.subr.mxu0 0.0
        %1099 = vmatpush1.msra.mxu0 %v1091
        %1100 = vmatprep.subr.mxu0 0.0
        %1101 = vmatpush1.msra.mxu0 0.0
        %1102 = vmatprep.subr.mxu0 0.0
        %1103 = vmatpush1.msra.mxu0 0.0
        %1104 = vmatprep.subr.mxu0 0.0
        %1105 = vmatpush1.msra.mxu0 0.0
        %1106 = vmatprep.subr.mxu0 0.0
        %1107 = vmatpush1.msra.mxu0 0.0
        %1108 = vmatprep.subr.mxu0 0.0
        %1109 = vmatpush1.msra.mxu0 0.0
        %1110 = vmatprep.subr.mxu0 0.0
        %1111 = vmatpush1.msra.mxu0 0.0
        %1112 = vmatprep.subr.mxu0 0.0
        %1113 = vmatpush1.msra.mxu0 0.0
        %1114 = vmatprep.subr.mxu0 0.0
        %1115 = vmatpush1.msra.mxu0 0.0
        %1116 = vmatprep.subr.mxu0 0.0
        %1117 = vmatpush1.msra.mxu0 0.0
        %1118 = vmatprep.subr.mxu0 0.0
        %1119 = vmatpush1.msra.mxu0 0.0
        %1120 = vmatprep.subr.mxu0 0.0
        %1121 = vmatpush1.msra.mxu0 0.0
        %1122 = vmatprep.subr.mxu0 0.0
        %1123 = vmatpush1.msra.mxu0 0.0
        %1124 = vmatprep.subr.mxu0 0.0
        %1125 = vmatpush1.msra.mxu0 0.0
        %1126 = vmatprep.subr.mxu0 0.0
        %1127 = vmatpush1.msra.mxu0 0.0
        %1128 = vmatprep.subr.mxu0 0.0
        %1129 = vmatpush1.msra.mxu0 0.0
        %1130 = vmatprep.subr.mxu0 0.0
        %1131 = vmatpush1.msra.mxu0 0.0
        %1132 = vmatprep.subr.mxu0 0.0
        %1133 = vmatpush1.msra.mxu0 0.0
        %1134 = vmatprep.subr.mxu0 0.0
        %1135 = vmatpush1.msra.mxu0 0.0
        %1136 = vmatprep.subr.mxu0 0.0
        %1137 = vmatpush1.msra.mxu0 0.0
        %1138 = vmatprep.subr.mxu0 0.0
        %1139 = vmatpush1.msra.mxu0 0.0
        %1140 = vmatprep.subr.mxu0 0.0
        %1141 = vmatpush1.msra.mxu0 0.0
        %1142 = vmatprep.subr.mxu0 0.0
        %1143 = vmatpush1.msra.mxu0 0.0
        %1144 = vmatprep.subr.mxu0 0.0
        %1145 = vmatpush1.msra.mxu0 0.0
        %1146 = vmatprep.subr.mxu0 0.0
        %1147 = vmatpush1.msra.mxu0 0.0
        %1148 = vmatprep.subr.mxu0 0.0
        %1149 = vmatpush1.msra.mxu0 0.0
        %1150 = vmatprep.subr.mxu0 0.0
        %1151 = vmatpush1.msra.mxu0 0.0
        %1152 = vmatprep.subr.mxu0 0.0
        %1153 = vmatpush1.msra.mxu0 0.0
        %1154 = vmatprep.subr.mxu0 0.0
        %1155 = vmatpush1.msra.mxu0 0.0
        %1156 = vmatprep.mubr.f32.mxu0 0.0
        %1157 = vmatmul.mubr.f32.gmra.mrb[0].mxu0 %v712
        %v1158 = vpop.f32.mrb[0].mxu0
        %v1159 = vadd.f32 0.0, %v1158
        %v1160 = vpop.f32.mrb[0].mxu0
        %1161 = vdwg.mxu0
        %v1162 = vadd.f32 %v1086, %v1159
        %1163 = vmatprep.subr.mxu0 0.0
        %1164 = vmatpush1.msra.mxu0 %v392
        %1165 = vmatprep.subr.mxu0 0.0
        %1166 = vmatpush1.msra.mxu0 %v393
        %1167 = vmatprep.subr.mxu0 0.0
        %1168 = vmatpush1.msra.mxu0 %v394
        %1169 = vmatprep.subr.mxu0 0.0
        %1170 = vmatpush1.msra.mxu0 %v395
        %1171 = vmatprep.subr.mxu0 0.0
        %1172 = vmatpush1.msra.mxu0 0.0
        %1173 = vmatprep.subr.mxu0 0.0
        %1174 = vmatpush1.msra.mxu0 0.0
        %1175 = vmatprep.subr.mxu0 0.0
        %1176 = vmatpush1.msra.mxu0 0.0
        %1177 = vmatprep.subr.mxu0 0.0
        %1178 = vmatpush1.msra.mxu0 0.0
        %1179 = vmatprep.subr.mxu0 0.0
        %1180 = vmatpush1.msra.mxu0 0.0
        %1181 = vmatprep.subr.mxu0 0.0
        %1182 = vmatpush1.msra.mxu0 0.0
        %1183 = vmatprep.subr.mxu0 0.0
        %1184 = vmatpush1.msra.mxu0 0.0
        %1185 = vmatprep.subr.mxu0 0.0
        %1186 = vmatpush1.msra.mxu0 0.0
        %1187 = vmatprep.subr.mxu0 0.0
        %1188 = vmatpush1.msra.mxu0 0.0
        %1189 = vmatprep.subr.mxu0 0.0
        %1190 = vmatpush1.msra.mxu0 0.0
        %1191 = vmatprep.subr.mxu0 0.0
        %1192 = vmatpush1.msra.mxu0 0.0
        %1193 = vmatprep.subr.mxu0 0.0
        %1194 = vmatpush1.msra.mxu0 0.0
        %1195 = vmatprep.subr.mxu0 0.0
        %1196 = vmatpush1.msra.mxu0 0.0
        %1197 = vmatprep.subr.mxu0 0.0
        %1198 = vmatpush1.msra.mxu0 0.0
        %1199 = vmatprep.subr.mxu0 0.0
        %1200 = vmatpush1.msra.mxu0 0.0
        %1201 = vmatprep.subr.mxu0 0.0
        %1202 = vmatpush1.msra.mxu0 0.0
        %1203 = vmatprep.subr.mxu0 0.0
        %1204 = vmatpush1.msra.mxu0 0.0
        %1205 = vmatprep.subr.mxu0 0.0
        %1206 = vmatpush1.msra.mxu0 0.0
        %1207 = vmatprep.subr.mxu0 0.0
        %1208 = vmatpush1.msra.mxu0 0.0
        %1209 = vmatprep.subr.mxu0 0.0
        %1210 = vmatpush1.msra.mxu0 0.0
        %1211 = vmatprep.subr.mxu0 0.0
        %1212 = vmatpush1.msra.mxu0 0.0
        %1213 = vmatprep.subr.mxu0 0.0
        %1214 = vmatpush1.msra.mxu0 0.0
        %1215 = vmatprep.subr.mxu0 0.0
        %1216 = vmatpush1.msra.mxu0 0.0
        %1217 = vmatprep.subr.mxu0 0.0
        %1218 = vmatpush1.msra.mxu0 0.0
        %1219 = vmatprep.subr.mxu0 0.0
        %1220 = vmatpush1.msra.mxu0 0.0
        %1221 = vmatprep.subr.mxu0 0.0
        %1222 = vmatpush1.msra.mxu0 0.0
        %1223 = vmatprep.subr.mxu0 0.0
        %1224 = vmatpush1.msra.mxu0 0.0
        %1225 = vmatprep.subr.mxu0 0.0
        %1226 = vmatpush1.msra.mxu0 0.0
        %1227 = vmatprep.mubr.f32.mxu0 0.0
        %1228 = vmatmul.mubr.f32.gmra.mrb[0].mxu0 %v551
        %v1229 = vpop.f32.mrb[0].mxu0
        %v1230 = vadd.f32 0.0, %v1229
        %v1231 = vpop.f32.mrb[0].mxu0
        %1232 = vdwg.mxu0
        %1233 = vmatprep.subr.mxu0 0.0
        %1234 = vmatpush1.msra.mxu0 %v385
        %1235 = vmatprep.subr.mxu0 0.0
        %1236 = vmatpush1.msra.mxu0 %v386
        %1237 = vmatprep.subr.mxu0 0.0
        %1238 = vmatpush1.msra.mxu0 %v387
        %1239 = vmatprep.subr.mxu0 0.0
        %1240 = vmatpush1.msra.mxu0 %v388
        %1241 = vmatprep.subr.mxu0 0.0
        %1242 = vmatpush1.msra.mxu0 0.0
        %1243 = vmatprep.subr.mxu0 0.0
        %1244 = vmatpush1.msra.mxu0 0.0
        %1245 = vmatprep.subr.mxu0 0.0
        %1246 = vmatpush1.msra.mxu0 0.0
        %1247 = vmatprep.subr.mxu0 0.0
        %1248 = vmatpush1.msra.mxu0 0.0
        %1249 = vmatprep.subr.mxu0 0.0
        %1250 = vmatpush1.msra.mxu0 0.0
        %1251 = vmatprep.subr.mxu0 0.0
        %1252 = vmatpush1.msra.mxu0 0.0
        %1253 = vmatprep.subr.mxu0 0.0
        %1254 = vmatpush1.msra.mxu0 0.0
        %1255 = vmatprep.subr.mxu0 0.0
        %1256 = vmatpush1.msra.mxu0 0.0
        %1257 = vmatprep.subr.mxu0 0.0
        %1258 = vmatpush1.msra.mxu0 0.0
        %1259 = vmatprep.subr.mxu0 0.0
        %1260 = vmatpush1.msra.mxu0 0.0
        %1261 = vmatprep.subr.mxu0 0.0
        %1262 = vmatpush1.msra.mxu0 0.0
        %1263 = vmatprep.subr.mxu0 0.0
        %1264 = vmatpush1.msra.mxu0 0.0
        %1265 = vmatprep.subr.mxu0 0.0
        %1266 = vmatpush1.msra.mxu0 0.0
        %1267 = vmatprep.subr.mxu0 0.0
        %1268 = vmatpush1.msra.mxu0 0.0
        %1269 = vmatprep.subr.mxu0 0.0
        %1270 = vmatpush1.msra.mxu0 0.0
        %1271 = vmatprep.subr.mxu0 0.0
        %1272 = vmatpush1.msra.mxu0 0.0
        %1273 = vmatprep.subr.mxu0 0.0
        %1274 = vmatpush1.msra.mxu0 0.0
        %1275 = vmatprep.subr.mxu0 0.0
        %1276 = vmatpush1.msra.mxu0 0.0
        %1277 = vmatprep.subr.mxu0 0.0
        %1278 = vmatpush1.msra.mxu0 0.0
        %1279 = vmatprep.subr.mxu0 0.0
        %1280 = vmatpush1.msra.mxu0 0.0
        %1281 = vmatprep.subr.mxu0 0.0
        %1282 = vmatpush1.msra.mxu0 0.0
        %1283 = vmatprep.subr.mxu0 0.0
        %1284 = vmatpush1.msra.mxu0 0.0
        %1285 = vmatprep.subr.mxu0 0.0
        %1286 = vmatpush1.msra.mxu0 0.0
        %1287 = vmatprep.subr.mxu0 0.0
        %1288 = vmatpush1.msra.mxu0 0.0
        %1289 = vmatprep.subr.mxu0 0.0
        %1290 = vmatpush1.msra.mxu0 0.0
        %1291 = vmatprep.subr.mxu0 0.0
        %1292 = vmatpush1.msra.mxu0 0.0
        %1293 = vmatprep.subr.mxu0 0.0
        %1294 = vmatpush1.msra.mxu0 0.0
        %1295 = vmatprep.subr.mxu0 0.0
        %1296 = vmatpush1.msra.mxu0 0.0
        %1297 = vmatprep.mubr.f32.mxu0 0.0
        %1298 = vmatmul.mubr.f32.gmra.mrb[0].mxu0 %v398
        %v1299 = vpop.f32.mrb[0].mxu0
        %v1300 = vadd.f32 %v1230, %v1299
        %v1301 = vpop.f32.mrb[0].mxu0
        %1302 = vdwg.mxu0
        %1303 = vmatprep.subr.mxu0 0.0
        %1304 = vmatpush1.msra.mxu0 %v546
        %1305 = vmatprep.subr.mxu0 0.0
        %1306 = vmatpush1.msra.mxu0 %v547
        %1307 = vmatprep.subr.mxu0 0.0
        %1308 = vmatpush1.msra.mxu0 %v548
        %1309 = vmatprep.subr.mxu0 0.0
        %1310 = vmatpush1.msra.mxu0 %v549
        %1311 = vmatprep.subr.mxu0 0.0
        %1312 = vmatpush1.msra.mxu0 0.0
        %1313 = vmatprep.subr.mxu0 0.0
        %1314 = vmatpush1.msra.mxu0 0.0
        %1315 = vmatprep.subr.mxu0 0.0
        %1316 = vmatpush1.msra.mxu0 0.0
        %1317 = vmatprep.subr.mxu0 0.0
        %1318 = vmatpush1.msra.mxu0 0.0
        %1319 = vmatprep.subr.mxu0 0.0
        %1320 = vmatpush1.msra.mxu0 0.0
        %1321 = vmatprep.subr.mxu0 0.0
        %1322 = vmatpush1.msra.mxu0 0.0
        %1323 = vmatprep.subr.mxu0 0.0
        %1324 = vmatpush1.msra.mxu0 0.0
        %1325 = vmatprep.subr.mxu0 0.0
        %1326 = vmatpush1.msra.mxu0 0.0
        %1327 = vmatprep.subr.mxu0 0.0
        %1328 = vmatpush1.msra.mxu0 0.0
        %1329 = vmatprep.subr.mxu0 0.0
        %1330 = vmatpush1.msra.mxu0 0.0
        %1331 = vmatprep.subr.mxu0 0.0
        %1332 = vmatpush1.msra.mxu0 0.0
        %1333 = vmatprep.subr.mxu0 0.0
        %1334 = vmatpush1.msra.mxu0 0.0
        %1335 = vmatprep.subr.mxu0 0.0
        %1336 = vmatpush1.msra.mxu0 0.0
        %1337 = vmatprep.subr.mxu0 0.0
        %1338 = vmatpush1.msra.mxu0 0.0
        %1339 = vmatprep.subr.mxu0 0.0
        %1340 = vmatpush1.msra.mxu0 0.0
        %1341 = vmatprep.subr.mxu0 0.0
        %1342 = vmatpush1.msra.mxu0 0.0
        %1343 = vmatprep.subr.mxu0 0.0
        %1344 = vmatpush1.msra.mxu0 0.0
        %1345 = vmatprep.subr.mxu0 0.0
        %1346 = vmatpush1.msra.mxu0 0.0
        %1347 = vmatprep.subr.mxu0 0.0
        %1348 = vmatpush1.msra.mxu0 0.0
        %1349 = vmatprep.subr.mxu0 0.0
        %1350 = vmatpush1.msra.mxu0 0.0
        %1351 = vmatprep.subr.mxu0 0.0
        %1352 = vmatpush1.msra.mxu0 0.0
        %1353 = vmatprep.subr.mxu0 0.0
        %1354 = vmatpush1.msra.mxu0 0.0
        %1355 = vmatprep.subr.mxu0 0.0
        %1356 = vmatpush1.msra.mxu0 0.0
        %1357 = vmatprep.subr.mxu0 0.0
        %1358 = vmatpush1.msra.mxu0 0.0
        %1359 = vmatprep.subr.mxu0 0.0
        %1360 = vmatpush1.msra.mxu0 0.0
        %1361 = vmatprep.subr.mxu0 0.0
        %1362 = vmatpush1.msra.mxu0 0.0
        %1363 = vmatprep.subr.mxu0 0.0
        %1364 = vmatpush1.msra.mxu0 0.0
        %1365 = vmatprep.subr.mxu0 0.0
        %1366 = vmatpush1.msra.mxu0 0.0
        %1367 = vmatprep.mubr.f32.mxu0 0.0
        %1368 = vmatmul.mubr.f32.gmra.mrb[0].mxu0 %v632
        %v1369 = vpop.f32.mrb[0].mxu0
        %v1370 = vadd.f32 0.0, %v1369
        %v1371 = vpop.f32.mrb[0].mxu0
        %1372 = vdwg.mxu0
        %v1373 = vadd.f32 %v1300, %v1370
        %1374 = vmatprep.subr.mxu0 0.0
        %1375 = vmatpush1.msra.mxu0 %v627
        %1376 = vmatprep.subr.mxu0 0.0
        %1377 = vmatpush1.msra.mxu0 %v628
        %1378 = vmatprep.subr.mxu0 0.0
        %1379 = vmatpush1.msra.mxu0 %v629
        %1380 = vmatprep.subr.mxu0 0.0
        %1381 = vmatpush1.msra.mxu0 %v630
        %1382 = vmatprep.subr.mxu0 0.0
        %1383 = vmatpush1.msra.mxu0 0.0
        %1384 = vmatprep.subr.mxu0 0.0
        %1385 = vmatpush1.msra.mxu0 0.0
        %1386 = vmatprep.subr.mxu0 0.0
        %1387 = vmatpush1.msra.mxu0 0.0
        %1388 = vmatprep.subr.mxu0 0.0
        %1389 = vmatpush1.msra.mxu0 0.0
        %1390 = vmatprep.subr.mxu0 0.0
        %1391 = vmatpush1.msra.mxu0 0.0
        %1392 = vmatprep.subr.mxu0 0.0
        %1393 = vmatpush1.msra.mxu0 0.0
        %1394 = vmatprep.subr.mxu0 0.0
        %1395 = vmatpush1.msra.mxu0 0.0
        %1396 = vmatprep.subr.mxu0 0.0
        %1397 = vmatpush1.msra.mxu0 0.0
        %1398 = vmatprep.subr.mxu0 0.0
        %1399 = vmatpush1.msra.mxu0 0.0
        %1400 = vmatprep.subr.mxu0 0.0
        %1401 = vmatpush1.msra.mxu0 0.0
        %1402 = vmatprep.subr.mxu0 0.0
        %1403 = vmatpush1.msra.mxu0 0.0
        %1404 = vmatprep.subr.mxu0 0.0
        %1405 = vmatpush1.msra.mxu0 0.0
        %1406 = vmatprep.subr.mxu0 0.0
        %1407 = vmatpush1.msra.mxu0 0.0
        %1408 = vmatprep.subr.mxu0 0.0
        %1409 = vmatpush1.msra.mxu0 0.0
        %1410 = vmatprep.subr.mxu0 0.0
        %1411 = vmatpush1.msra.mxu0 0.0
        %1412 = vmatprep.subr.mxu0 0.0
        %1413 = vmatpush1.msra.mxu0 0.0
        %1414 = vmatprep.subr.mxu0 0.0
        %1415 = vmatpush1.msra.mxu0 0.0
        %1416 = vmatprep.subr.mxu0 0.0
        %1417 = vmatpush1.msra.mxu0 0.0
        %1418 = vmatprep.subr.mxu0 0.0
        %1419 = vmatpush1.msra.mxu0 0.0
        %1420 = vmatprep.subr.mxu0 0.0
        %1421 = vmatpush1.msra.mxu0 0.0
        %1422 = vmatprep.subr.mxu0 0.0
        %1423 = vmatpush1.msra.mxu0 0.0
        %1424 = vmatprep.subr.mxu0 0.0
        %1425 = vmatpush1.msra.mxu0 0.0
        %1426 = vmatprep.subr.mxu0 0.0
        %1427 = vmatpush1.msra.mxu0 0.0
        %1428 = vmatprep.subr.mxu0 0.0
        %1429 = vmatpush1.msra.mxu0 0.0
        %1430 = vmatprep.subr.mxu0 0.0
        %1431 = vmatpush1.msra.mxu0 0.0
        %1432 = vmatprep.subr.mxu0 0.0
        %1433 = vmatpush1.msra.mxu0 0.0
        %1434 = vmatprep.subr.mxu0 0.0
        %1435 = vmatpush1.msra.mxu0 0.0
        %1436 = vmatprep.subr.mxu0 0.0
        %1437 = vmatpush1.msra.mxu0 0.0
        %1438 = vmatprep.mubr.f32.mxu0 0.0
        %1439 = vmatmul.mubr.f32.gmra.mrb[0].mxu0 %v712
        %v1440 = vpop.f32.mrb[0].mxu0
        %v1441 = vadd.f32 0.0, %v1440
        %v1442 = vpop.f32.mrb[0].mxu0
        %1443 = vdwg.mxu0
        %v1444 = vadd.f32 %v1373, %v1441
        %v1445 = vld [vmem:[%s389 + $0x1] sm:$0x7f]
        %v1447 = vsel %vm396, %v1445, 0
        %1449 = vmatprep.subr.mxu0 0.0
        %1450 = vmatpush1.msra.mxu0 %v707
        %1451 = vmatprep.subr.mxu0 0.0
        %1452 = vmatpush1.msra.mxu0 %v708
        %1453 = vmatprep.subr.mxu0 0.0
        %1454 = vmatpush1.msra.mxu0 %v709
        %1455 = vmatprep.subr.mxu0 0.0
        %1456 = vmatpush1.msra.mxu0 %v710
        %1457 = vmatprep.subr.mxu0 0.0
        %1458 = vmatpush1.msra.mxu0 0.0
        %1459 = vmatprep.subr.mxu0 0.0
        %1460 = vmatpush1.msra.mxu0 0.0
        %1461 = vmatprep.subr.mxu0 0.0
        %1462 = vmatpush1.msra.mxu0 0.0
        %1463 = vmatprep.subr.mxu0 0.0
        %1464 = vmatpush1.msra.mxu0 0.0
        %1465 = vmatprep.subr.mxu0 0.0
        %1466 = vmatpush1.msra.mxu0 0.0
        %1467 = vmatprep.subr.mxu0 0.0
        %1468 = vmatpush1.msra.mxu0 0.0
        %1469 = vmatprep.subr.mxu0 0.0
        %1470 = vmatpush1.msra.mxu0 0.0
        %1471 = vmatprep.subr.mxu0 0.0
        %1472 = vmatpush1.msra.mxu0 0.0
        %1473 = vmatprep.subr.mxu0 0.0
        %1474 = vmatpush1.msra.mxu0 0.0
        %1475 = vmatprep.subr.mxu0 0.0
        %1476 = vmatpush1.msra.mxu0 0.0
        %1477 = vmatprep.subr.mxu0 0.0
        %1478 = vmatpush1.msra.mxu0 0.0
        %1479 = vmatprep.subr.mxu0 0.0
        %1480 = vmatpush1.msra.mxu0 0.0
        %1481 = vmatprep.subr.mxu0 0.0
        %1482 = vmatpush1.msra.mxu0 0.0
        %1483 = vmatprep.subr.mxu0 0.0
        %1484 = vmatpush1.msra.mxu0 0.0
        %1485 = vmatprep.subr.mxu0 0.0
        %1486 = vmatpush1.msra.mxu0 0.0
        %1487 = vmatprep.subr.mxu0 0.0
        %1488 = vmatpush1.msra.mxu0 0.0
        %1489 = vmatprep.subr.mxu0 0.0
        %1490 = vmatpush1.msra.mxu0 0.0
        %1491 = vmatprep.subr.mxu0 0.0
        %1492 = vmatpush1.msra.mxu0 0.0
        %1493 = vmatprep.subr.mxu0 0.0
        %1494 = vmatpush1.msra.mxu0 0.0
        %1495 = vmatprep.subr.mxu0 0.0
        %1496 = vmatpush1.msra.mxu0 0.0
        %1497 = vmatprep.subr.mxu0 0.0
        %1498 = vmatpush1.msra.mxu0 0.0
        %1499 = vmatprep.subr.mxu0 0.0
        %1500 = vmatpush1.msra.mxu0 0.0
        %1501 = vmatprep.subr.mxu0 0.0
        %1502 = vmatpush1.msra.mxu0 0.0
        %1503 = vmatprep.subr.mxu0 0.0
        %1504 = vmatpush1.msra.mxu0 0.0
        %1505 = vmatprep.subr.mxu0 0.0
        %1506 = vmatpush1.msra.mxu0 0.0
        %1507 = vmatprep.subr.mxu0 0.0
        %1508 = vmatpush1.msra.mxu0 0.0
        %1509 = vmatprep.subr.mxu0 0.0
        %1510 = vmatpush1.msra.mxu0 0.0
        %1511 = vmatprep.subr.mxu0 0.0
        %1512 = vmatpush1.msra.mxu0 0.0
        %1513 = vmatprep.mubr.f32.mxu0 0.0
        %1514 = vmatmul.mubr.f32.gmra.mrb[0].mxu0 %v1447
        %v1515 = vpop.f32.mrb[0].mxu0
        %v1516 = vadd.f32 0.0, %v1515
        %v1517 = vpop.f32.mrb[0].mxu0
        %1518 = vdwg.mxu0
        %v1519 = vadd.f32 %v1444, %v1516
        %1520 = vmatprep.subr.mxu0 0.0
        %1521 = vmatpush1.msra.mxu0 %v791
        %1522 = vmatprep.subr.mxu0 0.0
        %1523 = vmatpush1.msra.mxu0 %v792
        %1524 = vmatprep.subr.mxu0 0.0
        %1525 = vmatpush1.msra.mxu0 %v793
        %1526 = vmatprep.subr.mxu0 0.0
        %1527 = vmatpush1.msra.mxu0 %v794
        %1528 = vmatprep.subr.mxu0 0.0
        %1529 = vmatpush1.msra.mxu0 0.0
        %1530 = vmatprep.subr.mxu0 0.0
        %1531 = vmatpush1.msra.mxu0 0.0
        %1532 = vmatprep.subr.mxu0 0.0
        %1533 = vmatpush1.msra.mxu0 0.0
        %1534 = vmatprep.subr.mxu0 0.0
        %1535 = vmatpush1.msra.mxu0 0.0
        %1536 = vmatprep.subr.mxu0 0.0
        %1537 = vmatpush1.msra.mxu0 0.0
        %1538 = vmatprep.subr.mxu0 0.0
        %1539 = vmatpush1.msra.mxu0 0.0
        %1540 = vmatprep.subr.mxu0 0.0
        %1541 = vmatpush1.msra.mxu0 0.0
        %1542 = vmatprep.subr.mxu0 0.0
        %1543 = vmatpush1.msra.mxu0 0.0
        %1544 = vmatprep.subr.mxu0 0.0
        %1545 = vmatpush1.msra.mxu0 0.0
        %1546 = vmatprep.subr.mxu0 0.0
        %1547 = vmatpush1.msra.mxu0 0.0
        %1548 = vmatprep.subr.mxu0 0.0
        %1549 = vmatpush1.msra.mxu0 0.0
        %1550 = vmatprep.subr.mxu0 0.0
        %1551 = vmatpush1.msra.mxu0 0.0
        %1552 = vmatprep.subr.mxu0 0.0
        %1553 = vmatpush1.msra.mxu0 0.0
        %1554 = vmatprep.subr.mxu0 0.0
        %1555 = vmatpush1.msra.mxu0 0.0
        %1556 = vmatprep.subr.mxu0 0.0
        %1557 = vmatpush1.msra.mxu0 0.0
        %1558 = vmatprep.subr.mxu0 0.0
        %1559 = vmatpush1.msra.mxu0 0.0
        %1560 = vmatprep.subr.mxu0 0.0
        %1561 = vmatpush1.msra.mxu0 0.0
        %1562 = vmatprep.subr.mxu0 0.0
        %1563 = vmatpush1.msra.mxu0 0.0
        %1564 = vmatprep.subr.mxu0 0.0
        %1565 = vmatpush1.msra.mxu0 0.0
        %1566 = vmatprep.subr.mxu0 0.0
        %1567 = vmatpush1.msra.mxu0 0.0
        %1568 = vmatprep.subr.mxu0 0.0
        %1569 = vmatpush1.msra.mxu0 0.0
        %1570 = vmatprep.subr.mxu0 0.0
        %1571 = vmatpush1.msra.mxu0 0.0
        %1572 = vmatprep.subr.mxu0 0.0
        %1573 = vmatpush1.msra.mxu0 0.0
        %1574 = vmatprep.subr.mxu0 0.0
        %1575 = vmatpush1.msra.mxu0 0.0
        %1576 = vmatprep.subr.mxu0 0.0
        %1577 = vmatpush1.msra.mxu0 0.0
        %1578 = vmatprep.subr.mxu0 0.0
        %1579 = vmatpush1.msra.mxu0 0.0
        %1580 = vmatprep.subr.mxu0 0.0
        %1581 = vmatpush1.msra.mxu0 0.0
        %1582 = vmatprep.subr.mxu0 0.0
        %1583 = vmatpush1.msra.mxu0 0.0
        %1584 = vmatprep.mubr.f32.mxu0 0.0
        %1585 = vmatmul.mubr.f32.gmra.mrb[0].mxu0 %v551
        %v1586 = vpop.f32.mrb[0].mxu0
        %v1587 = vadd.f32 0.0, %v1586
        %v1588 = vpop.f32.mrb[0].mxu0
        %1589 = vdwg.mxu0
        %1590 = vmatprep.subr.mxu0 0.0
        %1591 = vmatpush1.msra.mxu0 %v786
        %1592 = vmatprep.subr.mxu0 0.0
        %1593 = vmatpush1.msra.mxu0 %v787
        %1594 = vmatprep.subr.mxu0 0.0
        %1595 = vmatpush1.msra.mxu0 %v788
        %1596 = vmatprep.subr.mxu0 0.0
        %1597 = vmatpush1.msra.mxu0 %v789
        %1598 = vmatprep.subr.mxu0 0.0
        %1599 = vmatpush1.msra.mxu0 0.0
        %1600 = vmatprep.subr.mxu0 0.0
        %1601 = vmatpush1.msra.mxu0 0.0
        %1602 = vmatprep.subr.mxu0 0.0
        %1603 = vmatpush1.msra.mxu0 0.0
        %1604 = vmatprep.subr.mxu0 0.0
        %1605 = vmatpush1.msra.mxu0 0.0
        %1606 = vmatprep.subr.mxu0 0.0
        %1607 = vmatpush1.msra.mxu0 0.0
        %1608 = vmatprep.subr.mxu0 0.0
        %1609 = vmatpush1.msra.mxu0 0.0
        %1610 = vmatprep.subr.mxu0 0.0
        %1611 = vmatpush1.msra.mxu0 0.0
        %1612 = vmatprep.subr.mxu0 0.0
        %1613 = vmatpush1.msra.mxu0 0.0
        %1614 = vmatprep.subr.mxu0 0.0
        %1615 = vmatpush1.msra.mxu0 0.0
        %1616 = vmatprep.subr.mxu0 0.0
        %1617 = vmatpush1.msra.mxu0 0.0
        %1618 = vmatprep.subr.mxu0 0.0
        %1619 = vmatpush1.msra.mxu0 0.0
        %1620 = vmatprep.subr.mxu0 0.0
        %1621 = vmatpush1.msra.mxu0 0.0
        %1622 = vmatprep.subr.mxu0 0.0
        %1623 = vmatpush1.msra.mxu0 0.0
        %1624 = vmatprep.subr.mxu0 0.0
        %1625 = vmatpush1.msra.mxu0 0.0
        %1626 = vmatprep.subr.mxu0 0.0
        %1627 = vmatpush1.msra.mxu0 0.0
        %1628 = vmatprep.subr.mxu0 0.0
        %1629 = vmatpush1.msra.mxu0 0.0
        %1630 = vmatprep.subr.mxu0 0.0
        %1631 = vmatpush1.msra.mxu0 0.0
        %1632 = vmatprep.subr.mxu0 0.0
        %1633 = vmatpush1.msra.mxu0 0.0
        %1634 = vmatprep.subr.mxu0 0.0
        %1635 = vmatpush1.msra.mxu0 0.0
        %1636 = vmatprep.subr.mxu0 0.0
        %1637 = vmatpush1.msra.mxu0 0.0
        %1638 = vmatprep.subr.mxu0 0.0
        %1639 = vmatpush1.msra.mxu0 0.0
        %1640 = vmatprep.subr.mxu0 0.0
        %1641 = vmatpush1.msra.mxu0 0.0
        %1642 = vmatprep.subr.mxu0 0.0
        %1643 = vmatpush1.msra.mxu0 0.0
        %1644 = vmatprep.subr.mxu0 0.0
        %1645 = vmatpush1.msra.mxu0 0.0
        %1646 = vmatprep.subr.mxu0 0.0
        %1647 = vmatpush1.msra.mxu0 0.0
        %1648 = vmatprep.subr.mxu0 0.0
        %1649 = vmatpush1.msra.mxu0 0.0
        %1650 = vmatprep.subr.mxu0 0.0
        %1651 = vmatpush1.msra.mxu0 0.0
        %1652 = vmatprep.subr.mxu0 0.0
        %1653 = vmatpush1.msra.mxu0 0.0
        %1654 = vmatprep.mubr.f32.mxu0 0.0
        %1655 = vmatmul.mubr.f32.gmra.mrb[0].mxu0 %v398
        %v1656 = vpop.f32.mrb[0].mxu0
        %v1657 = vadd.f32 %v1587, %v1656
        %v1658 = vpop.f32.mrb[0].mxu0
        %1659 = vdwg.mxu0
        %1660 = vmatprep.subr.mxu0 0.0
        %1661 = vmatpush1.msra.mxu0 %v936
        %1662 = vmatprep.subr.mxu0 0.0
        %1663 = vmatpush1.msra.mxu0 %v937
        %1664 = vmatprep.subr.mxu0 0.0
        %1665 = vmatpush1.msra.mxu0 %v938
        %1666 = vmatprep.subr.mxu0 0.0
        %1667 = vmatpush1.msra.mxu0 %v939
        %1668 = vmatprep.subr.mxu0 0.0
        %1669 = vmatpush1.msra.mxu0 0.0
        %1670 = vmatprep.subr.mxu0 0.0
        %1671 = vmatpush1.msra.mxu0 0.0
        %1672 = vmatprep.subr.mxu0 0.0
        %1673 = vmatpush1.msra.mxu0 0.0
        %1674 = vmatprep.subr.mxu0 0.0
        %1675 = vmatpush1.msra.mxu0 0.0
        %1676 = vmatprep.subr.mxu0 0.0
        %1677 = vmatpush1.msra.mxu0 0.0
        %1678 = vmatprep.subr.mxu0 0.0
        %1679 = vmatpush1.msra.mxu0 0.0
        %1680 = vmatprep.subr.mxu0 0.0
        %1681 = vmatpush1.msra.mxu0 0.0
        %1682 = vmatprep.subr.mxu0 0.0
        %1683 = vmatpush1.msra.mxu0 0.0
        %1684 = vmatprep.subr.mxu0 0.0
        %1685 = vmatpush1.msra.mxu0 0.0
        %1686 = vmatprep.subr.mxu0 0.0
        %1687 = vmatpush1.msra.mxu0 0.0
        %1688 = vmatprep.subr.mxu0 0.0
        %1689 = vmatpush1.msra.mxu0 0.0
        %1690 = vmatprep.subr.mxu0 0.0
        %1691 = vmatpush1.msra.mxu0 0.0
        %1692 = vmatprep.subr.mxu0 0.0
        %1693 = vmatpush1.msra.mxu0 0.0
        %1694 = vmatprep.subr.mxu0 0.0
        %1695 = vmatpush1.msra.mxu0 0.0
        %1696 = vmatprep.subr.mxu0 0.0
        %1697 = vmatpush1.msra.mxu0 0.0
        %1698 = vmatprep.subr.mxu0 0.0
        %1699 = vmatpush1.msra.mxu0 0.0
        %1700 = vmatprep.subr.mxu0 0.0
        %1701 = vmatpush1.msra.mxu0 0.0
        %1702 = vmatprep.subr.mxu0 0.0
        %1703 = vmatpush1.msra.mxu0 0.0
        %1704 = vmatprep.subr.mxu0 0.0
        %1705 = vmatpush1.msra.mxu0 0.0
        %1706 = vmatprep.subr.mxu0 0.0
        %1707 = vmatpush1.msra.mxu0 0.0
        %1708 = vmatprep.subr.mxu0 0.0
        %1709 = vmatpush1.msra.mxu0 0.0
        %1710 = vmatprep.subr.mxu0 0.0
        %1711 = vmatpush1.msra.mxu0 0.0
        %1712 = vmatprep.subr.mxu0 0.0
        %1713 = vmatpush1.msra.mxu0 0.0
        %1714 = vmatprep.subr.mxu0 0.0
        %1715 = vmatpush1.msra.mxu0 0.0
        %1716 = vmatprep.subr.mxu0 0.0
        %1717 = vmatpush1.msra.mxu0 0.0
        %1718 = vmatprep.subr.mxu0 0.0
        %1719 = vmatpush1.msra.mxu0 0.0
        %1720 = vmatprep.subr.mxu0 0.0
        %1721 = vmatpush1.msra.mxu0 0.0
        %1722 = vmatprep.subr.mxu0 0.0
        %1723 = vmatpush1.msra.mxu0 0.0
        %1724 = vmatprep.mubr.f32.mxu0 0.0
        %1725 = vmatmul.mubr.f32.gmra.mrb[0].mxu0 %v632
        %v1726 = vpop.f32.mrb[0].mxu0
        %v1727 = vadd.f32 0.0, %v1726
        %v1728 = vpop.f32.mrb[0].mxu0
        %1729 = vdwg.mxu0
        %v1730 = vadd.f32 %v1657, %v1727
        %1731 = vmatprep.subr.mxu0 0.0
        %1732 = vmatpush1.msra.mxu0 %v1012
        %1733 = vmatprep.subr.mxu0 0.0
        %1734 = vmatpush1.msra.mxu0 %v1013
        %1735 = vmatprep.subr.mxu0 0.0
        %1736 = vmatpush1.msra.mxu0 %v1014
        %1737 = vmatprep.subr.mxu0 0.0
        %1738 = vmatpush1.msra.mxu0 %v1015
        %1739 = vmatprep.subr.mxu0 0.0
        %1740 = vmatpush1.msra.mxu0 0.0
        %1741 = vmatprep.subr.mxu0 0.0
        %1742 = vmatpush1.msra.mxu0 0.0
        %1743 = vmatprep.subr.mxu0 0.0
        %1744 = vmatpush1.msra.mxu0 0.0
        %1745 = vmatprep.subr.mxu0 0.0
        %1746 = vmatpush1.msra.mxu0 0.0
        %1747 = vmatprep.subr.mxu0 0.0
        %1748 = vmatpush1.msra.mxu0 0.0
        %1749 = vmatprep.subr.mxu0 0.0
        %1750 = vmatpush1.msra.mxu0 0.0
        %1751 = vmatprep.subr.mxu0 0.0
        %1752 = vmatpush1.msra.mxu0 0.0
        %1753 = vmatprep.subr.mxu0 0.0
        %1754 = vmatpush1.msra.mxu0 0.0
        %1755 = vmatprep.subr.mxu0 0.0
        %1756 = vmatpush1.msra.mxu0 0.0
        %1757 = vmatprep.subr.mxu0 0.0
        %1758 = vmatpush1.msra.mxu0 0.0
        %1759 = vmatprep.subr.mxu0 0.0
        %1760 = vmatpush1.msra.mxu0 0.0
        %1761 = vmatprep.subr.mxu0 0.0
        %1762 = vmatpush1.msra.mxu0 0.0
        %1763 = vmatprep.subr.mxu0 0.0
        %1764 = vmatpush1.msra.mxu0 0.0
        %1765 = vmatprep.subr.mxu0 0.0
        %1766 = vmatpush1.msra.mxu0 0.0
        %1767 = vmatprep.subr.mxu0 0.0
        %1768 = vmatpush1.msra.mxu0 0.0
        %1769 = vmatprep.subr.mxu0 0.0
        %1770 = vmatpush1.msra.mxu0 0.0
        %1771 = vmatprep.subr.mxu0 0.0
        %1772 = vmatpush1.msra.mxu0 0.0
        %1773 = vmatprep.subr.mxu0 0.0
        %1774 = vmatpush1.msra.mxu0 0.0
        %1775 = vmatprep.subr.mxu0 0.0
        %1776 = vmatpush1.msra.mxu0 0.0
        %1777 = vmatprep.subr.mxu0 0.0
        %1778 = vmatpush1.msra.mxu0 0.0
        %1779 = vmatprep.subr.mxu0 0.0
        %1780 = vmatpush1.msra.mxu0 0.0
        %1781 = vmatprep.subr.mxu0 0.0
        %1782 = vmatpush1.msra.mxu0 0.0
        %1783 = vmatprep.subr.mxu0 0.0
        %1784 = vmatpush1.msra.mxu0 0.0
        %1785 = vmatprep.subr.mxu0 0.0
        %1786 = vmatpush1.msra.mxu0 0.0
        %1787 = vmatprep.subr.mxu0 0.0
        %1788 = vmatpush1.msra.mxu0 0.0
        %1789 = vmatprep.subr.mxu0 0.0
        %1790 = vmatpush1.msra.mxu0 0.0
        %1791 = vmatprep.subr.mxu0 0.0
        %1792 = vmatpush1.msra.mxu0 0.0
        %1793 = vmatprep.subr.mxu0 0.0
        %1794 = vmatpush1.msra.mxu0 0.0
        %1795 = vmatprep.mubr.f32.mxu0 0.0
        %1796 = vmatmul.mubr.f32.gmra.mrb[0].mxu0 %v712
        %v1797 = vpop.f32.mrb[0].mxu0
        %v1798 = vadd.f32 0.0, %v1797
        %v1799 = vpop.f32.mrb[0].mxu0
        %1800 = vdwg.mxu0
        %v1801 = vadd.f32 %v1730, %v1798
        %1802 = vmatprep.subr.mxu0 0.0
        %1803 = vmatpush1.msra.mxu0 %v1088
        %1804 = vmatprep.subr.mxu0 0.0
        %1805 = vmatpush1.msra.mxu0 %v1089
        %1806 = vmatprep.subr.mxu0 0.0
        %1807 = vmatpush1.msra.mxu0 %v1090
        %1808 = vmatprep.subr.mxu0 0.0
        %1809 = vmatpush1.msra.mxu0 %v1091
        %1810 = vmatprep.subr.mxu0 0.0
        %1811 = vmatpush1.msra.mxu0 0.0
        %1812 = vmatprep.subr.mxu0 0.0
        %1813 = vmatpush1.msra.mxu0 0.0
        %1814 = vmatprep.subr.mxu0 0.0
        %1815 = vmatpush1.msra.mxu0 0.0
        %1816 = vmatprep.subr.mxu0 0.0
        %1817 = vmatpush1.msra.mxu0 0.0
        %1818 = vmatprep.subr.mxu0 0.0
        %1819 = vmatpush1.msra.mxu0 0.0
        %1820 = vmatprep.subr.mxu0 0.0
        %1821 = vmatpush1.msra.mxu0 0.0
        %1822 = vmatprep.subr.mxu0 0.0
        %1823 = vmatpush1.msra.mxu0 0.0
        %1824 = vmatprep.subr.mxu0 0.0
        %1825 = vmatpush1.msra.mxu0 0.0
        %1826 = vmatprep.subr.mxu0 0.0
        %1827 = vmatpush1.msra.mxu0 0.0
        %1828 = vmatprep.subr.mxu0 0.0
        %1829 = vmatpush1.msra.mxu0 0.0
        %1830 = vmatprep.subr.mxu0 0.0
        %1831 = vmatpush1.msra.mxu0 0.0
        %1832 = vmatprep.subr.mxu0 0.0
        %1833 = vmatpush1.msra.mxu0 0.0
        %1834 = vmatprep.subr.mxu0 0.0
        %1835 = vmatpush1.msra.mxu0 0.0
        %1836 = vmatprep.subr.mxu0 0.0
        %1837 = vmatpush1.msra.mxu0 0.0
        %1838 = vmatprep.subr.mxu0 0.0
        %1839 = vmatpush1.msra.mxu0 0.0
        %1840 = vmatprep.subr.mxu0 0.0
        %1841 = vmatpush1.msra.mxu0 0.0
        %1842 = vmatprep.subr.mxu0 0.0
        %1843 = vmatpush1.msra.mxu0 0.0
        %1844 = vmatprep.subr.mxu0 0.0
        %1845 = vmatpush1.msra.mxu0 0.0
        %1846 = vmatprep.subr.mxu0 0.0
        %1847 = vmatpush1.msra.mxu0 0.0
        %1848 = vmatprep.subr.mxu0 0.0
        %1849 = vmatpush1.msra.mxu0 0.0
        %1850 = vmatprep.subr.mxu0 0.0
        %1851 = vmatpush1.msra.mxu0 0.0
        %1852 = vmatprep.subr.mxu0 0.0
        %1853 = vmatpush1.msra.mxu0 0.0
        %1854 = vmatprep.subr.mxu0 0.0
        %1855 = vmatpush1.msra.mxu0 0.0
        %1856 = vmatprep.subr.mxu0 0.0
        %1857 = vmatpush1.msra.mxu0 0.0
        %1858 = vmatprep.subr.mxu0 0.0
        %1859 = vmatpush1.msra.mxu0 0.0
        %1860 = vmatprep.subr.mxu0 0.0
        %1861 = vmatpush1.msra.mxu0 0.0
        %1862 = vmatprep.subr.mxu0 0.0
        %1863 = vmatpush1.msra.mxu0 0.0
        %1864 = vmatprep.subr.mxu0 0.0
        %1865 = vmatpush1.msra.mxu0 0.0
        %1866 = vmatprep.mubr.f32.mxu0 0.0
        %1867 = vmatmul.mubr.f32.gmra.mrb[0].mxu0 %v1447
        %v1868 = vpop.f32.mrb[0].mxu0
        %v1869 = vadd.f32 0.0, %v1868
        %v1870 = vpop.f32.mrb[0].mxu0
        %1871 = vdwg.mxu0
        %v1872 = vadd.f32 %v1801, %v1869
        %v1873 = vmax.f32 %v784, %v1162
        %v1874 = vmax.f32 %v1873, %v1519
        %v1875 = vmax.f32 %v1874, %v1872
        %v1876 = vld [vmem:[%s2] sm:$0x1]
        %v1878 = vlaneseq
        %v1879 = vshrl.u32 %v1878, 7
        %v1880 = vsub.s32 0, %v1879
        %v1881 = vrot.slane %v1876, %v1880
        %v1883 = vadd.f32 %v1875, %v1881
        %v1884 = vmax.f32 %v1883, 0.0
        %1885 = vmatprep.subr.mxu0 0.0
        %1886 = vmatpush1.msra.mxu0 %v392
        %1887 = vmatprep.subr.mxu0 0.0
        %1888 = vmatpush1.msra.mxu0 %v393
        %1889 = vmatprep.subr.mxu0 0.0
        %1890 = vmatpush1.msra.mxu0 %v394
        %1891 = vmatprep.subr.mxu0 0.0
        %1892 = vmatpush1.msra.mxu0 %v395
        %1893 = vmatprep.subr.mxu0 0.0
        %1894 = vmatpush1.msra.mxu0 0.0
        %1895 = vmatprep.subr.mxu0 0.0
        %1896 = vmatpush1.msra.mxu0 0.0
        %1897 = vmatprep.subr.mxu0 0.0
        %1898 = vmatpush1.msra.mxu0 0.0
        %1899 = vmatprep.subr.mxu0 0.0
        %1900 = vmatpush1.msra.mxu0 0.0
        %1901 = vmatprep.subr.mxu0 0.0
        %1902 = vmatpush1.msra.mxu0 0.0
        %1903 = vmatprep.subr.mxu0 0.0
        %1904 = vmatpush1.msra.mxu0 0.0
        %1905 = vmatprep.subr.mxu0 0.0
        %1906 = vmatpush1.msra.mxu0 0.0
        %1907 = vmatprep.subr.mxu0 0.0
        %1908 = vmatpush1.msra.mxu0 0.0
        %1909 = vmatprep.subr.mxu0 0.0
        %1910 = vmatpush1.msra.mxu0 0.0
        %1911 = vmatprep.subr.mxu0 0.0
        %1912 = vmatpush1.msra.mxu0 0.0
        %1913 = vmatprep.subr.mxu0 0.0
        %1914 = vmatpush1.msra.mxu0 0.0
        %1915 = vmatprep.subr.mxu0 0.0
        %1916 = vmatpush1.msra.mxu0 0.0
        %1917 = vmatprep.subr.mxu0 0.0
        %1918 = vmatpush1.msra.mxu0 0.0
        %1919 = vmatprep.subr.mxu0 0.0
        %1920 = vmatpush1.msra.mxu0 0.0
        %1921 = vmatprep.subr.mxu0 0.0
        %1922 = vmatpush1.msra.mxu0 0.0
        %1923 = vmatprep.subr.mxu0 0.0
        %1924 = vmatpush1.msra.mxu0 0.0
        %1925 = vmatprep.subr.mxu0 0.0
        %1926 = vmatpush1.msra.mxu0 0.0
        %1927 = vmatprep.subr.mxu0 0.0
        %1928 = vmatpush1.msra.mxu0 0.0
        %1929 = vmatprep.subr.mxu0 0.0
        %1930 = vmatpush1.msra.mxu0 0.0
        %1931 = vmatprep.subr.mxu0 0.0
        %1932 = vmatpush1.msra.mxu0 0.0
        %1933 = vmatprep.subr.mxu0 0.0
        %1934 = vmatpush1.msra.mxu0 0.0
        %1935 = vmatprep.subr.mxu0 0.0
        %1936 = vmatpush1.msra.mxu0 0.0
        %1937 = vmatprep.subr.mxu0 0.0
        %1938 = vmatpush1.msra.mxu0 0.0
        %1939 = vmatprep.subr.mxu0 0.0
        %1940 = vmatpush1.msra.mxu0 0.0
        %1941 = vmatprep.subr.mxu0 0.0
        %1942 = vmatpush1.msra.mxu0 0.0
        %1943 = vmatprep.subr.mxu0 0.0
        %1944 = vmatpush1.msra.mxu0 0.0
        %1945 = vmatprep.subr.mxu0 0.0
        %1946 = vmatpush1.msra.mxu0 0.0
        %1947 = vmatprep.subr.mxu0 0.0
        %1948 = vmatpush1.msra.mxu0 0.0
        %1949 = vmatprep.mubr.f32.mxu0 0.0
        %1950 = vmatmul.mubr.f32.gmra.mrb[0].mxu0 %v632
        %v1951 = vpop.f32.mrb[0].mxu0
        %v1952 = vadd.f32 0.0, %v1951
        %v1953 = vpop.f32.mrb[0].mxu0
        %1954 = vdwg.mxu0
        %1955 = vmatprep.subr.mxu0 0.0
        %1956 = vmatpush1.msra.mxu0 %v385
        %1957 = vmatprep.subr.mxu0 0.0
        %1958 = vmatpush1.msra.mxu0 %v386
        %1959 = vmatprep.subr.mxu0 0.0
        %1960 = vmatpush1.msra.mxu0 %v387
        %1961 = vmatprep.subr.mxu0 0.0
        %1962 = vmatpush1.msra.mxu0 %v388
        %1963 = vmatprep.subr.mxu0 0.0
        %1964 = vmatpush1.msra.mxu0 0.0
        %1965 = vmatprep.subr.mxu0 0.0
        %1966 = vmatpush1.msra.mxu0 0.0
        %1967 = vmatprep.subr.mxu0 0.0
        %1968 = vmatpush1.msra.mxu0 0.0
        %1969 = vmatprep.subr.mxu0 0.0
        %1970 = vmatpush1.msra.mxu0 0.0
        %1971 = vmatprep.subr.mxu0 0.0
        %1972 = vmatpush1.msra.mxu0 0.0
        %1973 = vmatprep.subr.mxu0 0.0
        %1974 = vmatpush1.msra.mxu0 0.0
        %1975 = vmatprep.subr.mxu0 0.0
        %1976 = vmatpush1.msra.mxu0 0.0
        %1977 = vmatprep.subr.mxu0 0.0
        %1978 = vmatpush1.msra.mxu0 0.0
        %1979 = vmatprep.subr.mxu0 0.0
        %1980 = vmatpush1.msra.mxu0 0.0
        %1981 = vmatprep.subr.mxu0 0.0
        %1982 = vmatpush1.msra.mxu0 0.0
        %1983 = vmatprep.subr.mxu0 0.0
        %1984 = vmatpush1.msra.mxu0 0.0
        %1985 = vmatprep.subr.mxu0 0.0
        %1986 = vmatpush1.msra.mxu0 0.0
        %1987 = vmatprep.subr.mxu0 0.0
        %1988 = vmatpush1.msra.mxu0 0.0
        %1989 = vmatprep.subr.mxu0 0.0
        %1990 = vmatpush1.msra.mxu0 0.0
        %1991 = vmatprep.subr.mxu0 0.0
        %1992 = vmatpush1.msra.mxu0 0.0
        %1993 = vmatprep.subr.mxu0 0.0
        %1994 = vmatpush1.msra.mxu0 0.0
        %1995 = vmatprep.subr.mxu0 0.0
        %1996 = vmatpush1.msra.mxu0 0.0
        %1997 = vmatprep.subr.mxu0 0.0
        %1998 = vmatpush1.msra.mxu0 0.0
        %1999 = vmatprep.subr.mxu0 0.0
        %2000 = vmatpush1.msra.mxu0 0.0
        %2001 = vmatprep.subr.mxu0 0.0
        %2002 = vmatpush1.msra.mxu0 0.0
        %2003 = vmatprep.subr.mxu0 0.0
        %2004 = vmatpush1.msra.mxu0 0.0
        %2005 = vmatprep.subr.mxu0 0.0
        %2006 = vmatpush1.msra.mxu0 0.0
        %2007 = vmatprep.subr.mxu0 0.0
        %2008 = vmatpush1.msra.mxu0 0.0
        %2009 = vmatprep.subr.mxu0 0.0
        %2010 = vmatpush1.msra.mxu0 0.0
        %2011 = vmatprep.subr.mxu0 0.0
        %2012 = vmatpush1.msra.mxu0 0.0
        %2013 = vmatprep.subr.mxu0 0.0
        %2014 = vmatpush1.msra.mxu0 0.0
        %2015 = vmatprep.subr.mxu0 0.0
        %2016 = vmatpush1.msra.mxu0 0.0
        %2017 = vmatprep.subr.mxu0 0.0
        %2018 = vmatpush1.msra.mxu0 0.0
        %2019 = vmatprep.mubr.f32.mxu0 0.0
        %2020 = vmatmul.mubr.f32.gmra.mrb[0].mxu0 %v551
        %v2021 = vpop.f32.mrb[0].mxu0
        %v2022 = vadd.f32 %v1952, %v2021
        %v2023 = vpop.f32.mrb[0].mxu0
        %2024 = vdwg.mxu0
        %2025 = vmatprep.subr.mxu0 0.0
        %2026 = vmatpush1.msra.mxu0 %v546
        %2027 = vmatprep.subr.mxu0 0.0
        %2028 = vmatpush1.msra.mxu0 %v547
        %2029 = vmatprep.subr.mxu0 0.0
        %2030 = vmatpush1.msra.mxu0 %v548
        %2031 = vmatprep.subr.mxu0 0.0
        %2032 = vmatpush1.msra.mxu0 %v549
        %2033 = vmatprep.subr.mxu0 0.0
        %2034 = vmatpush1.msra.mxu0 0.0
        %2035 = vmatprep.subr.mxu0 0.0
        %2036 = vmatpush1.msra.mxu0 0.0
        %2037 = vmatprep.subr.mxu0 0.0
        %2038 = vmatpush1.msra.mxu0 0.0
        %2039 = vmatprep.subr.mxu0 0.0
        %2040 = vmatpush1.msra.mxu0 0.0
        %2041 = vmatprep.subr.mxu0 0.0
        %2042 = vmatpush1.msra.mxu0 0.0
        %2043 = vmatprep.subr.mxu0 0.0
        %2044 = vmatpush1.msra.mxu0 0.0
        %2045 = vmatprep.subr.mxu0 0.0
        %2046 = vmatpush1.msra.mxu0 0.0
        %2047 = vmatprep.subr.mxu0 0.0
        %2048 = vmatpush1.msra.mxu0 0.0
        %2049 = vmatprep.subr.mxu0 0.0
        %2050 = vmatpush1.msra.mxu0 0.0
        %2051 = vmatprep.subr.mxu0 0.0
        %2052 = vmatpush1.msra.mxu0 0.0
        %2053 = vmatprep.subr.mxu0 0.0
        %2054 = vmatpush1.msra.mxu0 0.0
        %2055 = vmatprep.subr.mxu0 0.0
        %2056 = vmatpush1.msra.mxu0 0.0
        %2057 = vmatprep.subr.mxu0 0.0
        %2058 = vmatpush1.msra.mxu0 0.0
        %2059 = vmatprep.subr.mxu0 0.0
        %2060 = vmatpush1.msra.mxu0 0.0
        %2061 = vmatprep.subr.mxu0 0.0
        %2062 = vmatpush1.msra.mxu0 0.0
        %2063 = vmatprep.subr.mxu0 0.0
        %2064 = vmatpush1.msra.mxu0 0.0
        %2065 = vmatprep.subr.mxu0 0.0
        %2066 = vmatpush1.msra.mxu0 0.0
        %2067 = vmatprep.subr.mxu0 0.0
        %2068 = vmatpush1.msra.mxu0 0.0
        %2069 = vmatprep.subr.mxu0 0.0
        %2070 = vmatpush1.msra.mxu0 0.0
        %2071 = vmatprep.subr.mxu0 0.0
        %2072 = vmatpush1.msra.mxu0 0.0
        %2073 = vmatprep.subr.mxu0 0.0
        %2074 = vmatpush1.msra.mxu0 0.0
        %2075 = vmatprep.subr.mxu0 0.0
        %2076 = vmatpush1.msra.mxu0 0.0
        %2077 = vmatprep.subr.mxu0 0.0
        %2078 = vmatpush1.msra.mxu0 0.0
        %2079 = vmatprep.subr.mxu0 0.0
        %2080 = vmatpush1.msra.mxu0 0.0
        %2081 = vmatprep.subr.mxu0 0.0
        %2082 = vmatpush1.msra.mxu0 0.0
        %2083 = vmatprep.subr.mxu0 0.0
        %2084 = vmatpush1.msra.mxu0 0.0
        %2085 = vmatprep.subr.mxu0 0.0
        %2086 = vmatpush1.msra.mxu0 0.0
        %2087 = vmatprep.subr.mxu0 0.0
        %2088 = vmatpush1.msra.mxu0 0.0
        %2089 = vmatprep.mubr.f32.mxu0 0.0
        %2090 = vmatmul.mubr.f32.gmra.mrb[0].mxu0 %v712
        %v2091 = vpop.f32.mrb[0].mxu0
        %v2092 = vadd.f32 0.0, %v2091
        %v2093 = vpop.f32.mrb[0].mxu0
        %2094 = vdwg.mxu0
        %v2095 = vadd.f32 %v2022, %v2092
        %2096 = vmatprep.subr.mxu0 0.0
        %2097 = vmatpush1.msra.mxu0 %v627
        %2098 = vmatprep.subr.mxu0 0.0
        %2099 = vmatpush1.msra.mxu0 %v628
        %2100 = vmatprep.subr.mxu0 0.0
        %2101 = vmatpush1.msra.mxu0 %v629
        %2102 = vmatprep.subr.mxu0 0.0
        %2103 = vmatpush1.msra.mxu0 %v630
        %2104 = vmatprep.subr.mxu0 0.0
        %2105 = vmatpush1.msra.mxu0 0.0
        %2106 = vmatprep.subr.mxu0 0.0
        %2107 = vmatpush1.msra.mxu0 0.0
        %2108 = vmatprep.subr.mxu0 0.0
        %2109 = vmatpush1.msra.mxu0 0.0
        %2110 = vmatprep.subr.mxu0 0.0
        %2111 = vmatpush1.msra.mxu0 0.0
        %2112 = vmatprep.subr.mxu0 0.0
        %2113 = vmatpush1.msra.mxu0 0.0
        %2114 = vmatprep.subr.mxu0 0.0
        %2115 = vmatpush1.msra.mxu0 0.0
        %2116 = vmatprep.subr.mxu0 0.0
        %2117 = vmatpush1.msra.mxu0 0.0
        %2118 = vmatprep.subr.mxu0 0.0
        %2119 = vmatpush1.msra.mxu0 0.0
        %2120 = vmatprep.subr.mxu0 0.0
        %2121 = vmatpush1.msra.mxu0 0.0
        %2122 = vmatprep.subr.mxu0 0.0
        %2123 = vmatpush1.msra.mxu0 0.0
        %2124 = vmatprep.subr.mxu0 0.0
        %2125 = vmatpush1.msra.mxu0 0.0
        %2126 = vmatprep.subr.mxu0 0.0
        %2127 = vmatpush1.msra.mxu0 0.0
        %2128 = vmatprep.subr.mxu0 0.0
        %2129 = vmatpush1.msra.mxu0 0.0
        %2130 = vmatprep.subr.mxu0 0.0
        %2131 = vmatpush1.msra.mxu0 0.0
        %2132 = vmatprep.subr.mxu0 0.0
        %2133 = vmatpush1.msra.mxu0 0.0
        %2134 = vmatprep.subr.mxu0 0.0
        %2135 = vmatpush1.msra.mxu0 0.0
        %2136 = vmatprep.subr.mxu0 0.0
        %2137 = vmatpush1.msra.mxu0 0.0
        %2138 = vmatprep.subr.mxu0 0.0
        %2139 = vmatpush1.msra.mxu0 0.0
        %2140 = vmatprep.subr.mxu0 0.0
        %2141 = vmatpush1.msra.mxu0 0.0
        %2142 = vmatprep.subr.mxu0 0.0
        %2143 = vmatpush1.msra.mxu0 0.0
        %2144 = vmatprep.subr.mxu0 0.0
        %2145 = vmatpush1.msra.mxu0 0.0
        %2146 = vmatprep.subr.mxu0 0.0
        %2147 = vmatpush1.msra.mxu0 0.0
        %2148 = vmatprep.subr.mxu0 0.0
        %2149 = vmatpush1.msra.mxu0 0.0
        %2150 = vmatprep.subr.mxu0 0.0
        %2151 = vmatpush1.msra.mxu0 0.0
        %2152 = vmatprep.subr.mxu0 0.0
        %2153 = vmatpush1.msra.mxu0 0.0
        %2154 = vmatprep.subr.mxu0 0.0
        %2155 = vmatpush1.msra.mxu0 0.0
        %2156 = vmatprep.subr.mxu0 0.0
        %2157 = vmatpush1.msra.mxu0 0.0
        %2158 = vmatprep.subr.mxu0 0.0
        %2159 = vmatpush1.msra.mxu0 0.0
        %2160 = vmatprep.mubr.f32.mxu0 0.0
        %2161 = vmatmul.mubr.f32.gmra.mrb[0].mxu0 %v1447
        %v2162 = vpop.f32.mrb[0].mxu0
        %v2163 = vadd.f32 0.0, %v2162
        %v2164 = vpop.f32.mrb[0].mxu0
        %2165 = vdwg.mxu0
        %v2166 = vadd.f32 %v2095, %v2163
        %v2167 = vld [vmem:[%s543 + $0x1] sm:$0x7f]
        %v2169 = vsel %vm396, %v2167, 0
        %2171 = vmatprep.subr.mxu0 0.0
        %2172 = vmatpush1.msra.mxu0 %v707
        %2173 = vmatprep.subr.mxu0 0.0
        %2174 = vmatpush1.msra.mxu0 %v708
        %2175 = vmatprep.subr.mxu0 0.0
        %2176 = vmatpush1.msra.mxu0 %v709
        %2177 = vmatprep.subr.mxu0 0.0
        %2178 = vmatpush1.msra.mxu0 %v710
        %2179 = vmatprep.subr.mxu0 0.0
        %2180 = vmatpush1.msra.mxu0 0.0
        %2181 = vmatprep.subr.mxu0 0.0
        %2182 = vmatpush1.msra.mxu0 0.0
        %2183 = vmatprep.subr.mxu0 0.0
        %2184 = vmatpush1.msra.mxu0 0.0
        %2185 = vmatprep.subr.mxu0 0.0
        %2186 = vmatpush1.msra.mxu0 0.0
        %2187 = vmatprep.subr.mxu0 0.0
        %2188 = vmatpush1.msra.mxu0 0.0
        %2189 = vmatprep.subr.mxu0 0.0
        %2190 = vmatpush1.msra.mxu0 0.0
        %2191 = vmatprep.subr.mxu0 0.0
        %2192 = vmatpush1.msra.mxu0 0.0
        %2193 = vmatprep.subr.mxu0 0.0
        %2194 = vmatpush1.msra.mxu0 0.0
        %2195 = vmatprep.subr.mxu0 0.0
        %2196 = vmatpush1.msra.mxu0 0.0
        %2197 = vmatprep.subr.mxu0 0.0
        %2198 = vmatpush1.msra.mxu0 0.0
        %2199 = vmatprep.subr.mxu0 0.0
        %2200 = vmatpush1.msra.mxu0 0.0
        %2201 = vmatprep.subr.mxu0 0.0
        %2202 = vmatpush1.msra.mxu0 0.0
        %2203 = vmatprep.subr.mxu0 0.0
        %2204 = vmatpush1.msra.mxu0 0.0
        %2205 = vmatprep.subr.mxu0 0.0
        %2206 = vmatpush1.msra.mxu0 0.0
        %2207 = vmatprep.subr.mxu0 0.0
        %2208 = vmatpush1.msra.mxu0 0.0
        %2209 = vmatprep.subr.mxu0 0.0
        %2210 = vmatpush1.msra.mxu0 0.0
        %2211 = vmatprep.subr.mxu0 0.0
        %2212 = vmatpush1.msra.mxu0 0.0
        %2213 = vmatprep.subr.mxu0 0.0
        %2214 = vmatpush1.msra.mxu0 0.0
        %2215 = vmatprep.subr.mxu0 0.0
        %2216 = vmatpush1.msra.mxu0 0.0
        %2217 = vmatprep.subr.mxu0 0.0
        %2218 = vmatpush1.msra.mxu0 0.0
        %2219 = vmatprep.subr.mxu0 0.0
        %2220 = vmatpush1.msra.mxu0 0.0
        %2221 = vmatprep.subr.mxu0 0.0
        %2222 = vmatpush1.msra.mxu0 0.0
        %2223 = vmatprep.subr.mxu0 0.0
        %2224 = vmatpush1.msra.mxu0 0.0
        %2225 = vmatprep.subr.mxu0 0.0
        %2226 = vmatpush1.msra.mxu0 0.0
        %2227 = vmatprep.subr.mxu0 0.0
        %2228 = vmatpush1.msra.mxu0 0.0
        %2229 = vmatprep.subr.mxu0 0.0
        %2230 = vmatpush1.msra.mxu0 0.0
        %2231 = vmatprep.subr.mxu0 0.0
        %2232 = vmatpush1.msra.mxu0 0.0
        %2233 = vmatprep.subr.mxu0 0.0
        %2234 = vmatpush1.msra.mxu0 0.0
        %2235 = vmatprep.mubr.f32.mxu0 0.0
        %2236 = vmatmul.mubr.f32.gmra.mrb[0].mxu0 %v2169
        %v2237 = vpop.f32.mrb[0].mxu0
        %v2238 = vadd.f32 0.0, %v2237
        %v2239 = vpop.f32.mrb[0].mxu0
        %2240 = vdwg.mxu0
        %v2241 = vadd.f32 %v2166, %v2238
        %2242 = vmatprep.subr.mxu0 0.0
        %2243 = vmatpush1.msra.mxu0 %v791
        %2244 = vmatprep.subr.mxu0 0.0
        %2245 = vmatpush1.msra.mxu0 %v792
        %2246 = vmatprep.subr.mxu0 0.0
        %2247 = vmatpush1.msra.mxu0 %v793
        %2248 = vmatprep.subr.mxu0 0.0
        %2249 = vmatpush1.msra.mxu0 %v794
        %2250 = vmatprep.subr.mxu0 0.0
        %2251 = vmatpush1.msra.mxu0 0.0
        %2252 = vmatprep.subr.mxu0 0.0
        %2253 = vmatpush1.msra.mxu0 0.0
        %2254 = vmatprep.subr.mxu0 0.0
        %2255 = vmatpush1.msra.mxu0 0.0
        %2256 = vmatprep.subr.mxu0 0.0
        %2257 = vmatpush1.msra.mxu0 0.0
        %2258 = vmatprep.subr.mxu0 0.0
        %2259 = vmatpush1.msra.mxu0 0.0
        %2260 = vmatprep.subr.mxu0 0.0
        %2261 = vmatpush1.msra.mxu0 0.0
        %2262 = vmatprep.subr.mxu0 0.0
        %2263 = vmatpush1.msra.mxu0 0.0
        %2264 = vmatprep.subr.mxu0 0.0
        %2265 = vmatpush1.msra.mxu0 0.0
        %2266 = vmatprep.subr.mxu0 0.0
        %2267 = vmatpush1.msra.mxu0 0.0
        %2268 = vmatprep.subr.mxu0 0.0
        %2269 = vmatpush1.msra.mxu0 0.0
        %2270 = vmatprep.subr.mxu0 0.0
        %2271 = vmatpush1.msra.mxu0 0.0
        %2272 = vmatprep.subr.mxu0 0.0
        %2273 = vmatpush1.msra.mxu0 0.0
        %2274 = vmatprep.subr.mxu0 0.0
        %2275 = vmatpush1.msra.mxu0 0.0
        %2276 = vmatprep.subr.mxu0 0.0
        %2277 = vmatpush1.msra.mxu0 0.0
        %2278 = vmatprep.subr.mxu0 0.0
        %2279 = vmatpush1.msra.mxu0 0.0
        %2280 = vmatprep.subr.mxu0 0.0
        %2281 = vmatpush1.msra.mxu0 0.0
        %2282 = vmatprep.subr.mxu0 0.0
        %2283 = vmatpush1.msra.mxu0 0.0
        %2284 = vmatprep.subr.mxu0 0.0
        %2285 = vmatpush1.msra.mxu0 0.0
        %2286 = vmatprep.subr.mxu0 0.0
        %2287 = vmatpush1.msra.mxu0 0.0
        %2288 = vmatprep.subr.mxu0 0.0
        %2289 = vmatpush1.msra.mxu0 0.0
        %2290 = vmatprep.subr.mxu0 0.0
        %2291 = vmatpush1.msra.mxu0 0.0
        %2292 = vmatprep.subr.mxu0 0.0
        %2293 = vmatpush1.msra.mxu0 0.0
        %2294 = vmatprep.subr.mxu0 0.0
        %2295 = vmatpush1.msra.mxu0 0.0
        %2296 = vmatprep.subr.mxu0 0.0
        %2297 = vmatpush1.msra.mxu0 0.0
        %2298 = vmatprep.subr.mxu0 0.0
        %2299 = vmatpush1.msra.mxu0 0.0
        %2300 = vmatprep.subr.mxu0 0.0
        %2301 = vmatpush1.msra.mxu0 0.0
        %2302 = vmatprep.subr.mxu0 0.0
        %2303 = vmatpush1.msra.mxu0 0.0
        %2304 = vmatprep.subr.mxu0 0.0
        %2305 = vmatpush1.msra.mxu0 0.0
        %2306 = vmatprep.mubr.f32.mxu0 0.0
        %2307 = vmatmul.mubr.f32.gmra.mrb[0].mxu0 %v632
        %v2308 = vpop.f32.mrb[0].mxu0
        %v2309 = vadd.f32 0.0, %v2308
        %v2310 = vpop.f32.mrb[0].mxu0
        %2311 = vdwg.mxu0
        %2312 = vmatprep.subr.mxu0 0.0
        %2313 = vmatpush1.msra.mxu0 %v786
        %2314 = vmatprep.subr.mxu0 0.0
        %2315 = vmatpush1.msra.mxu0 %v787
        %2316 = vmatprep.subr.mxu0 0.0
        %2317 = vmatpush1.msra.mxu0 %v788
        %2318 = vmatprep.subr.mxu0 0.0
        %2319 = vmatpush1.msra.mxu0 %v789
        %2320 = vmatprep.subr.mxu0 0.0
        %2321 = vmatpush1.msra.mxu0 0.0
        %2322 = vmatprep.subr.mxu0 0.0
        %2323 = vmatpush1.msra.mxu0 0.0
        %2324 = vmatprep.subr.mxu0 0.0
        %2325 = vmatpush1.msra.mxu0 0.0
        %2326 = vmatprep.subr.mxu0 0.0
        %2327 = vmatpush1.msra.mxu0 0.0
        %2328 = vmatprep.subr.mxu0 0.0
        %2329 = vmatpush1.msra.mxu0 0.0
        %2330 = vmatprep.subr.mxu0 0.0
        %2331 = vmatpush1.msra.mxu0 0.0
        %2332 = vmatprep.subr.mxu0 0.0
        %2333 = vmatpush1.msra.mxu0 0.0
        %2334 = vmatprep.subr.mxu0 0.0
        %2335 = vmatpush1.msra.mxu0 0.0
        %2336 = vmatprep.subr.mxu0 0.0
        %2337 = vmatpush1.msra.mxu0 0.0
        %2338 = vmatprep.subr.mxu0 0.0
        %2339 = vmatpush1.msra.mxu0 0.0
        %2340 = vmatprep.subr.mxu0 0.0
        %2341 = vmatpush1.msra.mxu0 0.0
        %2342 = vmatprep.subr.mxu0 0.0
        %2343 = vmatpush1.msra.mxu0 0.0
        %2344 = vmatprep.subr.mxu0 0.0
        %2345 = vmatpush1.msra.mxu0 0.0
        %2346 = vmatprep.subr.mxu0 0.0
        %2347 = vmatpush1.msra.mxu0 0.0
        %2348 = vmatprep.subr.mxu0 0.0
        %2349 = vmatpush1.msra.mxu0 0.0
        %2350 = vmatprep.subr.mxu0 0.0
        %2351 = vmatpush1.msra.mxu0 0.0
        %2352 = vmatprep.subr.mxu0 0.0
        %2353 = vmatpush1.msra.mxu0 0.0
        %2354 = vmatprep.subr.mxu0 0.0
        %2355 = vmatpush1.msra.mxu0 0.0
        %2356 = vmatprep.subr.mxu0 0.0
        %2357 = vmatpush1.msra.mxu0 0.0
        %2358 = vmatprep.subr.mxu0 0.0
        %2359 = vmatpush1.msra.mxu0 0.0
        %2360 = vmatprep.subr.mxu0 0.0
        %2361 = vmatpush1.msra.mxu0 0.0
        %2362 = vmatprep.subr.mxu0 0.0
        %2363 = vmatpush1.msra.mxu0 0.0
        %2364 = vmatprep.subr.mxu0 0.0
        %2365 = vmatpush1.msra.mxu0 0.0
        %2366 = vmatprep.subr.mxu0 0.0
        %2367 = vmatpush1.msra.mxu0 0.0
        %2368 = vmatprep.subr.mxu0 0.0
        %2369 = vmatpush1.msra.mxu0 0.0
        %2370 = vmatprep.subr.mxu0 0.0
        %2371 = vmatpush1.msra.mxu0 0.0
        %2372 = vmatprep.subr.mxu0 0.0
        %2373 = vmatpush1.msra.mxu0 0.0
        %2374 = vmatprep.subr.mxu0 0.0
        %2375 = vmatpush1.msra.mxu0 0.0
        %2376 = vmatprep.mubr.f32.mxu0 0.0
        %2377 = vmatmul.mubr.f32.gmra.mrb[0].mxu0 %v551
        %v2378 = vpop.f32.mrb[0].mxu0
        %v2379 = vadd.f32 %v2309, %v2378
        %v2380 = vpop.f32.mrb[0].mxu0
        %2381 = vdwg.mxu0
        %2382 = vmatprep.subr.mxu0 0.0
        %2383 = vmatpush1.msra.mxu0 %v936
        %2384 = vmatprep.subr.mxu0 0.0
        %2385 = vmatpush1.msra.mxu0 %v937
        %2386 = vmatprep.subr.mxu0 0.0
        %2387 = vmatpush1.msra.mxu0 %v938
        %2388 = vmatprep.subr.mxu0 0.0
        %2389 = vmatpush1.msra.mxu0 %v939
        %2390 = vmatprep.subr.mxu0 0.0
        %2391 = vmatpush1.msra.mxu0 0.0
        %2392 = vmatprep.subr.mxu0 0.0
        %2393 = vmatpush1.msra.mxu0 0.0
        %2394 = vmatprep.subr.mxu0 0.0
        %2395 = vmatpush1.msra.mxu0 0.0
        %2396 = vmatprep.subr.mxu0 0.0
        %2397 = vmatpush1.msra.mxu0 0.0
        %2398 = vmatprep.subr.mxu0 0.0
        %2399 = vmatpush1.msra.mxu0 0.0
        %2400 = vmatprep.subr.mxu0 0.0
        %2401 = vmatpush1.msra.mxu0 0.0
        %2402 = vmatprep.subr.mxu0 0.0
        %2403 = vmatpush1.msra.mxu0 0.0
        %2404 = vmatprep.subr.mxu0 0.0
        %2405 = vmatpush1.msra.mxu0 0.0
        %2406 = vmatprep.subr.mxu0 0.0
        %2407 = vmatpush1.msra.mxu0 0.0
        %2408 = vmatprep.subr.mxu0 0.0
        %2409 = vmatpush1.msra.mxu0 0.0
        %2410 = vmatprep.subr.mxu0 0.0
        %2411 = vmatpush1.msra.mxu0 0.0
        %2412 = vmatprep.subr.mxu0 0.0
        %2413 = vmatpush1.msra.mxu0 0.0
        %2414 = vmatprep.subr.mxu0 0.0
        %2415 = vmatpush1.msra.mxu0 0.0
        %2416 = vmatprep.subr.mxu0 0.0
        %2417 = vmatpush1.msra.mxu0 0.0
        %2418 = vmatprep.subr.mxu0 0.0
        %2419 = vmatpush1.msra.mxu0 0.0
        %2420 = vmatprep.subr.mxu0 0.0
        %2421 = vmatpush1.msra.mxu0 0.0
        %2422 = vmatprep.subr.mxu0 0.0
        %2423 = vmatpush1.msra.mxu0 0.0
        %2424 = vmatprep.subr.mxu0 0.0
        %2425 = vmatpush1.msra.mxu0 0.0
        %2426 = vmatprep.subr.mxu0 0.0
        %2427 = vmatpush1.msra.mxu0 0.0
        %2428 = vmatprep.subr.mxu0 0.0
        %2429 = vmatpush1.msra.mxu0 0.0
        %2430 = vmatprep.subr.mxu0 0.0
        %2431 = vmatpush1.msra.mxu0 0.0
        %2432 = vmatprep.subr.mxu0 0.0
        %2433 = vmatpush1.msra.mxu0 0.0
        %2434 = vmatprep.subr.mxu0 0.0
        %2435 = vmatpush1.msra.mxu0 0.0
        %2436 = vmatprep.subr.mxu0 0.0
        %2437 = vmatpush1.msra.mxu0 0.0
        %2438 = vmatprep.subr.mxu0 0.0
        %2439 = vmatpush1.msra.mxu0 0.0
        %2440 = vmatprep.subr.mxu0 0.0
        %2441 = vmatpush1.msra.mxu0 0.0
        %2442 = vmatprep.subr.mxu0 0.0
        %2443 = vmatpush1.msra.mxu0 0.0
        %2444 = vmatprep.subr.mxu0 0.0
        %2445 = vmatpush1.msra.mxu0 0.0
        %2446 = vmatprep.mubr.f32.mxu0 0.0
        %2447 = vmatmul.mubr.f32.gmra.mrb[0].mxu0 %v712
        %v2448 = vpop.f32.mrb[0].mxu0
        %v2449 = vadd.f32 0.0, %v2448
        %v2450 = vpop.f32.mrb[0].mxu0
        %2451 = vdwg.mxu0
        %v2452 = vadd.f32 %v2379, %v2449
        %2453 = vmatprep.subr.mxu0 0.0
        %2454 = vmatpush1.msra.mxu0 %v1012
        %2455 = vmatprep.subr.mxu0 0.0
        %2456 = vmatpush1.msra.mxu0 %v1013
        %2457 = vmatprep.subr.mxu0 0.0
        %2458 = vmatpush1.msra.mxu0 %v1014
        %2459 = vmatprep.subr.mxu0 0.0
        %2460 = vmatpush1.msra.mxu0 %v1015
        %2461 = vmatprep.subr.mxu0 0.0
        %2462 = vmatpush1.msra.mxu0 0.0
        %2463 = vmatprep.subr.mxu0 0.0
        %2464 = vmatpush1.msra.mxu0 0.0
        %2465 = vmatprep.subr.mxu0 0.0
        %2466 = vmatpush1.msra.mxu0 0.0
        %2467 = vmatprep.subr.mxu0 0.0
        %2468 = vmatpush1.msra.mxu0 0.0
        %2469 = vmatprep.subr.mxu0 0.0
        %2470 = vmatpush1.msra.mxu0 0.0
        %2471 = vmatprep.subr.mxu0 0.0
        %2472 = vmatpush1.msra.mxu0 0.0
        %2473 = vmatprep.subr.mxu0 0.0
        %2474 = vmatpush1.msra.mxu0 0.0
        %2475 = vmatprep.subr.mxu0 0.0
        %2476 = vmatpush1.msra.mxu0 0.0
        %2477 = vmatprep.subr.mxu0 0.0
        %2478 = vmatpush1.msra.mxu0 0.0
        %2479 = vmatprep.subr.mxu0 0.0
        %2480 = vmatpush1.msra.mxu0 0.0
        %2481 = vmatprep.subr.mxu0 0.0
        %2482 = vmatpush1.msra.mxu0 0.0
        %2483 = vmatprep.subr.mxu0 0.0
        %2484 = vmatpush1.msra.mxu0 0.0
        %2485 = vmatprep.subr.mxu0 0.0
        %2486 = vmatpush1.msra.mxu0 0.0
        %2487 = vmatprep.subr.mxu0 0.0
        %2488 = vmatpush1.msra.mxu0 0.0
        %2489 = vmatprep.subr.mxu0 0.0
        %2490 = vmatpush1.msra.mxu0 0.0
        %2491 = vmatprep.subr.mxu0 0.0
        %2492 = vmatpush1.msra.mxu0 0.0
        %2493 = vmatprep.subr.mxu0 0.0
        %2494 = vmatpush1.msra.mxu0 0.0
        %2495 = vmatprep.subr.mxu0 0.0
        %2496 = vmatpush1.msra.mxu0 0.0
        %2497 = vmatprep.subr.mxu0 0.0
        %2498 = vmatpush1.msra.mxu0 0.0
        %2499 = vmatprep.subr.mxu0 0.0
        %2500 = vmatpush1.msra.mxu0 0.0
        %2501 = vmatprep.subr.mxu0 0.0
        %2502 = vmatpush1.msra.mxu0 0.0
        %2503 = vmatprep.subr.mxu0 0.0
        %2504 = vmatpush1.msra.mxu0 0.0
        %2505 = vmatprep.subr.mxu0 0.0
        %2506 = vmatpush1.msra.mxu0 0.0
        %2507 = vmatprep.subr.mxu0 0.0
        %2508 = vmatpush1.msra.mxu0 0.0
        %2509 = vmatprep.subr.mxu0 0.0
        %2510 = vmatpush1.msra.mxu0 0.0
        %2511 = vmatprep.subr.mxu0 0.0
        %2512 = vmatpush1.msra.mxu0 0.0
        %2513 = vmatprep.subr.mxu0 0.0
        %2514 = vmatpush1.msra.mxu0 0.0
        %2515 = vmatprep.subr.mxu0 0.0
        %2516 = vmatpush1.msra.mxu0 0.0
        %2517 = vmatprep.mubr.f32.mxu0 0.0
        %2518 = vmatmul.mubr.f32.gmra.mrb[0].mxu0 %v1447
        %v2519 = vpop.f32.mrb[0].mxu0
        %v2520 = vadd.f32 0.0, %v2519
        %v2521 = vpop.f32.mrb[0].mxu0
        %2522 = vdwg.mxu0
        %v2523 = vadd.f32 %v2452, %v2520
        %2524 = vmatprep.subr.mxu0 0.0
        %2525 = vmatpush1.msra.mxu0 %v1088
        %2526 = vmatprep.subr.mxu0 0.0
        %2527 = vmatpush1.msra.mxu0 %v1089
        %2528 = vmatprep.subr.mxu0 0.0
        %2529 = vmatpush1.msra.mxu0 %v1090
        %2530 = vmatprep.subr.mxu0 0.0
        %2531 = vmatpush1.msra.mxu0 %v1091
        %2532 = vmatprep.subr.mxu0 0.0
        %2533 = vmatpush1.msra.mxu0 0.0
        %2534 = vmatprep.subr.mxu0 0.0
        %2535 = vmatpush1.msra.mxu0 0.0
        %2536 = vmatprep.subr.mxu0 0.0
        %2537 = vmatpush1.msra.mxu0 0.0
        %2538 = vmatprep.subr.mxu0 0.0
        %2539 = vmatpush1.msra.mxu0 0.0
        %2540 = vmatprep.subr.mxu0 0.0
        %2541 = vmatpush1.msra.mxu0 0.0
        %2542 = vmatprep.subr.mxu0 0.0
        %2543 = vmatpush1.msra.mxu0 0.0
        %2544 = vmatprep.subr.mxu0 0.0
        %2545 = vmatpush1.msra.mxu0 0.0
        %2546 = vmatprep.subr.mxu0 0.0
        %2547 = vmatpush1.msra.mxu0 0.0
        %2548 = vmatprep.subr.mxu0 0.0
        %2549 = vmatpush1.msra.mxu0 0.0
        %2550 = vmatprep.subr.mxu0 0.0
        %2551 = vmatpush1.msra.mxu0 0.0
        %2552 = vmatprep.subr.mxu0 0.0
        %2553 = vmatpush1.msra.mxu0 0.0
        %2554 = vmatprep.subr.mxu0 0.0
        %2555 = vmatpush1.msra.mxu0 0.0
        %2556 = vmatprep.subr.mxu0 0.0
        %2557 = vmatpush1.msra.mxu0 0.0
        %2558 = vmatprep.subr.mxu0 0.0
        %2559 = vmatpush1.msra.mxu0 0.0
        %2560 = vmatprep.subr.mxu0 0.0
        %2561 = vmatpush1.msra.mxu0 0.0
        %2562 = vmatprep.subr.mxu0 0.0
        %2563 = vmatpush1.msra.mxu0 0.0
        %2564 = vmatprep.subr.mxu0 0.0
        %2565 = vmatpush1.msra.mxu0 0.0
        %2566 = vmatprep.subr.mxu0 0.0
        %2567 = vmatpush1.msra.mxu0 0.0
        %2568 = vmatprep.subr.mxu0 0.0
        %2569 = vmatpush1.msra.mxu0 0.0
        %2570 = vmatprep.subr.mxu0 0.0
        %2571 = vmatpush1.msra.mxu0 0.0
        %2572 = vmatprep.subr.mxu0 0.0
        %2573 = vmatpush1.msra.mxu0 0.0
        %2574 = vmatprep.subr.mxu0 0.0
        %2575 = vmatpush1.msra.mxu0 0.0
        %2576 = vmatprep.subr.mxu0 0.0
        %2577 = vmatpush1.msra.mxu0 0.0
        %2578 = vmatprep.subr.mxu0 0.0
        %2579 = vmatpush1.msra.mxu0 0.0
        %2580 = vmatprep.subr.mxu0 0.0
        %2581 = vmatpush1.msra.mxu0 0.0
        %2582 = vmatprep.subr.mxu0 0.0
        %2583 = vmatpush1.msra.mxu0 0.0
        %2584 = vmatprep.subr.mxu0 0.0
        %2585 = vmatpush1.msra.mxu0 0.0
        %2586 = vmatprep.subr.mxu0 0.0
        %2587 = vmatpush1.msra.mxu0 0.0
        %2588 = vmatprep.mubr.f32.mxu0 0.0
        %2589 = vmatmul.mubr.f32.gmra.mrb[0].mxu0 %v2169
        %v2590 = vpop.f32.mrb[0].mxu0
        %v2591 = vadd.f32 0.0, %v2590
        %v2592 = vpop.f32.mrb[0].mxu0
        %2593 = vdwg.mxu0
        %v2594 = vadd.f32 %v2523, %v2591
        %2595 = vmatprep.subr.mxu0 0.0
        %2596 = vmatpush1.msra.mxu0 %v392
        %2597 = vmatprep.subr.mxu0 0.0
        %2598 = vmatpush1.msra.mxu0 %v393
        %2599 = vmatprep.subr.mxu0 0.0
        %2600 = vmatpush1.msra.mxu0 %v394
        %2601 = vmatprep.subr.mxu0 0.0
        %2602 = vmatpush1.msra.mxu0 %v395
        %2603 = vmatprep.subr.mxu0 0.0
        %2604 = vmatpush1.msra.mxu0 0.0
        %2605 = vmatprep.subr.mxu0 0.0
        %2606 = vmatpush1.msra.mxu0 0.0
        %2607 = vmatprep.subr.mxu0 0.0
        %2608 = vmatpush1.msra.mxu0 0.0
        %2609 = vmatprep.subr.mxu0 0.0
        %2610 = vmatpush1.msra.mxu0 0.0
        %2611 = vmatprep.subr.mxu0 0.0
        %2612 = vmatpush1.msra.mxu0 0.0
        %2613 = vmatprep.subr.mxu0 0.0
        %2614 = vmatpush1.msra.mxu0 0.0
        %2615 = vmatprep.subr.mxu0 0.0
        %2616 = vmatpush1.msra.mxu0 0.0
        %2617 = vmatprep.subr.mxu0 0.0
        %2618 = vmatpush1.msra.mxu0 0.0
        %2619 = vmatprep.subr.mxu0 0.0
        %2620 = vmatpush1.msra.mxu0 0.0
        %2621 = vmatprep.subr.mxu0 0.0
        %2622 = vmatpush1.msra.mxu0 0.0
        %2623 = vmatprep.subr.mxu0 0.0
        %2624 = vmatpush1.msra.mxu0 0.0
        %2625 = vmatprep.subr.mxu0 0.0
        %2626 = vmatpush1.msra.mxu0 0.0
        %2627 = vmatprep.subr.mxu0 0.0
        %2628 = vmatpush1.msra.mxu0 0.0
        %2629 = vmatprep.subr.mxu0 0.0
        %2630 = vmatpush1.msra.mxu0 0.0
        %2631 = vmatprep.subr.mxu0 0.0
        %2632 = vmatpush1.msra.mxu0 0.0
        %2633 = vmatprep.subr.mxu0 0.0
        %2634 = vmatpush1.msra.mxu0 0.0
        %2635 = vmatprep.subr.mxu0 0.0
        %2636 = vmatpush1.msra.mxu0 0.0
        %2637 = vmatprep.subr.mxu0 0.0
        %2638 = vmatpush1.msra.mxu0 0.0
        %2639 = vmatprep.subr.mxu0 0.0
        %2640 = vmatpush1.msra.mxu0 0.0
        %2641 = vmatprep.subr.mxu0 0.0
        %2642 = vmatpush1.msra.mxu0 0.0
        %2643 = vmatprep.subr.mxu0 0.0
        %2644 = vmatpush1.msra.mxu0 0.0
        %2645 = vmatprep.subr.mxu0 0.0
        %2646 = vmatpush1.msra.mxu0 0.0
        %2647 = vmatprep.subr.mxu0 0.0
        %2648 = vmatpush1.msra.mxu0 0.0
        %2649 = vmatprep.subr.mxu0 0.0
        %2650 = vmatpush1.msra.mxu0 0.0
        %2651 = vmatprep.subr.mxu0 0.0
        %2652 = vmatpush1.msra.mxu0 0.0
        %2653 = vmatprep.subr.mxu0 0.0
        %2654 = vmatpush1.msra.mxu0 0.0
        %2655 = vmatprep.subr.mxu0 0.0
        %2656 = vmatpush1.msra.mxu0 0.0
        %2657 = vmatprep.subr.mxu0 0.0
        %2658 = vmatpush1.msra.mxu0 0.0
        %2659 = vmatprep.mubr.f32.mxu0 0.0
        %2660 = vmatmul.mubr.f32.gmra.mrb[0].mxu0 %v712
        %v2661 = vpop.f32.mrb[0].mxu0
        %v2662 = vadd.f32 0.0, %v2661
        %v2663 = vpop.f32.mrb[0].mxu0
        %2664 = vdwg.mxu0
        %2665 = vmatprep.subr.mxu0 0.0
        %2666 = vmatpush1.msra.mxu0 %v385
        %2667 = vmatprep.subr.mxu0 0.0
        %2668 = vmatpush1.msra.mxu0 %v386
        %2669 = vmatprep.subr.mxu0 0.0
        %2670 = vmatpush1.msra.mxu0 %v387
        %2671 = vmatprep.subr.mxu0 0.0
        %2672 = vmatpush1.msra.mxu0 %v388
        %2673 = vmatprep.subr.mxu0 0.0
        %2674 = vmatpush1.msra.mxu0 0.0
        %2675 = vmatprep.subr.mxu0 0.0
        %2676 = vmatpush1.msra.mxu0 0.0
        %2677 = vmatprep.subr.mxu0 0.0
        %2678 = vmatpush1.msra.mxu0 0.0
        %2679 = vmatprep.subr.mxu0 0.0
        %2680 = vmatpush1.msra.mxu0 0.0
        %2681 = vmatprep.subr.mxu0 0.0
        %2682 = vmatpush1.msra.mxu0 0.0
        %2683 = vmatprep.subr.mxu0 0.0
        %2684 = vmatpush1.msra.mxu0 0.0
        %2685 = vmatprep.subr.mxu0 0.0
        %2686 = vmatpush1.msra.mxu0 0.0
        %2687 = vmatprep.subr.mxu0 0.0
        %2688 = vmatpush1.msra.mxu0 0.0
        %2689 = vmatprep.subr.mxu0 0.0
        %2690 = vmatpush1.msra.mxu0 0.0
        %2691 = vmatprep.subr.mxu0 0.0
        %2692 = vmatpush1.msra.mxu0 0.0
        %2693 = vmatprep.subr.mxu0 0.0
        %2694 = vmatpush1.msra.mxu0 0.0
        %2695 = vmatprep.subr.mxu0 0.0
        %2696 = vmatpush1.msra.mxu0 0.0
        %2697 = vmatprep.subr.mxu0 0.0
        %2698 = vmatpush1.msra.mxu0 0.0
        %2699 = vmatprep.subr.mxu0 0.0
        %2700 = vmatpush1.msra.mxu0 0.0
        %2701 = vmatprep.subr.mxu0 0.0
        %2702 = vmatpush1.msra.mxu0 0.0
        %2703 = vmatprep.subr.mxu0 0.0
        %2704 = vmatpush1.msra.mxu0 0.0
        %2705 = vmatprep.subr.mxu0 0.0
        %2706 = vmatpush1.msra.mxu0 0.0
        %2707 = vmatprep.subr.mxu0 0.0
        %2708 = vmatpush1.msra.mxu0 0.0
        %2709 = vmatprep.subr.mxu0 0.0
        %2710 = vmatpush1.msra.mxu0 0.0
        %2711 = vmatprep.subr.mxu0 0.0
        %2712 = vmatpush1.msra.mxu0 0.0
        %2713 = vmatprep.subr.mxu0 0.0
        %2714 = vmatpush1.msra.mxu0 0.0
        %2715 = vmatprep.subr.mxu0 0.0
        %2716 = vmatpush1.msra.mxu0 0.0
        %2717 = vmatprep.subr.mxu0 0.0
        %2718 = vmatpush1.msra.mxu0 0.0
        %2719 = vmatprep.subr.mxu0 0.0
        %2720 = vmatpush1.msra.mxu0 0.0
        %2721 = vmatprep.subr.mxu0 0.0
        %2722 = vmatpush1.msra.mxu0 0.0
        %2723 = vmatprep.subr.mxu0 0.0
        %2724 = vmatpush1.msra.mxu0 0.0
        %2725 = vmatprep.subr.mxu0 0.0
        %2726 = vmatpush1.msra.mxu0 0.0
        %2727 = vmatprep.subr.mxu0 0.0
        %2728 = vmatpush1.msra.mxu0 0.0
        %2729 = vmatprep.mubr.f32.mxu0 0.0
        %2730 = vmatmul.mubr.f32.gmra.mrb[0].mxu0 %v632
        %v2731 = vpop.f32.mrb[0].mxu0
        %v2732 = vadd.f32 %v2662, %v2731
        %v2733 = vpop.f32.mrb[0].mxu0
        %2734 = vdwg.mxu0
        %2735 = vmatprep.subr.mxu0 0.0
        %2736 = vmatpush1.msra.mxu0 %v546
        %2737 = vmatprep.subr.mxu0 0.0
        %2738 = vmatpush1.msra.mxu0 %v547
        %2739 = vmatprep.subr.mxu0 0.0
        %2740 = vmatpush1.msra.mxu0 %v548
        %2741 = vmatprep.subr.mxu0 0.0
        %2742 = vmatpush1.msra.mxu0 %v549
        %2743 = vmatprep.subr.mxu0 0.0
        %2744 = vmatpush1.msra.mxu0 0.0
        %2745 = vmatprep.subr.mxu0 0.0
        %2746 = vmatpush1.msra.mxu0 0.0
        %2747 = vmatprep.subr.mxu0 0.0
        %2748 = vmatpush1.msra.mxu0 0.0
        %2749 = vmatprep.subr.mxu0 0.0
        %2750 = vmatpush1.msra.mxu0 0.0
        %2751 = vmatprep.subr.mxu0 0.0
        %2752 = vmatpush1.msra.mxu0 0.0
        %2753 = vmatprep.subr.mxu0 0.0
        %2754 = vmatpush1.msra.mxu0 0.0
        %2755 = vmatprep.subr.mxu0 0.0
        %2756 = vmatpush1.msra.mxu0 0.0
        %2757 = vmatprep.subr.mxu0 0.0
        %2758 = vmatpush1.msra.mxu0 0.0
        %2759 = vmatprep.subr.mxu0 0.0
        %2760 = vmatpush1.msra.mxu0 0.0
        %2761 = vmatprep.subr.mxu0 0.0
        %2762 = vmatpush1.msra.mxu0 0.0
        %2763 = vmatprep.subr.mxu0 0.0
        %2764 = vmatpush1.msra.mxu0 0.0
        %2765 = vmatprep.subr.mxu0 0.0
        %2766 = vmatpush1.msra.mxu0 0.0
        %2767 = vmatprep.subr.mxu0 0.0
        %2768 = vmatpush1.msra.mxu0 0.0
        %2769 = vmatprep.subr.mxu0 0.0
        %2770 = vmatpush1.msra.mxu0 0.0
        %2771 = vmatprep.subr.mxu0 0.0
        %2772 = vmatpush1.msra.mxu0 0.0
        %2773 = vmatprep.subr.mxu0 0.0
        %2774 = vmatpush1.msra.mxu0 0.0
        %2775 = vmatprep.subr.mxu0 0.0
        %2776 = vmatpush1.msra.mxu0 0.0
        %2777 = vmatprep.subr.mxu0 0.0
        %2778 = vmatpush1.msra.mxu0 0.0
        %2779 = vmatprep.subr.mxu0 0.0
        %2780 = vmatpush1.msra.mxu0 0.0
        %2781 = vmatprep.subr.mxu0 0.0
        %2782 = vmatpush1.msra.mxu0 0.0
        %2783 = vmatprep.subr.mxu0 0.0
        %2784 = vmatpush1.msra.mxu0 0.0
        %2785 = vmatprep.subr.mxu0 0.0
        %2786 = vmatpush1.msra.mxu0 0.0
        %2787 = vmatprep.subr.mxu0 0.0
        %2788 = vmatpush1.msra.mxu0 0.0
        %2789 = vmatprep.subr.mxu0 0.0
        %2790 = vmatpush1.msra.mxu0 0.0
        %2791 = vmatprep.subr.mxu0 0.0
        %2792 = vmatpush1.msra.mxu0 0.0
        %2793 = vmatprep.subr.mxu0 0.0
        %2794 = vmatpush1.msra.mxu0 0.0
        %2795 = vmatprep.subr.mxu0 0.0
        %2796 = vmatpush1.msra.mxu0 0.0
        %2797 = vmatprep.subr.mxu0 0.0
        %2798 = vmatpush1.msra.mxu0 0.0
        %2799 = vmatprep.mubr.f32.mxu0 0.0
        %2800 = vmatmul.mubr.f32.gmra.mrb[0].mxu0 %v1447
        %v2801 = vpop.f32.mrb[0].mxu0
        %v2802 = vadd.f32 0.0, %v2801
        %v2803 = vpop.f32.mrb[0].mxu0
        %2804 = vdwg.mxu0
        %v2805 = vadd.f32 %v2732, %v2802
        %2806 = vmatprep.subr.mxu0 0.0
        %2807 = vmatpush1.msra.mxu0 %v627
        %2808 = vmatprep.subr.mxu0 0.0
        %2809 = vmatpush1.msra.mxu0 %v628
        %2810 = vmatprep.subr.mxu0 0.0
        %2811 = vmatpush1.msra.mxu0 %v629
        %2812 = vmatprep.subr.mxu0 0.0
        %2813 = vmatpush1.msra.mxu0 %v630
        %2814 = vmatprep.subr.mxu0 0.0
        %2815 = vmatpush1.msra.mxu0 0.0
        %2816 = vmatprep.subr.mxu0 0.0
        %2817 = vmatpush1.msra.mxu0 0.0
        %2818 = vmatprep.subr.mxu0 0.0
        %2819 = vmatpush1.msra.mxu0 0.0
        %2820 = vmatprep.subr.mxu0 0.0
        %2821 = vmatpush1.msra.mxu0 0.0
        %2822 = vmatprep.subr.mxu0 0.0
        %2823 = vmatpush1.msra.mxu0 0.0
        %2824 = vmatprep.subr.mxu0 0.0
        %2825 = vmatpush1.msra.mxu0 0.0
        %2826 = vmatprep.subr.mxu0 0.0
        %2827 = vmatpush1.msra.mxu0 0.0
        %2828 = vmatprep.subr.mxu0 0.0
        %2829 = vmatpush1.msra.mxu0 0.0
        %2830 = vmatprep.subr.mxu0 0.0
        %2831 = vmatpush1.msra.mxu0 0.0
        %2832 = vmatprep.subr.mxu0 0.0
        %2833 = vmatpush1.msra.mxu0 0.0
        %2834 = vmatprep.subr.mxu0 0.0
        %2835 = vmatpush1.msra.mxu0 0.0
        %2836 = vmatprep.subr.mxu0 0.0
        %2837 = vmatpush1.msra.mxu0 0.0
        %2838 = vmatprep.subr.mxu0 0.0
        %2839 = vmatpush1.msra.mxu0 0.0
        %2840 = vmatprep.subr.mxu0 0.0
        %2841 = vmatpush1.msra.mxu0 0.0
        %2842 = vmatprep.subr.mxu0 0.0
        %2843 = vmatpush1.msra.mxu0 0.0
        %2844 = vmatprep.subr.mxu0 0.0
        %2845 = vmatpush1.msra.mxu0 0.0
        %2846 = vmatprep.subr.mxu0 0.0
        %2847 = vmatpush1.msra.mxu0 0.0
        %2848 = vmatprep.subr.mxu0 0.0
        %2849 = vmatpush1.msra.mxu0 0.0
        %2850 = vmatprep.subr.mxu0 0.0
        %2851 = vmatpush1.msra.mxu0 0.0
        %2852 = vmatprep.subr.mxu0 0.0
        %2853 = vmatpush1.msra.mxu0 0.0
        %2854 = vmatprep.subr.mxu0 0.0
        %2855 = vmatpush1.msra.mxu0 0.0
        %2856 = vmatprep.subr.mxu0 0.0
        %2857 = vmatpush1.msra.mxu0 0.0
        %2858 = vmatprep.subr.mxu0 0.0
        %2859 = vmatpush1.msra.mxu0 0.0
        %2860 = vmatprep.subr.mxu0 0.0
        %2861 = vmatpush1.msra.mxu0 0.0
        %2862 = vmatprep.subr.mxu0 0.0
        %2863 = vmatpush1.msra.mxu0 0.0
        %2864 = vmatprep.subr.mxu0 0.0
        %2865 = vmatpush1.msra.mxu0 0.0
        %2866 = vmatprep.subr.mxu0 0.0
        %2867 = vmatpush1.msra.mxu0 0.0
        %2868 = vmatprep.subr.mxu0 0.0
        %2869 = vmatpush1.msra.mxu0 0.0
        %2870 = vmatprep.mubr.f32.mxu0 0.0
        %2871 = vmatmul.mubr.f32.gmra.mrb[0].mxu0 %v2169
        %v2872 = vpop.f32.mrb[0].mxu0
        %v2873 = vadd.f32 0.0, %v2872
        %v2874 = vpop.f32.mrb[0].mxu0
        %2875 = vdwg.mxu0
        %v2876 = vadd.f32 %v2805, %v2873
        %v2877 = vld [vmem:[%s624 + $0x1] sm:$0x7f]
        %v2879 = vsel %vm396, %v2877, 0
        %2881 = vmatprep.subr.mxu0 0.0
        %2882 = vmatpush1.msra.mxu0 %v707
        %2883 = vmatprep.subr.mxu0 0.0
        %2884 = vmatpush1.msra.mxu0 %v708
        %2885 = vmatprep.subr.mxu0 0.0
        %2886 = vmatpush1.msra.mxu0 %v709
        %2887 = vmatprep.subr.mxu0 0.0
        %2888 = vmatpush1.msra.mxu0 %v710
        %2889 = vmatprep.subr.mxu0 0.0
        %2890 = vmatpush1.msra.mxu0 0.0
        %2891 = vmatprep.subr.mxu0 0.0
        %2892 = vmatpush1.msra.mxu0 0.0
        %2893 = vmatprep.subr.mxu0 0.0
        %2894 = vmatpush1.msra.mxu0 0.0
        %2895 = vmatprep.subr.mxu0 0.0
        %2896 = vmatpush1.msra.mxu0 0.0
        %2897 = vmatprep.subr.mxu0 0.0
        %2898 = vmatpush1.msra.mxu0 0.0
        %2899 = vmatprep.subr.mxu0 0.0
        %2900 = vmatpush1.msra.mxu0 0.0
        %2901 = vmatprep.subr.mxu0 0.0
        %2902 = vmatpush1.msra.mxu0 0.0
        %2903 = vmatprep.subr.mxu0 0.0
        %2904 = vmatpush1.msra.mxu0 0.0
        %2905 = vmatprep.subr.mxu0 0.0
        %2906 = vmatpush1.msra.mxu0 0.0
        %2907 = vmatprep.subr.mxu0 0.0
        %2908 = vmatpush1.msra.mxu0 0.0
        %2909 = vmatprep.subr.mxu0 0.0
        %2910 = vmatpush1.msra.mxu0 0.0
        %2911 = vmatprep.subr.mxu0 0.0
        %2912 = vmatpush1.msra.mxu0 0.0
        %2913 = vmatprep.subr.mxu0 0.0
        %2914 = vmatpush1.msra.mxu0 0.0
        %2915 = vmatprep.subr.mxu0 0.0
        %2916 = vmatpush1.msra.mxu0 0.0
        %2917 = vmatprep.subr.mxu0 0.0
        %2918 = vmatpush1.msra.mxu0 0.0
        %2919 = vmatprep.subr.mxu0 0.0
        %2920 = vmatpush1.msra.mxu0 0.0
        %2921 = vmatprep.subr.mxu0 0.0
        %2922 = vmatpush1.msra.mxu0 0.0
        %2923 = vmatprep.subr.mxu0 0.0
        %2924 = vmatpush1.msra.mxu0 0.0
        %2925 = vmatprep.subr.mxu0 0.0
        %2926 = vmatpush1.msra.mxu0 0.0
        %2927 = vmatprep.subr.mxu0 0.0
        %2928 = vmatpush1.msra.mxu0 0.0
        %2929 = vmatprep.subr.mxu0 0.0
        %2930 = vmatpush1.msra.mxu0 0.0
        %2931 = vmatprep.subr.mxu0 0.0
        %2932 = vmatpush1.msra.mxu0 0.0
        %2933 = vmatprep.subr.mxu0 0.0
        %2934 = vmatpush1.msra.mxu0 0.0
        %2935 = vmatprep.subr.mxu0 0.0
        %2936 = vmatpush1.msra.mxu0 0.0
        %2937 = vmatprep.subr.mxu0 0.0
        %2938 = vmatpush1.msra.mxu0 0.0
        %2939 = vmatprep.subr.mxu0 0.0
        %2940 = vmatpush1.msra.mxu0 0.0
        %2941 = vmatprep.subr.mxu0 0.0
        %2942 = vmatpush1.msra.mxu0 0.0
        %2943 = vmatprep.subr.mxu0 0.0
        %2944 = vmatpush1.msra.mxu0 0.0
        %2945 = vmatprep.mubr.f32.mxu0 0.0
        %2946 = vmatmul.mubr.f32.gmra.mrb[0].mxu0 %v2879
        %v2947 = vpop.f32.mrb[0].mxu0
        %v2948 = vadd.f32 0.0, %v2947
        %v2949 = vpop.f32.mrb[0].mxu0
        %2950 = vdwg.mxu0
        %v2951 = vadd.f32 %v2876, %v2948
        %2952 = vmatprep.subr.mxu0 0.0
        %2953 = vmatpush1.msra.mxu0 %v791
        %2954 = vmatprep.subr.mxu0 0.0
        %2955 = vmatpush1.msra.mxu0 %v792
        %2956 = vmatprep.subr.mxu0 0.0
        %2957 = vmatpush1.msra.mxu0 %v793
        %2958 = vmatprep.subr.mxu0 0.0
        %2959 = vmatpush1.msra.mxu0 %v794
        %2960 = vmatprep.subr.mxu0 0.0
        %2961 = vmatpush1.msra.mxu0 0.0
        %2962 = vmatprep.subr.mxu0 0.0
        %2963 = vmatpush1.msra.mxu0 0.0
        %2964 = vmatprep.subr.mxu0 0.0
        %2965 = vmatpush1.msra.mxu0 0.0
        %2966 = vmatprep.subr.mxu0 0.0
        %2967 = vmatpush1.msra.mxu0 0.0
        %2968 = vmatprep.subr.mxu0 0.0
        %2969 = vmatpush1.msra.mxu0 0.0
        %2970 = vmatprep.subr.mxu0 0.0
        %2971 = vmatpush1.msra.mxu0 0.0
        %2972 = vmatprep.subr.mxu0 0.0
        %2973 = vmatpush1.msra.mxu0 0.0
        %2974 = vmatprep.subr.mxu0 0.0
        %2975 = vmatpush1.msra.mxu0 0.0
        %2976 = vmatprep.subr.mxu0 0.0
        %2977 = vmatpush1.msra.mxu0 0.0
        %2978 = vmatprep.subr.mxu0 0.0
        %2979 = vmatpush1.msra.mxu0 0.0
        %2980 = vmatprep.subr.mxu0 0.0
        %2981 = vmatpush1.msra.mxu0 0.0
        %2982 = vmatprep.subr.mxu0 0.0
        %2983 = vmatpush1.msra.mxu0 0.0
        %2984 = vmatprep.subr.mxu0 0.0
        %2985 = vmatpush1.msra.mxu0 0.0
        %2986 = vmatprep.subr.mxu0 0.0
        %2987 = vmatpush1.msra.mxu0 0.0
        %2988 = vmatprep.subr.mxu0 0.0
        %2989 = vmatpush1.msra.mxu0 0.0
        %2990 = vmatprep.subr.mxu0 0.0
        %2991 = vmatpush1.msra.mxu0 0.0
        %2992 = vmatprep.subr.mxu0 0.0
        %2993 = vmatpush1.msra.mxu0 0.0
        %2994 = vmatprep.subr.mxu0 0.0
        %2995 = vmatpush1.msra.mxu0 0.0
        %2996 = vmatprep.subr.mxu0 0.0
        %2997 = vmatpush1.msra.mxu0 0.0
        %2998 = vmatprep.subr.mxu0 0.0
        %2999 = vmatpush1.msra.mxu0 0.0
        %3000 = vmatprep.subr.mxu0 0.0
        %3001 = vmatpush1.msra.mxu0 0.0
        %3002 = vmatprep.subr.mxu0 0.0
        %3003 = vmatpush1.msra.mxu0 0.0
        %3004 = vmatprep.subr.mxu0 0.0
        %3005 = vmatpush1.msra.mxu0 0.0
        %3006 = vmatprep.subr.mxu0 0.0
        %3007 = vmatpush1.msra.mxu0 0.0
        %3008 = vmatprep.subr.mxu0 0.0
        %3009 = vmatpush1.msra.mxu0 0.0
        %3010 = vmatprep.subr.mxu0 0.0
        %3011 = vmatpush1.msra.mxu0 0.0
        %3012 = vmatprep.subr.mxu0 0.0
        %3013 = vmatpush1.msra.mxu0 0.0
        %3014 = vmatprep.subr.mxu0 0.0
        %3015 = vmatpush1.msra.mxu0 0.0
        %3016 = vmatprep.mubr.f32.mxu0 0.0
        %3017 = vmatmul.mubr.f32.gmra.mrb[0].mxu0 %v712
        %v3018 = vpop.f32.mrb[0].mxu0
        %v3019 = vadd.f32 0.0, %v3018
        %v3020 = vpop.f32.mrb[0].mxu0
        %3021 = vdwg.mxu0
        %3022 = vmatprep.subr.mxu0 0.0
        %3023 = vmatpush1.msra.mxu0 %v786
        %3024 = vmatprep.subr.mxu0 0.0
        %3025 = vmatpush1.msra.mxu0 %v787
        %3026 = vmatprep.subr.mxu0 0.0
        %3027 = vmatpush1.msra.mxu0 %v788
        %3028 = vmatprep.subr.mxu0 0.0
        %3029 = vmatpush1.msra.mxu0 %v789
        %3030 = vmatprep.subr.mxu0 0.0
        %3031 = vmatpush1.msra.mxu0 0.0
        %3032 = vmatprep.subr.mxu0 0.0
        %3033 = vmatpush1.msra.mxu0 0.0
        %3034 = vmatprep.subr.mxu0 0.0
        %3035 = vmatpush1.msra.mxu0 0.0
        %3036 = vmatprep.subr.mxu0 0.0
        %3037 = vmatpush1.msra.mxu0 0.0
        %3038 = vmatprep.subr.mxu0 0.0
        %3039 = vmatpush1.msra.mxu0 0.0
        %3040 = vmatprep.subr.mxu0 0.0
        %3041 = vmatpush1.msra.mxu0 0.0
        %3042 = vmatprep.subr.mxu0 0.0
        %3043 = vmatpush1.msra.mxu0 0.0
        %3044 = vmatprep.subr.mxu0 0.0
        %3045 = vmatpush1.msra.mxu0 0.0
        %3046 = vmatprep.subr.mxu0 0.0
        %3047 = vmatpush1.msra.mxu0 0.0
        %3048 = vmatprep.subr.mxu0 0.0
        %3049 = vmatpush1.msra.mxu0 0.0
        %3050 = vmatprep.subr.mxu0 0.0
        %3051 = vmatpush1.msra.mxu0 0.0
        %3052 = vmatprep.subr.mxu0 0.0
        %3053 = vmatpush1.msra.mxu0 0.0
        %3054 = vmatprep.subr.mxu0 0.0
        %3055 = vmatpush1.msra.mxu0 0.0
        %3056 = vmatprep.subr.mxu0 0.0
        %3057 = vmatpush1.msra.mxu0 0.0
        %3058 = vmatprep.subr.mxu0 0.0
        %3059 = vmatpush1.msra.mxu0 0.0
        %3060 = vmatprep.subr.mxu0 0.0
        %3061 = vmatpush1.msra.mxu0 0.0
        %3062 = vmatprep.subr.mxu0 0.0
        %3063 = vmatpush1.msra.mxu0 0.0
        %3064 = vmatprep.subr.mxu0 0.0
        %3065 = vmatpush1.msra.mxu0 0.0
        %3066 = vmatprep.subr.mxu0 0.0
        %3067 = vmatpush1.msra.mxu0 0.0
        %3068 = vmatprep.subr.mxu0 0.0
        %3069 = vmatpush1.msra.mxu0 0.0
        %3070 = vmatprep.subr.mxu0 0.0
        %3071 = vmatpush1.msra.mxu0 0.0
        %3072 = vmatprep.subr.mxu0 0.0
        %3073 = vmatpush1.msra.mxu0 0.0
        %3074 = vmatprep.subr.mxu0 0.0
        %3075 = vmatpush1.msra.mxu0 0.0
        %3076 = vmatprep.subr.mxu0 0.0
        %3077 = vmatpush1.msra.mxu0 0.0
        %3078 = vmatprep.subr.mxu0 0.0
        %3079 = vmatpush1.msra.mxu0 0.0
        %3080 = vmatprep.subr.mxu0 0.0
        %3081 = vmatpush1.msra.mxu0 0.0
        %3082 = vmatprep.subr.mxu0 0.0
        %3083 = vmatpush1.msra.mxu0 0.0
        %3084 = vmatprep.subr.mxu0 0.0
        %3085 = vmatpush1.msra.mxu0 0.0
        %3086 = vmatprep.mubr.f32.mxu0 0.0
        %3087 = vmatmul.mubr.f32.gmra.mrb[0].mxu0 %v632
        %v3088 = vpop.f32.mrb[0].mxu0
        %v3089 = vadd.f32 %v3019, %v3088
        %v3090 = vpop.f32.mrb[0].mxu0
        %3091 = vdwg.mxu0
        %3092 = vmatprep.subr.mxu0 0.0
        %3093 = vmatpush1.msra.mxu0 %v936
        %3094 = vmatprep.subr.mxu0 0.0
        %3095 = vmatpush1.msra.mxu0 %v937
        %3096 = vmatprep.subr.mxu0 0.0
        %3097 = vmatpush1.msra.mxu0 %v938
        %3098 = vmatprep.subr.mxu0 0.0
        %3099 = vmatpush1.msra.mxu0 %v939
        %3100 = vmatprep.subr.mxu0 0.0
        %3101 = vmatpush1.msra.mxu0 0.0
        %3102 = vmatprep.subr.mxu0 0.0
        %3103 = vmatpush1.msra.mxu0 0.0
        %3104 = vmatprep.subr.mxu0 0.0
        %3105 = vmatpush1.msra.mxu0 0.0
        %3106 = vmatprep.subr.mxu0 0.0
        %3107 = vmatpush1.msra.mxu0 0.0
        %3108 = vmatprep.subr.mxu0 0.0
        %3109 = vmatpush1.msra.mxu0 0.0
        %3110 = vmatprep.subr.mxu0 0.0
        %3111 = vmatpush1.msra.mxu0 0.0
        %3112 = vmatprep.subr.mxu0 0.0
        %3113 = vmatpush1.msra.mxu0 0.0
        %3114 = vmatprep.subr.mxu0 0.0
        %3115 = vmatpush1.msra.mxu0 0.0
        %3116 = vmatprep.subr.mxu0 0.0
        %3117 = vmatpush1.msra.mxu0 0.0
        %3118 = vmatprep.subr.mxu0 0.0
        %3119 = vmatpush1.msra.mxu0 0.0
        %3120 = vmatprep.subr.mxu0 0.0
        %3121 = vmatpush1.msra.mxu0 0.0
        %3122 = vmatprep.subr.mxu0 0.0
        %3123 = vmatpush1.msra.mxu0 0.0
        %3124 = vmatprep.subr.mxu0 0.0
        %3125 = vmatpush1.msra.mxu0 0.0
        %3126 = vmatprep.subr.mxu0 0.0
        %3127 = vmatpush1.msra.mxu0 0.0
        %3128 = vmatprep.subr.mxu0 0.0
        %3129 = vmatpush1.msra.mxu0 0.0
        %3130 = vmatprep.subr.mxu0 0.0
        %3131 = vmatpush1.msra.mxu0 0.0
        %3132 = vmatprep.subr.mxu0 0.0
        %3133 = vmatpush1.msra.mxu0 0.0
        %3134 = vmatprep.subr.mxu0 0.0
        %3135 = vmatpush1.msra.mxu0 0.0
        %3136 = vmatprep.subr.mxu0 0.0
        %3137 = vmatpush1.msra.mxu0 0.0
        %3138 = vmatprep.subr.mxu0 0.0
        %3139 = vmatpush1.msra.mxu0 0.0
        %3140 = vmatprep.subr.mxu0 0.0
        %3141 = vmatpush1.msra.mxu0 0.0
        %3142 = vmatprep.subr.mxu0 0.0
        %3143 = vmatpush1.msra.mxu0 0.0
        %3144 = vmatprep.subr.mxu0 0.0
        %3145 = vmatpush1.msra.mxu0 0.0
        %3146 = vmatprep.subr.mxu0 0.0
        %3147 = vmatpush1.msra.mxu0 0.0
        %3148 = vmatprep.subr.mxu0 0.0
        %3149 = vmatpush1.msra.mxu0 0.0
        %3150 = vmatprep.subr.mxu0 0.0
        %3151 = vmatpush1.msra.mxu0 0.0
        %3152 = vmatprep.subr.mxu0 0.0
        %3153 = vmatpush1.msra.mxu0 0.0
        %3154 = vmatprep.subr.mxu0 0.0
        %3155 = vmatpush1.msra.mxu0 0.0
        %3156 = vmatprep.mubr.f32.mxu0 0.0
        %3157 = vmatmul.mubr.f32.gmra.mrb[0].mxu0 %v1447
        %v3158 = vpop.f32.mrb[0].mxu0
        %v3159 = vadd.f32 0.0, %v3158
        %v3160 = vpop.f32.mrb[0].mxu0
        %3161 = vdwg.mxu0
        %v3162 = vadd.f32 %v3089, %v3159
        %3163 = vmatprep.subr.mxu0 0.0
        %3164 = vmatpush1.msra.mxu0 %v1012
        %3165 = vmatprep.subr.mxu0 0.0
        %3166 = vmatpush1.msra.mxu0 %v1013
        %3167 = vmatprep.subr.mxu0 0.0
        %3168 = vmatpush1.msra.mxu0 %v1014
        %3169 = vmatprep.subr.mxu0 0.0
        %3170 = vmatpush1.msra.mxu0 %v1015
        %3171 = vmatprep.subr.mxu0 0.0
        %3172 = vmatpush1.msra.mxu0 0.0
        %3173 = vmatprep.subr.mxu0 0.0
        %3174 = vmatpush1.msra.mxu0 0.0
        %3175 = vmatprep.subr.mxu0 0.0
        %3176 = vmatpush1.msra.mxu0 0.0
        %3177 = vmatprep.subr.mxu0 0.0
        %3178 = vmatpush1.msra.mxu0 0.0
        %3179 = vmatprep.subr.mxu0 0.0
        %3180 = vmatpush1.msra.mxu0 0.0
        %3181 = vmatprep.subr.mxu0 0.0
        %3182 = vmatpush1.msra.mxu0 0.0
        %3183 = vmatprep.subr.mxu0 0.0
        %3184 = vmatpush1.msra.mxu0 0.0
        %3185 = vmatprep.subr.mxu0 0.0
        %3186 = vmatpush1.msra.mxu0 0.0
        %3187 = vmatprep.subr.mxu0 0.0
        %3188 = vmatpush1.msra.mxu0 0.0
        %3189 = vmatprep.subr.mxu0 0.0
        %3190 = vmatpush1.msra.mxu0 0.0
        %3191 = vmatprep.subr.mxu0 0.0
        %3192 = vmatpush1.msra.mxu0 0.0
        %3193 = vmatprep.subr.mxu0 0.0
        %3194 = vmatpush1.msra.mxu0 0.0
        %3195 = vmatprep.subr.mxu0 0.0
        %3196 = vmatpush1.msra.mxu0 0.0
        %3197 = vmatprep.subr.mxu0 0.0
        %3198 = vmatpush1.msra.mxu0 0.0
        %3199 = vmatprep.subr.mxu0 0.0
        %3200 = vmatpush1.msra.mxu0 0.0
        %3201 = vmatprep.subr.mxu0 0.0
        %3202 = vmatpush1.msra.mxu0 0.0
        %3203 = vmatprep.subr.mxu0 0.0
        %3204 = vmatpush1.msra.mxu0 0.0
        %3205 = vmatprep.subr.mxu0 0.0
        %3206 = vmatpush1.msra.mxu0 0.0
        %3207 = vmatprep.subr.mxu0 0.0
        %3208 = vmatpush1.msra.mxu0 0.0
        %3209 = vmatprep.subr.mxu0 0.0
        %3210 = vmatpush1.msra.mxu0 0.0
        %3211 = vmatprep.subr.mxu0 0.0
        %3212 = vmatpush1.msra.mxu0 0.0
        %3213 = vmatprep.subr.mxu0 0.0
        %3214 = vmatpush1.msra.mxu0 0.0
        %3215 = vmatprep.subr.mxu0 0.0
        %3216 = vmatpush1.msra.mxu0 0.0
        %3217 = vmatprep.subr.mxu0 0.0
        %3218 = vmatpush1.msra.mxu0 0.0
        %3219 = vmatprep.subr.mxu0 0.0
        %3220 = vmatpush1.msra.mxu0 0.0
        %3221 = vmatprep.subr.mxu0 0.0
        %3222 = vmatpush1.msra.mxu0 0.0
        %3223 = vmatprep.subr.mxu0 0.0
        %3224 = vmatpush1.msra.mxu0 0.0
        %3225 = vmatprep.subr.mxu0 0.0
        %3226 = vmatpush1.msra.mxu0 0.0
        %3227 = vmatprep.mubr.f32.mxu0 0.0
        %3228 = vmatmul.mubr.f32.gmra.mrb[0].mxu0 %v2169
        %v3229 = vpop.f32.mrb[0].mxu0
        %v3230 = vadd.f32 0.0, %v3229
        %v3231 = vpop.f32.mrb[0].mxu0
        %3232 = vdwg.mxu0
        %v3233 = vadd.f32 %v3162, %v3230
        %3234 = vmatprep.subr.mxu0 0.0
        %3235 = vmatpush1.msra.mxu0 %v1088
        %3236 = vmatprep.subr.mxu0 0.0
        %3237 = vmatpush1.msra.mxu0 %v1089
        %3238 = vmatprep.subr.mxu0 0.0
        %3239 = vmatpush1.msra.mxu0 %v1090
        %3240 = vmatprep.subr.mxu0 0.0
        %3241 = vmatpush1.msra.mxu0 %v1091
        %3242 = vmatprep.subr.mxu0 0.0
        %3243 = vmatpush1.msra.mxu0 0.0
        %3244 = vmatprep.subr.mxu0 0.0
        %3245 = vmatpush1.msra.mxu0 0.0
        %3246 = vmatprep.subr.mxu0 0.0
        %3247 = vmatpush1.msra.mxu0 0.0
        %3248 = vmatprep.subr.mxu0 0.0
        %3249 = vmatpush1.msra.mxu0 0.0
        %3250 = vmatprep.subr.mxu0 0.0
        %3251 = vmatpush1.msra.mxu0 0.0
        %3252 = vmatprep.subr.mxu0 0.0
        %3253 = vmatpush1.msra.mxu0 0.0
        %3254 = vmatprep.subr.mxu0 0.0
        %3255 = vmatpush1.msra.mxu0 0.0
        %3256 = vmatprep.subr.mxu0 0.0
        %3257 = vmatpush1.msra.mxu0 0.0
        %3258 = vmatprep.subr.mxu0 0.0
        %3259 = vmatpush1.msra.mxu0 0.0
        %3260 = vmatprep.subr.mxu0 0.0
        %3261 = vmatpush1.msra.mxu0 0.0
        %3262 = vmatprep.subr.mxu0 0.0
        %3263 = vmatpush1.msra.mxu0 0.0
        %3264 = vmatprep.subr.mxu0 0.0
        %3265 = vmatpush1.msra.mxu0 0.0
        %3266 = vmatprep.subr.mxu0 0.0
        %3267 = vmatpush1.msra.mxu0 0.0
        %3268 = vmatprep.subr.mxu0 0.0
        %3269 = vmatpush1.msra.mxu0 0.0
        %3270 = vmatprep.subr.mxu0 0.0
        %3271 = vmatpush1.msra.mxu0 0.0
        %3272 = vmatprep.subr.mxu0 0.0
        %3273 = vmatpush1.msra.mxu0 0.0
        %3274 = vmatprep.subr.mxu0 0.0
        %3275 = vmatpush1.msra.mxu0 0.0
        %3276 = vmatprep.subr.mxu0 0.0
        %3277 = vmatpush1.msra.mxu0 0.0
        %3278 = vmatprep.subr.mxu0 0.0
        %3279 = vmatpush1.msra.mxu0 0.0
        %3280 = vmatprep.subr.mxu0 0.0
        %3281 = vmatpush1.msra.mxu0 0.0
        %3282 = vmatprep.subr.mxu0 0.0
        %3283 = vmatpush1.msra.mxu0 0.0
        %3284 = vmatprep.subr.mxu0 0.0
        %3285 = vmatpush1.msra.mxu0 0.0
        %3286 = vmatprep.subr.mxu0 0.0
        %3287 = vmatpush1.msra.mxu0 0.0
        %3288 = vmatprep.subr.mxu0 0.0
        %3289 = vmatpush1.msra.mxu0 0.0
        %3290 = vmatprep.subr.mxu0 0.0
        %3291 = vmatpush1.msra.mxu0 0.0
        %3292 = vmatprep.subr.mxu0 0.0
        %3293 = vmatpush1.msra.mxu0 0.0
        %3294 = vmatprep.subr.mxu0 0.0
        %3295 = vmatpush1.msra.mxu0 0.0
        %3296 = vmatprep.subr.mxu0 0.0
        %3297 = vmatpush1.msra.mxu0 0.0
        %3298 = vmatprep.mubr.f32.mxu0 0.0
        %3299 = vmatmul.mubr.f32.gmra.mrb[0].mxu0 %v2879
        %v3300 = vpop.f32.mrb[0].mxu0
        %v3301 = vadd.f32 0.0, %v3300
        %v3302 = vpop.f32.mrb[0].mxu0
        %3303 = vdwg.mxu0
        %v3304 = vadd.f32 %v3233, %v3301
        %v3305 = vmax.f32 %v2241, %v2594
        %v3306 = vmax.f32 %v3305, %v2951
        %v3307 = vmax.f32 %v3306, %v3304
        %v3308 = vadd.f32 %v3307, %v1881
        %v3309 = vmax.f32 %v3308, 0.0
        %v3310 = vld [vmem:[%s3] sm:$0xff]
        %v3311 = vld [vmem:[%s3 + $0x8] sm:$0xff]
        %v3312 = vld [vmem:[%s3 + $0x10] sm:$0xff]
        %v3313 = vld [vmem:[%s3 + $0x18] sm:$0xff]
        %v3314 = vld [vmem:[%s3 + $0x20] sm:$0xff]
        %v3315 = vld [vmem:[%s3 + $0x28] sm:$0xff]
        %v3316 = vld [vmem:[%s3 + $0x30] sm:$0xff]
        %v3317 = vld [vmem:[%s3 + $0x38] sm:$0xff]
        %v3318 = vld [vmem:[%s3 + $0x40] sm:$0xff]
        %v3319 = vld [vmem:[%s3 + $0x48] sm:$0xff]
        %v3320 = vld [vmem:[%s3 + $0x50] sm:$0xff]
        %v3321 = vld [vmem:[%s3 + $0x58] sm:$0xff]
        %v3322 = vld [vmem:[%s3 + $0x60] sm:$0xff]
        %v3323 = vld [vmem:[%s3 + $0x68] sm:$0xff]
        %s3324 = scalar_lea.vmem %s3, 112
        %v3325 = vld [vmem:[%s3324] sm:$0xff]
        %v3326 = vld [vmem:[%s3324 + $0x8] sm:$0xff]
        %v3327 = vld [vmem:[%s3324 + $0x10] sm:$0xff]
        %v3328 = vld [vmem:[%s3324 + $0x18] sm:$0xff]
        %v3329 = vld [vmem:[%s3324 + $0x20] sm:$0xff]
        %v3330 = vld [vmem:[%s3324 + $0x28] sm:$0xff]
        %v3331 = vld [vmem:[%s3324 + $0x30] sm:$0xff]
        %v3332 = vld [vmem:[%s3324 + $0x38] sm:$0xff]
        %v3333 = vld [vmem:[%s3324 + $0x40] sm:$0xff]
        %v3334 = vld [vmem:[%s3324 + $0x48] sm:$0xff]
        %v3335 = vld [vmem:[%s3324 + $0x50] sm:$0xff]
        %v3336 = vld [vmem:[%s3324 + $0x58] sm:$0xff]
        %v3337 = vld [vmem:[%s3324 + $0x60] sm:$0xff]
        %v3338 = vld [vmem:[%s3324 + $0x68] sm:$0xff]
        %vm3339 = vcmask 916480
        %v3341 = vsel %vm3339, %v3309, 0
        %3343 = vmatprep.subr.mxu0 0.0
        %3344 = vmatpush1.msra.mxu0 %v3325
        %3345 = vmatprep.subr.mxu0 0.0
        %3346 = vmatpush1.msra.mxu0 %v3326
        %3347 = vmatprep.subr.mxu0 0.0
        %3348 = vmatpush1.msra.mxu0 %v3327
        %3349 = vmatprep.subr.mxu0 0.0
        %3350 = vmatpush1.msra.mxu0 %v3328
        %3351 = vmatprep.subr.mxu0 0.0
        %3352 = vmatpush1.msra.mxu0 %v3329
        %3353 = vmatprep.subr.mxu0 0.0
        %3354 = vmatpush1.msra.mxu0 %v3330
        %3355 = vmatprep.subr.mxu0 0.0
        %3356 = vmatpush1.msra.mxu0 %v3331
        %3357 = vmatprep.subr.mxu0 0.0
        %3358 = vmatpush1.msra.mxu0 %v3332
        %3359 = vmatprep.subr.mxu0 0.0
        %3360 = vmatpush1.msra.mxu0 %v3333
        %3361 = vmatprep.subr.mxu0 0.0
        %3362 = vmatpush1.msra.mxu0 %v3334
        %3363 = vmatprep.subr.mxu0 0.0
        %3364 = vmatpush1.msra.mxu0 %v3335
        %3365 = vmatprep.subr.mxu0 0.0
        %3366 = vmatpush1.msra.mxu0 %v3336
        %3367 = vmatprep.subr.mxu0 0.0
        %3368 = vmatpush1.msra.mxu0 %v3337
        %3369 = vmatprep.subr.mxu0 0.0
        %3370 = vmatpush1.msra.mxu0 %v3338
        %3371 = vmatprep.subr.mxu0 0.0
        %3372 = vmatpush1.msra.mxu0 0.0
        %3373 = vmatprep.subr.mxu0 0.0
        %3374 = vmatpush1.msra.mxu0 0.0
        %3375 = vmatprep.subr.mxu0 0.0
        %3376 = vmatpush1.msra.mxu0 0.0
        %3377 = vmatprep.subr.mxu0 0.0
        %3378 = vmatpush1.msra.mxu0 0.0
        %3379 = vmatprep.subr.mxu0 0.0
        %3380 = vmatpush1.msra.mxu0 0.0
        %3381 = vmatprep.subr.mxu0 0.0
        %3382 = vmatpush1.msra.mxu0 0.0
        %3383 = vmatprep.subr.mxu0 0.0
        %3384 = vmatpush1.msra.mxu0 0.0
        %3385 = vmatprep.subr.mxu0 0.0
        %3386 = vmatpush1.msra.mxu0 0.0
        %3387 = vmatprep.subr.mxu0 0.0
        %3388 = vmatpush1.msra.mxu0 0.0
        %3389 = vmatprep.subr.mxu0 0.0
        %3390 = vmatpush1.msra.mxu0 0.0
        %3391 = vmatprep.subr.mxu0 0.0
        %3392 = vmatpush1.msra.mxu0 0.0
        %3393 = vmatprep.subr.mxu0 0.0
        %3394 = vmatpush1.msra.mxu0 0.0
        %3395 = vmatprep.subr.mxu0 0.0
        %3396 = vmatpush1.msra.mxu0 0.0
        %3397 = vmatprep.subr.mxu0 0.0
        %3398 = vmatpush1.msra.mxu0 0.0
        %3399 = vmatprep.subr.mxu0 0.0
        %3400 = vmatpush1.msra.mxu0 0.0
        %3401 = vmatprep.subr.mxu0 0.0
        %3402 = vmatpush1.msra.mxu0 0.0
        %3403 = vmatprep.subr.mxu0 0.0
        %3404 = vmatpush1.msra.mxu0 0.0
        %3405 = vmatprep.subr.mxu0 0.0
        %3406 = vmatpush1.msra.mxu0 0.0
        %3407 = vmatprep.mubr.f32.mxu0 0.0
        %3408 = vmatmul.mubr.f32.gmra.mrb[0].mxu0 %v3341
        %v3409 = vpop.f32.mrb[0].mxu0
        %v3410 = vadd.f32 0.0, %v3409
        %v3411 = vpop.f32.mrb[0].mxu0
        %3412 = vdwg.mxu0
        %v3414 = vsel %vm3339, %v1884, 0
        %3416 = vmatprep.subr.mxu0 0.0
        %3417 = vmatpush1.msra.mxu0 %v3310
        %3418 = vmatprep.subr.mxu0 0.0
        %3419 = vmatpush1.msra.mxu0 %v3311
        %3420 = vmatprep.subr.mxu0 0.0
        %3421 = vmatpush1.msra.mxu0 %v3312
        %3422 = vmatprep.subr.mxu0 0.0
        %3423 = vmatpush1.msra.mxu0 %v3313
        %3424 = vmatprep.subr.mxu0 0.0
        %3425 = vmatpush1.msra.mxu0 %v3314
        %3426 = vmatprep.subr.mxu0 0.0
        %3427 = vmatpush1.msra.mxu0 %v3315
        %3428 = vmatprep.subr.mxu0 0.0
        %3429 = vmatpush1.msra.mxu0 %v3316
        %3430 = vmatprep.subr.mxu0 0.0
        %3431 = vmatpush1.msra.mxu0 %v3317
        %3432 = vmatprep.subr.mxu0 0.0
        %3433 = vmatpush1.msra.mxu0 %v3318
        %3434 = vmatprep.subr.mxu0 0.0
        %3435 = vmatpush1.msra.mxu0 %v3319
        %3436 = vmatprep.subr.mxu0 0.0
        %3437 = vmatpush1.msra.mxu0 %v3320
        %3438 = vmatprep.subr.mxu0 0.0
        %3439 = vmatpush1.msra.mxu0 %v3321
        %3440 = vmatprep.subr.mxu0 0.0
        %3441 = vmatpush1.msra.mxu0 %v3322
        %3442 = vmatprep.subr.mxu0 0.0
        %3443 = vmatpush1.msra.mxu0 %v3323
        %3444 = vmatprep.subr.mxu0 0.0
        %3445 = vmatpush1.msra.mxu0 0.0
        %3446 = vmatprep.subr.mxu0 0.0
        %3447 = vmatpush1.msra.mxu0 0.0
        %3448 = vmatprep.subr.mxu0 0.0
        %3449 = vmatpush1.msra.mxu0 0.0
        %3450 = vmatprep.subr.mxu0 0.0
        %3451 = vmatpush1.msra.mxu0 0.0
        %3452 = vmatprep.subr.mxu0 0.0
        %3453 = vmatpush1.msra.mxu0 0.0
        %3454 = vmatprep.subr.mxu0 0.0
        %3455 = vmatpush1.msra.mxu0 0.0
        %3456 = vmatprep.subr.mxu0 0.0
        %3457 = vmatpush1.msra.mxu0 0.0
        %3458 = vmatprep.subr.mxu0 0.0
        %3459 = vmatpush1.msra.mxu0 0.0
        %3460 = vmatprep.subr.mxu0 0.0
        %3461 = vmatpush1.msra.mxu0 0.0
        %3462 = vmatprep.subr.mxu0 0.0
        %3463 = vmatpush1.msra.mxu0 0.0
        %3464 = vmatprep.subr.mxu0 0.0
        %3465 = vmatpush1.msra.mxu0 0.0
        %3466 = vmatprep.subr.mxu0 0.0
        %3467 = vmatpush1.msra.mxu0 0.0
        %3468 = vmatprep.subr.mxu0 0.0
        %3469 = vmatpush1.msra.mxu0 0.0
        %3470 = vmatprep.subr.mxu0 0.0
        %3471 = vmatpush1.msra.mxu0 0.0
        %3472 = vmatprep.subr.mxu0 0.0
        %3473 = vmatpush1.msra.mxu0 0.0
        %3474 = vmatprep.subr.mxu0 0.0
        %3475 = vmatpush1.msra.mxu0 0.0
        %3476 = vmatprep.subr.mxu0 0.0
        %3477 = vmatpush1.msra.mxu0 0.0
        %3478 = vmatprep.subr.mxu0 0.0
        %3479 = vmatpush1.msra.mxu0 0.0
        %3480 = vmatprep.mubr.f32.mxu0 0.0
        %3481 = vmatmul.mubr.f32.gmra.mrb[0].mxu0 %v3414
        %v3482 = vpop.f32.mrb[0].mxu0
        %v3483 = vadd.f32 %v3410, %v3482
        %v3484 = vpop.f32.mrb[0].mxu0
        %3485 = vdwg.mxu0
        %s3486 = scalar_lea.vmem %s3, 224
        %v3487 = vld [vmem:[%s3486] sm:$0xff]
        %v3488 = vld [vmem:[%s3486 + $0x8] sm:$0xff]
        %v3489 = vld [vmem:[%s3486 + $0x10] sm:$0xff]
        %v3490 = vld [vmem:[%s3486 + $0x18] sm:$0xff]
        %v3491 = vld [vmem:[%s3486 + $0x20] sm:$0xff]
        %v3492 = vld [vmem:[%s3486 + $0x28] sm:$0xff]
        %v3493 = vld [vmem:[%s3486 + $0x30] sm:$0xff]
        %v3494 = vld [vmem:[%s3486 + $0x38] sm:$0xff]
        %v3495 = vld [vmem:[%s3486 + $0x40] sm:$0xff]
        %v3496 = vld [vmem:[%s3486 + $0x48] sm:$0xff]
        %v3497 = vld [vmem:[%s3486 + $0x50] sm:$0xff]
        %v3498 = vld [vmem:[%s3486 + $0x58] sm:$0xff]
        %v3499 = vld [vmem:[%s3486 + $0x60] sm:$0xff]
        %v3500 = vld [vmem:[%s3486 + $0x68] sm:$0xff]
        %v3501 = vrot.slane %v1884, 1
        %v3502 = vsel %vm3339, %v3501, 0
        %3504 = vmatprep.subr.mxu0 0.0
        %3505 = vmatpush1.msra.mxu0 %v3487
        %3506 = vmatprep.subr.mxu0 0.0
        %3507 = vmatpush1.msra.mxu0 %v3488
        %3508 = vmatprep.subr.mxu0 0.0
        %3509 = vmatpush1.msra.mxu0 %v3489
        %3510 = vmatprep.subr.mxu0 0.0
        %3511 = vmatpush1.msra.mxu0 %v3490
        %3512 = vmatprep.subr.mxu0 0.0
        %3513 = vmatpush1.msra.mxu0 %v3491
        %3514 = vmatprep.subr.mxu0 0.0
        %3515 = vmatpush1.msra.mxu0 %v3492
        %3516 = vmatprep.subr.mxu0 0.0
        %3517 = vmatpush1.msra.mxu0 %v3493
        %3518 = vmatprep.subr.mxu0 0.0
        %3519 = vmatpush1.msra.mxu0 %v3494
        %3520 = vmatprep.subr.mxu0 0.0
        %3521 = vmatpush1.msra.mxu0 %v3495
        %3522 = vmatprep.subr.mxu0 0.0
        %3523 = vmatpush1.msra.mxu0 %v3496
        %3524 = vmatprep.subr.mxu0 0.0
        %3525 = vmatpush1.msra.mxu0 %v3497
        %3526 = vmatprep.subr.mxu0 0.0
        %3527 = vmatpush1.msra.mxu0 %v3498
        %3528 = vmatprep.subr.mxu0 0.0
        %3529 = vmatpush1.msra.mxu0 %v3499
        %3530 = vmatprep.subr.mxu0 0.0
        %3531 = vmatpush1.msra.mxu0 %v3500
        %3532 = vmatprep.subr.mxu0 0.0
        %3533 = vmatpush1.msra.mxu0 0.0
        %3534 = vmatprep.subr.mxu0 0.0
        %3535 = vmatpush1.msra.mxu0 0.0
        %3536 = vmatprep.subr.mxu0 0.0
        %3537 = vmatpush1.msra.mxu0 0.0
        %3538 = vmatprep.subr.mxu0 0.0
        %3539 = vmatpush1.msra.mxu0 0.0
        %3540 = vmatprep.subr.mxu0 0.0
        %3541 = vmatpush1.msra.mxu0 0.0
        %3542 = vmatprep.subr.mxu0 0.0
        %3543 = vmatpush1.msra.mxu0 0.0
        %3544 = vmatprep.subr.mxu0 0.0
        %3545 = vmatpush1.msra.mxu0 0.0
        %3546 = vmatprep.subr.mxu0 0.0
        %3547 = vmatpush1.msra.mxu0 0.0
        %3548 = vmatprep.subr.mxu0 0.0
        %3549 = vmatpush1.msra.mxu0 0.0
        %3550 = vmatprep.subr.mxu0 0.0
        %3551 = vmatpush1.msra.mxu0 0.0
        %3552 = vmatprep.subr.mxu0 0.0
        %3553 = vmatpush1.msra.mxu0 0.0
        %3554 = vmatprep.subr.mxu0 0.0
        %3555 = vmatpush1.msra.mxu0 0.0
        %3556 = vmatprep.subr.mxu0 0.0
        %3557 = vmatpush1.msra.mxu0 0.0
        %3558 = vmatprep.subr.mxu0 0.0
        %3559 = vmatpush1.msra.mxu0 0.0
        %3560 = vmatprep.subr.mxu0 0.0
        %3561 = vmatpush1.msra.mxu0 0.0
        %3562 = vmatprep.subr.mxu0 0.0
        %3563 = vmatpush1.msra.mxu0 0.0
        %3564 = vmatprep.subr.mxu0 0.0
        %3565 = vmatpush1.msra.mxu0 0.0
        %3566 = vmatprep.subr.mxu0 0.0
        %3567 = vmatpush1.msra.mxu0 0.0
        %3568 = vmatprep.mubr.f32.mxu0 0.0
        %3569 = vmatmul.mubr.f32.gmra.mrb[0].mxu0 %v3502
        %v3570 = vpop.f32.mrb[0].mxu0
        %v3571 = vadd.f32 0.0, %v3570
        %v3572 = vpop.f32.mrb[0].mxu0
        %3573 = vdwg.mxu0
        %v3574 = vadd.f32 %v3483, %v3571
        %s3575 = scalar_lea.vmem %s3, 336
        %v3576 = vld [vmem:[%s3575] sm:$0xff]
        %v3577 = vld [vmem:[%s3575 + $0x8] sm:$0xff]
        %v3578 = vld [vmem:[%s3575 + $0x10] sm:$0xff]
        %v3579 = vld [vmem:[%s3575 + $0x18] sm:$0xff]
        %v3580 = vld [vmem:[%s3575 + $0x20] sm:$0xff]
        %v3581 = vld [vmem:[%s3575 + $0x28] sm:$0xff]
        %v3582 = vld [vmem:[%s3575 + $0x30] sm:$0xff]
        %v3583 = vld [vmem:[%s3575 + $0x38] sm:$0xff]
        %v3584 = vld [vmem:[%s3575 + $0x40] sm:$0xff]
        %v3585 = vld [vmem:[%s3575 + $0x48] sm:$0xff]
        %v3586 = vld [vmem:[%s3575 + $0x50] sm:$0xff]
        %v3587 = vld [vmem:[%s3575 + $0x58] sm:$0xff]
        %v3588 = vld [vmem:[%s3575 + $0x60] sm:$0xff]
        %v3589 = vld [vmem:[%s3575 + $0x68] sm:$0xff]
        %v3590 = vrot.slane %v3309, 1
        %v3591 = vsel %vm3339, %v3590, 0
        %3593 = vmatprep.subr.mxu0 0.0
        %3594 = vmatpush1.msra.mxu0 %v3576
        %3595 = vmatprep.subr.mxu0 0.0
        %3596 = vmatpush1.msra.mxu0 %v3577
        %3597 = vmatprep.subr.mxu0 0.0
        %3598 = vmatpush1.msra.mxu0 %v3578
        %3599 = vmatprep.subr.mxu0 0.0
        %3600 = vmatpush1.msra.mxu0 %v3579
        %3601 = vmatprep.subr.mxu0 0.0
        %3602 = vmatpush1.msra.mxu0 %v3580
        %3603 = vmatprep.subr.mxu0 0.0
        %3604 = vmatpush1.msra.mxu0 %v3581
        %3605 = vmatprep.subr.mxu0 0.0
        %3606 = vmatpush1.msra.mxu0 %v3582
        %3607 = vmatprep.subr.mxu0 0.0
        %3608 = vmatpush1.msra.mxu0 %v3583
        %3609 = vmatprep.subr.mxu0 0.0
        %3610 = vmatpush1.msra.mxu0 %v3584
        %3611 = vmatprep.subr.mxu0 0.0
        %3612 = vmatpush1.msra.mxu0 %v3585
        %3613 = vmatprep.subr.mxu0 0.0
        %3614 = vmatpush1.msra.mxu0 %v3586
        %3615 = vmatprep.subr.mxu0 0.0
        %3616 = vmatpush1.msra.mxu0 %v3587
        %3617 = vmatprep.subr.mxu0 0.0
        %3618 = vmatpush1.msra.mxu0 %v3588
        %3619 = vmatprep.subr.mxu0 0.0
        %3620 = vmatpush1.msra.mxu0 %v3589
        %3621 = vmatprep.subr.mxu0 0.0
        %3622 = vmatpush1.msra.mxu0 0.0
        %3623 = vmatprep.subr.mxu0 0.0
        %3624 = vmatpush1.msra.mxu0 0.0
        %3625 = vmatprep.subr.mxu0 0.0
        %3626 = vmatpush1.msra.mxu0 0.0
        %3627 = vmatprep.subr.mxu0 0.0
        %3628 = vmatpush1.msra.mxu0 0.0
        %3629 = vmatprep.subr.mxu0 0.0
        %3630 = vmatpush1.msra.mxu0 0.0
        %3631 = vmatprep.subr.mxu0 0.0
        %3632 = vmatpush1.msra.mxu0 0.0
        %3633 = vmatprep.subr.mxu0 0.0
        %3634 = vmatpush1.msra.mxu0 0.0
        %3635 = vmatprep.subr.mxu0 0.0
        %3636 = vmatpush1.msra.mxu0 0.0
        %3637 = vmatprep.subr.mxu0 0.0
        %3638 = vmatpush1.msra.mxu0 0.0
        %3639 = vmatprep.subr.mxu0 0.0
        %3640 = vmatpush1.msra.mxu0 0.0
        %3641 = vmatprep.subr.mxu0 0.0
        %3642 = vmatpush1.msra.mxu0 0.0
        %3643 = vmatprep.subr.mxu0 0.0
        %3644 = vmatpush1.msra.mxu0 0.0
        %3645 = vmatprep.subr.mxu0 0.0
        %3646 = vmatpush1.msra.mxu0 0.0
        %3647 = vmatprep.subr.mxu0 0.0
        %3648 = vmatpush1.msra.mxu0 0.0
        %3649 = vmatprep.subr.mxu0 0.0
        %3650 = vmatpush1.msra.mxu0 0.0
        %3651 = vmatprep.subr.mxu0 0.0
        %3652 = vmatpush1.msra.mxu0 0.0
        %3653 = vmatprep.subr.mxu0 0.0
        %3654 = vmatpush1.msra.mxu0 0.0
        %3655 = vmatprep.subr.mxu0 0.0
        %3656 = vmatpush1.msra.mxu0 0.0
        %3657 = vmatprep.mubr.f32.mxu0 0.0
        %3658 = vmatmul.mubr.f32.gmra.mrb[0].mxu0 %v3591
        %v3659 = vpop.f32.mrb[0].mxu0
        %v3660 = vadd.f32 0.0, %v3659
        %v3661 = vpop.f32.mrb[0].mxu0
        %3662 = vdwg.mxu0
        %v3663 = vadd.f32 %v3574, %v3660
        %s3664 = scalar_lea.vmem %s3, 448
        %v3665 = vld [vmem:[%s3664] sm:$0xff]
        %v3666 = vld [vmem:[%s3664 + $0x8] sm:$0xff]
        %v3667 = vld [vmem:[%s3664 + $0x10] sm:$0xff]
        %v3668 = vld [vmem:[%s3664 + $0x18] sm:$0xff]
        %v3669 = vld [vmem:[%s3664 + $0x20] sm:$0xff]
        %v3670 = vld [vmem:[%s3664 + $0x28] sm:$0xff]
        %v3671 = vld [vmem:[%s3664 + $0x30] sm:$0xff]
        %v3672 = vld [vmem:[%s3664 + $0x38] sm:$0xff]
        %v3673 = vld [vmem:[%s3664 + $0x40] sm:$0xff]
        %v3674 = vld [vmem:[%s3664 + $0x48] sm:$0xff]
        %v3675 = vld [vmem:[%s3664 + $0x50] sm:$0xff]
        %v3676 = vld [vmem:[%s3664 + $0x58] sm:$0xff]
        %v3677 = vld [vmem:[%s3664 + $0x60] sm:$0xff]
        %v3678 = vld [vmem:[%s3664 + $0x68] sm:$0xff]
        %v3679 = vrot.slane %v1884, 2
        %v3680 = vsel %vm3339, %v3679, 0
        %3682 = vmatprep.subr.mxu0 0.0
        %3683 = vmatpush1.msra.mxu0 %v3665
        %3684 = vmatprep.subr.mxu0 0.0
        %3685 = vmatpush1.msra.mxu0 %v3666
        %3686 = vmatprep.subr.mxu0 0.0
        %3687 = vmatpush1.msra.mxu0 %v3667
        %3688 = vmatprep.subr.mxu0 0.0
        %3689 = vmatpush1.msra.mxu0 %v3668
        %3690 = vmatprep.subr.mxu0 0.0
        %3691 = vmatpush1.msra.mxu0 %v3669
        %3692 = vmatprep.subr.mxu0 0.0
        %3693 = vmatpush1.msra.mxu0 %v3670
        %3694 = vmatprep.subr.mxu0 0.0
        %3695 = vmatpush1.msra.mxu0 %v3671
        %3696 = vmatprep.subr.mxu0 0.0
        %3697 = vmatpush1.msra.mxu0 %v3672
        %3698 = vmatprep.subr.mxu0 0.0
        %3699 = vmatpush1.msra.mxu0 %v3673
        %3700 = vmatprep.subr.mxu0 0.0
        %3701 = vmatpush1.msra.mxu0 %v3674
        %3702 = vmatprep.subr.mxu0 0.0
        %3703 = vmatpush1.msra.mxu0 %v3675
        %3704 = vmatprep.subr.mxu0 0.0
        %3705 = vmatpush1.msra.mxu0 %v3676
        %3706 = vmatprep.subr.mxu0 0.0
        %3707 = vmatpush1.msra.mxu0 %v3677
        %3708 = vmatprep.subr.mxu0 0.0
        %3709 = vmatpush1.msra.mxu0 %v3678
        %3710 = vmatprep.subr.mxu0 0.0
        %3711 = vmatpush1.msra.mxu0 0.0
        %3712 = vmatprep.subr.mxu0 0.0
        %3713 = vmatpush1.msra.mxu0 0.0
        %3714 = vmatprep.subr.mxu0 0.0
        %3715 = vmatpush1.msra.mxu0 0.0
        %3716 = vmatprep.subr.mxu0 0.0
        %3717 = vmatpush1.msra.mxu0 0.0
        %3718 = vmatprep.subr.mxu0 0.0
        %3719 = vmatpush1.msra.mxu0 0.0
        %3720 = vmatprep.subr.mxu0 0.0
        %3721 = vmatpush1.msra.mxu0 0.0
        %3722 = vmatprep.subr.mxu0 0.0
        %3723 = vmatpush1.msra.mxu0 0.0
        %3724 = vmatprep.subr.mxu0 0.0
        %3725 = vmatpush1.msra.mxu0 0.0
        %3726 = vmatprep.subr.mxu0 0.0
        %3727 = vmatpush1.msra.mxu0 0.0
        %3728 = vmatprep.subr.mxu0 0.0
        %3729 = vmatpush1.msra.mxu0 0.0
        %3730 = vmatprep.subr.mxu0 0.0
        %3731 = vmatpush1.msra.mxu0 0.0
        %3732 = vmatprep.subr.mxu0 0.0
        %3733 = vmatpush1.msra.mxu0 0.0
        %3734 = vmatprep.subr.mxu0 0.0
        %3735 = vmatpush1.msra.mxu0 0.0
        %3736 = vmatprep.subr.mxu0 0.0
        %3737 = vmatpush1.msra.mxu0 0.0
        %3738 = vmatprep.subr.mxu0 0.0
        %3739 = vmatpush1.msra.mxu0 0.0
        %3740 = vmatprep.subr.mxu0 0.0
        %3741 = vmatpush1.msra.mxu0 0.0
        %3742 = vmatprep.subr.mxu0 0.0
        %3743 = vmatpush1.msra.mxu0 0.0
        %3744 = vmatprep.subr.mxu0 0.0
        %3745 = vmatpush1.msra.mxu0 0.0
        %3746 = vmatprep.mubr.f32.mxu0 0.0
        %3747 = vmatmul.mubr.f32.gmra.mrb[0].mxu0 %v3680
        %v3748 = vpop.f32.mrb[0].mxu0
        %v3749 = vadd.f32 0.0, %v3748
        %v3750 = vpop.f32.mrb[0].mxu0
        %3751 = vdwg.mxu0
        %v3752 = vadd.f32 %v3663, %v3749
        %s3753 = scalar_lea.vmem %s3, 560
        %v3754 = vld [vmem:[%s3753] sm:$0xff]
        %v3755 = vld [vmem:[%s3753 + $0x8] sm:$0xff]
        %v3756 = vld [vmem:[%s3753 + $0x10] sm:$0xff]
        %v3757 = vld [vmem:[%s3753 + $0x18] sm:$0xff]
        %v3758 = vld [vmem:[%s3753 + $0x20] sm:$0xff]
        %v3759 = vld [vmem:[%s3753 + $0x28] sm:$0xff]
        %v3760 = vld [vmem:[%s3753 + $0x30] sm:$0xff]
        %v3761 = vld [vmem:[%s3753 + $0x38] sm:$0xff]
        %v3762 = vld [vmem:[%s3753 + $0x40] sm:$0xff]
        %v3763 = vld [vmem:[%s3753 + $0x48] sm:$0xff]
        %v3764 = vld [vmem:[%s3753 + $0x50] sm:$0xff]
        %v3765 = vld [vmem:[%s3753 + $0x58] sm:$0xff]
        %v3766 = vld [vmem:[%s3753 + $0x60] sm:$0xff]
        %v3767 = vld [vmem:[%s3753 + $0x68] sm:$0xff]
        %s3768 = scalar_lea.vmem %s3, 672
        %v3769 = vld [vmem:[%s3768] sm:$0xff]
        %v3770 = vld [vmem:[%s3768 + $0x8] sm:$0xff]
        %v3771 = vld [vmem:[%s3768 + $0x10] sm:$0xff]
        %v3772 = vld [vmem:[%s3768 + $0x18] sm:$0xff]
        %v3773 = vld [vmem:[%s3768 + $0x20] sm:$0xff]
        %v3774 = vld [vmem:[%s3768 + $0x28] sm:$0xff]
        %v3775 = vld [vmem:[%s3768 + $0x30] sm:$0xff]
        %v3776 = vld [vmem:[%s3768 + $0x38] sm:$0xff]
        %v3777 = vld [vmem:[%s3768 + $0x40] sm:$0xff]
        %v3778 = vld [vmem:[%s3768 + $0x48] sm:$0xff]
        %v3779 = vld [vmem:[%s3768 + $0x50] sm:$0xff]
        %v3780 = vld [vmem:[%s3768 + $0x58] sm:$0xff]
        %v3781 = vld [vmem:[%s3768 + $0x60] sm:$0xff]
        %v3782 = vld [vmem:[%s3768 + $0x68] sm:$0xff]
        %3783 = vmatprep.subr.mxu0 0.0
        %3784 = vmatpush1.msra.mxu0 %v3769
        %3785 = vmatprep.subr.mxu0 0.0
        %3786 = vmatpush1.msra.mxu0 %v3770
        %3787 = vmatprep.subr.mxu0 0.0
        %3788 = vmatpush1.msra.mxu0 %v3771
        %3789 = vmatprep.subr.mxu0 0.0
        %3790 = vmatpush1.msra.mxu0 %v3772
        %3791 = vmatprep.subr.mxu0 0.0
        %3792 = vmatpush1.msra.mxu0 %v3773
        %3793 = vmatprep.subr.mxu0 0.0
        %3794 = vmatpush1.msra.mxu0 %v3774
        %3795 = vmatprep.subr.mxu0 0.0
        %3796 = vmatpush1.msra.mxu0 %v3775
        %3797 = vmatprep.subr.mxu0 0.0
        %3798 = vmatpush1.msra.mxu0 %v3776
        %3799 = vmatprep.subr.mxu0 0.0
        %3800 = vmatpush1.msra.mxu0 %v3777
        %3801 = vmatprep.subr.mxu0 0.0
        %3802 = vmatpush1.msra.mxu0 %v3778
        %3803 = vmatprep.subr.mxu0 0.0
        %3804 = vmatpush1.msra.mxu0 %v3779
        %3805 = vmatprep.subr.mxu0 0.0
        %3806 = vmatpush1.msra.mxu0 %v3780
        %3807 = vmatprep.subr.mxu0 0.0
        %3808 = vmatpush1.msra.mxu0 %v3781
        %3809 = vmatprep.subr.mxu0 0.0
        %3810 = vmatpush1.msra.mxu0 %v3782
        %3811 = vmatprep.subr.mxu0 0.0
        %3812 = vmatpush1.msra.mxu0 0.0
        %3813 = vmatprep.subr.mxu0 0.0
        %3814 = vmatpush1.msra.mxu0 0.0
        %3815 = vmatprep.subr.mxu0 0.0
        %3816 = vmatpush1.msra.mxu0 0.0
        %3817 = vmatprep.subr.mxu0 0.0
        %3818 = vmatpush1.msra.mxu0 0.0
        %3819 = vmatprep.subr.mxu0 0.0
        %3820 = vmatpush1.msra.mxu0 0.0
        %3821 = vmatprep.subr.mxu0 0.0
        %3822 = vmatpush1.msra.mxu0 0.0
        %3823 = vmatprep.subr.mxu0 0.0
        %3824 = vmatpush1.msra.mxu0 0.0
        %3825 = vmatprep.subr.mxu0 0.0
        %3826 = vmatpush1.msra.mxu0 0.0
        %3827 = vmatprep.subr.mxu0 0.0
        %3828 = vmatpush1.msra.mxu0 0.0
        %3829 = vmatprep.subr.mxu0 0.0
        %3830 = vmatpush1.msra.mxu0 0.0
        %3831 = vmatprep.subr.mxu0 0.0
        %3832 = vmatpush1.msra.mxu0 0.0
        %3833 = vmatprep.subr.mxu0 0.0
        %3834 = vmatpush1.msra.mxu0 0.0
        %3835 = vmatprep.subr.mxu0 0.0
        %3836 = vmatpush1.msra.mxu0 0.0
        %3837 = vmatprep.subr.mxu0 0.0
        %3838 = vmatpush1.msra.mxu0 0.0
        %3839 = vmatprep.subr.mxu0 0.0
        %3840 = vmatpush1.msra.mxu0 0.0
        %3841 = vmatprep.subr.mxu0 0.0
        %3842 = vmatpush1.msra.mxu0 0.0
        %3843 = vmatprep.subr.mxu0 0.0
        %3844 = vmatpush1.msra.mxu0 0.0
        %3845 = vmatprep.subr.mxu0 0.0
        %3846 = vmatpush1.msra.mxu0 0.0
        %3847 = vmatprep.mubr.f32.mxu0 0.0
        %3848 = vmatmul.mubr.f32.gmra.mrb[0].mxu0 %v3341
        %v3849 = vpop.f32.mrb[0].mxu0
        %v3850 = vadd.f32 0.0, %v3849
        %v3851 = vpop.f32.mrb[0].mxu0
        %3852 = vdwg.mxu0
        %3853 = vmatprep.subr.mxu0 0.0
        %3854 = vmatpush1.msra.mxu0 %v3754
        %3855 = vmatprep.subr.mxu0 0.0
        %3856 = vmatpush1.msra.mxu0 %v3755
        %3857 = vmatprep.subr.mxu0 0.0
        %3858 = vmatpush1.msra.mxu0 %v3756
        %3859 = vmatprep.subr.mxu0 0.0
        %3860 = vmatpush1.msra.mxu0 %v3757
        %3861 = vmatprep.subr.mxu0 0.0
        %3862 = vmatpush1.msra.mxu0 %v3758
        %3863 = vmatprep.subr.mxu0 0.0
        %3864 = vmatpush1.msra.mxu0 %v3759
        %3865 = vmatprep.subr.mxu0 0.0
        %3866 = vmatpush1.msra.mxu0 %v3760
        %3867 = vmatprep.subr.mxu0 0.0
        %3868 = vmatpush1.msra.mxu0 %v3761
        %3869 = vmatprep.subr.mxu0 0.0
        %3870 = vmatpush1.msra.mxu0 %v3762
        %3871 = vmatprep.subr.mxu0 0.0
        %3872 = vmatpush1.msra.mxu0 %v3763
        %3873 = vmatprep.subr.mxu0 0.0
        %3874 = vmatpush1.msra.mxu0 %v3764
        %3875 = vmatprep.subr.mxu0 0.0
        %3876 = vmatpush1.msra.mxu0 %v3765
        %3877 = vmatprep.subr.mxu0 0.0
        %3878 = vmatpush1.msra.mxu0 %v3766
        %3879 = vmatprep.subr.mxu0 0.0
        %3880 = vmatpush1.msra.mxu0 %v3767
        %3881 = vmatprep.subr.mxu0 0.0
        %3882 = vmatpush1.msra.mxu0 0.0
        %3883 = vmatprep.subr.mxu0 0.0
        %3884 = vmatpush1.msra.mxu0 0.0
        %3885 = vmatprep.subr.mxu0 0.0
        %3886 = vmatpush1.msra.mxu0 0.0
        %3887 = vmatprep.subr.mxu0 0.0
        %3888 = vmatpush1.msra.mxu0 0.0
        %3889 = vmatprep.subr.mxu0 0.0
        %3890 = vmatpush1.msra.mxu0 0.0
        %3891 = vmatprep.subr.mxu0 0.0
        %3892 = vmatpush1.msra.mxu0 0.0
        %3893 = vmatprep.subr.mxu0 0.0
        %3894 = vmatpush1.msra.mxu0 0.0
        %3895 = vmatprep.subr.mxu0 0.0
        %3896 = vmatpush1.msra.mxu0 0.0
        %3897 = vmatprep.subr.mxu0 0.0
        %3898 = vmatpush1.msra.mxu0 0.0
        %3899 = vmatprep.subr.mxu0 0.0
        %3900 = vmatpush1.msra.mxu0 0.0
        %3901 = vmatprep.subr.mxu0 0.0
        %3902 = vmatpush1.msra.mxu0 0.0
        %3903 = vmatprep.subr.mxu0 0.0
        %3904 = vmatpush1.msra.mxu0 0.0
        %3905 = vmatprep.subr.mxu0 0.0
        %3906 = vmatpush1.msra.mxu0 0.0
        %3907 = vmatprep.subr.mxu0 0.0
        %3908 = vmatpush1.msra.mxu0 0.0
        %3909 = vmatprep.subr.mxu0 0.0
        %3910 = vmatpush1.msra.mxu0 0.0
        %3911 = vmatprep.subr.mxu0 0.0
        %3912 = vmatpush1.msra.mxu0 0.0
        %3913 = vmatprep.subr.mxu0 0.0
        %3914 = vmatpush1.msra.mxu0 0.0
        %3915 = vmatprep.subr.mxu0 0.0
        %3916 = vmatpush1.msra.mxu0 0.0
        %3917 = vmatprep.mubr.f32.mxu0 0.0
        %3918 = vmatmul.mubr.f32.gmra.mrb[0].mxu0 %v3414
        %v3919 = vpop.f32.mrb[0].mxu0
        %v3920 = vadd.f32 %v3850, %v3919
        %v3921 = vpop.f32.mrb[0].mxu0
        %3922 = vdwg.mxu0
        %s3923 = scalar_lea.vmem %s3, 784
        %v3924 = vld [vmem:[%s3923] sm:$0xff]
        %v3925 = vld [vmem:[%s3923 + $0x8] sm:$0xff]
        %v3926 = vld [vmem:[%s3923 + $0x10] sm:$0xff]
        %v3927 = vld [vmem:[%s3923 + $0x18] sm:$0xff]
        %v3928 = vld [vmem:[%s3923 + $0x20] sm:$0xff]
        %v3929 = vld [vmem:[%s3923 + $0x28] sm:$0xff]
        %v3930 = vld [vmem:[%s3923 + $0x30] sm:$0xff]
        %v3931 = vld [vmem:[%s3923 + $0x38] sm:$0xff]
        %v3932 = vld [vmem:[%s3923 + $0x40] sm:$0xff]
        %v3933 = vld [vmem:[%s3923 + $0x48] sm:$0xff]
        %v3934 = vld [vmem:[%s3923 + $0x50] sm:$0xff]
        %v3935 = vld [vmem:[%s3923 + $0x58] sm:$0xff]
        %v3936 = vld [vmem:[%s3923 + $0x60] sm:$0xff]
        %v3937 = vld [vmem:[%s3923 + $0x68] sm:$0xff]
        %3938 = vmatprep.subr.mxu0 0.0
        %3939 = vmatpush1.msra.mxu0 %v3924
        %3940 = vmatprep.subr.mxu0 0.0
        %3941 = vmatpush1.msra.mxu0 %v3925
        %3942 = vmatprep.subr.mxu0 0.0
        %3943 = vmatpush1.msra.mxu0 %v3926
        %3944 = vmatprep.subr.mxu0 0.0
        %3945 = vmatpush1.msra.mxu0 %v3927
        %3946 = vmatprep.subr.mxu0 0.0
        %3947 = vmatpush1.msra.mxu0 %v3928
        %3948 = vmatprep.subr.mxu0 0.0
        %3949 = vmatpush1.msra.mxu0 %v3929
        %3950 = vmatprep.subr.mxu0 0.0
        %3951 = vmatpush1.msra.mxu0 %v3930
        %3952 = vmatprep.subr.mxu0 0.0
        %3953 = vmatpush1.msra.mxu0 %v3931
        %3954 = vmatprep.subr.mxu0 0.0
        %3955 = vmatpush1.msra.mxu0 %v3932
        %3956 = vmatprep.subr.mxu0 0.0
        %3957 = vmatpush1.msra.mxu0 %v3933
        %3958 = vmatprep.subr.mxu0 0.0
        %3959 = vmatpush1.msra.mxu0 %v3934
        %3960 = vmatprep.subr.mxu0 0.0
        %3961 = vmatpush1.msra.mxu0 %v3935
        %3962 = vmatprep.subr.mxu0 0.0
        %3963 = vmatpush1.msra.mxu0 %v3936
        %3964 = vmatprep.subr.mxu0 0.0
        %3965 = vmatpush1.msra.mxu0 %v3937
        %3966 = vmatprep.subr.mxu0 0.0
        %3967 = vmatpush1.msra.mxu0 0.0
        %3968 = vmatprep.subr.mxu0 0.0
        %3969 = vmatpush1.msra.mxu0 0.0
        %3970 = vmatprep.subr.mxu0 0.0
        %3971 = vmatpush1.msra.mxu0 0.0
        %3972 = vmatprep.subr.mxu0 0.0
        %3973 = vmatpush1.msra.mxu0 0.0
        %3974 = vmatprep.subr.mxu0 0.0
        %3975 = vmatpush1.msra.mxu0 0.0
        %3976 = vmatprep.subr.mxu0 0.0
        %3977 = vmatpush1.msra.mxu0 0.0
        %3978 = vmatprep.subr.mxu0 0.0
        %3979 = vmatpush1.msra.mxu0 0.0
        %3980 = vmatprep.subr.mxu0 0.0
        %3981 = vmatpush1.msra.mxu0 0.0
        %3982 = vmatprep.subr.mxu0 0.0
        %3983 = vmatpush1.msra.mxu0 0.0
        %3984 = vmatprep.subr.mxu0 0.0
        %3985 = vmatpush1.msra.mxu0 0.0
        %3986 = vmatprep.subr.mxu0 0.0
        %3987 = vmatpush1.msra.mxu0 0.0
        %3988 = vmatprep.subr.mxu0 0.0
        %3989 = vmatpush1.msra.mxu0 0.0
        %3990 = vmatprep.subr.mxu0 0.0
        %3991 = vmatpush1.msra.mxu0 0.0
        %3992 = vmatprep.subr.mxu0 0.0
        %3993 = vmatpush1.msra.mxu0 0.0
        %3994 = vmatprep.subr.mxu0 0.0
        %3995 = vmatpush1.msra.mxu0 0.0
        %3996 = vmatprep.subr.mxu0 0.0
        %3997 = vmatpush1.msra.mxu0 0.0
        %3998 = vmatprep.subr.mxu0 0.0
        %3999 = vmatpush1.msra.mxu0 0.0
        %4000 = vmatprep.subr.mxu0 0.0
        %4001 = vmatpush1.msra.mxu0 0.0
        %4002 = vmatprep.mubr.f32.mxu0 0.0
        %4003 = vmatmul.mubr.f32.gmra.mrb[0].mxu0 %v3502
        %v4004 = vpop.f32.mrb[0].mxu0
        %v4005 = vadd.f32 0.0, %v4004
        %v4006 = vpop.f32.mrb[0].mxu0
        %4007 = vdwg.mxu0
        %v4008 = vadd.f32 %v3920, %v4005
        %s4009 = scalar_lea.vmem %s3, 896
        %v4010 = vld [vmem:[%s4009] sm:$0xff]
        %v4011 = vld [vmem:[%s4009 + $0x8] sm:$0xff]
        %v4012 = vld [vmem:[%s4009 + $0x10] sm:$0xff]
        %v4013 = vld [vmem:[%s4009 + $0x18] sm:$0xff]
        %v4014 = vld [vmem:[%s4009 + $0x20] sm:$0xff]
        %v4015 = vld [vmem:[%s4009 + $0x28] sm:$0xff]
        %v4016 = vld [vmem:[%s4009 + $0x30] sm:$0xff]
        %v4017 = vld [vmem:[%s4009 + $0x38] sm:$0xff]
        %v4018 = vld [vmem:[%s4009 + $0x40] sm:$0xff]
        %v4019 = vld [vmem:[%s4009 + $0x48] sm:$0xff]
        %v4020 = vld [vmem:[%s4009 + $0x50] sm:$0xff]
        %v4021 = vld [vmem:[%s4009 + $0x58] sm:$0xff]
        %v4022 = vld [vmem:[%s4009 + $0x60] sm:$0xff]
        %v4023 = vld [vmem:[%s4009 + $0x68] sm:$0xff]
        %4024 = vmatprep.subr.mxu0 0.0
        %4025 = vmatpush1.msra.mxu0 %v4010
        %4026 = vmatprep.subr.mxu0 0.0
        %4027 = vmatpush1.msra.mxu0 %v4011
        %4028 = vmatprep.subr.mxu0 0.0
        %4029 = vmatpush1.msra.mxu0 %v4012
        %4030 = vmatprep.subr.mxu0 0.0
        %4031 = vmatpush1.msra.mxu0 %v4013
        %4032 = vmatprep.subr.mxu0 0.0
        %4033 = vmatpush1.msra.mxu0 %v4014
        %4034 = vmatprep.subr.mxu0 0.0
        %4035 = vmatpush1.msra.mxu0 %v4015
        %4036 = vmatprep.subr.mxu0 0.0
        %4037 = vmatpush1.msra.mxu0 %v4016
        %4038 = vmatprep.subr.mxu0 0.0
        %4039 = vmatpush1.msra.mxu0 %v4017
        %4040 = vmatprep.subr.mxu0 0.0
        %4041 = vmatpush1.msra.mxu0 %v4018
        %4042 = vmatprep.subr.mxu0 0.0
        %4043 = vmatpush1.msra.mxu0 %v4019
        %4044 = vmatprep.subr.mxu0 0.0
        %4045 = vmatpush1.msra.mxu0 %v4020
        %4046 = vmatprep.subr.mxu0 0.0
        %4047 = vmatpush1.msra.mxu0 %v4021
        %4048 = vmatprep.subr.mxu0 0.0
        %4049 = vmatpush1.msra.mxu0 %v4022
        %4050 = vmatprep.subr.mxu0 0.0
        %4051 = vmatpush1.msra.mxu0 %v4023
        %4052 = vmatprep.subr.mxu0 0.0
        %4053 = vmatpush1.msra.mxu0 0.0
        %4054 = vmatprep.subr.mxu0 0.0
        %4055 = vmatpush1.msra.mxu0 0.0
        %4056 = vmatprep.subr.mxu0 0.0
        %4057 = vmatpush1.msra.mxu0 0.0
        %4058 = vmatprep.subr.mxu0 0.0
        %4059 = vmatpush1.msra.mxu0 0.0
        %4060 = vmatprep.subr.mxu0 0.0
        %4061 = vmatpush1.msra.mxu0 0.0
        %4062 = vmatprep.subr.mxu0 0.0
        %4063 = vmatpush1.msra.mxu0 0.0
        %4064 = vmatprep.subr.mxu0 0.0
        %4065 = vmatpush1.msra.mxu0 0.0
        %4066 = vmatprep.subr.mxu0 0.0
        %4067 = vmatpush1.msra.mxu0 0.0
        %4068 = vmatprep.subr.mxu0 0.0
        %4069 = vmatpush1.msra.mxu0 0.0
        %4070 = vmatprep.subr.mxu0 0.0
        %4071 = vmatpush1.msra.mxu0 0.0
        %4072 = vmatprep.subr.mxu0 0.0
        %4073 = vmatpush1.msra.mxu0 0.0
        %4074 = vmatprep.subr.mxu0 0.0
        %4075 = vmatpush1.msra.mxu0 0.0
        %4076 = vmatprep.subr.mxu0 0.0
        %4077 = vmatpush1.msra.mxu0 0.0
        %4078 = vmatprep.subr.mxu0 0.0
        %4079 = vmatpush1.msra.mxu0 0.0
        %4080 = vmatprep.subr.mxu0 0.0
        %4081 = vmatpush1.msra.mxu0 0.0
        %4082 = vmatprep.subr.mxu0 0.0
        %4083 = vmatpush1.msra.mxu0 0.0
        %4084 = vmatprep.subr.mxu0 0.0
        %4085 = vmatpush1.msra.mxu0 0.0
        %4086 = vmatprep.subr.mxu0 0.0
        %4087 = vmatpush1.msra.mxu0 0.0
        %4088 = vmatprep.mubr.f32.mxu0 0.0
        %4089 = vmatmul.mubr.f32.gmra.mrb[0].mxu0 %v3591
        %v4090 = vpop.f32.mrb[0].mxu0
        %v4091 = vadd.f32 0.0, %v4090
        %v4092 = vpop.f32.mrb[0].mxu0
        %4093 = vdwg.mxu0
        %v4094 = vadd.f32 %v4008, %v4091
        %s4095 = scalar_lea.vmem %s3, 1008
        %v4096 = vld [vmem:[%s4095] sm:$0xff]
        %v4097 = vld [vmem:[%s4095 + $0x8] sm:$0xff]
        %v4098 = vld [vmem:[%s4095 + $0x10] sm:$0xff]
        %v4099 = vld [vmem:[%s4095 + $0x18] sm:$0xff]
        %v4100 = vld [vmem:[%s4095 + $0x20] sm:$0xff]
        %v4101 = vld [vmem:[%s4095 + $0x28] sm:$0xff]
        %v4102 = vld [vmem:[%s4095 + $0x30] sm:$0xff]
        %v4103 = vld [vmem:[%s4095 + $0x38] sm:$0xff]
        %v4104 = vld [vmem:[%s4095 + $0x40] sm:$0xff]
        %v4105 = vld [vmem:[%s4095 + $0x48] sm:$0xff]
        %v4106 = vld [vmem:[%s4095 + $0x50] sm:$0xff]
        %v4107 = vld [vmem:[%s4095 + $0x58] sm:$0xff]
        %v4108 = vld [vmem:[%s4095 + $0x60] sm:$0xff]
        %v4109 = vld [vmem:[%s4095 + $0x68] sm:$0xff]
        %4110 = vmatprep.subr.mxu0 0.0
        %4111 = vmatpush1.msra.mxu0 %v4096
        %4112 = vmatprep.subr.mxu0 0.0
        %4113 = vmatpush1.msra.mxu0 %v4097
        %4114 = vmatprep.subr.mxu0 0.0
        %4115 = vmatpush1.msra.mxu0 %v4098
        %4116 = vmatprep.subr.mxu0 0.0
        %4117 = vmatpush1.msra.mxu0 %v4099
        %4118 = vmatprep.subr.mxu0 0.0
        %4119 = vmatpush1.msra.mxu0 %v4100
        %4120 = vmatprep.subr.mxu0 0.0
        %4121 = vmatpush1.msra.mxu0 %v4101
        %4122 = vmatprep.subr.mxu0 0.0
        %4123 = vmatpush1.msra.mxu0 %v4102
        %4124 = vmatprep.subr.mxu0 0.0
        %4125 = vmatpush1.msra.mxu0 %v4103
        %4126 = vmatprep.subr.mxu0 0.0
        %4127 = vmatpush1.msra.mxu0 %v4104
        %4128 = vmatprep.subr.mxu0 0.0
        %4129 = vmatpush1.msra.mxu0 %v4105
        %4130 = vmatprep.subr.mxu0 0.0
        %4131 = vmatpush1.msra.mxu0 %v4106
        %4132 = vmatprep.subr.mxu0 0.0
        %4133 = vmatpush1.msra.mxu0 %v4107
        %4134 = vmatprep.subr.mxu0 0.0
        %4135 = vmatpush1.msra.mxu0 %v4108
        %4136 = vmatprep.subr.mxu0 0.0
        %4137 = vmatpush1.msra.mxu0 %v4109
        %4138 = vmatprep.subr.mxu0 0.0
        %4139 = vmatpush1.msra.mxu0 0.0
        %4140 = vmatprep.subr.mxu0 0.0
        %4141 = vmatpush1.msra.mxu0 0.0
        %4142 = vmatprep.subr.mxu0 0.0
        %4143 = vmatpush1.msra.mxu0 0.0
        %4144 = vmatprep.subr.mxu0 0.0
        %4145 = vmatpush1.msra.mxu0 0.0
        %4146 = vmatprep.subr.mxu0 0.0
        %4147 = vmatpush1.msra.mxu0 0.0
        %4148 = vmatprep.subr.mxu0 0.0
        %4149 = vmatpush1.msra.mxu0 0.0
        %4150 = vmatprep.subr.mxu0 0.0
        %4151 = vmatpush1.msra.mxu0 0.0
        %4152 = vmatprep.subr.mxu0 0.0
        %4153 = vmatpush1.msra.mxu0 0.0
        %4154 = vmatprep.subr.mxu0 0.0
        %4155 = vmatpush1.msra.mxu0 0.0
        %4156 = vmatprep.subr.mxu0 0.0
        %4157 = vmatpush1.msra.mxu0 0.0
        %4158 = vmatprep.subr.mxu0 0.0
        %4159 = vmatpush1.msra.mxu0 0.0
        %4160 = vmatprep.subr.mxu0 0.0
        %4161 = vmatpush1.msra.mxu0 0.0
        %4162 = vmatprep.subr.mxu0 0.0
        %4163 = vmatpush1.msra.mxu0 0.0
        %4164 = vmatprep.subr.mxu0 0.0
        %4165 = vmatpush1.msra.mxu0 0.0
        %4166 = vmatprep.subr.mxu0 0.0
        %4167 = vmatpush1.msra.mxu0 0.0
        %4168 = vmatprep.subr.mxu0 0.0
        %4169 = vmatpush1.msra.mxu0 0.0
        %4170 = vmatprep.subr.mxu0 0.0
        %4171 = vmatpush1.msra.mxu0 0.0
        %4172 = vmatprep.subr.mxu0 0.0
        %4173 = vmatpush1.msra.mxu0 0.0
        %4174 = vmatprep.mubr.f32.mxu0 0.0
        %4175 = vmatmul.mubr.f32.gmra.mrb[0].mxu0 %v3680
        %v4176 = vpop.f32.mrb[0].mxu0
        %v4177 = vadd.f32 0.0, %v4176
        %v4178 = vpop.f32.mrb[0].mxu0
        %4179 = vdwg.mxu0
        %v4180 = vadd.f32 %v4094, %v4177
        %4181 = vmatprep.subr.mxu0 0.0
        %4182 = vmatpush1.msra.mxu0 %v3325
        %4183 = vmatprep.subr.mxu0 0.0
        %4184 = vmatpush1.msra.mxu0 %v3326
        %4185 = vmatprep.subr.mxu0 0.0
        %4186 = vmatpush1.msra.mxu0 %v3327
        %4187 = vmatprep.subr.mxu0 0.0
        %4188 = vmatpush1.msra.mxu0 %v3328
        %4189 = vmatprep.subr.mxu0 0.0
        %4190 = vmatpush1.msra.mxu0 %v3329
        %4191 = vmatprep.subr.mxu0 0.0
        %4192 = vmatpush1.msra.mxu0 %v3330
        %4193 = vmatprep.subr.mxu0 0.0
        %4194 = vmatpush1.msra.mxu0 %v3331
        %4195 = vmatprep.subr.mxu0 0.0
        %4196 = vmatpush1.msra.mxu0 %v3332
        %4197 = vmatprep.subr.mxu0 0.0
        %4198 = vmatpush1.msra.mxu0 %v3333
        %4199 = vmatprep.subr.mxu0 0.0
        %4200 = vmatpush1.msra.mxu0 %v3334
        %4201 = vmatprep.subr.mxu0 0.0
        %4202 = vmatpush1.msra.mxu0 %v3335
        %4203 = vmatprep.subr.mxu0 0.0
        %4204 = vmatpush1.msra.mxu0 %v3336
        %4205 = vmatprep.subr.mxu0 0.0
        %4206 = vmatpush1.msra.mxu0 %v3337
        %4207 = vmatprep.subr.mxu0 0.0
        %4208 = vmatpush1.msra.mxu0 %v3338
        %4209 = vmatprep.subr.mxu0 0.0
        %4210 = vmatpush1.msra.mxu0 0.0
        %4211 = vmatprep.subr.mxu0 0.0
        %4212 = vmatpush1.msra.mxu0 0.0
        %4213 = vmatprep.subr.mxu0 0.0
        %4214 = vmatpush1.msra.mxu0 0.0
        %4215 = vmatprep.subr.mxu0 0.0
        %4216 = vmatpush1.msra.mxu0 0.0
        %4217 = vmatprep.subr.mxu0 0.0
        %4218 = vmatpush1.msra.mxu0 0.0
        %4219 = vmatprep.subr.mxu0 0.0
        %4220 = vmatpush1.msra.mxu0 0.0
        %4221 = vmatprep.subr.mxu0 0.0
        %4222 = vmatpush1.msra.mxu0 0.0
        %4223 = vmatprep.subr.mxu0 0.0
        %4224 = vmatpush1.msra.mxu0 0.0
        %4225 = vmatprep.subr.mxu0 0.0
        %4226 = vmatpush1.msra.mxu0 0.0
        %4227 = vmatprep.subr.mxu0 0.0
        %4228 = vmatpush1.msra.mxu0 0.0
        %4229 = vmatprep.subr.mxu0 0.0
        %4230 = vmatpush1.msra.mxu0 0.0
        %4231 = vmatprep.subr.mxu0 0.0
        %4232 = vmatpush1.msra.mxu0 0.0
        %4233 = vmatprep.subr.mxu0 0.0
        %4234 = vmatpush1.msra.mxu0 0.0
        %4235 = vmatprep.subr.mxu0 0.0
        %4236 = vmatpush1.msra.mxu0 0.0
        %4237 = vmatprep.subr.mxu0 0.0
        %4238 = vmatpush1.msra.mxu0 0.0
        %4239 = vmatprep.subr.mxu0 0.0
        %4240 = vmatpush1.msra.mxu0 0.0
        %4241 = vmatprep.subr.mxu0 0.0
        %4242 = vmatpush1.msra.mxu0 0.0
        %4243 = vmatprep.subr.mxu0 0.0
        %4244 = vmatpush1.msra.mxu0 0.0
        %4245 = vmatprep.mubr.f32.mxu0 0.0
        %4246 = vmatmul.mubr.f32.gmra.mrb[0].mxu0 %v3502
        %v4247 = vpop.f32.mrb[0].mxu0
        %v4248 = vadd.f32 0.0, %v4247
        %v4249 = vpop.f32.mrb[0].mxu0
        %4250 = vdwg.mxu0
        %4251 = vmatprep.subr.mxu0 0.0
        %4252 = vmatpush1.msra.mxu0 %v3310
        %4253 = vmatprep.subr.mxu0 0.0
        %4254 = vmatpush1.msra.mxu0 %v3311
        %4255 = vmatprep.subr.mxu0 0.0
        %4256 = vmatpush1.msra.mxu0 %v3312
        %4257 = vmatprep.subr.mxu0 0.0
        %4258 = vmatpush1.msra.mxu0 %v3313
        %4259 = vmatprep.subr.mxu0 0.0
        %4260 = vmatpush1.msra.mxu0 %v3314
        %4261 = vmatprep.subr.mxu0 0.0
        %4262 = vmatpush1.msra.mxu0 %v3315
        %4263 = vmatprep.subr.mxu0 0.0
        %4264 = vmatpush1.msra.mxu0 %v3316
        %4265 = vmatprep.subr.mxu0 0.0
        %4266 = vmatpush1.msra.mxu0 %v3317
        %4267 = vmatprep.subr.mxu0 0.0
        %4268 = vmatpush1.msra.mxu0 %v3318
        %4269 = vmatprep.subr.mxu0 0.0
        %4270 = vmatpush1.msra.mxu0 %v3319
        %4271 = vmatprep.subr.mxu0 0.0
        %4272 = vmatpush1.msra.mxu0 %v3320
        %4273 = vmatprep.subr.mxu0 0.0
        %4274 = vmatpush1.msra.mxu0 %v3321
        %4275 = vmatprep.subr.mxu0 0.0
        %4276 = vmatpush1.msra.mxu0 %v3322
        %4277 = vmatprep.subr.mxu0 0.0
        %4278 = vmatpush1.msra.mxu0 %v3323
        %4279 = vmatprep.subr.mxu0 0.0
        %4280 = vmatpush1.msra.mxu0 0.0
        %4281 = vmatprep.subr.mxu0 0.0
        %4282 = vmatpush1.msra.mxu0 0.0
        %4283 = vmatprep.subr.mxu0 0.0
        %4284 = vmatpush1.msra.mxu0 0.0
        %4285 = vmatprep.subr.mxu0 0.0
        %4286 = vmatpush1.msra.mxu0 0.0
        %4287 = vmatprep.subr.mxu0 0.0
        %4288 = vmatpush1.msra.mxu0 0.0
        %4289 = vmatprep.subr.mxu0 0.0
        %4290 = vmatpush1.msra.mxu0 0.0
        %4291 = vmatprep.subr.mxu0 0.0
        %4292 = vmatpush1.msra.mxu0 0.0
        %4293 = vmatprep.subr.mxu0 0.0
        %4294 = vmatpush1.msra.mxu0 0.0
        %4295 = vmatprep.subr.mxu0 0.0
        %4296 = vmatpush1.msra.mxu0 0.0
        %4297 = vmatprep.subr.mxu0 0.0
        %4298 = vmatpush1.msra.mxu0 0.0
        %4299 = vmatprep.subr.mxu0 0.0
        %4300 = vmatpush1.msra.mxu0 0.0
        %4301 = vmatprep.subr.mxu0 0.0
        %4302 = vmatpush1.msra.mxu0 0.0
        %4303 = vmatprep.subr.mxu0 0.0
        %4304 = vmatpush1.msra.mxu0 0.0
        %4305 = vmatprep.subr.mxu0 0.0
        %4306 = vmatpush1.msra.mxu0 0.0
        %4307 = vmatprep.subr.mxu0 0.0
        %4308 = vmatpush1.msra.mxu0 0.0
        %4309 = vmatprep.subr.mxu0 0.0
        %4310 = vmatpush1.msra.mxu0 0.0
        %4311 = vmatprep.subr.mxu0 0.0
        %4312 = vmatpush1.msra.mxu0 0.0
        %4313 = vmatprep.subr.mxu0 0.0
        %4314 = vmatpush1.msra.mxu0 0.0
        %4315 = vmatprep.mubr.f32.mxu0 0.0
        %4316 = vmatmul.mubr.f32.gmra.mrb[0].mxu0 %v3341
        %v4317 = vpop.f32.mrb[0].mxu0
        %v4318 = vadd.f32 %v4248, %v4317
        %v4319 = vpop.f32.mrb[0].mxu0
        %4320 = vdwg.mxu0
        %4321 = vmatprep.subr.mxu0 0.0
        %4322 = vmatpush1.msra.mxu0 %v3487
        %4323 = vmatprep.subr.mxu0 0.0
        %4324 = vmatpush1.msra.mxu0 %v3488
        %4325 = vmatprep.subr.mxu0 0.0
        %4326 = vmatpush1.msra.mxu0 %v3489
        %4327 = vmatprep.subr.mxu0 0.0
        %4328 = vmatpush1.msra.mxu0 %v3490
        %4329 = vmatprep.subr.mxu0 0.0
        %4330 = vmatpush1.msra.mxu0 %v3491
        %4331 = vmatprep.subr.mxu0 0.0
        %4332 = vmatpush1.msra.mxu0 %v3492
        %4333 = vmatprep.subr.mxu0 0.0
        %4334 = vmatpush1.msra.mxu0 %v3493
        %4335 = vmatprep.subr.mxu0 0.0
        %4336 = vmatpush1.msra.mxu0 %v3494
        %4337 = vmatprep.subr.mxu0 0.0
        %4338 = vmatpush1.msra.mxu0 %v3495
        %4339 = vmatprep.subr.mxu0 0.0
        %4340 = vmatpush1.msra.mxu0 %v3496
        %4341 = vmatprep.subr.mxu0 0.0
        %4342 = vmatpush1.msra.mxu0 %v3497
        %4343 = vmatprep.subr.mxu0 0.0
        %4344 = vmatpush1.msra.mxu0 %v3498
        %4345 = vmatprep.subr.mxu0 0.0
        %4346 = vmatpush1.msra.mxu0 %v3499
        %4347 = vmatprep.subr.mxu0 0.0
        %4348 = vmatpush1.msra.mxu0 %v3500
        %4349 = vmatprep.subr.mxu0 0.0
        %4350 = vmatpush1.msra.mxu0 0.0
        %4351 = vmatprep.subr.mxu0 0.0
        %4352 = vmatpush1.msra.mxu0 0.0
        %4353 = vmatprep.subr.mxu0 0.0
        %4354 = vmatpush1.msra.mxu0 0.0
        %4355 = vmatprep.subr.mxu0 0.0
        %4356 = vmatpush1.msra.mxu0 0.0
        %4357 = vmatprep.subr.mxu0 0.0
        %4358 = vmatpush1.msra.mxu0 0.0
        %4359 = vmatprep.subr.mxu0 0.0
        %4360 = vmatpush1.msra.mxu0 0.0
        %4361 = vmatprep.subr.mxu0 0.0
        %4362 = vmatpush1.msra.mxu0 0.0
        %4363 = vmatprep.subr.mxu0 0.0
        %4364 = vmatpush1.msra.mxu0 0.0
        %4365 = vmatprep.subr.mxu0 0.0
        %4366 = vmatpush1.msra.mxu0 0.0
        %4367 = vmatprep.subr.mxu0 0.0
        %4368 = vmatpush1.msra.mxu0 0.0
        %4369 = vmatprep.subr.mxu0 0.0
        %4370 = vmatpush1.msra.mxu0 0.0
        %4371 = vmatprep.subr.mxu0 0.0
        %4372 = vmatpush1.msra.mxu0 0.0
        %4373 = vmatprep.subr.mxu0 0.0
        %4374 = vmatpush1.msra.mxu0 0.0
        %4375 = vmatprep.subr.mxu0 0.0
        %4376 = vmatpush1.msra.mxu0 0.0
        %4377 = vmatprep.subr.mxu0 0.0
        %4378 = vmatpush1.msra.mxu0 0.0
        %4379 = vmatprep.subr.mxu0 0.0
        %4380 = vmatpush1.msra.mxu0 0.0
        %4381 = vmatprep.subr.mxu0 0.0
        %4382 = vmatpush1.msra.mxu0 0.0
        %4383 = vmatprep.subr.mxu0 0.0
        %4384 = vmatpush1.msra.mxu0 0.0
        %4385 = vmatprep.mubr.f32.mxu0 0.0
        %4386 = vmatmul.mubr.f32.gmra.mrb[0].mxu0 %v3591
        %v4387 = vpop.f32.mrb[0].mxu0
        %v4388 = vadd.f32 0.0, %v4387
        %v4389 = vpop.f32.mrb[0].mxu0
        %4390 = vdwg.mxu0
        %v4391 = vadd.f32 %v4318, %v4388
        %4392 = vmatprep.subr.mxu0 0.0
        %4393 = vmatpush1.msra.mxu0 %v3576
        %4394 = vmatprep.subr.mxu0 0.0
        %4395 = vmatpush1.msra.mxu0 %v3577
        %4396 = vmatprep.subr.mxu0 0.0
        %4397 = vmatpush1.msra.mxu0 %v3578
        %4398 = vmatprep.subr.mxu0 0.0
        %4399 = vmatpush1.msra.mxu0 %v3579
        %4400 = vmatprep.subr.mxu0 0.0
        %4401 = vmatpush1.msra.mxu0 %v3580
        %4402 = vmatprep.subr.mxu0 0.0
        %4403 = vmatpush1.msra.mxu0 %v3581
        %4404 = vmatprep.subr.mxu0 0.0
        %4405 = vmatpush1.msra.mxu0 %v3582
        %4406 = vmatprep.subr.mxu0 0.0
        %4407 = vmatpush1.msra.mxu0 %v3583
        %4408 = vmatprep.subr.mxu0 0.0
        %4409 = vmatpush1.msra.mxu0 %v3584
        %4410 = vmatprep.subr.mxu0 0.0
        %4411 = vmatpush1.msra.mxu0 %v3585
        %4412 = vmatprep.subr.mxu0 0.0
        %4413 = vmatpush1.msra.mxu0 %v3586
        %4414 = vmatprep.subr.mxu0 0.0
        %4415 = vmatpush1.msra.mxu0 %v3587
        %4416 = vmatprep.subr.mxu0 0.0
        %4417 = vmatpush1.msra.mxu0 %v3588
        %4418 = vmatprep.subr.mxu0 0.0
        %4419 = vmatpush1.msra.mxu0 %v3589
        %4420 = vmatprep.subr.mxu0 0.0
        %4421 = vmatpush1.msra.mxu0 0.0
        %4422 = vmatprep.subr.mxu0 0.0
        %4423 = vmatpush1.msra.mxu0 0.0
        %4424 = vmatprep.subr.mxu0 0.0
        %4425 = vmatpush1.msra.mxu0 0.0
        %4426 = vmatprep.subr.mxu0 0.0
        %4427 = vmatpush1.msra.mxu0 0.0
        %4428 = vmatprep.subr.mxu0 0.0
        %4429 = vmatpush1.msra.mxu0 0.0
        %4430 = vmatprep.subr.mxu0 0.0
        %4431 = vmatpush1.msra.mxu0 0.0
        %4432 = vmatprep.subr.mxu0 0.0
        %4433 = vmatpush1.msra.mxu0 0.0
        %4434 = vmatprep.subr.mxu0 0.0
        %4435 = vmatpush1.msra.mxu0 0.0
        %4436 = vmatprep.subr.mxu0 0.0
        %4437 = vmatpush1.msra.mxu0 0.0
        %4438 = vmatprep.subr.mxu0 0.0
        %4439 = vmatpush1.msra.mxu0 0.0
        %4440 = vmatprep.subr.mxu0 0.0
        %4441 = vmatpush1.msra.mxu0 0.0
        %4442 = vmatprep.subr.mxu0 0.0
        %4443 = vmatpush1.msra.mxu0 0.0
        %4444 = vmatprep.subr.mxu0 0.0
        %4445 = vmatpush1.msra.mxu0 0.0
        %4446 = vmatprep.subr.mxu0 0.0
        %4447 = vmatpush1.msra.mxu0 0.0
        %4448 = vmatprep.subr.mxu0 0.0
        %4449 = vmatpush1.msra.mxu0 0.0
        %4450 = vmatprep.subr.mxu0 0.0
        %4451 = vmatpush1.msra.mxu0 0.0
        %4452 = vmatprep.subr.mxu0 0.0
        %4453 = vmatpush1.msra.mxu0 0.0
        %4454 = vmatprep.subr.mxu0 0.0
        %4455 = vmatpush1.msra.mxu0 0.0
        %4456 = vmatprep.mubr.f32.mxu0 0.0
        %4457 = vmatmul.mubr.f32.gmra.mrb[0].mxu0 %v3680
        %v4458 = vpop.f32.mrb[0].mxu0
        %v4459 = vadd.f32 0.0, %v4458
        %v4460 = vpop.f32.mrb[0].mxu0
        %4461 = vdwg.mxu0
        %v4462 = vadd.f32 %v4391, %v4459
        %v4463 = vrot.slane %v3309, 2
        %v4464 = vsel %vm3339, %v4463, 0
        %4466 = vmatprep.subr.mxu0 0.0
        %4467 = vmatpush1.msra.mxu0 %v3665
        %4468 = vmatprep.subr.mxu0 0.0
        %4469 = vmatpush1.msra.mxu0 %v3666
        %4470 = vmatprep.subr.mxu0 0.0
        %4471 = vmatpush1.msra.mxu0 %v3667
        %4472 = vmatprep.subr.mxu0 0.0
        %4473 = vmatpush1.msra.mxu0 %v3668
        %4474 = vmatprep.subr.mxu0 0.0
        %4475 = vmatpush1.msra.mxu0 %v3669
        %4476 = vmatprep.subr.mxu0 0.0
        %4477 = vmatpush1.msra.mxu0 %v3670
        %4478 = vmatprep.subr.mxu0 0.0
        %4479 = vmatpush1.msra.mxu0 %v3671
        %4480 = vmatprep.subr.mxu0 0.0
        %4481 = vmatpush1.msra.mxu0 %v3672
        %4482 = vmatprep.subr.mxu0 0.0
        %4483 = vmatpush1.msra.mxu0 %v3673
        %4484 = vmatprep.subr.mxu0 0.0
        %4485 = vmatpush1.msra.mxu0 %v3674
        %4486 = vmatprep.subr.mxu0 0.0
        %4487 = vmatpush1.msra.mxu0 %v3675
        %4488 = vmatprep.subr.mxu0 0.0
        %4489 = vmatpush1.msra.mxu0 %v3676
        %4490 = vmatprep.subr.mxu0 0.0
        %4491 = vmatpush1.msra.mxu0 %v3677
        %4492 = vmatprep.subr.mxu0 0.0
        %4493 = vmatpush1.msra.mxu0 %v3678
        %4494 = vmatprep.subr.mxu0 0.0
        %4495 = vmatpush1.msra.mxu0 0.0
        %4496 = vmatprep.subr.mxu0 0.0
        %4497 = vmatpush1.msra.mxu0 0.0
        %4498 = vmatprep.subr.mxu0 0.0
        %4499 = vmatpush1.msra.mxu0 0.0
        %4500 = vmatprep.subr.mxu0 0.0
        %4501 = vmatpush1.msra.mxu0 0.0
        %4502 = vmatprep.subr.mxu0 0.0
        %4503 = vmatpush1.msra.mxu0 0.0
        %4504 = vmatprep.subr.mxu0 0.0
        %4505 = vmatpush1.msra.mxu0 0.0
        %4506 = vmatprep.subr.mxu0 0.0
        %4507 = vmatpush1.msra.mxu0 0.0
        %4508 = vmatprep.subr.mxu0 0.0
        %4509 = vmatpush1.msra.mxu0 0.0
        %4510 = vmatprep.subr.mxu0 0.0
        %4511 = vmatpush1.msra.mxu0 0.0
        %4512 = vmatprep.subr.mxu0 0.0
        %4513 = vmatpush1.msra.mxu0 0.0
        %4514 = vmatprep.subr.mxu0 0.0
        %4515 = vmatpush1.msra.mxu0 0.0
        %4516 = vmatprep.subr.mxu0 0.0
        %4517 = vmatpush1.msra.mxu0 0.0
        %4518 = vmatprep.subr.mxu0 0.0
        %4519 = vmatpush1.msra.mxu0 0.0
        %4520 = vmatprep.subr.mxu0 0.0
        %4521 = vmatpush1.msra.mxu0 0.0
        %4522 = vmatprep.subr.mxu0 0.0
        %4523 = vmatpush1.msra.mxu0 0.0
        %4524 = vmatprep.subr.mxu0 0.0
        %4525 = vmatpush1.msra.mxu0 0.0
        %4526 = vmatprep.subr.mxu0 0.0
        %4527 = vmatpush1.msra.mxu0 0.0
        %4528 = vmatprep.subr.mxu0 0.0
        %4529 = vmatpush1.msra.mxu0 0.0
        %4530 = vmatprep.mubr.f32.mxu0 0.0
        %4531 = vmatmul.mubr.f32.gmra.mrb[0].mxu0 %v4464
        %v4532 = vpop.f32.mrb[0].mxu0
        %v4533 = vadd.f32 0.0, %v4532
        %v4534 = vpop.f32.mrb[0].mxu0
        %4535 = vdwg.mxu0
        %v4536 = vadd.f32 %v4462, %v4533
        %4537 = vmatprep.subr.mxu0 0.0
        %4538 = vmatpush1.msra.mxu0 %v3769
        %4539 = vmatprep.subr.mxu0 0.0
        %4540 = vmatpush1.msra.mxu0 %v3770
        %4541 = vmatprep.subr.mxu0 0.0
        %4542 = vmatpush1.msra.mxu0 %v3771
        %4543 = vmatprep.subr.mxu0 0.0
        %4544 = vmatpush1.msra.mxu0 %v3772
        %4545 = vmatprep.subr.mxu0 0.0
        %4546 = vmatpush1.msra.mxu0 %v3773
        %4547 = vmatprep.subr.mxu0 0.0
        %4548 = vmatpush1.msra.mxu0 %v3774
        %4549 = vmatprep.subr.mxu0 0.0
        %4550 = vmatpush1.msra.mxu0 %v3775
        %4551 = vmatprep.subr.mxu0 0.0
        %4552 = vmatpush1.msra.mxu0 %v3776
        %4553 = vmatprep.subr.mxu0 0.0
        %4554 = vmatpush1.msra.mxu0 %v3777
        %4555 = vmatprep.subr.mxu0 0.0
        %4556 = vmatpush1.msra.mxu0 %v3778
        %4557 = vmatprep.subr.mxu0 0.0
        %4558 = vmatpush1.msra.mxu0 %v3779
        %4559 = vmatprep.subr.mxu0 0.0
        %4560 = vmatpush1.msra.mxu0 %v3780
        %4561 = vmatprep.subr.mxu0 0.0
        %4562 = vmatpush1.msra.mxu0 %v3781
        %4563 = vmatprep.subr.mxu0 0.0
        %4564 = vmatpush1.msra.mxu0 %v3782
        %4565 = vmatprep.subr.mxu0 0.0
        %4566 = vmatpush1.msra.mxu0 0.0
        %4567 = vmatprep.subr.mxu0 0.0
        %4568 = vmatpush1.msra.mxu0 0.0
        %4569 = vmatprep.subr.mxu0 0.0
        %4570 = vmatpush1.msra.mxu0 0.0
        %4571 = vmatprep.subr.mxu0 0.0
        %4572 = vmatpush1.msra.mxu0 0.0
        %4573 = vmatprep.subr.mxu0 0.0
        %4574 = vmatpush1.msra.mxu0 0.0
        %4575 = vmatprep.subr.mxu0 0.0
        %4576 = vmatpush1.msra.mxu0 0.0
        %4577 = vmatprep.subr.mxu0 0.0
        %4578 = vmatpush1.msra.mxu0 0.0
        %4579 = vmatprep.subr.mxu0 0.0
        %4580 = vmatpush1.msra.mxu0 0.0
        %4581 = vmatprep.subr.mxu0 0.0
        %4582 = vmatpush1.msra.mxu0 0.0
        %4583 = vmatprep.subr.mxu0 0.0
        %4584 = vmatpush1.msra.mxu0 0.0
        %4585 = vmatprep.subr.mxu0 0.0
        %4586 = vmatpush1.msra.mxu0 0.0
        %4587 = vmatprep.subr.mxu0 0.0
        %4588 = vmatpush1.msra.mxu0 0.0
        %4589 = vmatprep.subr.mxu0 0.0
        %4590 = vmatpush1.msra.mxu0 0.0
        %4591 = vmatprep.subr.mxu0 0.0
        %4592 = vmatpush1.msra.mxu0 0.0
        %4593 = vmatprep.subr.mxu0 0.0
        %4594 = vmatpush1.msra.mxu0 0.0
        %4595 = vmatprep.subr.mxu0 0.0
        %4596 = vmatpush1.msra.mxu0 0.0
        %4597 = vmatprep.subr.mxu0 0.0
        %4598 = vmatpush1.msra.mxu0 0.0
        %4599 = vmatprep.subr.mxu0 0.0
        %4600 = vmatpush1.msra.mxu0 0.0
        %4601 = vmatprep.mubr.f32.mxu0 0.0
        %4602 = vmatmul.mubr.f32.gmra.mrb[0].mxu0 %v3502
        %v4603 = vpop.f32.mrb[0].mxu0
        %v4604 = vadd.f32 0.0, %v4603
        %v4605 = vpop.f32.mrb[0].mxu0
        %4606 = vdwg.mxu0
        %4607 = vmatprep.subr.mxu0 0.0
        %4608 = vmatpush1.msra.mxu0 %v3754
        %4609 = vmatprep.subr.mxu0 0.0
        %4610 = vmatpush1.msra.mxu0 %v3755
        %4611 = vmatprep.subr.mxu0 0.0
        %4612 = vmatpush1.msra.mxu0 %v3756
        %4613 = vmatprep.subr.mxu0 0.0
        %4614 = vmatpush1.msra.mxu0 %v3757
        %4615 = vmatprep.subr.mxu0 0.0
        %4616 = vmatpush1.msra.mxu0 %v3758
        %4617 = vmatprep.subr.mxu0 0.0
        %4618 = vmatpush1.msra.mxu0 %v3759
        %4619 = vmatprep.subr.mxu0 0.0
        %4620 = vmatpush1.msra.mxu0 %v3760
        %4621 = vmatprep.subr.mxu0 0.0
        %4622 = vmatpush1.msra.mxu0 %v3761
        %4623 = vmatprep.subr.mxu0 0.0
        %4624 = vmatpush1.msra.mxu0 %v3762
        %4625 = vmatprep.subr.mxu0 0.0
        %4626 = vmatpush1.msra.mxu0 %v3763
        %4627 = vmatprep.subr.mxu0 0.0
        %4628 = vmatpush1.msra.mxu0 %v3764
        %4629 = vmatprep.subr.mxu0 0.0
        %4630 = vmatpush1.msra.mxu0 %v3765
        %4631 = vmatprep.subr.mxu0 0.0
        %4632 = vmatpush1.msra.mxu0 %v3766
        %4633 = vmatprep.subr.mxu0 0.0
        %4634 = vmatpush1.msra.mxu0 %v3767
        %4635 = vmatprep.subr.mxu0 0.0
        %4636 = vmatpush1.msra.mxu0 0.0
        %4637 = vmatprep.subr.mxu0 0.0
        %4638 = vmatpush1.msra.mxu0 0.0
        %4639 = vmatprep.subr.mxu0 0.0
        %4640 = vmatpush1.msra.mxu0 0.0
        %4641 = vmatprep.subr.mxu0 0.0
        %4642 = vmatpush1.msra.mxu0 0.0
        %4643 = vmatprep.subr.mxu0 0.0
        %4644 = vmatpush1.msra.mxu0 0.0
        %4645 = vmatprep.subr.mxu0 0.0
        %4646 = vmatpush1.msra.mxu0 0.0
        %4647 = vmatprep.subr.mxu0 0.0
        %4648 = vmatpush1.msra.mxu0 0.0
        %4649 = vmatprep.subr.mxu0 0.0
        %4650 = vmatpush1.msra.mxu0 0.0
        %4651 = vmatprep.subr.mxu0 0.0
        %4652 = vmatpush1.msra.mxu0 0.0
        %4653 = vmatprep.subr.mxu0 0.0
        %4654 = vmatpush1.msra.mxu0 0.0
        %4655 = vmatprep.subr.mxu0 0.0
        %4656 = vmatpush1.msra.mxu0 0.0
        %4657 = vmatprep.subr.mxu0 0.0
        %4658 = vmatpush1.msra.mxu0 0.0
        %4659 = vmatprep.subr.mxu0 0.0
        %4660 = vmatpush1.msra.mxu0 0.0
        %4661 = vmatprep.subr.mxu0 0.0
        %4662 = vmatpush1.msra.mxu0 0.0
        %4663 = vmatprep.subr.mxu0 0.0
        %4664 = vmatpush1.msra.mxu0 0.0
        %4665 = vmatprep.subr.mxu0 0.0
        %4666 = vmatpush1.msra.mxu0 0.0
        %4667 = vmatprep.subr.mxu0 0.0
        %4668 = vmatpush1.msra.mxu0 0.0
        %4669 = vmatprep.subr.mxu0 0.0
        %4670 = vmatpush1.msra.mxu0 0.0
        %4671 = vmatprep.mubr.f32.mxu0 0.0
        %4672 = vmatmul.mubr.f32.gmra.mrb[0].mxu0 %v3341
        %v4673 = vpop.f32.mrb[0].mxu0
        %v4674 = vadd.f32 %v4604, %v4673
        %v4675 = vpop.f32.mrb[0].mxu0
        %4676 = vdwg.mxu0
        %4677 = vmatprep.subr.mxu0 0.0
        %4678 = vmatpush1.msra.mxu0 %v3924
        %4679 = vmatprep.subr.mxu0 0.0
        %4680 = vmatpush1.msra.mxu0 %v3925
        %4681 = vmatprep.subr.mxu0 0.0
        %4682 = vmatpush1.msra.mxu0 %v3926
        %4683 = vmatprep.subr.mxu0 0.0
        %4684 = vmatpush1.msra.mxu0 %v3927
        %4685 = vmatprep.subr.mxu0 0.0
        %4686 = vmatpush1.msra.mxu0 %v3928
        %4687 = vmatprep.subr.mxu0 0.0
        %4688 = vmatpush1.msra.mxu0 %v3929
        %4689 = vmatprep.subr.mxu0 0.0
        %4690 = vmatpush1.msra.mxu0 %v3930
        %4691 = vmatprep.subr.mxu0 0.0
        %4692 = vmatpush1.msra.mxu0 %v3931
        %4693 = vmatprep.subr.mxu0 0.0
        %4694 = vmatpush1.msra.mxu0 %v3932
        %4695 = vmatprep.subr.mxu0 0.0
        %4696 = vmatpush1.msra.mxu0 %v3933
        %4697 = vmatprep.subr.mxu0 0.0
        %4698 = vmatpush1.msra.mxu0 %v3934
        %4699 = vmatprep.subr.mxu0 0.0
        %4700 = vmatpush1.msra.mxu0 %v3935
        %4701 = vmatprep.subr.mxu0 0.0
        %4702 = vmatpush1.msra.mxu0 %v3936
        %4703 = vmatprep.subr.mxu0 0.0
        %4704 = vmatpush1.msra.mxu0 %v3937
        %4705 = vmatprep.subr.mxu0 0.0
        %4706 = vmatpush1.msra.mxu0 0.0
        %4707 = vmatprep.subr.mxu0 0.0
        %4708 = vmatpush1.msra.mxu0 0.0
        %4709 = vmatprep.subr.mxu0 0.0
        %4710 = vmatpush1.msra.mxu0 0.0
        %4711 = vmatprep.subr.mxu0 0.0
        %4712 = vmatpush1.msra.mxu0 0.0
        %4713 = vmatprep.subr.mxu0 0.0
        %4714 = vmatpush1.msra.mxu0 0.0
        %4715 = vmatprep.subr.mxu0 0.0
        %4716 = vmatpush1.msra.mxu0 0.0
        %4717 = vmatprep.subr.mxu0 0.0
        %4718 = vmatpush1.msra.mxu0 0.0
        %4719 = vmatprep.subr.mxu0 0.0
        %4720 = vmatpush1.msra.mxu0 0.0
        %4721 = vmatprep.subr.mxu0 0.0
        %4722 = vmatpush1.msra.mxu0 0.0
        %4723 = vmatprep.subr.mxu0 0.0
        %4724 = vmatpush1.msra.mxu0 0.0
        %4725 = vmatprep.subr.mxu0 0.0
        %4726 = vmatpush1.msra.mxu0 0.0
        %4727 = vmatprep.subr.mxu0 0.0
        %4728 = vmatpush1.msra.mxu0 0.0
        %4729 = vmatprep.subr.mxu0 0.0
        %4730 = vmatpush1.msra.mxu0 0.0
        %4731 = vmatprep.subr.mxu0 0.0
        %4732 = vmatpush1.msra.mxu0 0.0
        %4733 = vmatprep.subr.mxu0 0.0
        %4734 = vmatpush1.msra.mxu0 0.0
        %4735 = vmatprep.subr.mxu0 0.0
        %4736 = vmatpush1.msra.mxu0 0.0
        %4737 = vmatprep.subr.mxu0 0.0
        %4738 = vmatpush1.msra.mxu0 0.0
        %4739 = vmatprep.subr.mxu0 0.0
        %4740 = vmatpush1.msra.mxu0 0.0
        %4741 = vmatprep.mubr.f32.mxu0 0.0
        %4742 = vmatmul.mubr.f32.gmra.mrb[0].mxu0 %v3591
        %v4743 = vpop.f32.mrb[0].mxu0
        %v4744 = vadd.f32 0.0, %v4743
        %v4745 = vpop.f32.mrb[0].mxu0
        %4746 = vdwg.mxu0
        %v4747 = vadd.f32 %v4674, %v4744
        %4748 = vmatprep.subr.mxu0 0.0
        %4749 = vmatpush1.msra.mxu0 %v4010
        %4750 = vmatprep.subr.mxu0 0.0
        %4751 = vmatpush1.msra.mxu0 %v4011
        %4752 = vmatprep.subr.mxu0 0.0
        %4753 = vmatpush1.msra.mxu0 %v4012
        %4754 = vmatprep.subr.mxu0 0.0
        %4755 = vmatpush1.msra.mxu0 %v4013
        %4756 = vmatprep.subr.mxu0 0.0
        %4757 = vmatpush1.msra.mxu0 %v4014
        %4758 = vmatprep.subr.mxu0 0.0
        %4759 = vmatpush1.msra.mxu0 %v4015
        %4760 = vmatprep.subr.mxu0 0.0
        %4761 = vmatpush1.msra.mxu0 %v4016
        %4762 = vmatprep.subr.mxu0 0.0
        %4763 = vmatpush1.msra.mxu0 %v4017
        %4764 = vmatprep.subr.mxu0 0.0
        %4765 = vmatpush1.msra.mxu0 %v4018
        %4766 = vmatprep.subr.mxu0 0.0
        %4767 = vmatpush1.msra.mxu0 %v4019
        %4768 = vmatprep.subr.mxu0 0.0
        %4769 = vmatpush1.msra.mxu0 %v4020
        %4770 = vmatprep.subr.mxu0 0.0
        %4771 = vmatpush1.msra.mxu0 %v4021
        %4772 = vmatprep.subr.mxu0 0.0
        %4773 = vmatpush1.msra.mxu0 %v4022
        %4774 = vmatprep.subr.mxu0 0.0
        %4775 = vmatpush1.msra.mxu0 %v4023
        %4776 = vmatprep.subr.mxu0 0.0
        %4777 = vmatpush1.msra.mxu0 0.0
        %4778 = vmatprep.subr.mxu0 0.0
        %4779 = vmatpush1.msra.mxu0 0.0
        %4780 = vmatprep.subr.mxu0 0.0
        %4781 = vmatpush1.msra.mxu0 0.0
        %4782 = vmatprep.subr.mxu0 0.0
        %4783 = vmatpush1.msra.mxu0 0.0
        %4784 = vmatprep.subr.mxu0 0.0
        %4785 = vmatpush1.msra.mxu0 0.0
        %4786 = vmatprep.subr.mxu0 0.0
        %4787 = vmatpush1.msra.mxu0 0.0
        %4788 = vmatprep.subr.mxu0 0.0
        %4789 = vmatpush1.msra.mxu0 0.0
        %4790 = vmatprep.subr.mxu0 0.0
        %4791 = vmatpush1.msra.mxu0 0.0
        %4792 = vmatprep.subr.mxu0 0.0
        %4793 = vmatpush1.msra.mxu0 0.0
        %4794 = vmatprep.subr.mxu0 0.0
        %4795 = vmatpush1.msra.mxu0 0.0
        %4796 = vmatprep.subr.mxu0 0.0
        %4797 = vmatpush1.msra.mxu0 0.0
        %4798 = vmatprep.subr.mxu0 0.0
        %4799 = vmatpush1.msra.mxu0 0.0
        %4800 = vmatprep.subr.mxu0 0.0
        %4801 = vmatpush1.msra.mxu0 0.0
        %4802 = vmatprep.subr.mxu0 0.0
        %4803 = vmatpush1.msra.mxu0 0.0
        %4804 = vmatprep.subr.mxu0 0.0
        %4805 = vmatpush1.msra.mxu0 0.0
        %4806 = vmatprep.subr.mxu0 0.0
        %4807 = vmatpush1.msra.mxu0 0.0
        %4808 = vmatprep.subr.mxu0 0.0
        %4809 = vmatpush1.msra.mxu0 0.0
        %4810 = vmatprep.subr.mxu0 0.0
        %4811 = vmatpush1.msra.mxu0 0.0
        %4812 = vmatprep.mubr.f32.mxu0 0.0
        %4813 = vmatmul.mubr.f32.gmra.mrb[0].mxu0 %v3680
        %v4814 = vpop.f32.mrb[0].mxu0
        %v4815 = vadd.f32 0.0, %v4814
        %v4816 = vpop.f32.mrb[0].mxu0
        %4817 = vdwg.mxu0
        %v4818 = vadd.f32 %v4747, %v4815
        %4819 = vmatprep.subr.mxu0 0.0
        %4820 = vmatpush1.msra.mxu0 %v4096
        %4821 = vmatprep.subr.mxu0 0.0
        %4822 = vmatpush1.msra.mxu0 %v4097
        %4823 = vmatprep.subr.mxu0 0.0
        %4824 = vmatpush1.msra.mxu0 %v4098
        %4825 = vmatprep.subr.mxu0 0.0
        %4826 = vmatpush1.msra.mxu0 %v4099
        %4827 = vmatprep.subr.mxu0 0.0
        %4828 = vmatpush1.msra.mxu0 %v4100
        %4829 = vmatprep.subr.mxu0 0.0
        %4830 = vmatpush1.msra.mxu0 %v4101
        %4831 = vmatprep.subr.mxu0 0.0
        %4832 = vmatpush1.msra.mxu0 %v4102
        %4833 = vmatprep.subr.mxu0 0.0
        %4834 = vmatpush1.msra.mxu0 %v4103
        %4835 = vmatprep.subr.mxu0 0.0
        %4836 = vmatpush1.msra.mxu0 %v4104
        %4837 = vmatprep.subr.mxu0 0.0
        %4838 = vmatpush1.msra.mxu0 %v4105
        %4839 = vmatprep.subr.mxu0 0.0
        %4840 = vmatpush1.msra.mxu0 %v4106
        %4841 = vmatprep.subr.mxu0 0.0
        %4842 = vmatpush1.msra.mxu0 %v4107
        %4843 = vmatprep.subr.mxu0 0.0
        %4844 = vmatpush1.msra.mxu0 %v4108
        %4845 = vmatprep.subr.mxu0 0.0
        %4846 = vmatpush1.msra.mxu0 %v4109
        %4847 = vmatprep.subr.mxu0 0.0
        %4848 = vmatpush1.msra.mxu0 0.0
        %4849 = vmatprep.subr.mxu0 0.0
        %4850 = vmatpush1.msra.mxu0 0.0
        %4851 = vmatprep.subr.mxu0 0.0
        %4852 = vmatpush1.msra.mxu0 0.0
        %4853 = vmatprep.subr.mxu0 0.0
        %4854 = vmatpush1.msra.mxu0 0.0
        %4855 = vmatprep.subr.mxu0 0.0
        %4856 = vmatpush1.msra.mxu0 0.0
        %4857 = vmatprep.subr.mxu0 0.0
        %4858 = vmatpush1.msra.mxu0 0.0
        %4859 = vmatprep.subr.mxu0 0.0
        %4860 = vmatpush1.msra.mxu0 0.0
        %4861 = vmatprep.subr.mxu0 0.0
        %4862 = vmatpush1.msra.mxu0 0.0
        %4863 = vmatprep.subr.mxu0 0.0
        %4864 = vmatpush1.msra.mxu0 0.0
        %4865 = vmatprep.subr.mxu0 0.0
        %4866 = vmatpush1.msra.mxu0 0.0
        %4867 = vmatprep.subr.mxu0 0.0
        %4868 = vmatpush1.msra.mxu0 0.0
        %4869 = vmatprep.subr.mxu0 0.0
        %4870 = vmatpush1.msra.mxu0 0.0
        %4871 = vmatprep.subr.mxu0 0.0
        %4872 = vmatpush1.msra.mxu0 0.0
        %4873 = vmatprep.subr.mxu0 0.0
        %4874 = vmatpush1.msra.mxu0 0.0
        %4875 = vmatprep.subr.mxu0 0.0
        %4876 = vmatpush1.msra.mxu0 0.0
        %4877 = vmatprep.subr.mxu0 0.0
        %4878 = vmatpush1.msra.mxu0 0.0
        %4879 = vmatprep.subr.mxu0 0.0
        %4880 = vmatpush1.msra.mxu0 0.0
        %4881 = vmatprep.subr.mxu0 0.0
        %4882 = vmatpush1.msra.mxu0 0.0
        %4883 = vmatprep.mubr.f32.mxu0 0.0
        %4884 = vmatmul.mubr.f32.gmra.mrb[0].mxu0 %v4464
        %v4885 = vpop.f32.mrb[0].mxu0
        %v4886 = vadd.f32 0.0, %v4885
        %v4887 = vpop.f32.mrb[0].mxu0
        %4888 = vdwg.mxu0
        %v4889 = vadd.f32 %v4818, %v4886
        %v4890 = vmax.f32 %v3752, %v4180
        %v4891 = vmax.f32 %v4890, %v4536
        %v4892 = vmax.f32 %v4891, %v4889
        %v4893 = vld [vmem:[%s4] sm:$0x1]
        %v4895 = vlaneseq
        %v4896 = vshrl.u32 %v4895, 7
        %v4897 = vsub.s32 0, %v4896
        %v4898 = vrot.slane %v4893, %v4897
        %v4900 = vadd.f32 %v4892, %v4898
        %v4901 = vmax.f32 %v4900, 0.0
        %v4902 = vld [vmem:[%s5] sm:$0xff]
        %v4903 = vld [vmem:[%s5 + $0x8] sm:$0xff]
        %v4904 = vld [vmem:[%s5 + $0x10] sm:$0xff]
        %v4905 = vld [vmem:[%s5 + $0x18] sm:$0xff]
        %v4906 = vld [vmem:[%s5 + $0x20] sm:$0xff]
        %v4907 = vld [vmem:[%s5 + $0x28] sm:$0xff]
        %v4908 = vld [vmem:[%s5 + $0x30] sm:$0xff]
        %v4909 = vld [vmem:[%s5 + $0x38] sm:$0xff]
        %v4910 = vld [vmem:[%s5 + $0x40] sm:$0xff]
        %v4911 = vld [vmem:[%s5 + $0x48] sm:$0xff]
        %s4912 = scalar_lea.vmem %s5, 80
        %v4913 = vld [vmem:[%s4912] sm:$0xff]
        %v4914 = vld [vmem:[%s4912 + $0x8] sm:$0xff]
        %v4915 = vld [vmem:[%s4912 + $0x10] sm:$0xff]
        %v4916 = vld [vmem:[%s4912 + $0x18] sm:$0xff]
        %v4917 = vld [vmem:[%s4912 + $0x20] sm:$0xff]
        %v4918 = vld [vmem:[%s4912 + $0x28] sm:$0xff]
        %v4919 = vld [vmem:[%s4912 + $0x30] sm:$0xff]
        %v4920 = vld [vmem:[%s4912 + $0x38] sm:$0xff]
        %v4921 = vld [vmem:[%s4912 + $0x40] sm:$0xff]
        %v4922 = vld [vmem:[%s4912 + $0x48] sm:$0xff]
        %v4924 = vrot.slane %v4901, 1
        %vm4925 = vcmask 654336
        %v4926 = vsel %vm4925, %v4924, 0
        %4928 = vmatprep.subr.mxu0 0.0
        %4929 = vmatpush1.msra.mxu0 %v4913
        %4930 = vmatprep.subr.mxu0 0.0
        %4931 = vmatpush1.msra.mxu0 %v4914
        %4932 = vmatprep.subr.mxu0 0.0
        %4933 = vmatpush1.msra.mxu0 %v4915
        %4934 = vmatprep.subr.mxu0 0.0
        %4935 = vmatpush1.msra.mxu0 %v4916
        %4936 = vmatprep.subr.mxu0 0.0
        %4937 = vmatpush1.msra.mxu0 %v4917
        %4938 = vmatprep.subr.mxu0 0.0
        %4939 = vmatpush1.msra.mxu0 %v4918
        %4940 = vmatprep.subr.mxu0 0.0
        %4941 = vmatpush1.msra.mxu0 %v4919
        %4942 = vmatprep.subr.mxu0 0.0
        %4943 = vmatpush1.msra.mxu0 %v4920
        %4944 = vmatprep.subr.mxu0 0.0
        %4945 = vmatpush1.msra.mxu0 %v4921
        %4946 = vmatprep.subr.mxu0 0.0
        %4947 = vmatpush1.msra.mxu0 %v4922
        %4948 = vmatprep.subr.mxu0 0.0
        %4949 = vmatpush1.msra.mxu0 0.0
        %4950 = vmatprep.subr.mxu0 0.0
        %4951 = vmatpush1.msra.mxu0 0.0
        %4952 = vmatprep.subr.mxu0 0.0
        %4953 = vmatpush1.msra.mxu0 0.0
        %4954 = vmatprep.subr.mxu0 0.0
        %4955 = vmatpush1.msra.mxu0 0.0
        %4956 = vmatprep.subr.mxu0 0.0
        %4957 = vmatpush1.msra.mxu0 0.0
        %4958 = vmatprep.subr.mxu0 0.0
        %4959 = vmatpush1.msra.mxu0 0.0
        %4960 = vmatprep.subr.mxu0 0.0
        %4961 = vmatpush1.msra.mxu0 0.0
        %4962 = vmatprep.subr.mxu0 0.0
        %4963 = vmatpush1.msra.mxu0 0.0
        %4964 = vmatprep.subr.mxu0 0.0
        %4965 = vmatpush1.msra.mxu0 0.0
        %4966 = vmatprep.subr.mxu0 0.0
        %4967 = vmatpush1.msra.mxu0 0.0
        %4968 = vmatprep.subr.mxu0 0.0
        %4969 = vmatpush1.msra.mxu0 0.0
        %4970 = vmatprep.subr.mxu0 0.0
        %4971 = vmatpush1.msra.mxu0 0.0
        %4972 = vmatprep.subr.mxu0 0.0
        %4973 = vmatpush1.msra.mxu0 0.0
        %4974 = vmatprep.subr.mxu0 0.0
        %4975 = vmatpush1.msra.mxu0 0.0
        %4976 = vmatprep.subr.mxu0 0.0
        %4977 = vmatpush1.msra.mxu0 0.0
        %4978 = vmatprep.subr.mxu0 0.0
        %4979 = vmatpush1.msra.mxu0 0.0
        %4980 = vmatprep.subr.mxu0 0.0
        %4981 = vmatpush1.msra.mxu0 0.0
        %4982 = vmatprep.subr.mxu0 0.0
        %4983 = vmatpush1.msra.mxu0 0.0
        %4984 = vmatprep.subr.mxu0 0.0
        %4985 = vmatpush1.msra.mxu0 0.0
        %4986 = vmatprep.subr.mxu0 0.0
        %4987 = vmatpush1.msra.mxu0 0.0
        %4988 = vmatprep.subr.mxu0 0.0
        %4989 = vmatpush1.msra.mxu0 0.0
        %4990 = vmatprep.subr.mxu0 0.0
        %4991 = vmatpush1.msra.mxu0 0.0
        %4992 = vmatprep.mubr.f32.mxu0 0.0
        %4993 = vmatmul.mubr.f32.gmra.mrb[0].mxu0 %v4926
        %v4994 = vpop.f32.mrb[0].mxu0
        %v4995 = vadd.f32 0.0, %v4994
        %v4996 = vpop.f32.mrb[0].mxu0
        %4997 = vdwg.mxu0
        %v4998 = vsel %vm4925, %v4901, 0
        %5000 = vmatprep.subr.mxu0 0.0
        %5001 = vmatpush1.msra.mxu0 %v4902
        %5002 = vmatprep.subr.mxu0 0.0
        %5003 = vmatpush1.msra.mxu0 %v4903
        %5004 = vmatprep.subr.mxu0 0.0
        %5005 = vmatpush1.msra.mxu0 %v4904
        %5006 = vmatprep.subr.mxu0 0.0
        %5007 = vmatpush1.msra.mxu0 %v4905
        %5008 = vmatprep.subr.mxu0 0.0
        %5009 = vmatpush1.msra.mxu0 %v4906
        %5010 = vmatprep.subr.mxu0 0.0
        %5011 = vmatpush1.msra.mxu0 %v4907
        %5012 = vmatprep.subr.mxu0 0.0
        %5013 = vmatpush1.msra.mxu0 %v4908
        %5014 = vmatprep.subr.mxu0 0.0
        %5015 = vmatpush1.msra.mxu0 %v4909
        %5016 = vmatprep.subr.mxu0 0.0
        %5017 = vmatpush1.msra.mxu0 %v4910
        %5018 = vmatprep.subr.mxu0 0.0
        %5019 = vmatpush1.msra.mxu0 %v4911
        %5020 = vmatprep.subr.mxu0 0.0
        %5021 = vmatpush1.msra.mxu0 0.0
        %5022 = vmatprep.subr.mxu0 0.0
        %5023 = vmatpush1.msra.mxu0 0.0
        %5024 = vmatprep.subr.mxu0 0.0
        %5025 = vmatpush1.msra.mxu0 0.0
        %5026 = vmatprep.subr.mxu0 0.0
        %5027 = vmatpush1.msra.mxu0 0.0
        %5028 = vmatprep.subr.mxu0 0.0
        %5029 = vmatpush1.msra.mxu0 0.0
        %5030 = vmatprep.subr.mxu0 0.0
        %5031 = vmatpush1.msra.mxu0 0.0
        %5032 = vmatprep.subr.mxu0 0.0
        %5033 = vmatpush1.msra.mxu0 0.0
        %5034 = vmatprep.subr.mxu0 0.0
        %5035 = vmatpush1.msra.mxu0 0.0
        %5036 = vmatprep.subr.mxu0 0.0
        %5037 = vmatpush1.msra.mxu0 0.0
        %5038 = vmatprep.subr.mxu0 0.0
        %5039 = vmatpush1.msra.mxu0 0.0
        %5040 = vmatprep.subr.mxu0 0.0
        %5041 = vmatpush1.msra.mxu0 0.0
        %5042 = vmatprep.subr.mxu0 0.0
        %5043 = vmatpush1.msra.mxu0 0.0
        %5044 = vmatprep.subr.mxu0 0.0
        %5045 = vmatpush1.msra.mxu0 0.0
        %5046 = vmatprep.subr.mxu0 0.0
        %5047 = vmatpush1.msra.mxu0 0.0
        %5048 = vmatprep.subr.mxu0 0.0
        %5049 = vmatpush1.msra.mxu0 0.0
        %5050 = vmatprep.subr.mxu0 0.0
        %5051 = vmatpush1.msra.mxu0 0.0
        %5052 = vmatprep.subr.mxu0 0.0
        %5053 = vmatpush1.msra.mxu0 0.0
        %5054 = vmatprep.subr.mxu0 0.0
        %5055 = vmatpush1.msra.mxu0 0.0
        %5056 = vmatprep.subr.mxu0 0.0
        %5057 = vmatpush1.msra.mxu0 0.0
        %5058 = vmatprep.subr.mxu0 0.0
        %5059 = vmatpush1.msra.mxu0 0.0
        %5060 = vmatprep.subr.mxu0 0.0
        %5061 = vmatpush1.msra.mxu0 0.0
        %5062 = vmatprep.subr.mxu0 0.0
        %5063 = vmatpush1.msra.mxu0 0.0
        %5064 = vmatprep.mubr.f32.mxu0 0.0
        %5065 = vmatmul.mubr.f32.gmra.mrb[0].mxu0 %v4998
        %v5066 = vpop.f32.mrb[0].mxu0
        %v5067 = vadd.f32 %v4995, %v5066
        %v5068 = vpop.f32.mrb[0].mxu0
        %5069 = vdwg.mxu0
        %s5070 = scalar_lea.vmem %s5, 160
        %v5071 = vld [vmem:[%s5070] sm:$0xff]
        %v5072 = vld [vmem:[%s5070 + $0x8] sm:$0xff]
        %v5073 = vld [vmem:[%s5070 + $0x10] sm:$0xff]
        %v5074 = vld [vmem:[%s5070 + $0x18] sm:$0xff]
        %v5075 = vld [vmem:[%s5070 + $0x20] sm:$0xff]
        %v5076 = vld [vmem:[%s5070 + $0x28] sm:$0xff]
        %v5077 = vld [vmem:[%s5070 + $0x30] sm:$0xff]
        %v5078 = vld [vmem:[%s5070 + $0x38] sm:$0xff]
        %v5079 = vld [vmem:[%s5070 + $0x40] sm:$0xff]
        %v5080 = vld [vmem:[%s5070 + $0x48] sm:$0xff]
        %v5081 = vrot.slane %v4901, 2
        %v5082 = vsel %vm4925, %v5081, 0
        %5084 = vmatprep.subr.mxu0 0.0
        %5085 = vmatpush1.msra.mxu0 %v5071
        %5086 = vmatprep.subr.mxu0 0.0
        %5087 = vmatpush1.msra.mxu0 %v5072
        %5088 = vmatprep.subr.mxu0 0.0
        %5089 = vmatpush1.msra.mxu0 %v5073
        %5090 = vmatprep.subr.mxu0 0.0
        %5091 = vmatpush1.msra.mxu0 %v5074
        %5092 = vmatprep.subr.mxu0 0.0
        %5093 = vmatpush1.msra.mxu0 %v5075
        %5094 = vmatprep.subr.mxu0 0.0
        %5095 = vmatpush1.msra.mxu0 %v5076
        %5096 = vmatprep.subr.mxu0 0.0
        %5097 = vmatpush1.msra.mxu0 %v5077
        %5098 = vmatprep.subr.mxu0 0.0
        %5099 = vmatpush1.msra.mxu0 %v5078
        %5100 = vmatprep.subr.mxu0 0.0
        %5101 = vmatpush1.msra.mxu0 %v5079
        %5102 = vmatprep.subr.mxu0 0.0
        %5103 = vmatpush1.msra.mxu0 %v5080
        %5104 = vmatprep.subr.mxu0 0.0
        %5105 = vmatpush1.msra.mxu0 0.0
        %5106 = vmatprep.subr.mxu0 0.0
        %5107 = vmatpush1.msra.mxu0 0.0
        %5108 = vmatprep.subr.mxu0 0.0
        %5109 = vmatpush1.msra.mxu0 0.0
        %5110 = vmatprep.subr.mxu0 0.0
        %5111 = vmatpush1.msra.mxu0 0.0
        %5112 = vmatprep.subr.mxu0 0.0
        %5113 = vmatpush1.msra.mxu0 0.0
        %5114 = vmatprep.subr.mxu0 0.0
        %5115 = vmatpush1.msra.mxu0 0.0
        %5116 = vmatprep.subr.mxu0 0.0
        %5117 = vmatpush1.msra.mxu0 0.0
        %5118 = vmatprep.subr.mxu0 0.0
        %5119 = vmatpush1.msra.mxu0 0.0
        %5120 = vmatprep.subr.mxu0 0.0
        %5121 = vmatpush1.msra.mxu0 0.0
        %5122 = vmatprep.subr.mxu0 0.0
        %5123 = vmatpush1.msra.mxu0 0.0
        %5124 = vmatprep.subr.mxu0 0.0
        %5125 = vmatpush1.msra.mxu0 0.0
        %5126 = vmatprep.subr.mxu0 0.0
        %5127 = vmatpush1.msra.mxu0 0.0
        %5128 = vmatprep.subr.mxu0 0.0
        %5129 = vmatpush1.msra.mxu0 0.0
        %5130 = vmatprep.subr.mxu0 0.0
        %5131 = vmatpush1.msra.mxu0 0.0
        %5132 = vmatprep.subr.mxu0 0.0
        %5133 = vmatpush1.msra.mxu0 0.0
        %5134 = vmatprep.subr.mxu0 0.0
        %5135 = vmatpush1.msra.mxu0 0.0
        %5136 = vmatprep.subr.mxu0 0.0
        %5137 = vmatpush1.msra.mxu0 0.0
        %5138 = vmatprep.subr.mxu0 0.0
        %5139 = vmatpush1.msra.mxu0 0.0
        %5140 = vmatprep.subr.mxu0 0.0
        %5141 = vmatpush1.msra.mxu0 0.0
        %5142 = vmatprep.subr.mxu0 0.0
        %5143 = vmatpush1.msra.mxu0 0.0
        %5144 = vmatprep.subr.mxu0 0.0
        %5145 = vmatpush1.msra.mxu0 0.0
        %5146 = vmatprep.subr.mxu0 0.0
        %5147 = vmatpush1.msra.mxu0 0.0
        %5148 = vmatprep.mubr.f32.mxu0 0.0
        %5149 = vmatmul.mubr.f32.gmra.mrb[0].mxu0 %v5082
        %v5150 = vpop.f32.mrb[0].mxu0
        %v5151 = vadd.f32 0.0, %v5150
        %v5152 = vpop.f32.mrb[0].mxu0
        %5153 = vdwg.mxu0
        %v5154 = vadd.f32 %v5067, %v5151
        %s5155 = scalar_lea.vmem %s5, 240
        %v5156 = vld [vmem:[%s5155] sm:$0xff]
        %v5157 = vld [vmem:[%s5155 + $0x8] sm:$0xff]
        %v5158 = vld [vmem:[%s5155 + $0x10] sm:$0xff]
        %v5159 = vld [vmem:[%s5155 + $0x18] sm:$0xff]
        %v5160 = vld [vmem:[%s5155 + $0x20] sm:$0xff]
        %v5161 = vld [vmem:[%s5155 + $0x28] sm:$0xff]
        %v5162 = vld [vmem:[%s5155 + $0x30] sm:$0xff]
        %v5163 = vld [vmem:[%s5155 + $0x38] sm:$0xff]
        %v5164 = vld [vmem:[%s5155 + $0x40] sm:$0xff]
        %v5165 = vld [vmem:[%s5155 + $0x48] sm:$0xff]
        %v5166 = vrot.slane %v4901, 3
        %v5167 = vsel %vm4925, %v5166, 0
        %5169 = vmatprep.subr.mxu0 0.0
        %5170 = vmatpush1.msra.mxu0 %v5156
        %5171 = vmatprep.subr.mxu0 0.0
        %5172 = vmatpush1.msra.mxu0 %v5157
        %5173 = vmatprep.subr.mxu0 0.0
        %5174 = vmatpush1.msra.mxu0 %v5158
        %5175 = vmatprep.subr.mxu0 0.0
        %5176 = vmatpush1.msra.mxu0 %v5159
        %5177 = vmatprep.subr.mxu0 0.0
        %5178 = vmatpush1.msra.mxu0 %v5160
        %5179 = vmatprep.subr.mxu0 0.0
        %5180 = vmatpush1.msra.mxu0 %v5161
        %5181 = vmatprep.subr.mxu0 0.0
        %5182 = vmatpush1.msra.mxu0 %v5162
        %5183 = vmatprep.subr.mxu0 0.0
        %5184 = vmatpush1.msra.mxu0 %v5163
        %5185 = vmatprep.subr.mxu0 0.0
        %5186 = vmatpush1.msra.mxu0 %v5164
        %5187 = vmatprep.subr.mxu0 0.0
        %5188 = vmatpush1.msra.mxu0 %v5165
        %5189 = vmatprep.subr.mxu0 0.0
        %5190 = vmatpush1.msra.mxu0 0.0
        %5191 = vmatprep.subr.mxu0 0.0
        %5192 = vmatpush1.msra.mxu0 0.0
        %5193 = vmatprep.subr.mxu0 0.0
        %5194 = vmatpush1.msra.mxu0 0.0
        %5195 = vmatprep.subr.mxu0 0.0
        %5196 = vmatpush1.msra.mxu0 0.0
        %5197 = vmatprep.subr.mxu0 0.0
        %5198 = vmatpush1.msra.mxu0 0.0
        %5199 = vmatprep.subr.mxu0 0.0
        %5200 = vmatpush1.msra.mxu0 0.0
        %5201 = vmatprep.subr.mxu0 0.0
        %5202 = vmatpush1.msra.mxu0 0.0
        %5203 = vmatprep.subr.mxu0 0.0
        %5204 = vmatpush1.msra.mxu0 0.0
        %5205 = vmatprep.subr.mxu0 0.0
        %5206 = vmatpush1.msra.mxu0 0.0
        %5207 = vmatprep.subr.mxu0 0.0
        %5208 = vmatpush1.msra.mxu0 0.0
        %5209 = vmatprep.subr.mxu0 0.0
        %5210 = vmatpush1.msra.mxu0 0.0
        %5211 = vmatprep.subr.mxu0 0.0
        %5212 = vmatpush1.msra.mxu0 0.0
        %5213 = vmatprep.subr.mxu0 0.0
        %5214 = vmatpush1.msra.mxu0 0.0
        %5215 = vmatprep.subr.mxu0 0.0
        %5216 = vmatpush1.msra.mxu0 0.0
        %5217 = vmatprep.subr.mxu0 0.0
        %5218 = vmatpush1.msra.mxu0 0.0
        %5219 = vmatprep.subr.mxu0 0.0
        %5220 = vmatpush1.msra.mxu0 0.0
        %5221 = vmatprep.subr.mxu0 0.0
        %5222 = vmatpush1.msra.mxu0 0.0
        %5223 = vmatprep.subr.mxu0 0.0
        %5224 = vmatpush1.msra.mxu0 0.0
        %5225 = vmatprep.subr.mxu0 0.0
        %5226 = vmatpush1.msra.mxu0 0.0
        %5227 = vmatprep.subr.mxu0 0.0
        %5228 = vmatpush1.msra.mxu0 0.0
        %5229 = vmatprep.subr.mxu0 0.0
        %5230 = vmatpush1.msra.mxu0 0.0
        %5231 = vmatprep.subr.mxu0 0.0
        %5232 = vmatpush1.msra.mxu0 0.0
        %5233 = vmatprep.mubr.f32.mxu0 0.0
        %5234 = vmatmul.mubr.f32.gmra.mrb[0].mxu0 %v5167
        %v5235 = vpop.f32.mrb[0].mxu0
        %v5236 = vadd.f32 0.0, %v5235
        %v5237 = vpop.f32.mrb[0].mxu0
        %5238 = vdwg.mxu0
        %v5239 = vadd.f32 %v5154, %v5236
        %s5240 = scalar_lea.vmem %s5, 320
        %v5241 = vld [vmem:[%s5240] sm:$0xff]
        %v5242 = vld [vmem:[%s5240 + $0x8] sm:$0xff]
        %v5243 = vld [vmem:[%s5240 + $0x10] sm:$0xff]
        %v5244 = vld [vmem:[%s5240 + $0x18] sm:$0xff]
        %v5245 = vld [vmem:[%s5240 + $0x20] sm:$0xff]
        %v5246 = vld [vmem:[%s5240 + $0x28] sm:$0xff]
        %v5247 = vld [vmem:[%s5240 + $0x30] sm:$0xff]
        %v5248 = vld [vmem:[%s5240 + $0x38] sm:$0xff]
        %v5249 = vld [vmem:[%s5240 + $0x40] sm:$0xff]
        %v5250 = vld [vmem:[%s5240 + $0x48] sm:$0xff]
        %v5251 = vrot.slane %v4901, 4
        %v5252 = vsel %vm4925, %v5251, 0
        %5254 = vmatprep.subr.mxu0 0.0
        %5255 = vmatpush1.msra.mxu0 %v5241
        %5256 = vmatprep.subr.mxu0 0.0
        %5257 = vmatpush1.msra.mxu0 %v5242
        %5258 = vmatprep.subr.mxu0 0.0
        %5259 = vmatpush1.msra.mxu0 %v5243
        %5260 = vmatprep.subr.mxu0 0.0
        %5261 = vmatpush1.msra.mxu0 %v5244
        %5262 = vmatprep.subr.mxu0 0.0
        %5263 = vmatpush1.msra.mxu0 %v5245
        %5264 = vmatprep.subr.mxu0 0.0
        %5265 = vmatpush1.msra.mxu0 %v5246
        %5266 = vmatprep.subr.mxu0 0.0
        %5267 = vmatpush1.msra.mxu0 %v5247
        %5268 = vmatprep.subr.mxu0 0.0
        %5269 = vmatpush1.msra.mxu0 %v5248
        %5270 = vmatprep.subr.mxu0 0.0
        %5271 = vmatpush1.msra.mxu0 %v5249
        %5272 = vmatprep.subr.mxu0 0.0
        %5273 = vmatpush1.msra.mxu0 %v5250
        %5274 = vmatprep.subr.mxu0 0.0
        %5275 = vmatpush1.msra.mxu0 0.0
        %5276 = vmatprep.subr.mxu0 0.0
        %5277 = vmatpush1.msra.mxu0 0.0
        %5278 = vmatprep.subr.mxu0 0.0
        %5279 = vmatpush1.msra.mxu0 0.0
        %5280 = vmatprep.subr.mxu0 0.0
        %5281 = vmatpush1.msra.mxu0 0.0
        %5282 = vmatprep.subr.mxu0 0.0
        %5283 = vmatpush1.msra.mxu0 0.0
        %5284 = vmatprep.subr.mxu0 0.0
        %5285 = vmatpush1.msra.mxu0 0.0
        %5286 = vmatprep.subr.mxu0 0.0
        %5287 = vmatpush1.msra.mxu0 0.0
        %5288 = vmatprep.subr.mxu0 0.0
        %5289 = vmatpush1.msra.mxu0 0.0
        %5290 = vmatprep.subr.mxu0 0.0
        %5291 = vmatpush1.msra.mxu0 0.0
        %5292 = vmatprep.subr.mxu0 0.0
        %5293 = vmatpush1.msra.mxu0 0.0
        %5294 = vmatprep.subr.mxu0 0.0
        %5295 = vmatpush1.msra.mxu0 0.0
        %5296 = vmatprep.subr.mxu0 0.0
        %5297 = vmatpush1.msra.mxu0 0.0
        %5298 = vmatprep.subr.mxu0 0.0
        %5299 = vmatpush1.msra.mxu0 0.0
        %5300 = vmatprep.subr.mxu0 0.0
        %5301 = vmatpush1.msra.mxu0 0.0
        %5302 = vmatprep.subr.mxu0 0.0
        %5303 = vmatpush1.msra.mxu0 0.0
        %5304 = vmatprep.subr.mxu0 0.0
        %5305 = vmatpush1.msra.mxu0 0.0
        %5306 = vmatprep.subr.mxu0 0.0
        %5307 = vmatpush1.msra.mxu0 0.0
        %5308 = vmatprep.subr.mxu0 0.0
        %5309 = vmatpush1.msra.mxu0 0.0
        %5310 = vmatprep.subr.mxu0 0.0
        %5311 = vmatpush1.msra.mxu0 0.0
        %5312 = vmatprep.subr.mxu0 0.0
        %5313 = vmatpush1.msra.mxu0 0.0
        %5314 = vmatprep.subr.mxu0 0.0
        %5315 = vmatpush1.msra.mxu0 0.0
        %5316 = vmatprep.subr.mxu0 0.0
        %5317 = vmatpush1.msra.mxu0 0.0
        %5318 = vmatprep.mubr.f32.mxu0 0.0
        %5319 = vmatmul.mubr.f32.gmra.mrb[0].mxu0 %v5252
        %v5320 = vpop.f32.mrb[0].mxu0
        %v5321 = vadd.f32 0.0, %v5320
        %v5322 = vpop.f32.mrb[0].mxu0
        %5323 = vdwg.mxu0
        %v5324 = vadd.f32 %v5239, %v5321
        %v5325 = vld [vmem:[%s6] sm:$0x1]
        %v5326 = vadd.f32 %v5324, %v5325
        %v5327 = vmax.f32 %v5326, 0.0
        %v5328 = vld [vmem:[%s7] sm:$0xff]
        %v5329 = vld [vmem:[%s7 + $0x8] sm:$0xff]
        %v5330 = vld [vmem:[%s7 + $0x10] sm:$0xff]
        %v5331 = vld [vmem:[%s7 + $0x18] sm:$0xff]
        %v5332 = vld [vmem:[%s7 + $0x20] sm:$0xff]
        %v5333 = vld [vmem:[%s7 + $0x28] sm:$0xff]
        %v5334 = vld [vmem:[%s7 + $0x30] sm:$0xff]
        %v5335 = vld [vmem:[%s7 + $0x38] sm:$0xff]
        %v5336 = vld [vmem:[%s7 + $0x40] sm:$0xff]
        %v5337 = vld [vmem:[%s7 + $0x48] sm:$0xff]
        %v5338 = vld [vmem:[%s7 + $0x50] sm:$0xff]
        %v5339 = vld [vmem:[%s7 + $0x58] sm:$0xff]
        %v5340 = vld [vmem:[%s7 + $0x60] sm:$0xff]
        %v5341 = vld [vmem:[%s7 + $0x68] sm:$0xff]
        %v5342 = vld [vmem:[%s7 + $0x70] sm:$0xff]
        %v5343 = vld [vmem:[%s7 + $0x78] sm:$0xff]
        %v5344 = vld [vmem:[%s8] sm:$0x1]
        %5345 = vmatprep.subr.mxu0 0.0
        %5346 = vmatpush1.msra.mxu0 %v5328
        %5347 = vmatprep.subr.mxu0 0.0
        %5348 = vmatpush1.msra.mxu0 %v5329
        %5349 = vmatprep.subr.mxu0 0.0
        %5350 = vmatpush1.msra.mxu0 %v5330
        %5351 = vmatprep.subr.mxu0 0.0
        %5352 = vmatpush1.msra.mxu0 %v5331
        %5353 = vmatprep.subr.mxu0 0.0
        %5354 = vmatpush1.msra.mxu0 %v5332
        %5355 = vmatprep.subr.mxu0 0.0
        %5356 = vmatpush1.msra.mxu0 %v5333
        %5357 = vmatprep.subr.mxu0 0.0
        %5358 = vmatpush1.msra.mxu0 %v5334
        %5359 = vmatprep.subr.mxu0 0.0
        %5360 = vmatpush1.msra.mxu0 %v5335
        %5361 = vmatprep.subr.mxu0 0.0
        %5362 = vmatpush1.msra.mxu0 %v5336
        %5363 = vmatprep.subr.mxu0 0.0
        %5364 = vmatpush1.msra.mxu0 %v5337
        %5365 = vmatprep.subr.mxu0 0.0
        %5366 = vmatpush1.msra.mxu0 %v5338
        %5367 = vmatprep.subr.mxu0 0.0
        %5368 = vmatpush1.msra.mxu0 %v5339
        %5369 = vmatprep.subr.mxu0 0.0
        %5370 = vmatpush1.msra.mxu0 %v5340
        %5371 = vmatprep.subr.mxu0 0.0
        %5372 = vmatpush1.msra.mxu0 %v5341
        %5373 = vmatprep.subr.mxu0 0.0
        %5374 = vmatpush1.msra.mxu0 %v5342
        %5375 = vmatprep.subr.mxu0 0.0
        %5376 = vmatpush1.msra.mxu0 %v5343
        %5377 = vmatprep.subr.mxu0 0.0
        %5378 = vmatpush1.msra.mxu0 0.0
        %5379 = vmatprep.subr.mxu0 0.0
        %5380 = vmatpush1.msra.mxu0 0.0
        %5381 = vmatprep.subr.mxu0 0.0
        %5382 = vmatpush1.msra.mxu0 0.0
        %5383 = vmatprep.subr.mxu0 0.0
        %5384 = vmatpush1.msra.mxu0 0.0
        %5385 = vmatprep.subr.mxu0 0.0
        %5386 = vmatpush1.msra.mxu0 0.0
        %5387 = vmatprep.subr.mxu0 0.0
        %5388 = vmatpush1.msra.mxu0 0.0
        %5389 = vmatprep.subr.mxu0 0.0
        %5390 = vmatpush1.msra.mxu0 0.0
        %5391 = vmatprep.subr.mxu0 0.0
        %5392 = vmatpush1.msra.mxu0 0.0
        %5393 = vmatprep.subr.mxu0 0.0
        %5394 = vmatpush1.msra.mxu0 0.0
        %5395 = vmatprep.subr.mxu0 0.0
        %5396 = vmatpush1.msra.mxu0 0.0
        %5397 = vmatprep.subr.mxu0 0.0
        %5398 = vmatpush1.msra.mxu0 0.0
        %5399 = vmatprep.subr.mxu0 0.0
        %5400 = vmatpush1.msra.mxu0 0.0
        %5401 = vmatprep.subr.mxu0 0.0
        %5402 = vmatpush1.msra.mxu0 0.0
        %5403 = vmatprep.subr.mxu0 0.0
        %5404 = vmatpush1.msra.mxu0 0.0
        %5405 = vmatprep.subr.mxu0 0.0
        %5406 = vmatpush1.msra.mxu0 0.0
        %5407 = vmatprep.subr.mxu0 0.0
        %5408 = vmatpush1.msra.mxu0 0.0
        %5409 = vmatprep.mubr.f32.mxu0 0.0
        %5410 = vmatmul.mubr.f32.gmra.mrb[0].mxu0 %v5327
        %v5411 = vpop.f32.mrb[0].mxu0
        %v5412 = vadd.f32 %v5344, %v5411
        %v5413 = vpop.f32.mrb[0].mxu0
        %5414 = vdwg.mxu0
        %v5415 = vmax.f32 %v5412, 0.0
        %v5416 = vld [vmem:[%s9] sm:$0xff]
        %v5417 = vld [vmem:[%s9 + $0x8] sm:$0xff]
        %v5418 = vld [vmem:[%s9 + $0x10] sm:$0xff]
        %v5419 = vld [vmem:[%s9 + $0x18] sm:$0xff]
        %v5420 = vld [vmem:[%s9 + $0x20] sm:$0xff]
        %v5421 = vld [vmem:[%s9 + $0x28] sm:$0xff]
        %v5422 = vld [vmem:[%s9 + $0x30] sm:$0xff]
        %v5423 = vld [vmem:[%s9 + $0x38] sm:$0xff]
        %v5424 = vld [vmem:[%s9 + $0x40] sm:$0xff]
        %v5425 = vld [vmem:[%s9 + $0x48] sm:$0xff]
        %v5426 = vld [vmem:[%s9 + $0x50] sm:$0xff]
        %v5427 = vld [vmem:[%s9 + $0x58] sm:$0xff]
        %v5428 = vld [vmem:[%s9 + $0x60] sm:$0xff]
        %v5429 = vld [vmem:[%s9 + $0x68] sm:$0xff]
        %v5430 = vld [vmem:[%s9 + $0x70] sm:$0xff]
        %v5431 = vld [vmem:[%s9 + $0x78] sm:$0xff]
        %v5432 = vld [vmem:[%s10] sm:$0x1]
        %5433 = vmatprep.subr.mxu0 0.0
        %5434 = vmatpush1.msra.mxu0 %v5416
        %5435 = vmatprep.subr.mxu0 0.0
        %5436 = vmatpush1.msra.mxu0 %v5417
        %5437 = vmatprep.subr.mxu0 0.0
        %5438 = vmatpush1.msra.mxu0 %v5418
        %5439 = vmatprep.subr.mxu0 0.0
        %5440 = vmatpush1.msra.mxu0 %v5419
        %5441 = vmatprep.subr.mxu0 0.0
        %5442 = vmatpush1.msra.mxu0 %v5420
        %5443 = vmatprep.subr.mxu0 0.0
        %5444 = vmatpush1.msra.mxu0 %v5421
        %5445 = vmatprep.subr.mxu0 0.0
        %5446 = vmatpush1.msra.mxu0 %v5422
        %5447 = vmatprep.subr.mxu0 0.0
        %5448 = vmatpush1.msra.mxu0 %v5423
        %5449 = vmatprep.subr.mxu0 0.0
        %5450 = vmatpush1.msra.mxu0 %v5424
        %5451 = vmatprep.subr.mxu0 0.0
        %5452 = vmatpush1.msra.mxu0 %v5425
        %5453 = vmatprep.subr.mxu0 0.0
        %5454 = vmatpush1.msra.mxu0 %v5426
        %5455 = vmatprep.subr.mxu0 0.0
        %5456 = vmatpush1.msra.mxu0 %v5427
        %5457 = vmatprep.subr.mxu0 0.0
        %5458 = vmatpush1.msra.mxu0 %v5428
        %5459 = vmatprep.subr.mxu0 0.0
        %5460 = vmatpush1.msra.mxu0 %v5429
        %5461 = vmatprep.subr.mxu0 0.0
        %5462 = vmatpush1.msra.mxu0 %v5430
        %5463 = vmatprep.subr.mxu0 0.0
        %5464 = vmatpush1.msra.mxu0 %v5431
        %5465 = vmatprep.subr.mxu0 0.0
        %5466 = vmatpush1.msra.mxu0 0.0
        %5467 = vmatprep.subr.mxu0 0.0
        %5468 = vmatpush1.msra.mxu0 0.0
        %5469 = vmatprep.subr.mxu0 0.0
        %5470 = vmatpush1.msra.mxu0 0.0
        %5471 = vmatprep.subr.mxu0 0.0
        %5472 = vmatpush1.msra.mxu0 0.0
        %5473 = vmatprep.subr.mxu0 0.0
        %5474 = vmatpush1.msra.mxu0 0.0
        %5475 = vmatprep.subr.mxu0 0.0
        %5476 = vmatpush1.msra.mxu0 0.0
        %5477 = vmatprep.subr.mxu0 0.0
        %5478 = vmatpush1.msra.mxu0 0.0
        %5479 = vmatprep.subr.mxu0 0.0
        %5480 = vmatpush1.msra.mxu0 0.0
        %5481 = vmatprep.subr.mxu0 0.0
        %5482 = vmatpush1.msra.mxu0 0.0
        %5483 = vmatprep.subr.mxu0 0.0
        %5484 = vmatpush1.msra.mxu0 0.0
        %5485 = vmatprep.subr.mxu0 0.0
        %5486 = vmatpush1.msra.mxu0 0.0
        %5487 = vmatprep.subr.mxu0 0.0
        %5488 = vmatpush1.msra.mxu0 0.0
        %5489 = vmatprep.subr.mxu0 0.0
        %5490 = vmatpush1.msra.mxu0 0.0
        %5491 = vmatprep.subr.mxu0 0.0
        %5492 = vmatpush1.msra.mxu0 0.0
        %5493 = vmatprep.subr.mxu0 0.0
        %5494 = vmatpush1.msra.mxu0 0.0
        %5495 = vmatprep.subr.mxu0 0.0
        %5496 = vmatpush1.msra.mxu0 0.0
        %5497 = vmatprep.mubr.f32.mxu0 0.0
        %5498 = vmatmul.mubr.f32.gmra.mrb[0].mxu0 %v5415
        %v5499 = vpop.f32.mrb[0].mxu0
        %v5500 = vadd.f32 %v5432, %v5499
        %v5501 = vpop.f32.mrb[0].mxu0
        %5502 = vdwg.mxu0
        %5503 = vst [vmem:[%s378] sm:$0x1] %v5500
        %s5504 = sand.u32 %s269, 1
        %s5505 = scalar_lea.sflag [#allocation3], %s5504
        %s5506 = sand.u32 %s269, 1
        %s5507 = scalar_lea.vmem [#allocation2], %s5506
        // Predicated region
        $region65: #{lenet_forward.1} parent=63 // pred_check
          %p5508 = pneg %p279
        $region66: #{lenet_forward.1} parent=63 // pred_check_branch
          %5510 = sbr.rel (%p5508) target = $region68
        $region67: #{lenet_forward.1} parent=63 // pred_region
          %s5512 = ssub.s32 16, 16
          %5513 = vsyncadd %s5505, %s5512
          %s5514 = smul.addr %s25, 16
          %s5515 = scalar_lea.hbm %s11, %s5514
          %s5517 = sshll.u32 %s5507, 4
          %s5518 = int_to_ptr.vmem [resolvable:$true] %s5517
          %5520 = dma.vmem_to_hbm [thread:$0]  %s5518, 16, %s5515, %s5505
        $region68: #{lenet_forward.1} parent=63 // pred_fallthru
          _
      $region64: #{lenet_forward.1} parent=5 // pred_fallthru
        _
      %p5521 = scmp.le.s32.totalorder 2, %s20
      // Predicated region
      $region69: #{lenet_forward.1} parent=5 // pred_check
        %p5522 = pneg %p5521
      $region70: #{lenet_forward.1} parent=5 // pred_check_branch
        %5524 = sbr.rel (%p5522) target = $region72
      $region71: #{lenet_forward.1} parent=5 // pred_region
        %s5525 = ssub.s32 %s20, 2
        // Predicated region
        $region73: #{lenet_forward.1} parent=71 // pred_check
          %p5526 = pneg %p285
        $region74: #{lenet_forward.1} parent=71 // pred_check_branch
          %5528 = sbr.rel (%p5526) target = $region76
        $region75: #{lenet_forward.1} parent=71 // pred_region
          %s5529 = sand.u32 %s270, 1
          %s5530 = scalar_lea.sflag [#allocation3], %s5529
          %s5531 = sand.u32 %s270, 1
          %s5532 = scalar_lea.vmem [#allocation2], %s5531
          %5533 = dma.done %s5530, 16
        $region76: #{lenet_forward.1} parent=71 // pred_fallthru
          _
      $region72: #{lenet_forward.1} parent=5 // pred_fallthru
        _
    $region6: #{lenet_forward.1} parent=1 // loop_footer
      %s24 = sadd.s32 1, %s20
    $region7: #{lenet_forward.1} parent=1 // loop_footer_branch
      %19 = sbr.rel target = $region3
    $region8: #{lenet_forward.1} parent=1 // loop_exit
      _
    %5534 = vsyncpa [#allocation3], 1
    %s5535 = scalar_lea.sflag [#allocation3], 1
    %5536 = vsyncpa %s5535, 1

</llo_original>
